<compile_context>
chip_gen: v7x
topology: tpu7x:2x2x1
jax: 0.10.0
libtpu: 0.0.40
codegen_flags: <defaults>
</compile_context>

<pallas_src>
import numpy as np

import jax
import jax.numpy as jnp
from jax.experimental import pallas as pl
from jax.experimental.pallas import tpu as pltpu

MS_WEIGHTS_DEFAULT = (0.0448, 0.2856, 0.3001, 0.2363, 0.1333)


# ----------------------------- parameter setup (plain numpy, trace-time) -----------

def _round_up(x: int, m: int) -> int:
    return ((x + m - 1) // m) * m


def _gauss_1d(size: int, sigma: float) -> np.ndarray:
    """Same as torch _fspecial_gauss_1d, flattened to shape (size,)."""
    coords = np.arange(size, dtype=np.float32) - (size // 2)
    g = np.exp(-(coords ** 2) / (2.0 * sigma ** 2))
    return (g / g.sum()).astype(np.float32)


def _band(n_out: int, n_in: int, g: np.ndarray) -> np.ndarray:
    """Band matrix M with M[i, i+t] = g[t]; (M @ x)[i] = sum_t g[t]*x[i+t] (valid conv)."""
    m = np.zeros((n_out, n_in), dtype=np.float32)
    for t, gt in enumerate(g):
        m[np.arange(n_out), np.arange(n_out) + t] = gt
    return m


def _pool_matrix(n: int) -> np.ndarray:
    """Separable factor of F.avg_pool2d(kernel=2, stride=2, padding=n%2, count_include_pad=True)."""
    pad = n % 2
    n_out = (n + 2 * pad - 2) // 2 + 1
    m = np.zeros((n_out, n), dtype=np.float32)
    for i in range(n_out):
        for j in (2 * i - pad, 2 * i + 1 - pad):
            if 0 <= j < n:
                m[i, j] = 0.5
    return m


def _build_scale_plan(H: int, W: int, levels: int, win: int, g: np.ndarray):
    """Blur band-matrices, pool matrices and geometry for every scale."""
    hms, wms, phs, pws, meta = [], [], [], [], []
    h, w = H, W
    for s in range(levels):
        # torch _gaussian_filter only filters dims with size >= window size.
        if h >= win:
            hout = h - win + 1
            hm = _band(hout, h, g)
        else:
            hout, hm = h, np.eye(h, dtype=np.float32)
        hop = _round_up(hout, 8)                       # 8-aligned for sublane concat
        hm = np.pad(hm, ((0, hop - hout), (0, 0)))     # zero rows -> exact zeros
        if w >= win:
            wout = w - win + 1
            wm = np.ascontiguousarray(_band(wout, w, g).T)
        else:
            wout, wm = w, np.eye(w, dtype=np.float32)
        hms.append(hm)
        wms.append(wm)
        meta.append((hout, wout, hop))
        if s < levels - 1:
            ph = _pool_matrix(h)                       # (h_next, h)
            pw = np.ascontiguousarray(_pool_matrix(w).T)  # (w, w_next)
            phs.append(ph)
            pws.append(pw)
            h, w = ph.shape[0], pw.shape[1]
    return hms, wms, phs, pws, meta


def _pick_tb(bc: int, h: int, w: int, budget_bytes: int = 2 << 20) -> int:
    """Planes per grid step: must divide bc (no dead work); prefer >= 2 grid steps
    so both v7x TensorCores get a block; keep the input block modest for VMEM."""
    divs = [d for d in range(1, bc + 1) if bc % d == 0]
    fit = [d for d in divs if d * h * w * 4 <= budget_bytes and d <= 128]
    if not fit:
        fit = [1]
    pref = [d for d in fit if bc // d >= 2]
    return max(pref) if pref else max(fit)


# ----------------------------- Pallas kernel ---------------------------------------

def _make_msssim_kernel(tb: int, levels: int, c1: float, c2: float,
                        scale_meta, stat_rows: int):
    """Fused kernel: all `levels` scales for a block of `tb` channel-planes.

    Output: one (stat_rows, 128) f32 stats block per grid step with
    stats[2*s, b] = ssim(scale s, plane b), stats[2*s+1, b] = cs(scale s, plane b).
    """
    c1 = float(c1)
    c2 = float(c2)

    def kernel(*refs):
        img1_ref, img2_ref = refs[0], refs[1]
        off = 2
        hm_refs = refs[off:off + levels]; off += levels
        wm_refs = refs[off:off + levels]; off += levels
        ph_refs = refs[off:off + levels - 1]; off += levels - 1
        pw_refs = refs[off:off + levels - 1]; off += levels - 1
        stats_ref = refs[off]

        row = jax.lax.broadcasted_iota(jnp.int32, (stat_rows, 128), 0)
        col = jax.lax.broadcasted_iota(jnp.int32, (stat_rows, 128), 1)

        def plane_body(b, stats):
            x1 = img1_ref[b]                      # (H, W) of the current scale
            x2 = img2_ref[b]
            for s in range(levels):               # static unroll over scales
                hout, wout, hop = scale_meta[s]
                hm = hm_refs[s][...]              # (hop, Hs): valid conv over H, pad rows 0
                wm = wm_refs[s][...]              # (Ws, wout): valid conv over W

                # Five blur operands; H pass per operand, then ONE batched W-pass
                # matmul with the intermediates stacked along sublanes (hop % 8 == 0,
                # so the concat and the slices below stay sublane-aligned).
                ops = (x1, x2, x1 * x1, x2 * x2, x1 * x2)
                stacked = jnp.concatenate(
                    [jnp.dot(hm, op, preferred_element_type=jnp.float32) for op in ops],
                    axis=0)                                          # (5*hop, Ws)
                blur = jnp.dot(stacked, wm,
                               preferred_element_type=jnp.float32)   # (5*hop, wout)

                mu1 = blur[0 * hop:0 * hop + hout, :]
                mu2 = blur[1 * hop:1 * hop + hout, :]
                e11 = blur[2 * hop:2 * hop + hout, :]
                e22 = blur[3 * hop:3 * hop + hout, :]
                e12 = blur[4 * hop:4 * hop + hout, :]

                mu11 = mu1 * mu1
                mu22 = mu2 * mu2
                mu12 = mu1 * mu2
                a1 = 2.0 * mu12 + c1                     # 2*mu1*mu2 + C1
                b1 = mu11 + mu22 + c1                    # mu1^2 + mu2^2 + C1
                a2 = 2.0 * (e12 - mu12) + c2             # 2*sigma12 + C2
                b2 = (e11 - mu11) + (e22 - mu22) + c2    # sigma1^2 + sigma2^2 + C2
                cs_map = a2 / b2
                ssim_map = (a1 / b1) * cs_map

                inv_n = 1.0 / float(hout * wout)
                ssim_val = jnp.sum(ssim_map) * inv_n
                cs_val = jnp.sum(cs_map) * inv_n

                hit = col == b
                stats = jnp.where((row == 2 * s) & hit, ssim_val, stats)
                stats = jnp.where((row == 2 * s + 1) & hit, cs_val, stats)

                if s < levels - 1:
                    # Fused 2x2 average pool feeding the next scale (stays in VMEM).
                    ph = ph_refs[s][...]         # (H_{s+1}, Hs)
                    pw = pw_refs[s][...]         # (Ws, W_{s+1})
                    x1 = jnp.dot(jnp.dot(ph, x1, preferred_element_type=jnp.float32),
                                 pw, preferred_element_type=jnp.float32)
                    x2 = jnp.dot(jnp.dot(ph, x2, preferred_element_type=jnp.float32),
                                 pw, preferred_element_type=jnp.float32)
            return stats

        stats = jax.lax.fori_loop(0, tb, plane_body,
                                  jnp.zeros((stat_rows, 128), jnp.float32))
        stats_ref[0] = stats

    return kernel


# ----------------------------- module wrapper (single jit, single pallas_call) -----

class MSSSIMPallas:
    """JAX/Pallas equivalent of the PyTorch MS_SSIM module (2D images, NCHW)."""

    def __init__(self, data_range=255.0, size_average=True, window_size=11,
                 window_sigma=1.5, channel=3, spatial_dims=2, weights=None,
                 k=(0.01, 0.03)):
        if spatial_dims != 2:
            raise NotImplementedError("only spatial_dims=2 is implemented")  # TODO(synk): 3D
        if window_size % 2 != 1:
            raise ValueError(f"window_size must be odd, got {window_size}")
        self.data_range = float(data_range)
        self.size_average = size_average
        self.window_size = window_size
        self.window = _gauss_1d(window_size, window_sigma)   # same Gaussian per channel
        self.weights = np.asarray(
            weights if weights is not None else MS_WEIGHTS_DEFAULT, dtype=np.float32)
        self.k = (float(k[0]), float(k[1]))
        self.channel = channel
        self._forward = jax.jit(self._forward_impl)

    def __call__(self, image1, image2):
        if image1.shape != image2.shape:
            raise ValueError("image1 and image2 must have the same shape")
        return self._forward(image1, image2)

    def _forward_impl(self, image1, image2):
        B, C, H, W = image1.shape
        win = self.window_size
        if min(H, W) <= (win - 1) * 2 ** 4:
            raise AssertionError(
                "images must be larger than (window_size-1)*16 for 4 downsamplings")

        levels = int(self.weights.shape[0])
        c1 = (self.k[0] * self.data_range) ** 2
        c2 = (self.k[1] * self.data_range) ** 2

        bc = B * C
        x1 = image1.reshape(bc, H, W).astype(jnp.float32)
        x2 = image2.reshape(bc, H, W).astype(jnp.float32)

        tb = _pick_tb(bc, H, W)
        nblk = bc // tb                                   # tb divides bc exactly

        hms, wms, phs, pws, meta = _build_scale_plan(H, W, levels, win, self.window)
        mats = hms + wms + phs + pws
        mat_bytes = int(sum(m.size for m in mats)) * 4

        stat_rows = _round_up(2 * levels, 8)
        hout0, wout0, hop0 = meta[0]
        # Rough working-set estimate (per plane, dominated by the largest scale).
        work_bytes = 4 * (3 * H * W + 10 * hop0 * W + 19 * hop0 * _round_up(wout0, 128))
        vmem_est = (2 * 2 * 2 * tb * H * W * 4     # two image inputs, double-buffered
                    + 2 * mat_bytes                # constant matrices
                    + work_bytes + (6 << 20))      # in-kernel temporaries + slack
        vmem_limit = int(min(max(vmem_est, 32 << 20), 64 << 20))   # v7x: 64 MiB/TC

        kernel = _make_msssim_kernel(tb, levels, c1, c2, meta, stat_rows)

        in_specs = ([pl.BlockSpec((tb, H, W), lambda i: (i, 0, 0)),
                     pl.BlockSpec((tb, H, W), lambda i: (i, 0, 0))] +
                    [pl.BlockSpec(m.shape, lambda i: (0, 0)) for m in mats])
        out_spec = pl.BlockSpec((1, stat_rows, 128), lambda i: (i, 0, 0))

        stats = pl.pallas_call(
            kernel,
            out_shape=jax.ShapeDtypeStruct((nblk, stat_rows, 128), jnp.float32),
            grid_spec=pltpu.PrefetchScalarGridSpec(
                num_scalar_prefetch=0,
                grid=(nblk,),
                in_specs=in_specs,
                out_specs=out_spec,
            ),
            compiler_params=pltpu.CompilerParams(
                dimension_semantics=("parallel",),   # independent plane-blocks
                vmem_limit_bytes=vmem_limit,
            ),
        )(x1, x2, *[jnp.asarray(m) for m in mats])

        # stats: (nblk, stat_rows, 128) -> per-plane (bc, 2*levels) dense slab.
        vals = stats[:, :2 * levels, :tb]                      # (nblk, 2L, tb)
        vals = jnp.transpose(vals, (0, 2, 1)).reshape(bc, 2 * levels)

        mcs = [jax.nn.relu(vals[:, 2 * s + 1].reshape(B, C)) for s in range(levels - 1)]
        ssim_last = jax.nn.relu(vals[:, 2 * (levels - 1)].reshape(B, C))
        mcs_and_ssim = jnp.stack(mcs + [ssim_last], axis=0)    # (levels, B, C)
        wts = jnp.asarray(self.weights).reshape(-1, 1, 1)
        ms_ssim_val = jnp.prod(mcs_and_ssim ** wts, axis=0)    # (B, C)
        return ms_ssim_val.mean() if self.size_average else ms_ssim_val.mean(axis=1)


# ----------------------------- demo -------------------------------------------------

if __name__ == "__main__":
    key = jax.random.PRNGKey(0)
    k1, k2 = jax.random.split(key)
    # MS-SSIM needs min(H, W) > (11-1)*16 = 160 for the 4 downsamplings.
    B, C, H, W = 2, 3, 192, 192
    image1 = jax.random.uniform(k1, (B, C, H, W), dtype=jnp.float32,
                                minval=0.0, maxval=255.0)
    image2 = jax.random.uniform(k2, (B, C, H, W), dtype=jnp.float32,
                                minval=0.0, maxval=255.0)

    metric = MSSSIMPallas(data_range=255.0, size_average=True, window_size=11,
                          window_sigma=1.5, channel=C, spatial_dims=2)

    val = jax.block_until_ready(metric(image1, image2))
    assert bool(jnp.isfinite(val)), "MS-SSIM produced a non-finite value"

    # Sanity check: MS-SSIM of an image with itself must be (numerically) 1.
    val_same = jax.block_until_ready(metric(image1, image1))
    assert abs(float(val_same) - 1.0) < 1e-3, f"self MS-SSIM = {float(val_same)}"

    print("KERNEL_OK")
</pallas_src>

<mosaic_0001>
module attributes {stable_mosaic.version = 11 : i64} {
  func.func @kernel(%arg0: i32, %arg1: memref<3x192x192xf32, #tpu.memory_space<vmem>>, %arg2: memref<3x192x192xf32, #tpu.memory_space<vmem>>, %arg3: memref<184x192xf32, #tpu.memory_space<vmem>>, %arg4: memref<88x96xf32, #tpu.memory_space<vmem>>, %arg5: memref<40x48xf32, #tpu.memory_space<vmem>>, %arg6: memref<16x24xf32, #tpu.memory_space<vmem>>, %arg7: memref<8x12xf32, #tpu.memory_space<vmem>>, %arg8: memref<192x182xf32, #tpu.memory_space<vmem>>, %arg9: memref<96x86xf32, #tpu.memory_space<vmem>>, %arg10: memref<48x38xf32, #tpu.memory_space<vmem>>, %arg11: memref<24x14xf32, #tpu.memory_space<vmem>>, %arg12: memref<12x2xf32, #tpu.memory_space<vmem>>, %arg13: memref<96x192xf32, #tpu.memory_space<vmem>>, %arg14: memref<48x96xf32, #tpu.memory_space<vmem>>, %arg15: memref<24x48xf32, #tpu.memory_space<vmem>>, %arg16: memref<12x24xf32, #tpu.memory_space<vmem>>, %arg17: memref<192x96xf32, #tpu.memory_space<vmem>>, %arg18: memref<96x48xf32, #tpu.memory_space<vmem>>, %arg19: memref<48x24xf32, #tpu.memory_space<vmem>>, %arg20: memref<24x12xf32, #tpu.memory_space<vmem>>, %arg21: memref<1x16x128xf32, #tpu.memory_space<vmem>>) attributes {dimension_semantics = [#tpu.dimension_semantics<parallel>], iteration_bounds = array<i64: 2>, scalar_prefetch = 0 : i64, scratch_operands = 0 : i64, tpu.core_type = #tpu.core_type<tc>, window_params = [{transform_indices = @transform_0, window_bounds = array<i64: 3, 192, 192>}, {transform_indices = @transform_1, window_bounds = array<i64: 3, 192, 192>}, {pipeline_mode = #tpu.pipeline_mode<synchronous>, transform_indices = @transform_2, window_bounds = array<i64: 184, 192>}, {pipeline_mode = #tpu.pipeline_mode<synchronous>, transform_indices = @transform_3, window_bounds = array<i64: 88, 96>}, {pipeline_mode = #tpu.pipeline_mode<synchronous>, transform_indices = @transform_4, window_bounds = array<i64: 40, 48>}, {pipeline_mode = #tpu.pipeline_mode<synchronous>, transform_indices = @transform_5, window_bounds = array<i64: 16, 24>}, {pipeline_mode = #tpu.pipeline_mode<synchronous>, transform_indices = @transform_6, window_bounds = array<i64: 8, 12>}, {pipeline_mode = #tpu.pipeline_mode<synchronous>, transform_indices = @transform_7, window_bounds = array<i64: 192, 182>}, {pipeline_mode = #tpu.pipeline_mode<synchronous>, transform_indices = @transform_8, window_bounds = array<i64: 96, 86>}, {pipeline_mode = #tpu.pipeline_mode<synchronous>, transform_indices = @transform_9, window_bounds = array<i64: 48, 38>}, {pipeline_mode = #tpu.pipeline_mode<synchronous>, transform_indices = @transform_10, window_bounds = array<i64: 24, 14>}, {pipeline_mode = #tpu.pipeline_mode<synchronous>, transform_indices = @transform_11, window_bounds = array<i64: 12, 2>}, {pipeline_mode = #tpu.pipeline_mode<synchronous>, transform_indices = @transform_12, window_bounds = array<i64: 96, 192>}, {pipeline_mode = #tpu.pipeline_mode<synchronous>, transform_indices = @transform_13, window_bounds = array<i64: 48, 96>}, {pipeline_mode = #tpu.pipeline_mode<synchronous>, transform_indices = @transform_14, window_bounds = array<i64: 24, 48>}, {pipeline_mode = #tpu.pipeline_mode<synchronous>, transform_indices = @transform_15, window_bounds = array<i64: 12, 24>}, {pipeline_mode = #tpu.pipeline_mode<synchronous>, transform_indices = @transform_16, window_bounds = array<i64: 192, 96>}, {pipeline_mode = #tpu.pipeline_mode<synchronous>, transform_indices = @transform_17, window_bounds = array<i64: 96, 48>}, {pipeline_mode = #tpu.pipeline_mode<synchronous>, transform_indices = @transform_18, window_bounds = array<i64: 48, 24>}, {pipeline_mode = #tpu.pipeline_mode<synchronous>, transform_indices = @transform_19, window_bounds = array<i64: 24, 12>}, {transform_indices = @transform_20, window_bounds = array<i64: 1, 16, 128>}]} {
    %0 = tpu.iota {dimensions = array<i32: 0>} : vector<16x128xi32>
    %1 = tpu.iota {dimensions = array<i32: 1>} : vector<16x128xi32>
    %cst = arith.constant 0.000000e+00 : f32
    %2 = vector.broadcast %cst : f32 to vector<16x128xf32>
    %c0_i32 = arith.constant 0 : i32
    %c3_i32 = arith.constant 3 : i32
    %3 = arith.addi %c0_i32, %c3_i32 : i32
    %c1_i32 = arith.constant 1 : i32
    %4 = scf.for %arg22 = %c0_i32 to %3 step %c1_i32 iter_args(%arg23 = %2) -> (vector<16x128xf32>)  : i32 {
      %8 = arith.index_cast %arg22 : i32 to index
      %c0_3 = arith.constant 0 : index
      %c0_4 = arith.constant 0 : index
      %9 = vector.load %arg1[%8, %c0_3, %c0_4] : memref<3x192x192xf32, #tpu.memory_space<vmem>>, vector<1x192x192xf32>
      %10 = vector.shape_cast %9 : vector<1x192x192xf32> to vector<192x192xf32>
      %11 = arith.index_cast %arg22 : i32 to index
      %c0_5 = arith.constant 0 : index
      %c0_6 = arith.constant 0 : index
      %12 = vector.load %arg2[%11, %c0_5, %c0_6] : memref<3x192x192xf32, #tpu.memory_space<vmem>>, vector<1x192x192xf32>
      %13 = vector.shape_cast %12 : vector<1x192x192xf32> to vector<192x192xf32>
      %c0_7 = arith.constant 0 : index
      %c0_8 = arith.constant 0 : index
      %14 = vector.load %arg3[%c0_7, %c0_8] : memref<184x192xf32, #tpu.memory_space<vmem>>, vector<184x192xf32>
      %c0_9 = arith.constant 0 : index
      %c0_10 = arith.constant 0 : index
      %15 = vector.load %arg8[%c0_9, %c0_10] : memref<192x182xf32, #tpu.memory_space<vmem>>, vector<192x182xf32>
      %16 = arith.mulf %10, %10 : vector<192x192xf32>
      %17 = arith.mulf %13, %13 : vector<192x192xf32>
      %18 = arith.mulf %10, %13 : vector<192x192xf32>
      %cst_11 = arith.constant dense<0.000000e+00> : vector<184x192xf32>
      %19 = tpu.matmul %14, %10, %cst_11 {dimension_numbers = #tpu.dot_dimension_numbers<[1], [0], [0], [1], [0, 0, 1, 1], [], []>} : vector<184x192xf32>, vector<192x192xf32>, vector<184x192xf32> -> vector<184x192xf32>
      %cst_12 = arith.constant dense<0.000000e+00> : vector<184x192xf32>
      %20 = tpu.matmul %14, %13, %cst_12 {dimension_numbers = #tpu.dot_dimension_numbers<[1], [0], [0], [1], [0, 0, 1, 1], [], []>} : vector<184x192xf32>, vector<192x192xf32>, vector<184x192xf32> -> vector<184x192xf32>
      %cst_13 = arith.constant dense<0.000000e+00> : vector<184x192xf32>
      %21 = tpu.matmul %14, %16, %cst_13 {dimension_numbers = #tpu.dot_dimension_numbers<[1], [0], [0], [1], [0, 0, 1, 1], [], []>} : vector<184x192xf32>, vector<192x192xf32>, vector<184x192xf32> -> vector<184x192xf32>
      %cst_14 = arith.constant dense<0.000000e+00> : vector<184x192xf32>
      %22 = tpu.matmul %14, %17, %cst_14 {dimension_numbers = #tpu.dot_dimension_numbers<[1], [0], [0], [1], [0, 0, 1, 1], [], []>} : vector<184x192xf32>, vector<192x192xf32>, vector<184x192xf32> -> vector<184x192xf32>
      %cst_15 = arith.constant dense<0.000000e+00> : vector<184x192xf32>
      %23 = tpu.matmul %14, %18, %cst_15 {dimension_numbers = #tpu.dot_dimension_numbers<[1], [0], [0], [1], [0, 0, 1, 1], [], []>} : vector<184x192xf32>, vector<192x192xf32>, vector<184x192xf32> -> vector<184x192xf32>
      %24 = tpu.concatenate %19, %20, %21, %22, %23 in 0 : vector<184x192xf32>, vector<184x192xf32>, vector<184x192xf32>, vector<184x192xf32>, vector<184x192xf32> -> vector<920x192xf32>
      %cst_16 = arith.constant dense<0.000000e+00> : vector<920x182xf32>
      %25 = tpu.matmul %24, %15, %cst_16 {dimension_numbers = #tpu.dot_dimension_numbers<[1], [0], [0], [1], [0, 0, 1, 1], [], []>} : vector<920x192xf32>, vector<192x182xf32>, vector<920x182xf32> -> vector<920x182xf32>
      %26 = vector.extract_strided_slice %25 {offsets = [0, 0], sizes = [182, 182], strides = [1, 1]} : vector<920x182xf32> to vector<182x182xf32>
      %27 = vector.extract_strided_slice %25 {offsets = [184, 0], sizes = [182, 182], strides = [1, 1]} : vector<920x182xf32> to vector<182x182xf32>
      %28 = vector.extract_strided_slice %25 {offsets = [368, 0], sizes = [182, 182], strides = [1, 1]} : vector<920x182xf32> to vector<182x182xf32>
      %29 = vector.extract_strided_slice %25 {offsets = [552, 0], sizes = [182, 182], strides = [1, 1]} : vector<920x182xf32> to vector<182x182xf32>
      %30 = vector.extract_strided_slice %25 {offsets = [736, 0], sizes = [182, 182], strides = [1, 1]} : vector<920x182xf32> to vector<182x182xf32>
      %31 = arith.mulf %26, %26 : vector<182x182xf32>
      %32 = arith.mulf %27, %27 : vector<182x182xf32>
      %33 = arith.mulf %26, %27 : vector<182x182xf32>
      %cst_17 = arith.constant 2.000000e+00 : f32
      %34 = vector.broadcast %cst_17 : f32 to vector<182x182xf32>
      %35 = arith.mulf %34, %33 : vector<182x182xf32>
      %cst_18 = arith.constant 6.502500e+00 : f32
      %36 = vector.broadcast %cst_18 : f32 to vector<182x182xf32>
      %37 = arith.addf %35, %36 : vector<182x182xf32>
      %38 = arith.addf %31, %32 : vector<182x182xf32>
      %cst_19 = arith.constant 6.502500e+00 : f32
      %39 = vector.broadcast %cst_19 : f32 to vector<182x182xf32>
      %40 = arith.addf %38, %39 : vector<182x182xf32>
      %41 = arith.subf %30, %33 : vector<182x182xf32>
      %cst_20 = arith.constant 2.000000e+00 : f32
      %42 = vector.broadcast %cst_20 : f32 to vector<182x182xf32>
      %43 = arith.mulf %42, %41 : vector<182x182xf32>
      %cst_21 = arith.constant 5.852250e+01 : f32
      %44 = vector.broadcast %cst_21 : f32 to vector<182x182xf32>
      %45 = arith.addf %43, %44 : vector<182x182xf32>
      %46 = arith.subf %28, %31 : vector<182x182xf32>
      %47 = arith.subf %29, %32 : vector<182x182xf32>
      %48 = arith.addf %46, %47 : vector<182x182xf32>
      %cst_22 = arith.constant 5.852250e+01 : f32
      %49 = vector.broadcast %cst_22 : f32 to vector<182x182xf32>
      %50 = arith.addf %48, %49 : vector<182x182xf32>
      %51 = arith.divf %45, %50 : vector<182x182xf32>
      %52 = arith.divf %37, %40 : vector<182x182xf32>
      %53 = arith.mulf %52, %51 : vector<182x182xf32>
      %54 = vector.shape_cast %53 : vector<182x182xf32> to vector<1x182x182xf32>
      %cst_23 = arith.constant dense<0.000000e+00> : vector<1xf32>
      %55 = vector.multi_reduction <add>, %54, %cst_23 [1, 2] : vector<1x182x182xf32> to vector<1xf32>
      %56 = vector.shape_cast %55 : vector<1xf32> to vector<1x1x1xf32>
      %57 = vector.extract %56[0, 0, 0] : f32 from vector<1x1x1xf32>
      %cst_24 = arith.constant 3.01895907E-5 : f32
      %58 = arith.mulf %57, %cst_24 : f32
      %59 = vector.shape_cast %51 : vector<182x182xf32> to vector<1x182x182xf32>
      %cst_25 = arith.constant dense<0.000000e+00> : vector<1xf32>
      %60 = vector.multi_reduction <add>, %59, %cst_25 [1, 2] : vector<1x182x182xf32> to vector<1xf32>
      %61 = vector.shape_cast %60 : vector<1xf32> to vector<1x1x1xf32>
      %62 = vector.extract %61[0, 0, 0] : f32 from vector<1x1x1xf32>
      %cst_26 = arith.constant 3.01895907E-5 : f32
      %63 = arith.mulf %62, %cst_26 : f32
      %64 = vector.broadcast %arg22 : i32 to vector<16x128xi32>
      %65 = arith.cmpi eq, %1, %64 : vector<16x128xi32>
      %c0_i32_27 = arith.constant 0 : i32
      %66 = vector.broadcast %c0_i32_27 : i32 to vector<16x128xi32>
      %67 = arith.cmpi eq, %0, %66 : vector<16x128xi32>
      %68 = arith.andi %67, %65 : vector<16x128xi1>
      %69 = vector.broadcast %58 : f32 to vector<16x128xf32>
      %70 = arith.select %68, %69, %arg23 : vector<16x128xi1>, vector<16x128xf32>
      %c1_i32_28 = arith.constant 1 : i32
      %71 = vector.broadcast %c1_i32_28 : i32 to vector<16x128xi32>
      %72 = arith.cmpi eq, %0, %71 : vector<16x128xi32>
      %73 = arith.andi %72, %65 : vector<16x128xi1>
      %74 = vector.broadcast %63 : f32 to vector<16x128xf32>
      %75 = arith.select %73, %74, %70 : vector<16x128xi1>, vector<16x128xf32>
      %c0_29 = arith.constant 0 : index
      %c0_30 = arith.constant 0 : index
      %76 = vector.load %arg13[%c0_29, %c0_30] : memref<96x192xf32, #tpu.memory_space<vmem>>, vector<96x192xf32>
      %c0_31 = arith.constant 0 : index
      %c0_32 = arith.constant 0 : index
      %77 = vector.load %arg17[%c0_31, %c0_32] : memref<192x96xf32, #tpu.memory_space<vmem>>, vector<192x96xf32>
      %cst_33 = arith.constant dense<0.000000e+00> : vector<96x192xf32>
      %78 = tpu.matmul %76, %10, %cst_33 {dimension_numbers = #tpu.dot_dimension_numbers<[1], [0], [0], [1], [0, 0, 1, 1], [], []>} : vector<96x192xf32>, vector<192x192xf32>, vector<96x192xf32> -> vector<96x192xf32>
      %cst_34 = arith.constant dense<0.000000e+00> : vector<96x96xf32>
      %79 = tpu.matmul %78, %77, %cst_34 {dimension_numbers = #tpu.dot_dimension_numbers<[1], [0], [0], [1], [0, 0, 1, 1], [], []>} : vector<96x192xf32>, vector<192x96xf32>, vector<96x96xf32> -> vector<96x96xf32>
      %cst_35 = arith.constant dense<0.000000e+00> : vector<96x192xf32>
      %80 = tpu.matmul %76, %13, %cst_35 {dimension_numbers = #tpu.dot_dimension_numbers<[1], [0], [0], [1], [0, 0, 1, 1], [], []>} : vector<96x192xf32>, vector<192x192xf32>, vector<96x192xf32> -> vector<96x192xf32>
      %cst_36 = arith.constant dense<0.000000e+00> : vector<96x96xf32>
      %81 = tpu.matmul %80, %77, %cst_36 {dimension_numbers = #tpu.dot_dimension_numbers<[1], [0], [0], [1], [0, 0, 1, 1], [], []>} : vector<96x192xf32>, vector<192x96xf32>, vector<96x96xf32> -> vector<96x96xf32>
      %c0_37 = arith.constant 0 : index
      %c0_38 = arith.constant 0 : index
      %82 = vector.load %arg4[%c0_37, %c0_38] : memref<88x96xf32, #tpu.memory_space<vmem>>, vector<88x96xf32>
      %c0_39 = arith.constant 0 : index
      %c0_40 = arith.constant 0 : index
      %83 = vector.load %arg9[%c0_39, %c0_40] : memref<96x86xf32, #tpu.memory_space<vmem>>, vector<96x86xf32>
      %84 = arith.mulf %79, %79 : vector<96x96xf32>
      %85 = arith.mulf %81, %81 : vector<96x96xf32>
      %86 = arith.mulf %79, %81 : vector<96x96xf32>
      %cst_41 = arith.constant dense<0.000000e+00> : vector<88x96xf32>
      %87 = tpu.matmul %82, %79, %cst_41 {dimension_numbers = #tpu.dot_dimension_numbers<[1], [0], [0], [1], [0, 0, 1, 1], [], []>} : vector<88x96xf32>, vector<96x96xf32>, vector<88x96xf32> -> vector<88x96xf32>
      %cst_42 = arith.constant dense<0.000000e+00> : vector<88x96xf32>
      %88 = tpu.matmul %82, %81, %cst_42 {dimension_numbers = #tpu.dot_dimension_numbers<[1], [0], [0], [1], [0, 0, 1, 1], [], []>} : vector<88x96xf32>, vector<96x96xf32>, vector<88x96xf32> -> vector<88x96xf32>
      %cst_43 = arith.constant dense<0.000000e+00> : vector<88x96xf32>
      %89 = tpu.matmul %82, %84, %cst_43 {dimension_numbers = #tpu.dot_dimension_numbers<[1], [0], [0], [1], [0, 0, 1, 1], [], []>} : vector<88x96xf32>, vector<96x96xf32>, vector<88x96xf32> -> vector<88x96xf32>
      %cst_44 = arith.constant dense<0.000000e+00> : vector<88x96xf32>
      %90 = tpu.matmul %82, %85, %cst_44 {dimension_numbers = #tpu.dot_dimension_numbers<[1], [0], [0], [1], [0, 0, 1, 1], [], []>} : vector<88x96xf32>, vector<96x96xf32>, vector<88x96xf32> -> vector<88x96xf32>
      %cst_45 = arith.constant dense<0.000000e+00> : vector<88x96xf32>
      %91 = tpu.matmul %82, %86, %cst_45 {dimension_numbers = #tpu.dot_dimension_numbers<[1], [0], [0], [1], [0, 0, 1, 1], [], []>} : vector<88x96xf32>, vector<96x96xf32>, vector<88x96xf32> -> vector<88x96xf32>
      %92 = tpu.concatenate %87, %88, %89, %90, %91 in 0 : vector<88x96xf32>, vector<88x96xf32>, vector<88x96xf32>, vector<88x96xf32>, vector<88x96xf32> -> vector<440x96xf32>
      %cst_46 = arith.constant dense<0.000000e+00> : vector<440x86xf32>
      %93 = tpu.matmul %92, %83, %cst_46 {dimension_numbers = #tpu.dot_dimension_numbers<[1], [0], [0], [1], [0, 0, 1, 1], [], []>} : vector<440x96xf32>, vector<96x86xf32>, vector<440x86xf32> -> vector<440x86xf32>
      %94 = vector.extract_strided_slice %93 {offsets = [0, 0], sizes = [86, 86], strides = [1, 1]} : vector<440x86xf32> to vector<86x86xf32>
      %95 = vector.extract_strided_slice %93 {offsets = [88, 0], sizes = [86, 86], strides = [1, 1]} : vector<440x86xf32> to vector<86x86xf32>
      %96 = vector.extract_strided_slice %93 {offsets = [176, 0], sizes = [86, 86], strides = [1, 1]} : vector<440x86xf32> to vector<86x86xf32>
      %97 = vector.extract_strided_slice %93 {offsets = [264, 0], sizes = [86, 86], strides = [1, 1]} : vector<440x86xf32> to vector<86x86xf32>
      %98 = vector.extract_strided_slice %93 {offsets = [352, 0], sizes = [86, 86], strides = [1, 1]} : vector<440x86xf32> to vector<86x86xf32>
      %99 = arith.mulf %94, %94 : vector<86x86xf32>
      %100 = arith.mulf %95, %95 : vector<86x86xf32>
      %101 = arith.mulf %94, %95 : vector<86x86xf32>
      %cst_47 = arith.constant 2.000000e+00 : f32
      %102 = vector.broadcast %cst_47 : f32 to vector<86x86xf32>
      %103 = arith.mulf %102, %101 : vector<86x86xf32>
      %cst_48 = arith.constant 6.502500e+00 : f32
      %104 = vector.broadcast %cst_48 : f32 to vector<86x86xf32>
      %105 = arith.addf %103, %104 : vector<86x86xf32>
      %106 = arith.addf %99, %100 : vector<86x86xf32>
      %cst_49 = arith.constant 6.502500e+00 : f32
      %107 = vector.broadcast %cst_49 : f32 to vector<86x86xf32>
      %108 = arith.addf %106, %107 : vector<86x86xf32>
      %109 = arith.subf %98, %101 : vector<86x86xf32>
      %cst_50 = arith.constant 2.000000e+00 : f32
      %110 = vector.broadcast %cst_50 : f32 to vector<86x86xf32>
      %111 = arith.mulf %110, %109 : vector<86x86xf32>
      %cst_51 = arith.constant 5.852250e+01 : f32
      %112 = vector.broadcast %cst_51 : f32 to vector<86x86xf32>
      %113 = arith.addf %111, %112 : vector<86x86xf32>
      %114 = arith.subf %96, %99 : vector<86x86xf32>
      %115 = arith.subf %97, %100 : vector<86x86xf32>
      %116 = arith.addf %114, %115 : vector<86x86xf32>
      %cst_52 = arith.constant 5.852250e+01 : f32
      %117 = vector.broadcast %cst_52 : f32 to vector<86x86xf32>
      %118 = arith.addf %116, %117 : vector<86x86xf32>
      %119 = arith.divf %113, %118 : vector<86x86xf32>
      %120 = arith.divf %105, %108 : vector<86x86xf32>
      %121 = arith.mulf %120, %119 : vector<86x86xf32>
      %122 = vector.shape_cast %121 : vector<86x86xf32> to vector<1x86x86xf32>
      %cst_53 = arith.constant dense<0.000000e+00> : vector<1xf32>
      %123 = vector.multi_reduction <add>, %122, %cst_53 [1, 2] : vector<1x86x86xf32> to vector<1xf32>
      %124 = vector.shape_cast %123 : vector<1xf32> to vector<1x1x1xf32>
      %125 = vector.extract %124[0, 0, 0] : f32 from vector<1x1x1xf32>
      %cst_54 = arith.constant 1.35208218E-4 : f32
      %126 = arith.mulf %125, %cst_54 : f32
      %127 = vector.shape_cast %119 : vector<86x86xf32> to vector<1x86x86xf32>
      %cst_55 = arith.constant dense<0.000000e+00> : vector<1xf32>
      %128 = vector.multi_reduction <add>, %127, %cst_55 [1, 2] : vector<1x86x86xf32> to vector<1xf32>
      %129 = vector.shape_cast %128 : vector<1xf32> to vector<1x1x1xf32>
      %130 = vector.extract %129[0, 0, 0] : f32 from vector<1x1x1xf32>
      %cst_56 = arith.constant 1.35208218E-4 : f32
      %131 = arith.mulf %130, %cst_56 : f32
      %132 = vector.broadcast %arg22 : i32 to vector<16x128xi32>
      %133 = arith.cmpi eq, %1, %132 : vector<16x128xi32>
      %c2_i32 = arith.constant 2 : i32
      %134 = vector.broadcast %c2_i32 : i32 to vector<16x128xi32>
      %135 = arith.cmpi eq, %0, %134 : vector<16x128xi32>
      %136 = arith.andi %135, %133 : vector<16x128xi1>
      %137 = vector.broadcast %126 : f32 to vector<16x128xf32>
      %138 = arith.select %136, %137, %75 : vector<16x128xi1>, vector<16x128xf32>
      %c3_i32_57 = arith.constant 3 : i32
      %139 = vector.broadcast %c3_i32_57 : i32 to vector<16x128xi32>
      %140 = arith.cmpi eq, %0, %139 : vector<16x128xi32>
      %141 = arith.andi %140, %133 : vector<16x128xi1>
      %142 = vector.broadcast %131 : f32 to vector<16x128xf32>
      %143 = arith.select %141, %142, %138 : vector<16x128xi1>, vector<16x128xf32>
      %c0_58 = arith.constant 0 : index
      %c0_59 = arith.constant 0 : index
      %144 = vector.load %arg14[%c0_58, %c0_59] : memref<48x96xf32, #tpu.memory_space<vmem>>, vector<48x96xf32>
      %c0_60 = arith.constant 0 : index
      %c0_61 = arith.constant 0 : index
      %145 = vector.load %arg18[%c0_60, %c0_61] : memref<96x48xf32, #tpu.memory_space<vmem>>, vector<96x48xf32>
      %cst_62 = arith.constant dense<0.000000e+00> : vector<48x96xf32>
      %146 = tpu.matmul %144, %79, %cst_62 {dimension_numbers = #tpu.dot_dimension_numbers<[1], [0], [0], [1], [0, 0, 1, 1], [], []>} : vector<48x96xf32>, vector<96x96xf32>, vector<48x96xf32> -> vector<48x96xf32>
      %cst_63 = arith.constant dense<0.000000e+00> : vector<48x48xf32>
      %147 = tpu.matmul %146, %145, %cst_63 {dimension_numbers = #tpu.dot_dimension_numbers<[1], [0], [0], [1], [0, 0, 1, 1], [], []>} : vector<48x96xf32>, vector<96x48xf32>, vector<48x48xf32> -> vector<48x48xf32>
      %cst_64 = arith.constant dense<0.000000e+00> : vector<48x96xf32>
      %148 = tpu.matmul %144, %81, %cst_64 {dimension_numbers = #tpu.dot_dimension_numbers<[1], [0], [0], [1], [0, 0, 1, 1], [], []>} : vector<48x96xf32>, vector<96x96xf32>, vector<48x96xf32> -> vector<48x96xf32>
      %cst_65 = arith.constant dense<0.000000e+00> : vector<48x48xf32>
      %149 = tpu.matmul %148, %145, %cst_65 {dimension_numbers = #tpu.dot_dimension_numbers<[1], [0], [0], [1], [0, 0, 1, 1], [], []>} : vector<48x96xf32>, vector<96x48xf32>, vector<48x48xf32> -> vector<48x48xf32>
      %c0_66 = arith.constant 0 : index
      %c0_67 = arith.constant 0 : index
      %150 = vector.load %arg5[%c0_66, %c0_67] : memref<40x48xf32, #tpu.memory_space<vmem>>, vector<40x48xf32>
      %c0_68 = arith.constant 0 : index
      %c0_69 = arith.constant 0 : index
      %151 = vector.load %arg10[%c0_68, %c0_69] : memref<48x38xf32, #tpu.memory_space<vmem>>, vector<48x38xf32>
      %152 = arith.mulf %147, %147 : vector<48x48xf32>
      %153 = arith.mulf %149, %149 : vector<48x48xf32>
      %154 = arith.mulf %147, %149 : vector<48x48xf32>
      %cst_70 = arith.constant dense<0.000000e+00> : vector<40x48xf32>
      %155 = tpu.matmul %150, %147, %cst_70 {dimension_numbers = #tpu.dot_dimension_numbers<[1], [0], [0], [1], [0, 0, 1, 1], [], []>} : vector<40x48xf32>, vector<48x48xf32>, vector<40x48xf32> -> vector<40x48xf32>
      %cst_71 = arith.constant dense<0.000000e+00> : vector<40x48xf32>
      %156 = tpu.matmul %150, %149, %cst_71 {dimension_numbers = #tpu.dot_dimension_numbers<[1], [0], [0], [1], [0, 0, 1, 1], [], []>} : vector<40x48xf32>, vector<48x48xf32>, vector<40x48xf32> -> vector<40x48xf32>
      %cst_72 = arith.constant dense<0.000000e+00> : vector<40x48xf32>
      %157 = tpu.matmul %150, %152, %cst_72 {dimension_numbers = #tpu.dot_dimension_numbers<[1], [0], [0], [1], [0, 0, 1, 1], [], []>} : vector<40x48xf32>, vector<48x48xf32>, vector<40x48xf32> -> vector<40x48xf32>
      %cst_73 = arith.constant dense<0.000000e+00> : vector<40x48xf32>
      %158 = tpu.matmul %150, %153, %cst_73 {dimension_numbers = #tpu.dot_dimension_numbers<[1], [0], [0], [1], [0, 0, 1, 1], [], []>} : vector<40x48xf32>, vector<48x48xf32>, vector<40x48xf32> -> vector<40x48xf32>
      %cst_74 = arith.constant dense<0.000000e+00> : vector<40x48xf32>
      %159 = tpu.matmul %150, %154, %cst_74 {dimension_numbers = #tpu.dot_dimension_numbers<[1], [0], [0], [1], [0, 0, 1, 1], [], []>} : vector<40x48xf32>, vector<48x48xf32>, vector<40x48xf32> -> vector<40x48xf32>
      %160 = tpu.concatenate %155, %156, %157, %158, %159 in 0 : vector<40x48xf32>, vector<40x48xf32>, vector<40x48xf32>, vector<40x48xf32>, vector<40x48xf32> -> vector<200x48xf32>
      %cst_75 = arith.constant dense<0.000000e+00> : vector<200x38xf32>
      %161 = tpu.matmul %160, %151, %cst_75 {dimension_numbers = #tpu.dot_dimension_numbers<[1], [0], [0], [1], [0, 0, 1, 1], [], []>} : vector<200x48xf32>, vector<48x38xf32>, vector<200x38xf32> -> vector<200x38xf32>
      %162 = vector.extract_strided_slice %161 {offsets = [0, 0], sizes = [38, 38], strides = [1, 1]} : vector<200x38xf32> to vector<38x38xf32>
      %163 = vector.extract_strided_slice %161 {offsets = [40, 0], sizes = [38, 38], strides = [1, 1]} : vector<200x38xf32> to vector<38x38xf32>
      %164 = vector.extract_strided_slice %161 {offsets = [80, 0], sizes = [38, 38], strides = [1, 1]} : vector<200x38xf32> to vector<38x38xf32>
      %165 = vector.extract_strided_slice %161 {offsets = [120, 0], sizes = [38, 38], strides = [1, 1]} : vector<200x38xf32> to vector<38x38xf32>
      %166 = vector.extract_strided_slice %161 {offsets = [160, 0], sizes = [38, 38], strides = [1, 1]} : vector<200x38xf32> to vector<38x38xf32>
      %167 = arith.mulf %162, %162 : vector<38x38xf32>
      %168 = arith.mulf %163, %163 : vector<38x38xf32>
      %169 = arith.mulf %162, %163 : vector<38x38xf32>
      %cst_76 = arith.constant 2.000000e+00 : f32
      %170 = vector.broadcast %cst_76 : f32 to vector<38x38xf32>
      %171 = arith.mulf %170, %169 : vector<38x38xf32>
      %cst_77 = arith.constant 6.502500e+00 : f32
      %172 = vector.broadcast %cst_77 : f32 to vector<38x38xf32>
      %173 = arith.addf %171, %172 : vector<38x38xf32>
      %174 = arith.addf %167, %168 : vector<38x38xf32>
      %cst_78 = arith.constant 6.502500e+00 : f32
      %175 = vector.broadcast %cst_78 : f32 to vector<38x38xf32>
      %176 = arith.addf %174, %175 : vector<38x38xf32>
      %177 = arith.subf %166, %169 : vector<38x38xf32>
      %cst_79 = arith.constant 2.000000e+00 : f32
      %178 = vector.broadcast %cst_79 : f32 to vector<38x38xf32>
      %179 = arith.mulf %178, %177 : vector<38x38xf32>
      %cst_80 = arith.constant 5.852250e+01 : f32
      %180 = vector.broadcast %cst_80 : f32 to vector<38x38xf32>
      %181 = arith.addf %179, %180 : vector<38x38xf32>
      %182 = arith.subf %164, %167 : vector<38x38xf32>
      %183 = arith.subf %165, %168 : vector<38x38xf32>
      %184 = arith.addf %182, %183 : vector<38x38xf32>
      %cst_81 = arith.constant 5.852250e+01 : f32
      %185 = vector.broadcast %cst_81 : f32 to vector<38x38xf32>
      %186 = arith.addf %184, %185 : vector<38x38xf32>
      %187 = arith.divf %181, %186 : vector<38x38xf32>
      %188 = arith.divf %173, %176 : vector<38x38xf32>
      %189 = arith.mulf %188, %187 : vector<38x38xf32>
      %190 = vector.shape_cast %189 : vector<38x38xf32> to vector<1x38x38xf32>
      %cst_82 = arith.constant dense<0.000000e+00> : vector<1xf32>
      %191 = vector.multi_reduction <add>, %190, %cst_82 [1, 2] : vector<1x38x38xf32> to vector<1xf32>
      %192 = vector.shape_cast %191 : vector<1xf32> to vector<1x1x1xf32>
      %193 = vector.extract %192[0, 0, 0] : f32 from vector<1x1x1xf32>
      %cst_83 = arith.constant 6.92520756E-4 : f32
      %194 = arith.mulf %193, %cst_83 : f32
      %195 = vector.shape_cast %187 : vector<38x38xf32> to vector<1x38x38xf32>
      %cst_84 = arith.constant dense<0.000000e+00> : vector<1xf32>
      %196 = vector.multi_reduction <add>, %195, %cst_84 [1, 2] : vector<1x38x38xf32> to vector<1xf32>
      %197 = vector.shape_cast %196 : vector<1xf32> to vector<1x1x1xf32>
      %198 = vector.extract %197[0, 0, 0] : f32 from vector<1x1x1xf32>
      %cst_85 = arith.constant 6.92520756E-4 : f32
      %199 = arith.mulf %198, %cst_85 : f32
      %200 = vector.broadcast %arg22 : i32 to vector<16x128xi32>
      %201 = arith.cmpi eq, %1, %200 : vector<16x128xi32>
      %c4_i32 = arith.constant 4 : i32
      %202 = vector.broadcast %c4_i32 : i32 to vector<16x128xi32>
      %203 = arith.cmpi eq, %0, %202 : vector<16x128xi32>
      %204 = arith.andi %203, %201 : vector<16x128xi1>
      %205 = vector.broadcast %194 : f32 to vector<16x128xf32>
      %206 = arith.select %204, %205, %143 : vector<16x128xi1>, vector<16x128xf32>
      %c5_i32 = arith.constant 5 : i32
      %207 = vector.broadcast %c5_i32 : i32 to vector<16x128xi32>
      %208 = arith.cmpi eq, %0, %207 : vector<16x128xi32>
      %209 = arith.andi %208, %201 : vector<16x128xi1>
      %210 = vector.broadcast %199 : f32 to vector<16x128xf32>
      %211 = arith.select %209, %210, %206 : vector<16x128xi1>, vector<16x128xf32>
      %c0_86 = arith.constant 0 : index
      %c0_87 = arith.constant 0 : index
      %212 = vector.load %arg15[%c0_86, %c0_87] : memref<24x48xf32, #tpu.memory_space<vmem>>, vector<24x48xf32>
      %c0_88 = arith.constant 0 : index
      %c0_89 = arith.constant 0 : index
      %213 = vector.load %arg19[%c0_88, %c0_89] : memref<48x24xf32, #tpu.memory_space<vmem>>, vector<48x24xf32>
      %cst_90 = arith.constant dense<0.000000e+00> : vector<24x48xf32>
      %214 = tpu.matmul %212, %147, %cst_90 {dimension_numbers = #tpu.dot_dimension_numbers<[1], [0], [0], [1], [0, 0, 1, 1], [], []>} : vector<24x48xf32>, vector<48x48xf32>, vector<24x48xf32> -> vector<24x48xf32>
      %cst_91 = arith.constant dense<0.000000e+00> : vector<24x24xf32>
      %215 = tpu.matmul %214, %213, %cst_91 {dimension_numbers = #tpu.dot_dimension_numbers<[1], [0], [0], [1], [0, 0, 1, 1], [], []>} : vector<24x48xf32>, vector<48x24xf32>, vector<24x24xf32> -> vector<24x24xf32>
      %cst_92 = arith.constant dense<0.000000e+00> : vector<24x48xf32>
      %216 = tpu.matmul %212, %149, %cst_92 {dimension_numbers = #tpu.dot_dimension_numbers<[1], [0], [0], [1], [0, 0, 1, 1], [], []>} : vector<24x48xf32>, vector<48x48xf32>, vector<24x48xf32> -> vector<24x48xf32>
      %cst_93 = arith.constant dense<0.000000e+00> : vector<24x24xf32>
      %217 = tpu.matmul %216, %213, %cst_93 {dimension_numbers = #tpu.dot_dimension_numbers<[1], [0], [0], [1], [0, 0, 1, 1], [], []>} : vector<24x48xf32>, vector<48x24xf32>, vector<24x24xf32> -> vector<24x24xf32>
      %c0_94 = arith.constant 0 : index
      %c0_95 = arith.constant 0 : index
      %218 = vector.load %arg6[%c0_94, %c0_95] : memref<16x24xf32, #tpu.memory_space<vmem>>, vector<16x24xf32>
      %c0_96 = arith.constant 0 : index
      %c0_97 = arith.constant 0 : index
      %219 = vector.load %arg11[%c0_96, %c0_97] : memref<24x14xf32, #tpu.memory_space<vmem>>, vector<24x14xf32>
      %220 = arith.mulf %215, %215 : vector<24x24xf32>
      %221 = arith.mulf %217, %217 : vector<24x24xf32>
      %222 = arith.mulf %215, %217 : vector<24x24xf32>
      %cst_98 = arith.constant dense<0.000000e+00> : vector<16x24xf32>
      %223 = tpu.matmul %218, %215, %cst_98 {dimension_numbers = #tpu.dot_dimension_numbers<[1], [0], [0], [1], [0, 0, 1, 1], [], []>} : vector<16x24xf32>, vector<24x24xf32>, vector<16x24xf32> -> vector<16x24xf32>
      %cst_99 = arith.constant dense<0.000000e+00> : vector<16x24xf32>
      %224 = tpu.matmul %218, %217, %cst_99 {dimension_numbers = #tpu.dot_dimension_numbers<[1], [0], [0], [1], [0, 0, 1, 1], [], []>} : vector<16x24xf32>, vector<24x24xf32>, vector<16x24xf32> -> vector<16x24xf32>
      %cst_100 = arith.constant dense<0.000000e+00> : vector<16x24xf32>
      %225 = tpu.matmul %218, %220, %cst_100 {dimension_numbers = #tpu.dot_dimension_numbers<[1], [0], [0], [1], [0, 0, 1, 1], [], []>} : vector<16x24xf32>, vector<24x24xf32>, vector<16x24xf32> -> vector<16x24xf32>
      %cst_101 = arith.constant dense<0.000000e+00> : vector<16x24xf32>
      %226 = tpu.matmul %218, %221, %cst_101 {dimension_numbers = #tpu.dot_dimension_numbers<[1], [0], [0], [1], [0, 0, 1, 1], [], []>} : vector<16x24xf32>, vector<24x24xf32>, vector<16x24xf32> -> vector<16x24xf32>
      %cst_102 = arith.constant dense<0.000000e+00> : vector<16x24xf32>
      %227 = tpu.matmul %218, %222, %cst_102 {dimension_numbers = #tpu.dot_dimension_numbers<[1], [0], [0], [1], [0, 0, 1, 1], [], []>} : vector<16x24xf32>, vector<24x24xf32>, vector<16x24xf32> -> vector<16x24xf32>
      %228 = tpu.concatenate %223, %224, %225, %226, %227 in 0 : vector<16x24xf32>, vector<16x24xf32>, vector<16x24xf32>, vector<16x24xf32>, vector<16x24xf32> -> vector<80x24xf32>
      %cst_103 = arith.constant dense<0.000000e+00> : vector<80x14xf32>
      %229 = tpu.matmul %228, %219, %cst_103 {dimension_numbers = #tpu.dot_dimension_numbers<[1], [0], [0], [1], [0, 0, 1, 1], [], []>} : vector<80x24xf32>, vector<24x14xf32>, vector<80x14xf32> -> vector<80x14xf32>
      %230 = vector.extract_strided_slice %229 {offsets = [0, 0], sizes = [14, 14], strides = [1, 1]} : vector<80x14xf32> to vector<14x14xf32>
      %231 = vector.extract_strided_slice %229 {offsets = [16, 0], sizes = [14, 14], strides = [1, 1]} : vector<80x14xf32> to vector<14x14xf32>
      %232 = vector.extract_strided_slice %229 {offsets = [32, 0], sizes = [14, 14], strides = [1, 1]} : vector<80x14xf32> to vector<14x14xf32>
      %233 = vector.extract_strided_slice %229 {offsets = [48, 0], sizes = [14, 14], strides = [1, 1]} : vector<80x14xf32> to vector<14x14xf32>
      %234 = vector.extract_strided_slice %229 {offsets = [64, 0], sizes = [14, 14], strides = [1, 1]} : vector<80x14xf32> to vector<14x14xf32>
      %235 = arith.mulf %230, %230 : vector<14x14xf32>
      %236 = arith.mulf %231, %231 : vector<14x14xf32>
      %237 = arith.mulf %230, %231 : vector<14x14xf32>
      %cst_104 = arith.constant 2.000000e+00 : f32
      %238 = vector.broadcast %cst_104 : f32 to vector<14x14xf32>
      %239 = arith.mulf %238, %237 : vector<14x14xf32>
      %cst_105 = arith.constant 6.502500e+00 : f32
      %240 = vector.broadcast %cst_105 : f32 to vector<14x14xf32>
      %241 = arith.addf %239, %240 : vector<14x14xf32>
      %242 = arith.addf %235, %236 : vector<14x14xf32>
      %cst_106 = arith.constant 6.502500e+00 : f32
      %243 = vector.broadcast %cst_106 : f32 to vector<14x14xf32>
      %244 = arith.addf %242, %243 : vector<14x14xf32>
      %245 = arith.subf %234, %237 : vector<14x14xf32>
      %cst_107 = arith.constant 2.000000e+00 : f32
      %246 = vector.broadcast %cst_107 : f32 to vector<14x14xf32>
      %247 = arith.mulf %246, %245 : vector<14x14xf32>
      %cst_108 = arith.constant 5.852250e+01 : f32
      %248 = vector.broadcast %cst_108 : f32 to vector<14x14xf32>
      %249 = arith.addf %247, %248 : vector<14x14xf32>
      %250 = arith.subf %232, %235 : vector<14x14xf32>
      %251 = arith.subf %233, %236 : vector<14x14xf32>
      %252 = arith.addf %250, %251 : vector<14x14xf32>
      %cst_109 = arith.constant 5.852250e+01 : f32
      %253 = vector.broadcast %cst_109 : f32 to vector<14x14xf32>
      %254 = arith.addf %252, %253 : vector<14x14xf32>
      %255 = arith.divf %249, %254 : vector<14x14xf32>
      %256 = arith.divf %241, %244 : vector<14x14xf32>
      %257 = arith.mulf %256, %255 : vector<14x14xf32>
      %258 = vector.shape_cast %257 : vector<14x14xf32> to vector<1x14x14xf32>
      %cst_110 = arith.constant dense<0.000000e+00> : vector<1xf32>
      %259 = vector.multi_reduction <add>, %258, %cst_110 [1, 2] : vector<1x14x14xf32> to vector<1xf32>
      %260 = vector.shape_cast %259 : vector<1xf32> to vector<1x1x1xf32>
      %261 = vector.extract %260[0, 0, 0] : f32 from vector<1x1x1xf32>
      %cst_111 = arith.constant 0.00510204071 : f32
      %262 = arith.mulf %261, %cst_111 : f32
      %263 = vector.shape_cast %255 : vector<14x14xf32> to vector<1x14x14xf32>
      %cst_112 = arith.constant dense<0.000000e+00> : vector<1xf32>
      %264 = vector.multi_reduction <add>, %263, %cst_112 [1, 2] : vector<1x14x14xf32> to vector<1xf32>
      %265 = vector.shape_cast %264 : vector<1xf32> to vector<1x1x1xf32>
      %266 = vector.extract %265[0, 0, 0] : f32 from vector<1x1x1xf32>
      %cst_113 = arith.constant 0.00510204071 : f32
      %267 = arith.mulf %266, %cst_113 : f32
      %268 = vector.broadcast %arg22 : i32 to vector<16x128xi32>
      %269 = arith.cmpi eq, %1, %268 : vector<16x128xi32>
      %c6_i32 = arith.constant 6 : i32
      %270 = vector.broadcast %c6_i32 : i32 to vector<16x128xi32>
      %271 = arith.cmpi eq, %0, %270 : vector<16x128xi32>
      %272 = arith.andi %271, %269 : vector<16x128xi1>
      %273 = vector.broadcast %262 : f32 to vector<16x128xf32>
      %274 = arith.select %272, %273, %211 : vector<16x128xi1>, vector<16x128xf32>
      %c7_i32 = arith.constant 7 : i32
      %275 = vector.broadcast %c7_i32 : i32 to vector<16x128xi32>
      %276 = arith.cmpi eq, %0, %275 : vector<16x128xi32>
      %277 = arith.andi %276, %269 : vector<16x128xi1>
      %278 = vector.broadcast %267 : f32 to vector<16x128xf32>
      %279 = arith.select %277, %278, %274 : vector<16x128xi1>, vector<16x128xf32>
      %c0_114 = arith.constant 0 : index
      %c0_115 = arith.constant 0 : index
      %280 = vector.load %arg16[%c0_114, %c0_115] : memref<12x24xf32, #tpu.memory_space<vmem>>, vector<12x24xf32>
      %c0_116 = arith.constant 0 : index
      %c0_117 = arith.constant 0 : index
      %281 = vector.load %arg20[%c0_116, %c0_117] : memref<24x12xf32, #tpu.memory_space<vmem>>, vector<24x12xf32>
      %cst_118 = arith.constant dense<0.000000e+00> : vector<12x24xf32>
      %282 = tpu.matmul %280, %215, %cst_118 {dimension_numbers = #tpu.dot_dimension_numbers<[1], [0], [0], [1], [0, 0, 1, 1], [], []>} : vector<12x24xf32>, vector<24x24xf32>, vector<12x24xf32> -> vector<12x24xf32>
      %cst_119 = arith.constant dense<0.000000e+00> : vector<12x12xf32>
      %283 = tpu.matmul %282, %281, %cst_119 {dimension_numbers = #tpu.dot_dimension_numbers<[1], [0], [0], [1], [0, 0, 1, 1], [], []>} : vector<12x24xf32>, vector<24x12xf32>, vector<12x12xf32> -> vector<12x12xf32>
      %cst_120 = arith.constant dense<0.000000e+00> : vector<12x24xf32>
      %284 = tpu.matmul %280, %217, %cst_120 {dimension_numbers = #tpu.dot_dimension_numbers<[1], [0], [0], [1], [0, 0, 1, 1], [], []>} : vector<12x24xf32>, vector<24x24xf32>, vector<12x24xf32> -> vector<12x24xf32>
      %cst_121 = arith.constant dense<0.000000e+00> : vector<12x12xf32>
      %285 = tpu.matmul %284, %281, %cst_121 {dimension_numbers = #tpu.dot_dimension_numbers<[1], [0], [0], [1], [0, 0, 1, 1], [], []>} : vector<12x24xf32>, vector<24x12xf32>, vector<12x12xf32> -> vector<12x12xf32>
      %c0_122 = arith.constant 0 : index
      %c0_123 = arith.constant 0 : index
      %286 = vector.load %arg7[%c0_122, %c0_123] : memref<8x12xf32, #tpu.memory_space<vmem>>, vector<8x12xf32>
      %c0_124 = arith.constant 0 : index
      %c0_125 = arith.constant 0 : index
      %287 = vector.load %arg12[%c0_124, %c0_125] : memref<12x2xf32, #tpu.memory_space<vmem>>, vector<12x2xf32>
      %288 = arith.mulf %283, %283 : vector<12x12xf32>
      %289 = arith.mulf %285, %285 : vector<12x12xf32>
      %290 = arith.mulf %283, %285 : vector<12x12xf32>
      %cst_126 = arith.constant dense<0.000000e+00> : vector<8x12xf32>
      %291 = tpu.matmul %286, %283, %cst_126 {dimension_numbers = #tpu.dot_dimension_numbers<[1], [0], [0], [1], [0, 0, 1, 1], [], []>} : vector<8x12xf32>, vector<12x12xf32>, vector<8x12xf32> -> vector<8x12xf32>
      %cst_127 = arith.constant dense<0.000000e+00> : vector<8x12xf32>
      %292 = tpu.matmul %286, %285, %cst_127 {dimension_numbers = #tpu.dot_dimension_numbers<[1], [0], [0], [1], [0, 0, 1, 1], [], []>} : vector<8x12xf32>, vector<12x12xf32>, vector<8x12xf32> -> vector<8x12xf32>
      %cst_128 = arith.constant dense<0.000000e+00> : vector<8x12xf32>
      %293 = tpu.matmul %286, %288, %cst_128 {dimension_numbers = #tpu.dot_dimension_numbers<[1], [0], [0], [1], [0, 0, 1, 1], [], []>} : vector<8x12xf32>, vector<12x12xf32>, vector<8x12xf32> -> vector<8x12xf32>
      %cst_129 = arith.constant dense<0.000000e+00> : vector<8x12xf32>
      %294 = tpu.matmul %286, %289, %cst_129 {dimension_numbers = #tpu.dot_dimension_numbers<[1], [0], [0], [1], [0, 0, 1, 1], [], []>} : vector<8x12xf32>, vector<12x12xf32>, vector<8x12xf32> -> vector<8x12xf32>
      %cst_130 = arith.constant dense<0.000000e+00> : vector<8x12xf32>
      %295 = tpu.matmul %286, %290, %cst_130 {dimension_numbers = #tpu.dot_dimension_numbers<[1], [0], [0], [1], [0, 0, 1, 1], [], []>} : vector<8x12xf32>, vector<12x12xf32>, vector<8x12xf32> -> vector<8x12xf32>
      %296 = tpu.concatenate %291, %292, %293, %294, %295 in 0 : vector<8x12xf32>, vector<8x12xf32>, vector<8x12xf32>, vector<8x12xf32>, vector<8x12xf32> -> vector<40x12xf32>
      %cst_131 = arith.constant dense<0.000000e+00> : vector<40x2xf32>
      %297 = tpu.matmul %296, %287, %cst_131 {dimension_numbers = #tpu.dot_dimension_numbers<[1], [0], [0], [1], [0, 0, 1, 1], [], []>} : vector<40x12xf32>, vector<12x2xf32>, vector<40x2xf32> -> vector<40x2xf32>
      %298 = vector.extract_strided_slice %297 {offsets = [0, 0], sizes = [2, 2], strides = [1, 1]} : vector<40x2xf32> to vector<2x2xf32>
      %299 = vector.extract_strided_slice %297 {offsets = [8, 0], sizes = [2, 2], strides = [1, 1]} : vector<40x2xf32> to vector<2x2xf32>
      %300 = vector.extract_strided_slice %297 {offsets = [16, 0], sizes = [2, 2], strides = [1, 1]} : vector<40x2xf32> to vector<2x2xf32>
      %301 = vector.extract_strided_slice %297 {offsets = [24, 0], sizes = [2, 2], strides = [1, 1]} : vector<40x2xf32> to vector<2x2xf32>
      %302 = vector.extract_strided_slice %297 {offsets = [32, 0], sizes = [2, 2], strides = [1, 1]} : vector<40x2xf32> to vector<2x2xf32>
      %303 = arith.mulf %298, %298 : vector<2x2xf32>
      %304 = arith.mulf %299, %299 : vector<2x2xf32>
      %305 = arith.mulf %298, %299 : vector<2x2xf32>
      %cst_132 = arith.constant 2.000000e+00 : f32
      %306 = vector.broadcast %cst_132 : f32 to vector<2x2xf32>
      %307 = arith.mulf %306, %305 : vector<2x2xf32>
      %cst_133 = arith.constant 6.502500e+00 : f32
      %308 = vector.broadcast %cst_133 : f32 to vector<2x2xf32>
      %309 = arith.addf %307, %308 : vector<2x2xf32>
      %310 = arith.addf %303, %304 : vector<2x2xf32>
      %cst_134 = arith.constant 6.502500e+00 : f32
      %311 = vector.broadcast %cst_134 : f32 to vector<2x2xf32>
      %312 = arith.addf %310, %311 : vector<2x2xf32>
      %313 = arith.subf %302, %305 : vector<2x2xf32>
      %cst_135 = arith.constant 2.000000e+00 : f32
      %314 = vector.broadcast %cst_135 : f32 to vector<2x2xf32>
      %315 = arith.mulf %314, %313 : vector<2x2xf32>
      %cst_136 = arith.constant 5.852250e+01 : f32
      %316 = vector.broadcast %cst_136 : f32 to vector<2x2xf32>
      %317 = arith.addf %315, %316 : vector<2x2xf32>
      %318 = arith.subf %300, %303 : vector<2x2xf32>
      %319 = arith.subf %301, %304 : vector<2x2xf32>
      %320 = arith.addf %318, %319 : vector<2x2xf32>
      %cst_137 = arith.constant 5.852250e+01 : f32
      %321 = vector.broadcast %cst_137 : f32 to vector<2x2xf32>
      %322 = arith.addf %320, %321 : vector<2x2xf32>
      %323 = arith.divf %317, %322 : vector<2x2xf32>
      %324 = arith.divf %309, %312 : vector<2x2xf32>
      %325 = arith.mulf %324, %323 : vector<2x2xf32>
      %326 = vector.shape_cast %325 : vector<2x2xf32> to vector<1x2x2xf32>
      %cst_138 = arith.constant dense<0.000000e+00> : vector<1xf32>
      %327 = vector.multi_reduction <add>, %326, %cst_138 [1, 2] : vector<1x2x2xf32> to vector<1xf32>
      %328 = vector.shape_cast %327 : vector<1xf32> to vector<1x1x1xf32>
      %329 = vector.extract %328[0, 0, 0] : f32 from vector<1x1x1xf32>
      %cst_139 = arith.constant 2.500000e-01 : f32
      %330 = arith.mulf %329, %cst_139 : f32
      %331 = vector.shape_cast %323 : vector<2x2xf32> to vector<1x2x2xf32>
      %cst_140 = arith.constant dense<0.000000e+00> : vector<1xf32>
      %332 = vector.multi_reduction <add>, %331, %cst_140 [1, 2] : vector<1x2x2xf32> to vector<1xf32>
      %333 = vector.shape_cast %332 : vector<1xf32> to vector<1x1x1xf32>
      %334 = vector.extract %333[0, 0, 0] : f32 from vector<1x1x1xf32>
      %cst_141 = arith.constant 2.500000e-01 : f32
      %335 = arith.mulf %334, %cst_141 : f32
      %336 = vector.broadcast %arg22 : i32 to vector<16x128xi32>
      %337 = arith.cmpi eq, %1, %336 : vector<16x128xi32>
      %c8_i32 = arith.constant 8 : i32
      %338 = vector.broadcast %c8_i32 : i32 to vector<16x128xi32>
      %339 = arith.cmpi eq, %0, %338 : vector<16x128xi32>
      %340 = arith.andi %339, %337 : vector<16x128xi1>
      %341 = vector.broadcast %330 : f32 to vector<16x128xf32>
      %342 = arith.select %340, %341, %279 : vector<16x128xi1>, vector<16x128xf32>
      %c9_i32 = arith.constant 9 : i32
      %343 = vector.broadcast %c9_i32 : i32 to vector<16x128xi32>
      %344 = arith.cmpi eq, %0, %343 : vector<16x128xi32>
      %345 = arith.andi %344, %337 : vector<16x128xi1>
      %346 = vector.broadcast %335 : f32 to vector<16x128xf32>
      %347 = arith.select %345, %346, %342 : vector<16x128xi1>, vector<16x128xf32>
      scf.yield %347 : vector<16x128xf32>
    }
    %c3_i32_0 = arith.constant 3 : i32
    %c0 = arith.constant 0 : index
    %c0_1 = arith.constant 0 : index
    %c0_2 = arith.constant 0 : index
    %5 = vector.load %arg21[%c0, %c0_1, %c0_2] : memref<1x16x128xf32, #tpu.memory_space<vmem>>, vector<1x16x128xf32>
    %6 = vector.shape_cast %5 : vector<1x16x128xf32> to vector<16x128xf32>
    %7 = vector.shape_cast %4 : vector<16x128xf32> to vector<1x16x128xf32>
    tpu.vector_store %arg21[%c0, %c0_1, %c0_2], %7 {strides = array<i32>} : memref<1x16x128xf32, #tpu.memory_space<vmem>>, vector<1x16x128xf32>,
    return
  }
  func.func @transform_0(%arg0: i32) -> (i32, i32, i32) {
    %c0_i32 = arith.constant 0 : i32
    %c0_i32_0 = arith.constant 0 : i32
    %c0_i32_1 = arith.constant 0 : i32
    return %arg0, %c0_i32, %c0_i32_0 : i32, i32, i32
  }
  func.func @transform_1(%arg0: i32) -> (i32, i32, i32) {
    %c0_i32 = arith.constant 0 : i32
    %c0_i32_0 = arith.constant 0 : i32
    %c0_i32_1 = arith.constant 0 : i32
    return %arg0, %c0_i32, %c0_i32_0 : i32, i32, i32
  }
  func.func @transform_2(%arg0: i32) -> (i32, i32) {
    %c0_i32 = arith.constant 0 : i32
    %c0_i32_0 = arith.constant 0 : i32
    %c0_i32_1 = arith.constant 0 : i32
    return %c0_i32, %c0_i32_0 : i32, i32
  }
  func.func @transform_3(%arg0: i32) -> (i32, i32) {
    %c0_i32 = arith.constant 0 : i32
    %c0_i32_0 = arith.constant 0 : i32
    %c0_i32_1 = arith.constant 0 : i32
    return %c0_i32, %c0_i32_0 : i32, i32
  }
  func.func @transform_4(%arg0: i32) -> (i32, i32) {
    %c0_i32 = arith.constant 0 : i32
    %c0_i32_0 = arith.constant 0 : i32
    %c0_i32_1 = arith.constant 0 : i32
    return %c0_i32, %c0_i32_0 : i32, i32
  }
  func.func @transform_5(%arg0: i32) -> (i32, i32) {
    %c0_i32 = arith.constant 0 : i32
    %c0_i32_0 = arith.constant 0 : i32
    %c0_i32_1 = arith.constant 0 : i32
    return %c0_i32, %c0_i32_0 : i32, i32
  }
  func.func @transform_6(%arg0: i32) -> (i32, i32) {
    %c0_i32 = arith.constant 0 : i32
    %c0_i32_0 = arith.constant 0 : i32
    %c0_i32_1 = arith.constant 0 : i32
    return %c0_i32, %c0_i32_0 : i32, i32
  }
  func.func @transform_7(%arg0: i32) -> (i32, i32) {
    %c0_i32 = arith.constant 0 : i32
    %c0_i32_0 = arith.constant 0 : i32
    %c0_i32_1 = arith.constant 0 : i32
    return %c0_i32, %c0_i32_0 : i32, i32
  }
  func.func @transform_8(%arg0: i32) -> (i32, i32) {
    %c0_i32 = arith.constant 0 : i32
    %c0_i32_0 = arith.constant 0 : i32
    %c0_i32_1 = arith.constant 0 : i32
    return %c0_i32, %c0_i32_0 : i32, i32
  }
  func.func @transform_9(%arg0: i32) -> (i32, i32) {
    %c0_i32 = arith.constant 0 : i32
    %c0_i32_0 = arith.constant 0 : i32
    %c0_i32_1 = arith.constant 0 : i32
    return %c0_i32, %c0_i32_0 : i32, i32
  }
  func.func @transform_10(%arg0: i32) -> (i32, i32) {
    %c0_i32 = arith.constant 0 : i32
    %c0_i32_0 = arith.constant 0 : i32
    %c0_i32_1 = arith.constant 0 : i32
    return %c0_i32, %c0_i32_0 : i32, i32
  }
  func.func @transform_11(%arg0: i32) -> (i32, i32) {
    %c0_i32 = arith.constant 0 : i32
    %c0_i32_0 = arith.constant 0 : i32
    %c0_i32_1 = arith.constant 0 : i32
    return %c0_i32, %c0_i32_0 : i32, i32
  }
  func.func @transform_12(%arg0: i32) -> (i32, i32) {
    %c0_i32 = arith.constant 0 : i32
    %c0_i32_0 = arith.constant 0 : i32
    %c0_i32_1 = arith.constant 0 : i32
    return %c0_i32, %c0_i32_0 : i32, i32
  }
  func.func @transform_13(%arg0: i32) -> (i32, i32) {
    %c0_i32 = arith.constant 0 : i32
    %c0_i32_0 = arith.constant 0 : i32
    %c0_i32_1 = arith.constant 0 : i32
    return %c0_i32, %c0_i32_0 : i32, i32
  }
  func.func @transform_14(%arg0: i32) -> (i32, i32) {
    %c0_i32 = arith.constant 0 : i32
    %c0_i32_0 = arith.constant 0 : i32
    %c0_i32_1 = arith.constant 0 : i32
    return %c0_i32, %c0_i32_0 : i32, i32
  }
  func.func @transform_15(%arg0: i32) -> (i32, i32) {
    %c0_i32 = arith.constant 0 : i32
    %c0_i32_0 = arith.constant 0 : i32
    %c0_i32_1 = arith.constant 0 : i32
    return %c0_i32, %c0_i32_0 : i32, i32
  }
  func.func @transform_16(%arg0: i32) -> (i32, i32) {
    %c0_i32 = arith.constant 0 : i32
    %c0_i32_0 = arith.constant 0 : i32
    %c0_i32_1 = arith.constant 0 : i32
    return %c0_i32, %c0_i32_0 : i32, i32
  }
  func.func @transform_17(%arg0: i32) -> (i32, i32) {
    %c0_i32 = arith.constant 0 : i32
    %c0_i32_0 = arith.constant 0 : i32
    %c0_i32_1 = arith.constant 0 : i32
    return %c0_i32, %c0_i32_0 : i32, i32
  }
  func.func @transform_18(%arg0: i32) -> (i32, i32) {
    %c0_i32 = arith.constant 0 : i32
    %c0_i32_0 = arith.constant 0 : i32
    %c0_i32_1 = arith.constant 0 : i32
    return %c0_i32, %c0_i32_0 : i32, i32
  }
  func.func @transform_19(%arg0: i32) -> (i32, i32) {
    %c0_i32 = arith.constant 0 : i32
    %c0_i32_0 = arith.constant 0 : i32
    %c0_i32_1 = arith.constant 0 : i32
    return %c0_i32, %c0_i32_0 : i32, i32
  }
  func.func @transform_20(%arg0: i32) -> (i32, i32, i32) {
    %c0_i32 = arith.constant 0 : i32
    %c0_i32_0 = arith.constant 0 : i32
    %c0_i32_1 = arith.constant 0 : i32
    return %arg0, %c0_i32, %c0_i32_0 : i32, i32, i32
  }
}

</mosaic_0001>

<llo_original>
// kernel: _forward_impl.1
$region0: #{_forward_impl.1}
  #allocation0 [shape = 'u32[]', space=smem, size = 0x4, offset = 0x4, fixed_abs, tag = 'smem constant byte address 0x4 - core index']
  #allocation1 [shape = 'u32[144,128]{1,0:T(1,128)}', space=vmem, size = 0x12000, scoped, tag = 'internal scratch']
  %s0 = inlined_call_operand.hbm [shape: f32[6,192,192], index: 0, kind: input, shape index: {}]
  %s1 = inlined_call_operand.hbm [shape: f32[6,192,192], index: 1, kind: input, shape index: {}]
  %s2 = inlined_call_operand.hbm [shape: f32[184,192], index: 2, kind: input, shape index: {}]
  %s3 = inlined_call_operand.hbm [shape: f32[88,96], index: 3, kind: input, shape index: {}]
  %s4 = inlined_call_operand.hbm [shape: f32[40,48], index: 4, kind: input, shape index: {}]
  %s5 = inlined_call_operand.hbm [shape: f32[16,24], index: 5, kind: input, shape index: {}]
  %s6 = inlined_call_operand.hbm [shape: f32[8,12], index: 6, kind: input, shape index: {}]
  %s7 = inlined_call_operand.hbm [shape: f32[192,182], index: 7, kind: input, shape index: {}]
  %s8 = inlined_call_operand.hbm [shape: f32[96,86], index: 8, kind: input, shape index: {}]
  %s9 = inlined_call_operand.hbm [shape: f32[48,38], index: 9, kind: input, shape index: {}]
  %s10 = inlined_call_operand.hbm [shape: f32[24,14], index: 10, kind: input, shape index: {}]
  %s11 = inlined_call_operand.hbm [shape: f32[12,2], index: 11, kind: input, shape index: {}]
  %s12 = inlined_call_operand.hbm [shape: f32[96,192], index: 12, kind: input, shape index: {}]
  %s13 = inlined_call_operand.hbm [shape: f32[48,96], index: 13, kind: input, shape index: {}]
  %s14 = inlined_call_operand.hbm [shape: f32[24,48], index: 14, kind: input, shape index: {}]
  %s15 = inlined_call_operand.hbm [shape: f32[12,24], index: 15, kind: input, shape index: {}]
  %s16 = inlined_call_operand.hbm [shape: f32[192,96], index: 16, kind: input, shape index: {}]
  %s17 = inlined_call_operand.hbm [shape: f32[96,48], index: 17, kind: input, shape index: {}]
  %s18 = inlined_call_operand.hbm [shape: f32[48,24], index: 18, kind: input, shape index: {}]
  %s19 = inlined_call_operand.hbm [shape: f32[24,12], index: 19, kind: input, shape index: {}]
  %s20 = inlined_call_operand.vmem [shape: f32[2,16,128], index: 20, kind: output, shape index: {}]
  %s21 = sld [smem:[#allocation0]]
  $region200: #{_forward_impl.1} parent=0
    _
  %s23 = ssub.s32 1, %s21
  %s24 = scalar_select 0, %s23, %s21
  $region1: #{_forward_impl.1} parent=0
    #allocation2 [shape = 'u8[1179648]{0}', space=vmem, size = 0x120000, scoped, tag = 'input window, operand 0']
    #allocation3 [shape = 's32[2]{0}', space=sflag, size = 0x8, scoped, tag = 'scoped memory for _forward_impl.1']
    #allocation4 [shape = 'u8[1179648]{0}', space=vmem, size = 0x120000, scoped, tag = 'input window, operand 1']
    #allocation5 [shape = 's32[2]{0}', space=sflag, size = 0x8, scoped, tag = 'scoped memory for _forward_impl.1']
    #allocation6 [shape = 'u8[188416]{0}', space=vmem, size = 0x2e000, scoped, tag = 'input window, operand 2, single buffered']
    #allocation7 [shape = 'u8[45056]{0}', space=vmem, size = 0xb000, scoped, tag = 'input window, operand 3, single buffered']
    #allocation8 [shape = 's32[1]{0}', space=sflag, size = 0x4, scoped, tag = 'scoped memory for _forward_impl.1']
    #allocation9 [shape = 'u8[20480]{0}', space=vmem, size = 0x5000, scoped, tag = 'input window, operand 4, single buffered']
    #allocation10 [shape = 'u8[8192]{0}', space=vmem, size = 0x2000, scoped, tag = 'input window, operand 5, single buffered']
    #allocation11 [shape = 's32[1]{0}', space=sflag, size = 0x4, scoped, tag = 'scoped memory for _forward_impl.1']
    #allocation12 [shape = 'u8[4096]{0}', space=vmem, size = 0x1000, scoped, tag = 'input window, operand 6, single buffered']
    #allocation13 [shape = 'u8[196608]{0}', space=vmem, size = 0x30000, scoped, tag = 'input window, operand 7, single buffered']
    #allocation14 [shape = 's32[1]{0}', space=sflag, size = 0x4, scoped, tag = 'scoped memory for _forward_impl.1']
    #allocation15 [shape = 'u8[49152]{0}', space=vmem, size = 0xc000, scoped, tag = 'input window, operand 8, single buffered']
    #allocation16 [shape = 'u8[24576]{0}', space=vmem, size = 0x6000, scoped, tag = 'input window, operand 9, single buffered']
    #allocation17 [shape = 's32[1]{0}', space=sflag, size = 0x4, scoped, tag = 'scoped memory for _forward_impl.1']
    #allocation18 [shape = 'u8[12288]{0}', space=vmem, size = 0x3000, scoped, tag = 'input window, operand 10, single buffered']
    #allocation19 [shape = 'u8[8192]{0}', space=vmem, size = 0x2000, scoped, tag = 'input window, operand 11, single buffered']
    #allocation20 [shape = 's32[1]{0}', space=sflag, size = 0x4, scoped, tag = 'scoped memory for _forward_impl.1']
    #allocation21 [shape = 'u8[98304]{0}', space=vmem, size = 0x18000, scoped, tag = 'input window, operand 12, single buffered']
    #allocation22 [shape = 'u8[24576]{0}', space=vmem, size = 0x6000, scoped, tag = 'input window, operand 13, single buffered']
    #allocation23 [shape = 's32[1]{0}', space=sflag, size = 0x4, scoped, tag = 'scoped memory for _forward_impl.1']
    #allocation24 [shape = 'u8[12288]{0}', space=vmem, size = 0x3000, scoped, tag = 'input window, operand 14, single buffered']
    #allocation25 [shape = 'u8[8192]{0}', space=vmem, size = 0x2000, scoped, tag = 'input window, operand 15, single buffered']
    #allocation26 [shape = 's32[1]{0}', space=sflag, size = 0x4, scoped, tag = 'scoped memory for _forward_impl.1']
    #allocation27 [shape = 'u8[98304]{0}', space=vmem, size = 0x18000, scoped, tag = 'input window, operand 16, single buffered']
    #allocation28 [shape = 'u8[49152]{0}', space=vmem, size = 0xc000, scoped, tag = 'input window, operand 17, single buffered']
    #allocation29 [shape = 's32[1]{0}', space=sflag, size = 0x4, scoped, tag = 'scoped memory for _forward_impl.1']
    #allocation30 [shape = 'u8[24576]{0}', space=vmem, size = 0x6000, scoped, tag = 'input window, operand 18, single buffered']
    #allocation31 [shape = 'u8[12288]{0}', space=vmem, size = 0x3000, scoped, tag = 'input window, operand 19, single buffered']
    #allocation32 [shape = 's32[1]{0}', space=sflag, size = 0x4, scoped, tag = 'scoped memory for _forward_impl.1']
    %25 = vsyncpa [#allocation3], 0
    %s26 = scalar_lea.sflag [#allocation3], 1
    %27 = vsyncpa %s26, 0
    %28 = vsyncpa [#allocation5], 0
    %s29 = scalar_lea.sflag [#allocation5], 1
    %30 = vsyncpa %s29, 0
    %31 = vsyncpa [#allocation8], 0
    %32 = vsyncpa [#allocation11], 0
    %33 = vsyncpa [#allocation14], 0
    %34 = vsyncpa [#allocation17], 0
    %35 = vsyncpa [#allocation20], 0
    %36 = vsyncpa [#allocation23], 0
    %37 = vsyncpa [#allocation26], 0
    %38 = vsyncpa [#allocation29], 0
    %39 = vsyncpa [#allocation32], 0
    loop: start=0, step=1, limit=4
    $region2: #{_forward_impl.1} parent=1 // loop_pre_header
      _
    $region3: #{_forward_impl.1} parent=1 // loop_header
      %s41 = sphi 0, %s45
      %p42 = scmp.ge.s32.totalorder %s41, 4
      %s51 = sphi 0, %s53
      %s54 = sphi 0, %s51
      %s55 = sphi 0, %s54
      %s71 = sphi 0, %s55
      %s77 = sphi 0, %s79
      %s80 = sphi 0, %s77
      %s81 = sphi 0, %s80
      %s97 = sphi 0, %s81
      %s101 = sphi 0, %s101
      %s103 = sphi 0, %s101
      %s104 = sphi 0, %s103
      %s118 = sphi 0, %s104
      %s122 = sphi 0, %s122
      %s124 = sphi 0, %s122
      %s125 = sphi 0, %s124
      %s139 = sphi 0, %s125
      %s143 = sphi 0, %s143
      %s145 = sphi 0, %s143
      %s146 = sphi 0, %s145
      %s160 = sphi 0, %s146
      %s164 = sphi 0, %s164
      %s166 = sphi 0, %s164
      %s167 = sphi 0, %s166
      %s181 = sphi 0, %s167
      %s185 = sphi 0, %s185
      %s187 = sphi 0, %s185
      %s188 = sphi 0, %s187
      %s202 = sphi 0, %s188
      %s206 = sphi 0, %s206
      %s208 = sphi 0, %s206
      %s209 = sphi 0, %s208
      %s223 = sphi 0, %s209
      %s227 = sphi 0, %s227
      %s229 = sphi 0, %s227
      %s230 = sphi 0, %s229
      %s244 = sphi 0, %s230
      %s248 = sphi 0, %s248
      %s250 = sphi 0, %s248
      %s251 = sphi 0, %s250
      %s265 = sphi 0, %s251
      %s269 = sphi 0, %s269
      %s271 = sphi 0, %s269
      %s272 = sphi 0, %s271
      %s286 = sphi 0, %s272
      %s290 = sphi 0, %s290
      %s292 = sphi 0, %s290
      %s293 = sphi 0, %s292
      %s307 = sphi 0, %s293
      %s311 = sphi 0, %s311
      %s313 = sphi 0, %s311
      %s314 = sphi 0, %s313
      %s328 = sphi 0, %s314
      %s332 = sphi 0, %s332
      %s334 = sphi 0, %s332
      %s335 = sphi 0, %s334
      %s349 = sphi 0, %s335
      %s353 = sphi 0, %s353
      %s355 = sphi 0, %s353
      %s356 = sphi 0, %s355
      %s370 = sphi 0, %s356
      %s374 = sphi 0, %s374
      %s376 = sphi 0, %s374
      %s377 = sphi 0, %s376
      %s391 = sphi 0, %s377
      %s395 = sphi 0, %s395
      %s397 = sphi 0, %s395
      %s398 = sphi 0, %s397
      %s412 = sphi 0, %s398
      %s416 = sphi 0, %s416
      %s418 = sphi 0, %s416
      %s419 = sphi 0, %s418
      %s433 = sphi 0, %s419
      %s437 = sphi 0, %s437
      %s439 = sphi 0, %s437
      %s440 = sphi 0, %s439
      %s454 = sphi 0, %s440
      %s458 = sphi 0, %s458
      %s460 = sphi 0, %s458
      %s461 = sphi 0, %s460
      %s475 = sphi 0, %s461
      %s481 = sphi 0, %s483
      %s484 = sphi 0, %s481
      %s485 = sphi 0, %s484
      %s501 = sphi 0, %s485
    $region4: #{_forward_impl.1} parent=1 // loop_header_branch
      %44 = sbr.rel (%p42) target = $region8
    $region5: #{_forward_impl.1} parent=1 // loop_body
      %s46 = ssub.s32 %s41, 1
      %s47 = ssub.s32 %s41, 2
      %s48 = sadd.s32 %s41, 1
      %s49 = ssub.s32 %s41, %s48
      %p50 = scmp.eq.s32.totalorder %s49, 0
      %s52 = sadd.s32 %s51, 1
      %s53 = scalar_select %p50, %s51, %s52
      %p56 = pneg %p50
      %p57 = scmp.eq.s32.totalorder %s41, 1
      %p58 = por %p56, %p57
      %p59 = scmp.ne.s32.totalorder %s51, %s54
      %p60 = scmp.eq.s32.totalorder %s41, 0
      %p61 = por %p59, %p60
      %p62 = scmp.ne.s32.totalorder %s51, %s54
      %p63 = scmp.eq.s32.totalorder %s46, 1
      %p64 = por %p62, %p63
      %p65 = scmp.ne.s32.totalorder %s54, %s55
      %p66 = scmp.eq.s32.totalorder %s46, 0
      %p67 = por %p65, %p66
      %p68 = scmp.ne.s32.totalorder %s54, %s55
      %p69 = scmp.eq.s32.totalorder %s47, 1
      %p70 = por %p68, %p69
      %p72 = scmp.ne.s32.totalorder %s55, %s71
      %p73 = scmp.eq.s32.totalorder %s47, 0
      %p74 = por %p72, %p73
      %s75 = ssub.s32 %s41, %s48
      %p76 = scmp.eq.s32.totalorder %s75, 0
      %s78 = sadd.s32 %s77, 1
      %s79 = scalar_select %p76, %s77, %s78
      %p82 = pneg %p76
      %p83 = scmp.eq.s32.totalorder %s41, 1
      %p84 = por %p82, %p83
      %p85 = scmp.ne.s32.totalorder %s77, %s80
      %p86 = scmp.eq.s32.totalorder %s41, 0
      %p87 = por %p85, %p86
      %p88 = scmp.ne.s32.totalorder %s77, %s80
      %p89 = scmp.eq.s32.totalorder %s46, 1
      %p90 = por %p88, %p89
      %p91 = scmp.ne.s32.totalorder %s80, %s81
      %p92 = scmp.eq.s32.totalorder %s46, 0
      %p93 = por %p91, %p92
      %p94 = scmp.ne.s32.totalorder %s80, %s81
      %p95 = scmp.eq.s32.totalorder %s47, 1
      %p96 = por %p94, %p95
      %p98 = scmp.ne.s32.totalorder %s81, %s97
      %p99 = scmp.eq.s32.totalorder %s47, 0
      %p100 = por %p98, %p99
      %s102 = sadd.s32 %s101, 1
      %p105 = scmp.eq.s32.totalorder %s41, 1
      %p106 = scmp.ne.s32.totalorder %s101, %s103
      %p107 = scmp.eq.s32.totalorder %s41, 0
      %p108 = por %p106, %p107
      %p109 = scmp.ne.s32.totalorder %s101, %s103
      %p110 = scmp.eq.s32.totalorder %s46, 1
      %p111 = por %p109, %p110
      %p112 = scmp.ne.s32.totalorder %s103, %s104
      %p113 = scmp.eq.s32.totalorder %s46, 0
      %p114 = por %p112, %p113
      %p115 = scmp.ne.s32.totalorder %s103, %s104
      %p116 = scmp.eq.s32.totalorder %s47, 1
      %p117 = por %p115, %p116
      %p119 = scmp.ne.s32.totalorder %s104, %s118
      %p120 = scmp.eq.s32.totalorder %s47, 0
      %p121 = por %p119, %p120
      %s123 = sadd.s32 %s122, 1
      %p126 = scmp.eq.s32.totalorder %s41, 1
      %p127 = scmp.ne.s32.totalorder %s122, %s124
      %p128 = scmp.eq.s32.totalorder %s41, 0
      %p129 = por %p127, %p128
      %p130 = scmp.ne.s32.totalorder %s122, %s124
      %p131 = scmp.eq.s32.totalorder %s46, 1
      %p132 = por %p130, %p131
      %p133 = scmp.ne.s32.totalorder %s124, %s125
      %p134 = scmp.eq.s32.totalorder %s46, 0
      %p135 = por %p133, %p134
      %p136 = scmp.ne.s32.totalorder %s124, %s125
      %p137 = scmp.eq.s32.totalorder %s47, 1
      %p138 = por %p136, %p137
      %p140 = scmp.ne.s32.totalorder %s125, %s139
      %p141 = scmp.eq.s32.totalorder %s47, 0
      %p142 = por %p140, %p141
      %s144 = sadd.s32 %s143, 1
      %p147 = scmp.eq.s32.totalorder %s41, 1
      %p148 = scmp.ne.s32.totalorder %s143, %s145
      %p149 = scmp.eq.s32.totalorder %s41, 0
      %p150 = por %p148, %p149
      %p151 = scmp.ne.s32.totalorder %s143, %s145
      %p152 = scmp.eq.s32.totalorder %s46, 1
      %p153 = por %p151, %p152
      %p154 = scmp.ne.s32.totalorder %s145, %s146
      %p155 = scmp.eq.s32.totalorder %s46, 0
      %p156 = por %p154, %p155
      %p157 = scmp.ne.s32.totalorder %s145, %s146
      %p158 = scmp.eq.s32.totalorder %s47, 1
      %p159 = por %p157, %p158
      %p161 = scmp.ne.s32.totalorder %s146, %s160
      %p162 = scmp.eq.s32.totalorder %s47, 0
      %p163 = por %p161, %p162
      %s165 = sadd.s32 %s164, 1
      %p168 = scmp.eq.s32.totalorder %s41, 1
      %p169 = scmp.ne.s32.totalorder %s164, %s166
      %p170 = scmp.eq.s32.totalorder %s41, 0
      %p171 = por %p169, %p170
      %p172 = scmp.ne.s32.totalorder %s164, %s166
      %p173 = scmp.eq.s32.totalorder %s46, 1
      %p174 = por %p172, %p173
      %p175 = scmp.ne.s32.totalorder %s166, %s167
      %p176 = scmp.eq.s32.totalorder %s46, 0
      %p177 = por %p175, %p176
      %p178 = scmp.ne.s32.totalorder %s166, %s167
      %p179 = scmp.eq.s32.totalorder %s47, 1
      %p180 = por %p178, %p179
      %p182 = scmp.ne.s32.totalorder %s167, %s181
      %p183 = scmp.eq.s32.totalorder %s47, 0
      %p184 = por %p182, %p183
      %s186 = sadd.s32 %s185, 1
      %p189 = scmp.eq.s32.totalorder %s41, 1
      %p190 = scmp.ne.s32.totalorder %s185, %s187
      %p191 = scmp.eq.s32.totalorder %s41, 0
      %p192 = por %p190, %p191
      %p193 = scmp.ne.s32.totalorder %s185, %s187
      %p194 = scmp.eq.s32.totalorder %s46, 1
      %p195 = por %p193, %p194
      %p196 = scmp.ne.s32.totalorder %s187, %s188
      %p197 = scmp.eq.s32.totalorder %s46, 0
      %p198 = por %p196, %p197
      %p199 = scmp.ne.s32.totalorder %s187, %s188
      %p200 = scmp.eq.s32.totalorder %s47, 1
      %p201 = por %p199, %p200
      %p203 = scmp.ne.s32.totalorder %s188, %s202
      %p204 = scmp.eq.s32.totalorder %s47, 0
      %p205 = por %p203, %p204
      %s207 = sadd.s32 %s206, 1
      %p210 = scmp.eq.s32.totalorder %s41, 1
      %p211 = scmp.ne.s32.totalorder %s206, %s208
      %p212 = scmp.eq.s32.totalorder %s41, 0
      %p213 = por %p211, %p212
      %p214 = scmp.ne.s32.totalorder %s206, %s208
      %p215 = scmp.eq.s32.totalorder %s46, 1
      %p216 = por %p214, %p215
      %p217 = scmp.ne.s32.totalorder %s208, %s209
      %p218 = scmp.eq.s32.totalorder %s46, 0
      %p219 = por %p217, %p218
      %p220 = scmp.ne.s32.totalorder %s208, %s209
      %p221 = scmp.eq.s32.totalorder %s47, 1
      %p222 = por %p220, %p221
      %p224 = scmp.ne.s32.totalorder %s209, %s223
      %p225 = scmp.eq.s32.totalorder %s47, 0
      %p226 = por %p224, %p225
      %s228 = sadd.s32 %s227, 1
      %p231 = scmp.eq.s32.totalorder %s41, 1
      %p232 = scmp.ne.s32.totalorder %s227, %s229
      %p233 = scmp.eq.s32.totalorder %s41, 0
      %p234 = por %p232, %p233
      %p235 = scmp.ne.s32.totalorder %s227, %s229
      %p236 = scmp.eq.s32.totalorder %s46, 1
      %p237 = por %p235, %p236
      %p238 = scmp.ne.s32.totalorder %s229, %s230
      %p239 = scmp.eq.s32.totalorder %s46, 0
      %p240 = por %p238, %p239
      %p241 = scmp.ne.s32.totalorder %s229, %s230
      %p242 = scmp.eq.s32.totalorder %s47, 1
      %p243 = por %p241, %p242
      %p245 = scmp.ne.s32.totalorder %s230, %s244
      %p246 = scmp.eq.s32.totalorder %s47, 0
      %p247 = por %p245, %p246
      %s249 = sadd.s32 %s248, 1
      %p252 = scmp.eq.s32.totalorder %s41, 1
      %p253 = scmp.ne.s32.totalorder %s248, %s250
      %p254 = scmp.eq.s32.totalorder %s41, 0
      %p255 = por %p253, %p254
      %p256 = scmp.ne.s32.totalorder %s248, %s250
      %p257 = scmp.eq.s32.totalorder %s46, 1
      %p258 = por %p256, %p257
      %p259 = scmp.ne.s32.totalorder %s250, %s251
      %p260 = scmp.eq.s32.totalorder %s46, 0
      %p261 = por %p259, %p260
      %p262 = scmp.ne.s32.totalorder %s250, %s251
      %p263 = scmp.eq.s32.totalorder %s47, 1
      %p264 = por %p262, %p263
      %p266 = scmp.ne.s32.totalorder %s251, %s265
      %p267 = scmp.eq.s32.totalorder %s47, 0
      %p268 = por %p266, %p267
      %s270 = sadd.s32 %s269, 1
      %p273 = scmp.eq.s32.totalorder %s41, 1
      %p274 = scmp.ne.s32.totalorder %s269, %s271
      %p275 = scmp.eq.s32.totalorder %s41, 0
      %p276 = por %p274, %p275
      %p277 = scmp.ne.s32.totalorder %s269, %s271
      %p278 = scmp.eq.s32.totalorder %s46, 1
      %p279 = por %p277, %p278
      %p280 = scmp.ne.s32.totalorder %s271, %s272
      %p281 = scmp.eq.s32.totalorder %s46, 0
      %p282 = por %p280, %p281
      %p283 = scmp.ne.s32.totalorder %s271, %s272
      %p284 = scmp.eq.s32.totalorder %s47, 1
      %p285 = por %p283, %p284
      %p287 = scmp.ne.s32.totalorder %s272, %s286
      %p288 = scmp.eq.s32.totalorder %s47, 0
      %p289 = por %p287, %p288
      %s291 = sadd.s32 %s290, 1
      %p294 = scmp.eq.s32.totalorder %s41, 1
      %p295 = scmp.ne.s32.totalorder %s290, %s292
      %p296 = scmp.eq.s32.totalorder %s41, 0
      %p297 = por %p295, %p296
      %p298 = scmp.ne.s32.totalorder %s290, %s292
      %p299 = scmp.eq.s32.totalorder %s46, 1
      %p300 = por %p298, %p299
      %p301 = scmp.ne.s32.totalorder %s292, %s293
      %p302 = scmp.eq.s32.totalorder %s46, 0
      %p303 = por %p301, %p302
      %p304 = scmp.ne.s32.totalorder %s292, %s293
      %p305 = scmp.eq.s32.totalorder %s47, 1
      %p306 = por %p304, %p305
      %p308 = scmp.ne.s32.totalorder %s293, %s307
      %p309 = scmp.eq.s32.totalorder %s47, 0
      %p310 = por %p308, %p309
      %s312 = sadd.s32 %s311, 1
      %p315 = scmp.eq.s32.totalorder %s41, 1
      %p316 = scmp.ne.s32.totalorder %s311, %s313
      %p317 = scmp.eq.s32.totalorder %s41, 0
      %p318 = por %p316, %p317
      %p319 = scmp.ne.s32.totalorder %s311, %s313
      %p320 = scmp.eq.s32.totalorder %s46, 1
      %p321 = por %p319, %p320
      %p322 = scmp.ne.s32.totalorder %s313, %s314
      %p323 = scmp.eq.s32.totalorder %s46, 0
      %p324 = por %p322, %p323
      %p325 = scmp.ne.s32.totalorder %s313, %s314
      %p326 = scmp.eq.s32.totalorder %s47, 1
      %p327 = por %p325, %p326
      %p329 = scmp.ne.s32.totalorder %s314, %s328
      %p330 = scmp.eq.s32.totalorder %s47, 0
      %p331 = por %p329, %p330
      %s333 = sadd.s32 %s332, 1
      %p336 = scmp.eq.s32.totalorder %s41, 1
      %p337 = scmp.ne.s32.totalorder %s332, %s334
      %p338 = scmp.eq.s32.totalorder %s41, 0
      %p339 = por %p337, %p338
      %p340 = scmp.ne.s32.totalorder %s332, %s334
      %p341 = scmp.eq.s32.totalorder %s46, 1
      %p342 = por %p340, %p341
      %p343 = scmp.ne.s32.totalorder %s334, %s335
      %p344 = scmp.eq.s32.totalorder %s46, 0
      %p345 = por %p343, %p344
      %p346 = scmp.ne.s32.totalorder %s334, %s335
      %p347 = scmp.eq.s32.totalorder %s47, 1
      %p348 = por %p346, %p347
      %p350 = scmp.ne.s32.totalorder %s335, %s349
      %p351 = scmp.eq.s32.totalorder %s47, 0
      %p352 = por %p350, %p351
      %s354 = sadd.s32 %s353, 1
      %p357 = scmp.eq.s32.totalorder %s41, 1
      %p358 = scmp.ne.s32.totalorder %s353, %s355
      %p359 = scmp.eq.s32.totalorder %s41, 0
      %p360 = por %p358, %p359
      %p361 = scmp.ne.s32.totalorder %s353, %s355
      %p362 = scmp.eq.s32.totalorder %s46, 1
      %p363 = por %p361, %p362
      %p364 = scmp.ne.s32.totalorder %s355, %s356
      %p365 = scmp.eq.s32.totalorder %s46, 0
      %p366 = por %p364, %p365
      %p367 = scmp.ne.s32.totalorder %s355, %s356
      %p368 = scmp.eq.s32.totalorder %s47, 1
      %p369 = por %p367, %p368
      %p371 = scmp.ne.s32.totalorder %s356, %s370
      %p372 = scmp.eq.s32.totalorder %s47, 0
      %p373 = por %p371, %p372
      %s375 = sadd.s32 %s374, 1
      %p378 = scmp.eq.s32.totalorder %s41, 1
      %p379 = scmp.ne.s32.totalorder %s374, %s376
      %p380 = scmp.eq.s32.totalorder %s41, 0
      %p381 = por %p379, %p380
      %p382 = scmp.ne.s32.totalorder %s374, %s376
      %p383 = scmp.eq.s32.totalorder %s46, 1
      %p384 = por %p382, %p383
      %p385 = scmp.ne.s32.totalorder %s376, %s377
      %p386 = scmp.eq.s32.totalorder %s46, 0
      %p387 = por %p385, %p386
      %p388 = scmp.ne.s32.totalorder %s376, %s377
      %p389 = scmp.eq.s32.totalorder %s47, 1
      %p390 = por %p388, %p389
      %p392 = scmp.ne.s32.totalorder %s377, %s391
      %p393 = scmp.eq.s32.totalorder %s47, 0
      %p394 = por %p392, %p393
      %s396 = sadd.s32 %s395, 1
      %p399 = scmp.eq.s32.totalorder %s41, 1
      %p400 = scmp.ne.s32.totalorder %s395, %s397
      %p401 = scmp.eq.s32.totalorder %s41, 0
      %p402 = por %p400, %p401
      %p403 = scmp.ne.s32.totalorder %s395, %s397
      %p404 = scmp.eq.s32.totalorder %s46, 1
      %p405 = por %p403, %p404
      %p406 = scmp.ne.s32.totalorder %s397, %s398
      %p407 = scmp.eq.s32.totalorder %s46, 0
      %p408 = por %p406, %p407
      %p409 = scmp.ne.s32.totalorder %s397, %s398
      %p410 = scmp.eq.s32.totalorder %s47, 1
      %p411 = por %p409, %p410
      %p413 = scmp.ne.s32.totalorder %s398, %s412
      %p414 = scmp.eq.s32.totalorder %s47, 0
      %p415 = por %p413, %p414
      %s417 = sadd.s32 %s416, 1
      %p420 = scmp.eq.s32.totalorder %s41, 1
      %p421 = scmp.ne.s32.totalorder %s416, %s418
      %p422 = scmp.eq.s32.totalorder %s41, 0
      %p423 = por %p421, %p422
      %p424 = scmp.ne.s32.totalorder %s416, %s418
      %p425 = scmp.eq.s32.totalorder %s46, 1
      %p426 = por %p424, %p425
      %p427 = scmp.ne.s32.totalorder %s418, %s419
      %p428 = scmp.eq.s32.totalorder %s46, 0
      %p429 = por %p427, %p428
      %p430 = scmp.ne.s32.totalorder %s418, %s419
      %p431 = scmp.eq.s32.totalorder %s47, 1
      %p432 = por %p430, %p431
      %p434 = scmp.ne.s32.totalorder %s419, %s433
      %p435 = scmp.eq.s32.totalorder %s47, 0
      %p436 = por %p434, %p435
      %s438 = sadd.s32 %s437, 1
      %p441 = scmp.eq.s32.totalorder %s41, 1
      %p442 = scmp.ne.s32.totalorder %s437, %s439
      %p443 = scmp.eq.s32.totalorder %s41, 0
      %p444 = por %p442, %p443
      %p445 = scmp.ne.s32.totalorder %s437, %s439
      %p446 = scmp.eq.s32.totalorder %s46, 1
      %p447 = por %p445, %p446
      %p448 = scmp.ne.s32.totalorder %s439, %s440
      %p449 = scmp.eq.s32.totalorder %s46, 0
      %p450 = por %p448, %p449
      %p451 = scmp.ne.s32.totalorder %s439, %s440
      %p452 = scmp.eq.s32.totalorder %s47, 1
      %p453 = por %p451, %p452
      %p455 = scmp.ne.s32.totalorder %s440, %s454
      %p456 = scmp.eq.s32.totalorder %s47, 0
      %p457 = por %p455, %p456
      %s459 = sadd.s32 %s458, 1
      %p462 = scmp.eq.s32.totalorder %s41, 1
      %p463 = scmp.ne.s32.totalorder %s458, %s460
      %p464 = scmp.eq.s32.totalorder %s41, 0
      %p465 = por %p463, %p464
      %p466 = scmp.ne.s32.totalorder %s458, %s460
      %p467 = scmp.eq.s32.totalorder %s46, 1
      %p468 = por %p466, %p467
      %p469 = scmp.ne.s32.totalorder %s460, %s461
      %p470 = scmp.eq.s32.totalorder %s46, 0
      %p471 = por %p469, %p470
      %p472 = scmp.ne.s32.totalorder %s460, %s461
      %p473 = scmp.eq.s32.totalorder %s47, 1
      %p474 = por %p472, %p473
      %p476 = scmp.ne.s32.totalorder %s461, %s475
      %p477 = scmp.eq.s32.totalorder %s47, 0
      %p478 = por %p476, %p477
      %s479 = ssub.s32 %s41, %s48
      %p480 = scmp.eq.s32.totalorder %s479, 0
      %s482 = sadd.s32 %s481, 1
      %s483 = scalar_select %p480, %s481, %s482
      %p486 = pneg %p480
      %p487 = scmp.eq.s32.totalorder %s41, 1
      %p488 = por %p486, %p487
      %p489 = scmp.ne.s32.totalorder %s481, %s484
      %p490 = scmp.eq.s32.totalorder %s41, 0
      %p491 = por %p489, %p490
      %p492 = scmp.ne.s32.totalorder %s481, %s484
      %p493 = scmp.eq.s32.totalorder %s46, 1
      %p494 = por %p492, %p493
      %p495 = scmp.ne.s32.totalorder %s484, %s485
      %p496 = scmp.eq.s32.totalorder %s46, 0
      %p497 = por %p495, %p496
      %p498 = scmp.ne.s32.totalorder %s484, %s485
      %p499 = scmp.eq.s32.totalorder %s47, 1
      %p500 = por %p498, %p499
      %p502 = scmp.ne.s32.totalorder %s485, %s501
      %p503 = scmp.eq.s32.totalorder %s47, 0
      %p504 = por %p502, %p503
      %p505 = scmp.le.s32.totalorder 1, %s41
      %p506 = scmp.lt.s32.totalorder %s41, 3
      %p507 = pnand %p505, %p506
      %p508 = pneg %p507
      // Predicated region
      $region9: #{_forward_impl.1} parent=5 // pred_check
        _
      $region10: #{_forward_impl.1} parent=5 // pred_check_branch
        %510 = sbr.rel (%p507) target = $region12
      $region11: #{_forward_impl.1} parent=5 // pred_region
        %s511 = ssub.s32 %s41, 1
        // Predicated region
        $region13: #{_forward_impl.1} parent=11 // pred_check
          %p512 = pneg %p114
        $region14: #{_forward_impl.1} parent=11 // pred_check_branch
          %514 = sbr.rel (%p512) target = $region16
        $region15: #{_forward_impl.1} parent=11 // pred_region
          %s516 = ssub.s32 5888, 5888
          %517 = vsyncadd [#allocation5], %s516
          %s518 = sshll.u32 [#allocation6], 4
          %s519 = int_to_ptr.vmem [resolvable:$true] %s518
          %524 = dma.hbm_to_vmem [thread:$0]  %s2, 5888, %s519, [#allocation5], 256, 256, 16
        $region16: #{_forward_impl.1} parent=11 // pred_fallthru
          _
        // Predicated region
        $region17: #{_forward_impl.1} parent=11 // pred_check
          %p525 = pneg %p135
        $region18: #{_forward_impl.1} parent=11 // pred_check_branch
          %527 = sbr.rel (%p525) target = $region20
        $region19: #{_forward_impl.1} parent=11 // pred_region
          %s529 = ssub.s32 1408, 1408
          %530 = vsyncadd [#allocation8], %s529
          %s531 = sshll.u32 [#allocation7], 4
          %s532 = int_to_ptr.vmem [resolvable:$true] %s531
          %537 = dma.hbm_to_vmem [thread:$0]  %s3, 1408, %s532, [#allocation8], 128, 128, 8
        $region20: #{_forward_impl.1} parent=11 // pred_fallthru
          _
        // Predicated region
        $region21: #{_forward_impl.1} parent=11 // pred_check
          %p538 = pneg %p156
        $region22: #{_forward_impl.1} parent=11 // pred_check_branch
          %540 = sbr.rel (%p538) target = $region24
        $region23: #{_forward_impl.1} parent=11 // pred_region
          %s542 = ssub.s32 640, 640
          %543 = vsyncadd [#allocation8], %s542
          %s544 = sshll.u32 [#allocation9], 4
          %s545 = int_to_ptr.vmem [resolvable:$true] %s544
          %550 = dma.hbm_to_vmem [thread:$0]  %s4, 640, %s545, [#allocation8], 128, 128, 8
        $region24: #{_forward_impl.1} parent=11 // pred_fallthru
          _
        // Predicated region
        $region25: #{_forward_impl.1} parent=11 // pred_check
          %p551 = pneg %p177
        $region26: #{_forward_impl.1} parent=11 // pred_check_branch
          %553 = sbr.rel (%p551) target = $region28
        $region27: #{_forward_impl.1} parent=11 // pred_region
          %s555 = ssub.s32 256, 256
          %556 = vsyncadd [#allocation11], %s555
          %s557 = sshll.u32 [#allocation10], 4
          %s558 = int_to_ptr.vmem [resolvable:$true] %s557
          %563 = dma.hbm_to_vmem [thread:$0]  %s5, 256, %s558, [#allocation11], 128, 128, 8
        $region28: #{_forward_impl.1} parent=11 // pred_fallthru
          _
        // Predicated region
        $region29: #{_forward_impl.1} parent=11 // pred_check
          %p564 = pneg %p198
        $region30: #{_forward_impl.1} parent=11 // pred_check_branch
          %566 = sbr.rel (%p564) target = $region32
        $region31: #{_forward_impl.1} parent=11 // pred_region
          %s568 = ssub.s32 128, 128
          %569 = vsyncadd [#allocation11], %s568
          %s571 = sshll.u32 [#allocation12], 4
          %s572 = int_to_ptr.vmem [resolvable:$true] %s571
          %574 = dma.hbm_to_vmem [thread:$0]  %s6, 128, %s572, [#allocation11]
        $region32: #{_forward_impl.1} parent=11 // pred_fallthru
          _
        // Predicated region
        $region33: #{_forward_impl.1} parent=11 // pred_check
          %p575 = pneg %p219
        $region34: #{_forward_impl.1} parent=11 // pred_check_branch
          %577 = sbr.rel (%p575) target = $region36
        $region35: #{_forward_impl.1} parent=11 // pred_region
          %s579 = ssub.s32 6144, 6144
          %580 = vsyncadd [#allocation14], %s579
          %s581 = sshll.u32 [#allocation13], 4
          %s582 = int_to_ptr.vmem [resolvable:$true] %s581
          %587 = dma.hbm_to_vmem [thread:$0]  %s7, 6144, %s582, [#allocation14], 256, 256, 16
        $region36: #{_forward_impl.1} parent=11 // pred_fallthru
          _
        // Predicated region
        $region37: #{_forward_impl.1} parent=11 // pred_check
          %p588 = pneg %p240
        $region38: #{_forward_impl.1} parent=11 // pred_check_branch
          %590 = sbr.rel (%p588) target = $region40
        $region39: #{_forward_impl.1} parent=11 // pred_region
          %s592 = ssub.s32 1536, 1536
          %593 = vsyncadd [#allocation14], %s592
          %s594 = sshll.u32 [#allocation15], 4
          %s595 = int_to_ptr.vmem [resolvable:$true] %s594
          %600 = dma.hbm_to_vmem [thread:$0]  %s8, 1536, %s595, [#allocation14], 128, 128, 8
        $region40: #{_forward_impl.1} parent=11 // pred_fallthru
          _
        // Predicated region
        $region41: #{_forward_impl.1} parent=11 // pred_check
          %p601 = pneg %p261
        $region42: #{_forward_impl.1} parent=11 // pred_check_branch
          %603 = sbr.rel (%p601) target = $region44
        $region43: #{_forward_impl.1} parent=11 // pred_region
          %s605 = ssub.s32 768, 768
          %606 = vsyncadd [#allocation17], %s605
          %s607 = sshll.u32 [#allocation16], 4
          %s608 = int_to_ptr.vmem [resolvable:$true] %s607
          %613 = dma.hbm_to_vmem [thread:$0]  %s9, 768, %s608, [#allocation17], 128, 128, 8
        $region44: #{_forward_impl.1} parent=11 // pred_fallthru
          _
        // Predicated region
        $region45: #{_forward_impl.1} parent=11 // pred_check
          %p614 = pneg %p282
        $region46: #{_forward_impl.1} parent=11 // pred_check_branch
          %616 = sbr.rel (%p614) target = $region48
        $region47: #{_forward_impl.1} parent=11 // pred_region
          %s618 = ssub.s32 384, 384
          %619 = vsyncadd [#allocation17], %s618
          %s620 = sshll.u32 [#allocation18], 4
          %s621 = int_to_ptr.vmem [resolvable:$true] %s620
          %626 = dma.hbm_to_vmem [thread:$0]  %s10, 384, %s621, [#allocation17], 128, 128, 8
        $region48: #{_forward_impl.1} parent=11 // pred_fallthru
          _
        // Predicated region
        $region49: #{_forward_impl.1} parent=11 // pred_check
          %p627 = pneg %p303
        $region50: #{_forward_impl.1} parent=11 // pred_check_branch
          %629 = sbr.rel (%p627) target = $region52
        $region51: #{_forward_impl.1} parent=11 // pred_region
          %s631 = ssub.s32 256, 256
          %632 = vsyncadd [#allocation20], %s631
          %s633 = sshll.u32 [#allocation19], 4
          %s634 = int_to_ptr.vmem [resolvable:$true] %s633
          %639 = dma.hbm_to_vmem [thread:$0]  %s11, 256, %s634, [#allocation20], 128, 128, 8
        $region52: #{_forward_impl.1} parent=11 // pred_fallthru
          _
        // Predicated region
        $region53: #{_forward_impl.1} parent=11 // pred_check
          %p640 = pneg %p324
        $region54: #{_forward_impl.1} parent=11 // pred_check_branch
          %642 = sbr.rel (%p640) target = $region56
        $region55: #{_forward_impl.1} parent=11 // pred_region
          %s644 = ssub.s32 3072, 3072
          %645 = vsyncadd [#allocation20], %s644
          %s646 = sshll.u32 [#allocation21], 4
          %s647 = int_to_ptr.vmem [resolvable:$true] %s646
          %652 = dma.hbm_to_vmem [thread:$0]  %s12, 3072, %s647, [#allocation20], 256, 256, 16
        $region56: #{_forward_impl.1} parent=11 // pred_fallthru
          _
        // Predicated region
        $region57: #{_forward_impl.1} parent=11 // pred_check
          %p653 = pneg %p345
        $region58: #{_forward_impl.1} parent=11 // pred_check_branch
          %655 = sbr.rel (%p653) target = $region60
        $region59: #{_forward_impl.1} parent=11 // pred_region
          %s657 = ssub.s32 768, 768
          %658 = vsyncadd [#allocation23], %s657
          %s659 = sshll.u32 [#allocation22], 4
          %s660 = int_to_ptr.vmem [resolvable:$true] %s659
          %665 = dma.hbm_to_vmem [thread:$0]  %s13, 768, %s660, [#allocation23], 128, 128, 8
        $region60: #{_forward_impl.1} parent=11 // pred_fallthru
          _
        // Predicated region
        $region61: #{_forward_impl.1} parent=11 // pred_check
          %p666 = pneg %p366
        $region62: #{_forward_impl.1} parent=11 // pred_check_branch
          %668 = sbr.rel (%p666) target = $region64
        $region63: #{_forward_impl.1} parent=11 // pred_region
          %s670 = ssub.s32 384, 384
          %671 = vsyncadd [#allocation23], %s670
          %s672 = sshll.u32 [#allocation24], 4
          %s673 = int_to_ptr.vmem [resolvable:$true] %s672
          %678 = dma.hbm_to_vmem [thread:$0]  %s14, 384, %s673, [#allocation23], 128, 128, 8
        $region64: #{_forward_impl.1} parent=11 // pred_fallthru
          _
        // Predicated region
        $region65: #{_forward_impl.1} parent=11 // pred_check
          %p679 = pneg %p387
        $region66: #{_forward_impl.1} parent=11 // pred_check_branch
          %681 = sbr.rel (%p679) target = $region68
        $region67: #{_forward_impl.1} parent=11 // pred_region
          %s683 = ssub.s32 256, 256
          %684 = vsyncadd [#allocation26], %s683
          %s685 = sshll.u32 [#allocation25], 4
          %s686 = int_to_ptr.vmem [resolvable:$true] %s685
          %691 = dma.hbm_to_vmem [thread:$0]  %s15, 256, %s686, [#allocation26], 128, 128, 8
        $region68: #{_forward_impl.1} parent=11 // pred_fallthru
          _
        // Predicated region
        $region69: #{_forward_impl.1} parent=11 // pred_check
          %p692 = pneg %p408
        $region70: #{_forward_impl.1} parent=11 // pred_check_branch
          %694 = sbr.rel (%p692) target = $region72
        $region71: #{_forward_impl.1} parent=11 // pred_region
          %s696 = ssub.s32 3072, 3072
          %697 = vsyncadd [#allocation26], %s696
          %s698 = sshll.u32 [#allocation27], 4
          %s699 = int_to_ptr.vmem [resolvable:$true] %s698
          %704 = dma.hbm_to_vmem [thread:$0]  %s16, 3072, %s699, [#allocation26], 128, 128, 8
        $region72: #{_forward_impl.1} parent=11 // pred_fallthru
          _
        // Predicated region
        $region73: #{_forward_impl.1} parent=11 // pred_check
          %p705 = pneg %p429
        $region74: #{_forward_impl.1} parent=11 // pred_check_branch
          %707 = sbr.rel (%p705) target = $region76
        $region75: #{_forward_impl.1} parent=11 // pred_region
          %s709 = ssub.s32 1536, 1536
          %710 = vsyncadd [#allocation29], %s709
          %s711 = sshll.u32 [#allocation28], 4
          %s712 = int_to_ptr.vmem [resolvable:$true] %s711
          %717 = dma.hbm_to_vmem [thread:$0]  %s17, 1536, %s712, [#allocation29], 128, 128, 8
        $region76: #{_forward_impl.1} parent=11 // pred_fallthru
          _
        // Predicated region
        $region77: #{_forward_impl.1} parent=11 // pred_check
          %p718 = pneg %p450
        $region78: #{_forward_impl.1} parent=11 // pred_check_branch
          %720 = sbr.rel (%p718) target = $region80
        $region79: #{_forward_impl.1} parent=11 // pred_region
          %s722 = ssub.s32 768, 768
          %723 = vsyncadd [#allocation29], %s722
          %s724 = sshll.u32 [#allocation30], 4
          %s725 = int_to_ptr.vmem [resolvable:$true] %s724
          %730 = dma.hbm_to_vmem [thread:$0]  %s18, 768, %s725, [#allocation29], 128, 128, 8
        $region80: #{_forward_impl.1} parent=11 // pred_fallthru
          _
        // Predicated region
        $region81: #{_forward_impl.1} parent=11 // pred_check
          %p731 = pneg %p471
        $region82: #{_forward_impl.1} parent=11 // pred_check_branch
          %733 = sbr.rel (%p731) target = $region84
        $region83: #{_forward_impl.1} parent=11 // pred_region
          %s735 = ssub.s32 384, 384
          %736 = vsyncadd [#allocation32], %s735
          %s737 = sshll.u32 [#allocation31], 4
          %s738 = int_to_ptr.vmem [resolvable:$true] %s737
          %743 = dma.hbm_to_vmem [thread:$0]  %s19, 384, %s738, [#allocation32], 128, 128, 8
        $region84: #{_forward_impl.1} parent=11 // pred_fallthru
          _
      $region12: #{_forward_impl.1} parent=5 // pred_fallthru
        _
      %p744 = scmp.lt.s32.totalorder %s41, 2
      // Predicated region
      $region85: #{_forward_impl.1} parent=5 // pred_check
        %p745 = pneg %p744
      $region86: #{_forward_impl.1} parent=5 // pred_check_branch
        %747 = sbr.rel (%p745) target = $region88
      $region87: #{_forward_impl.1} parent=5 // pred_region
        // Predicated region
        $region89: #{_forward_impl.1} parent=87 // pred_check
          %p748 = pneg %p61
        $region90: #{_forward_impl.1} parent=87 // pred_check_branch
          %750 = sbr.rel (%p748) target = $region92
        $region91: #{_forward_impl.1} parent=87 // pred_region
          %s751 = sand.u32 %s51, 1
          %s752 = scalar_lea.sflag [#allocation3], %s751
          %s753 = sand.u32 %s51, 1
          %s754 = smul.addr %s753, 1152
          %s755 = scalar_lea.vmem [#allocation2], %s754
          %s756 = smul.u32 3, %s41
          %s758 = ssub.s32 18432, 18432
          %759 = vsyncadd %s752, %s758
          %s760 = smul.addr %s756, 48
          %s761 = smul.addr %s760, 128
          %s762 = scalar_lea.hbm %s0, %s761
          %s763 = sshll.u32 %s755, 4
          %s764 = int_to_ptr.vmem [resolvable:$true] %s763
          %769 = dma.hbm_to_vmem [thread:$0]  %s762, 18432, %s764, %s752, 256, 256, 16
        $region92: #{_forward_impl.1} parent=87 // pred_fallthru
          _
        // Predicated region
        $region93: #{_forward_impl.1} parent=87 // pred_check
          %p770 = pneg %p87
        $region94: #{_forward_impl.1} parent=87 // pred_check_branch
          %772 = sbr.rel (%p770) target = $region96
        $region95: #{_forward_impl.1} parent=87 // pred_region
          %s773 = sand.u32 %s41, 1
          %s774 = scalar_lea.sflag [#allocation5], %s773
          %s775 = sand.u32 %s77, 1
          %s776 = smul.addr %s775, 1152
          %s777 = scalar_lea.vmem [#allocation4], %s776
          %s778 = smul.u32 3, %s41
          %s780 = ssub.s32 18432, 18432
          %781 = vsyncadd %s774, %s780
          %s782 = smul.addr %s778, 48
          %s783 = smul.addr %s782, 128
          %s784 = scalar_lea.hbm %s1, %s783
          %s785 = sshll.u32 %s777, 4
          %s786 = int_to_ptr.vmem [resolvable:$true] %s785
          %791 = dma.hbm_to_vmem [thread:$0]  %s784, 18432, %s786, %s774, 256, 256, 16
        $region96: #{_forward_impl.1} parent=87 // pred_fallthru
          _
      $region88: #{_forward_impl.1} parent=5 // pred_fallthru
        _
      %p792 = scmp.le.s32.totalorder 1, %s41
      %p793 = scmp.lt.s32.totalorder %s41, 3
      %p794 = pnand %p792, %p793
      %p795 = pneg %p794
      // Predicated region
      $region97: #{_forward_impl.1} parent=5 // pred_check
        _
      $region98: #{_forward_impl.1} parent=5 // pred_check_branch
        %797 = sbr.rel (%p794) target = $region100
      $region99: #{_forward_impl.1} parent=5 // pred_region
        %s798 = ssub.s32 %s41, 1
        %s799 = sand.u32 %s54, 1
        %s800 = scalar_lea.sflag [#allocation3], %s799
        %s801 = sand.u32 %s54, 1
        %s802 = smul.addr %s801, 1152
        %s803 = scalar_lea.vmem [#allocation2], %s802
        // Predicated region
        $region101: #{_forward_impl.1} parent=99 // pred_check
          %p804 = pneg %p67
        $region102: #{_forward_impl.1} parent=99 // pred_check_branch
          %806 = sbr.rel (%p804) target = $region104
        $region103: #{_forward_impl.1} parent=99 // pred_region
          %807 = dma.done %s800, 18432
        $region104: #{_forward_impl.1} parent=99 // pred_fallthru
          _
        %s808 = sand.u32 %s46, 1
        %s809 = scalar_lea.sflag [#allocation5], %s808
        %s810 = sand.u32 %s80, 1
        %s811 = smul.addr %s810, 1152
        %s812 = scalar_lea.vmem [#allocation4], %s811
        // Predicated region
        $region105: #{_forward_impl.1} parent=99 // pred_check
          %p813 = pneg %p93
        $region106: #{_forward_impl.1} parent=99 // pred_check_branch
          %815 = sbr.rel (%p813) target = $region108
        $region107: #{_forward_impl.1} parent=99 // pred_region
          %816 = dma.done %s809, 18432
        $region108: #{_forward_impl.1} parent=99 // pred_fallthru
          _
        // Predicated region
        $region109: #{_forward_impl.1} parent=99 // pred_check
          %p817 = pneg %p114
        $region110: #{_forward_impl.1} parent=99 // pred_check_branch
          %819 = sbr.rel (%p817) target = $region112
        $region111: #{_forward_impl.1} parent=99 // pred_region
          %820 = dma.done [#allocation5], 5888
        $region112: #{_forward_impl.1} parent=99 // pred_fallthru
          _
        // Predicated region
        $region113: #{_forward_impl.1} parent=99 // pred_check
          %p821 = pneg %p135
        $region114: #{_forward_impl.1} parent=99 // pred_check_branch
          %823 = sbr.rel (%p821) target = $region116
        $region115: #{_forward_impl.1} parent=99 // pred_region
          %824 = dma.done [#allocation8], 1408
        $region116: #{_forward_impl.1} parent=99 // pred_fallthru
          _
        // Predicated region
        $region117: #{_forward_impl.1} parent=99 // pred_check
          %p825 = pneg %p156
        $region118: #{_forward_impl.1} parent=99 // pred_check_branch
          %827 = sbr.rel (%p825) target = $region120
        $region119: #{_forward_impl.1} parent=99 // pred_region
          %828 = dma.done [#allocation8], 640
        $region120: #{_forward_impl.1} parent=99 // pred_fallthru
          _
        // Predicated region
        $region121: #{_forward_impl.1} parent=99 // pred_check
          %p829 = pneg %p177
        $region122: #{_forward_impl.1} parent=99 // pred_check_branch
          %831 = sbr.rel (%p829) target = $region124
        $region123: #{_forward_impl.1} parent=99 // pred_region
          %832 = dma.done [#allocation11], 256
        $region124: #{_forward_impl.1} parent=99 // pred_fallthru
          _
        // Predicated region
        $region125: #{_forward_impl.1} parent=99 // pred_check
          %p833 = pneg %p198
        $region126: #{_forward_impl.1} parent=99 // pred_check_branch
          %835 = sbr.rel (%p833) target = $region128
        $region127: #{_forward_impl.1} parent=99 // pred_region
          %836 = dma.done [#allocation11], 128
        $region128: #{_forward_impl.1} parent=99 // pred_fallthru
          _
        // Predicated region
        $region129: #{_forward_impl.1} parent=99 // pred_check
          %p837 = pneg %p219
        $region130: #{_forward_impl.1} parent=99 // pred_check_branch
          %839 = sbr.rel (%p837) target = $region132
        $region131: #{_forward_impl.1} parent=99 // pred_region
          %840 = dma.done [#allocation14], 6144
        $region132: #{_forward_impl.1} parent=99 // pred_fallthru
          _
        // Predicated region
        $region133: #{_forward_impl.1} parent=99 // pred_check
          %p841 = pneg %p240
        $region134: #{_forward_impl.1} parent=99 // pred_check_branch
          %843 = sbr.rel (%p841) target = $region136
        $region135: #{_forward_impl.1} parent=99 // pred_region
          %844 = dma.done [#allocation14], 1536
        $region136: #{_forward_impl.1} parent=99 // pred_fallthru
          _
        // Predicated region
        $region137: #{_forward_impl.1} parent=99 // pred_check
          %p845 = pneg %p261
        $region138: #{_forward_impl.1} parent=99 // pred_check_branch
          %847 = sbr.rel (%p845) target = $region140
        $region139: #{_forward_impl.1} parent=99 // pred_region
          %848 = dma.done [#allocation17], 768
        $region140: #{_forward_impl.1} parent=99 // pred_fallthru
          _
        // Predicated region
        $region141: #{_forward_impl.1} parent=99 // pred_check
          %p849 = pneg %p282
        $region142: #{_forward_impl.1} parent=99 // pred_check_branch
          %851 = sbr.rel (%p849) target = $region144
        $region143: #{_forward_impl.1} parent=99 // pred_region
          %852 = dma.done [#allocation17], 384
        $region144: #{_forward_impl.1} parent=99 // pred_fallthru
          _
        // Predicated region
        $region145: #{_forward_impl.1} parent=99 // pred_check
          %p853 = pneg %p303
        $region146: #{_forward_impl.1} parent=99 // pred_check_branch
          %855 = sbr.rel (%p853) target = $region148
        $region147: #{_forward_impl.1} parent=99 // pred_region
          %856 = dma.done [#allocation20], 256
        $region148: #{_forward_impl.1} parent=99 // pred_fallthru
          _
        // Predicated region
        $region149: #{_forward_impl.1} parent=99 // pred_check
          %p857 = pneg %p324
        $region150: #{_forward_impl.1} parent=99 // pred_check_branch
          %859 = sbr.rel (%p857) target = $region152
        $region151: #{_forward_impl.1} parent=99 // pred_region
          %860 = dma.done [#allocation20], 3072
        $region152: #{_forward_impl.1} parent=99 // pred_fallthru
          _
        // Predicated region
        $region153: #{_forward_impl.1} parent=99 // pred_check
          %p861 = pneg %p345
        $region154: #{_forward_impl.1} parent=99 // pred_check_branch
          %863 = sbr.rel (%p861) target = $region156
        $region155: #{_forward_impl.1} parent=99 // pred_region
          %864 = dma.done [#allocation23], 768
        $region156: #{_forward_impl.1} parent=99 // pred_fallthru
          _
        // Predicated region
        $region157: #{_forward_impl.1} parent=99 // pred_check
          %p865 = pneg %p366
        $region158: #{_forward_impl.1} parent=99 // pred_check_branch
          %867 = sbr.rel (%p865) target = $region160
        $region159: #{_forward_impl.1} parent=99 // pred_region
          %868 = dma.done [#allocation23], 384
        $region160: #{_forward_impl.1} parent=99 // pred_fallthru
          _
        // Predicated region
        $region161: #{_forward_impl.1} parent=99 // pred_check
          %p869 = pneg %p387
        $region162: #{_forward_impl.1} parent=99 // pred_check_branch
          %871 = sbr.rel (%p869) target = $region164
        $region163: #{_forward_impl.1} parent=99 // pred_region
          %872 = dma.done [#allocation26], 256
        $region164: #{_forward_impl.1} parent=99 // pred_fallthru
          _
        // Predicated region
        $region165: #{_forward_impl.1} parent=99 // pred_check
          %p873 = pneg %p408
        $region166: #{_forward_impl.1} parent=99 // pred_check_branch
          %875 = sbr.rel (%p873) target = $region168
        $region167: #{_forward_impl.1} parent=99 // pred_region
          %876 = dma.done [#allocation26], 3072
        $region168: #{_forward_impl.1} parent=99 // pred_fallthru
          _
        // Predicated region
        $region169: #{_forward_impl.1} parent=99 // pred_check
          %p877 = pneg %p429
        $region170: #{_forward_impl.1} parent=99 // pred_check_branch
          %879 = sbr.rel (%p877) target = $region172
        $region171: #{_forward_impl.1} parent=99 // pred_region
          %880 = dma.done [#allocation29], 1536
        $region172: #{_forward_impl.1} parent=99 // pred_fallthru
          _
        // Predicated region
        $region173: #{_forward_impl.1} parent=99 // pred_check
          %p881 = pneg %p450
        $region174: #{_forward_impl.1} parent=99 // pred_check_branch
          %883 = sbr.rel (%p881) target = $region176
        $region175: #{_forward_impl.1} parent=99 // pred_region
          %884 = dma.done [#allocation29], 768
        $region176: #{_forward_impl.1} parent=99 // pred_fallthru
          _
        // Predicated region
        $region177: #{_forward_impl.1} parent=99 // pred_check
          %p885 = pneg %p471
        $region178: #{_forward_impl.1} parent=99 // pred_check_branch
          %887 = sbr.rel (%p885) target = $region180
        $region179: #{_forward_impl.1} parent=99 // pred_region
          %888 = dma.done [#allocation32], 384
        $region180: #{_forward_impl.1} parent=99 // pred_fallthru
          _
        %s889 = sand.u32 %s54, 1
        %s890 = scalar_lea.sflag [#allocation3], %s889
        %s891 = sand.u32 %s54, 1
        %s892 = smul.addr %s891, 1152
        %s893 = scalar_lea.vmem [#allocation2], %s892
        %p894 = pneg %p67
        %p895 = pneg %p64
        %s896 = sand.u32 %s46, 1
        %s897 = scalar_lea.sflag [#allocation5], %s896
        %s898 = sand.u32 %s80, 1
        %s899 = smul.addr %s898, 1152
        %s900 = scalar_lea.vmem [#allocation4], %s899
        %p901 = pneg %p93
        %p902 = pneg %p90
        %p903 = pneg %p114
        %p904 = pneg %p111
        %p905 = pneg %p135
        %p906 = pneg %p132
        %p907 = pneg %p156
        %p908 = pneg %p153
        %p909 = pneg %p177
        %p910 = pneg %p174
        %p911 = pneg %p198
        %p912 = pneg %p195
        %p913 = pneg %p219
        %p914 = pneg %p216
        %p915 = pneg %p240
        %p916 = pneg %p237
        %p917 = pneg %p261
        %p918 = pneg %p258
        %p919 = pneg %p282
        %p920 = pneg %p279
        %p921 = pneg %p303
        %p922 = pneg %p300
        %p923 = pneg %p324
        %p924 = pneg %p321
        %p925 = pneg %p345
        %p926 = pneg %p342
        %p927 = pneg %p366
        %p928 = pneg %p363
        %p929 = pneg %p387
        %p930 = pneg %p384
        %p931 = pneg %p408
        %p932 = pneg %p405
        %p933 = pneg %p429
        %p934 = pneg %p426
        %p935 = pneg %p450
        %p936 = pneg %p447
        %p937 = pneg %p471
        %p938 = pneg %p468
        %p939 = pneg %p497
        %p940 = pneg %p494
        %p941 = scmp.lt.s32.totalorder %s46, 1
        %s942 = scalar_select %p941, %s46, 1
        %s943 = smul.addr %s942, 2
        %s944 = smul.addr %s943, 8
        %s945 = scalar_lea.vmem %s20, %s944
        %s946 = smul.u32 3, %s46
        %s947 = smul.u32 3, %s46
        %p948 = scmp.lt.s32.totalorder %s46, 1
        %s949 = scalar_select %p948, %s46, 1
        %s950 = smul.addr %s949, 2
        %s951 = smul.addr %s950, 8
        %s952 = scalar_lea.vmem %s20, %s951
        %v953 = vlaneseq
        %v954 = vshrl.u32 %v953, 7
        %v955 = vadd.s32 %v954, 8
        %v956 = vlaneseq
        %v957 = vand.u32 %v956, 127
        loop: start=0, step=1, limit=3
        $region181: #{_forward_impl.1} parent=99 // loop_pre_header
          _
        $region182: #{_forward_impl.1} parent=99 // loop_header
          %s959 = sphi 0, %s963
          %p960 = scmp.ge.s32.totalorder %s959, 3
          %v964 = vphi 0.0, %v9908
          %v965 = vphi 0.0, %v9909
        $region183: #{_forward_impl.1} parent=99 // loop_header_branch
          %962 = sbr.rel (%p960) target = $region187
        $region184: #{_forward_impl.1} parent=99 // loop_body
          %s966 = smul.u32 %s959, 48
          %s967 = smul.addr %s966, 8
          %s968 = scalar_lea.vmem %s803, %s967 [#allocation2]
          %v969 = vld [vmem:[%s968] sm:$0xff]
          %v970 = vld [vmem:[%s968 + $0x8] sm:$0xff]
          %v971 = vld [vmem:[%s968 + $0x10] sm:$0xff]
          %v972 = vld [vmem:[%s968 + $0x18] sm:$0xff]
          %v973 = vld [vmem:[%s968 + $0x20] sm:$0xff]
          %v974 = vld [vmem:[%s968 + $0x28] sm:$0xff]
          %v975 = vld [vmem:[%s968 + $0x30] sm:$0xff]
          %v976 = vld [vmem:[%s968 + $0x38] sm:$0xff]
          %v977 = vld [vmem:[%s968 + $0x40] sm:$0xff]
          %v978 = vld [vmem:[%s968 + $0x48] sm:$0xff]
          %v979 = vld [vmem:[%s968 + $0x50] sm:$0xff]
          %v980 = vld [vmem:[%s968 + $0x58] sm:$0xff]
          %v981 = vld [vmem:[%s968 + $0x60] sm:$0xff]
          %v982 = vld [vmem:[%s968 + $0x68] sm:$0xff]
          %v983 = vld [vmem:[%s968 + $0x70] sm:$0xff]
          %v984 = vld [vmem:[%s968 + $0x78] sm:$0xff]
          %v985 = vld [vmem:[%s968 + $0x80] sm:$0xff]
          %v986 = vld [vmem:[%s968 + $0x88] sm:$0xff]
          %v987 = vld [vmem:[%s968 + $0x90] sm:$0xff]
          %v988 = vld [vmem:[%s968 + $0x98] sm:$0xff]
          %v989 = vld [vmem:[%s968 + $0xa0] sm:$0xff]
          %v990 = vld [vmem:[%s968 + $0xa8] sm:$0xff]
          %v991 = vld [vmem:[%s968 + $0xb0] sm:$0xff]
          %v992 = vld [vmem:[%s968 + $0xb8] sm:$0xff]
          %v993 = vld [vmem:[%s968 + $0xc0] sm:$0xff]
          %v994 = vld [vmem:[%s968 + $0xc8] sm:$0xff]
          %v995 = vld [vmem:[%s968 + $0xd0] sm:$0xff]
          %v996 = vld [vmem:[%s968 + $0xd8] sm:$0xff]
          %v997 = vld [vmem:[%s968 + $0xe0] sm:$0xff]
          %v998 = vld [vmem:[%s968 + $0xe8] sm:$0xff]
          %v999 = vld [vmem:[%s968 + $0xf0] sm:$0xff]
          %v1000 = vld [vmem:[%s968 + $0xf8] sm:$0xff]
          %v1001 = vld [vmem:[%s968 + $0x100] sm:$0xff]
          %v1002 = vld [vmem:[%s968 + $0x108] sm:$0xff]
          %v1003 = vld [vmem:[%s968 + $0x110] sm:$0xff]
          %v1004 = vld [vmem:[%s968 + $0x118] sm:$0xff]
          %v1005 = vld [vmem:[%s968 + $0x120] sm:$0xff]
          %v1006 = vld [vmem:[%s968 + $0x128] sm:$0xff]
          %v1007 = vld [vmem:[%s968 + $0x130] sm:$0xff]
          %v1008 = vld [vmem:[%s968 + $0x138] sm:$0xff]
          %v1009 = vld [vmem:[%s968 + $0x140] sm:$0xff]
          %v1010 = vld [vmem:[%s968 + $0x148] sm:$0xff]
          %v1011 = vld [vmem:[%s968 + $0x150] sm:$0xff]
          %v1012 = vld [vmem:[%s968 + $0x158] sm:$0xff]
          %v1013 = vld [vmem:[%s968 + $0x160] sm:$0xff]
          %v1014 = vld [vmem:[%s968 + $0x168] sm:$0xff]
          %v1015 = vld [vmem:[%s968 + $0x170] sm:$0xff]
          %v1016 = vld [vmem:[%s968 + $0x178] sm:$0xff]
          %s1017 = smul.addr %s966, 8
          %s1018 = scalar_lea.vmem %s812, %s1017 [#allocation4]
          %v1019 = vld [vmem:[%s1018] sm:$0xff]
          %v1020 = vld [vmem:[%s1018 + $0x8] sm:$0xff]
          %v1021 = vld [vmem:[%s1018 + $0x10] sm:$0xff]
          %v1022 = vld [vmem:[%s1018 + $0x18] sm:$0xff]
          %v1023 = vld [vmem:[%s1018 + $0x20] sm:$0xff]
          %v1024 = vld [vmem:[%s1018 + $0x28] sm:$0xff]
          %v1025 = vld [vmem:[%s1018 + $0x30] sm:$0xff]
          %v1026 = vld [vmem:[%s1018 + $0x38] sm:$0xff]
          %v1027 = vld [vmem:[%s1018 + $0x40] sm:$0xff]
          %v1028 = vld [vmem:[%s1018 + $0x48] sm:$0xff]
          %v1029 = vld [vmem:[%s1018 + $0x50] sm:$0xff]
          %v1030 = vld [vmem:[%s1018 + $0x58] sm:$0xff]
          %v1031 = vld [vmem:[%s1018 + $0x60] sm:$0xff]
          %v1032 = vld [vmem:[%s1018 + $0x68] sm:$0xff]
          %v1033 = vld [vmem:[%s1018 + $0x70] sm:$0xff]
          %v1034 = vld [vmem:[%s1018 + $0x78] sm:$0xff]
          %v1035 = vld [vmem:[%s1018 + $0x80] sm:$0xff]
          %v1036 = vld [vmem:[%s1018 + $0x88] sm:$0xff]
          %v1037 = vld [vmem:[%s1018 + $0x90] sm:$0xff]
          %v1038 = vld [vmem:[%s1018 + $0x98] sm:$0xff]
          %v1039 = vld [vmem:[%s1018 + $0xa0] sm:$0xff]
          %v1040 = vld [vmem:[%s1018 + $0xa8] sm:$0xff]
          %v1041 = vld [vmem:[%s1018 + $0xb0] sm:$0xff]
          %v1042 = vld [vmem:[%s1018 + $0xb8] sm:$0xff]
          %v1043 = vld [vmem:[%s1018 + $0xc0] sm:$0xff]
          %v1044 = vld [vmem:[%s1018 + $0xc8] sm:$0xff]
          %v1045 = vld [vmem:[%s1018 + $0xd0] sm:$0xff]
          %v1046 = vld [vmem:[%s1018 + $0xd8] sm:$0xff]
          %v1047 = vld [vmem:[%s1018 + $0xe0] sm:$0xff]
          %v1048 = vld [vmem:[%s1018 + $0xe8] sm:$0xff]
          %v1049 = vld [vmem:[%s1018 + $0xf0] sm:$0xff]
          %v1050 = vld [vmem:[%s1018 + $0xf8] sm:$0xff]
          %v1051 = vld [vmem:[%s1018 + $0x100] sm:$0xff]
          %v1052 = vld [vmem:[%s1018 + $0x108] sm:$0xff]
          %v1053 = vld [vmem:[%s1018 + $0x110] sm:$0xff]
          %v1054 = vld [vmem:[%s1018 + $0x118] sm:$0xff]
          %v1055 = vld [vmem:[%s1018 + $0x120] sm:$0xff]
          %v1056 = vld [vmem:[%s1018 + $0x128] sm:$0xff]
          %v1057 = vld [vmem:[%s1018 + $0x130] sm:$0xff]
          %v1058 = vld [vmem:[%s1018 + $0x138] sm:$0xff]
          %v1059 = vld [vmem:[%s1018 + $0x140] sm:$0xff]
          %v1060 = vld [vmem:[%s1018 + $0x148] sm:$0xff]
          %v1061 = vld [vmem:[%s1018 + $0x150] sm:$0xff]
          %v1062 = vld [vmem:[%s1018 + $0x158] sm:$0xff]
          %v1063 = vld [vmem:[%s1018 + $0x160] sm:$0xff]
          %v1064 = vld [vmem:[%s1018 + $0x168] sm:$0xff]
          %v1065 = vld [vmem:[%s1018 + $0x170] sm:$0xff]
          %v1066 = vld [vmem:[%s1018 + $0x178] sm:$0xff]
          %v1067 = vld [vmem:[#allocation6] sm:$0xff]
          %v1068 = vld [vmem:[#allocation6 + $0x8] sm:$0xff]
          %v1069 = vld [vmem:[#allocation6 + $0x10] sm:$0xff]
          %v1070 = vld [vmem:[#allocation6 + $0x18] sm:$0xff]
          %v1071 = vld [vmem:[#allocation6 + $0x20] sm:$0xff]
          %v1072 = vld [vmem:[#allocation6 + $0x28] sm:$0xff]
          %v1073 = vld [vmem:[#allocation6 + $0x30] sm:$0xff]
          %v1074 = vld [vmem:[#allocation6 + $0x38] sm:$0xff]
          %v1075 = vld [vmem:[#allocation6 + $0x40] sm:$0xff]
          %v1076 = vld [vmem:[#allocation6 + $0x48] sm:$0xff]
          %v1077 = vld [vmem:[#allocation6 + $0x50] sm:$0xff]
          %v1078 = vld [vmem:[#allocation6 + $0x58] sm:$0xff]
          %v1079 = vld [vmem:[#allocation6 + $0x60] sm:$0xff]
          %v1080 = vld [vmem:[#allocation6 + $0x68] sm:$0xff]
          %v1081 = vld [vmem:[#allocation6 + $0x70] sm:$0xff]
          %v1082 = vld [vmem:[#allocation6 + $0x78] sm:$0xff]
          %v1083 = vld [vmem:[#allocation6 + $0x80] sm:$0xff]
          %v1084 = vld [vmem:[#allocation6 + $0x88] sm:$0xff]
          %v1085 = vld [vmem:[#allocation6 + $0x90] sm:$0xff]
          %v1086 = vld [vmem:[#allocation6 + $0x98] sm:$0xff]
          %v1087 = vld [vmem:[#allocation6 + $0xa0] sm:$0xff]
          %v1088 = vld [vmem:[#allocation6 + $0xa8] sm:$0xff]
          %v1089 = vld [vmem:[#allocation6 + $0xb0] sm:$0xff]
          %v1090 = vld [vmem:[#allocation6 + $0xb8] sm:$0xff]
          %v1091 = vld [vmem:[#allocation6 + $0xc0] sm:$0xff]
          %v1092 = vld [vmem:[#allocation6 + $0xc8] sm:$0xff]
          %v1093 = vld [vmem:[#allocation6 + $0xd0] sm:$0xff]
          %v1094 = vld [vmem:[#allocation6 + $0xd8] sm:$0xff]
          %v1095 = vld [vmem:[#allocation6 + $0xe0] sm:$0xff]
          %v1096 = vld [vmem:[#allocation6 + $0xe8] sm:$0xff]
          %v1097 = vld [vmem:[#allocation6 + $0xf0] sm:$0xff]
          %v1098 = vld [vmem:[#allocation6 + $0xf8] sm:$0xff]
          %v1099 = vld [vmem:[#allocation6 + $0x100] sm:$0xff]
          %v1100 = vld [vmem:[#allocation6 + $0x108] sm:$0xff]
          %v1101 = vld [vmem:[#allocation6 + $0x110] sm:$0xff]
          %v1102 = vld [vmem:[#allocation6 + $0x118] sm:$0xff]
          %v1103 = vld [vmem:[#allocation6 + $0x120] sm:$0xff]
          %v1104 = vld [vmem:[#allocation6 + $0x128] sm:$0xff]
          %v1105 = vld [vmem:[#allocation6 + $0x130] sm:$0xff]
          %v1106 = vld [vmem:[#allocation6 + $0x138] sm:$0xff]
          %v1107 = vld [vmem:[#allocation6 + $0x140] sm:$0xff]
          %v1108 = vld [vmem:[#allocation6 + $0x148] sm:$0xff]
          %v1109 = vld [vmem:[#allocation6 + $0x150] sm:$0xff]
          %v1110 = vld [vmem:[#allocation6 + $0x158] sm:$0xff]
          %v1111 = vld [vmem:[#allocation6 + $0x160] sm:$0xff]
          %v1112 = vld [vmem:[#allocation6 + $0x168] sm:$0xff]
          %v1113 = vld [vmem:[#allocation13] sm:$0xff]
          %v1114 = vld [vmem:[#allocation13 + $0x8] sm:$0xff]
          %v1115 = vld [vmem:[#allocation13 + $0x10] sm:$0xff]
          %v1116 = vld [vmem:[#allocation13 + $0x18] sm:$0xff]
          %v1117 = vld [vmem:[#allocation13 + $0x20] sm:$0xff]
          %v1118 = vld [vmem:[#allocation13 + $0x28] sm:$0xff]
          %v1119 = vld [vmem:[#allocation13 + $0x30] sm:$0xff]
          %v1120 = vld [vmem:[#allocation13 + $0x38] sm:$0xff]
          %v1121 = vld [vmem:[#allocation13 + $0x40] sm:$0xff]
          %v1122 = vld [vmem:[#allocation13 + $0x48] sm:$0xff]
          %v1123 = vld [vmem:[#allocation13 + $0x50] sm:$0xff]
          %v1124 = vld [vmem:[#allocation13 + $0x58] sm:$0xff]
          %v1125 = vld [vmem:[#allocation13 + $0x60] sm:$0xff]
          %v1126 = vld [vmem:[#allocation13 + $0x68] sm:$0xff]
          %v1127 = vld [vmem:[#allocation13 + $0x70] sm:$0xff]
          %v1128 = vld [vmem:[#allocation13 + $0x78] sm:$0xff]
          %v1129 = vld [vmem:[#allocation13 + $0x80] sm:$0xff]
          %v1130 = vld [vmem:[#allocation13 + $0x88] sm:$0xff]
          %v1131 = vld [vmem:[#allocation13 + $0x90] sm:$0xff]
          %v1132 = vld [vmem:[#allocation13 + $0x98] sm:$0xff]
          %v1133 = vld [vmem:[#allocation13 + $0xa0] sm:$0xff]
          %v1134 = vld [vmem:[#allocation13 + $0xa8] sm:$0xff]
          %v1135 = vld [vmem:[#allocation13 + $0xb0] sm:$0xff]
          %v1136 = vld [vmem:[#allocation13 + $0xb8] sm:$0xff]
          %v1137 = vld [vmem:[#allocation13 + $0xc0] sm:$0xff]
          %v1138 = vld [vmem:[#allocation13 + $0xc8] sm:$0xff]
          %v1139 = vld [vmem:[#allocation13 + $0xd0] sm:$0xff]
          %v1140 = vld [vmem:[#allocation13 + $0xd8] sm:$0xff]
          %v1141 = vld [vmem:[#allocation13 + $0xe0] sm:$0xff]
          %v1142 = vld [vmem:[#allocation13 + $0xe8] sm:$0xff]
          %v1143 = vld [vmem:[#allocation13 + $0xf0] sm:$0xff]
          %v1144 = vld [vmem:[#allocation13 + $0xf8] sm:$0xff]
          %v1145 = vld [vmem:[#allocation13 + $0x100] sm:$0xff]
          %v1146 = vld [vmem:[#allocation13 + $0x108] sm:$0xff]
          %v1147 = vld [vmem:[#allocation13 + $0x110] sm:$0xff]
          %v1148 = vld [vmem:[#allocation13 + $0x118] sm:$0xff]
          %v1149 = vld [vmem:[#allocation13 + $0x120] sm:$0xff]
          %v1150 = vld [vmem:[#allocation13 + $0x128] sm:$0xff]
          %v1151 = vld [vmem:[#allocation13 + $0x130] sm:$0xff]
          %v1152 = vld [vmem:[#allocation13 + $0x138] sm:$0xff]
          %v1153 = vld [vmem:[#allocation13 + $0x140] sm:$0xff]
          %v1154 = vld [vmem:[#allocation13 + $0x148] sm:$0xff]
          %v1155 = vld [vmem:[#allocation13 + $0x150] sm:$0xff]
          %v1156 = vld [vmem:[#allocation13 + $0x158] sm:$0xff]
          %v1157 = vld [vmem:[#allocation13 + $0x160] sm:$0xff]
          %v1158 = vld [vmem:[#allocation13 + $0x168] sm:$0xff]
          %v1159 = vld [vmem:[#allocation13 + $0x170] sm:$0xff]
          %v1160 = vld [vmem:[#allocation13 + $0x178] sm:$0xff]
          %v1161 = vmul.f32 %v969, %v969
          %v1162 = vmul.f32 %v970, %v970
          %v1163 = vmul.f32 %v971, %v971
          %v1164 = vmul.f32 %v972, %v972
          %v1165 = vmul.f32 %v973, %v973
          %v1166 = vmul.f32 %v974, %v974
          %v1167 = vmul.f32 %v975, %v975
          %v1168 = vmul.f32 %v976, %v976
          %v1169 = vmul.f32 %v977, %v977
          %v1170 = vmul.f32 %v978, %v978
          %v1171 = vmul.f32 %v979, %v979
          %v1172 = vmul.f32 %v980, %v980
          %v1173 = vmul.f32 %v981, %v981
          %v1174 = vmul.f32 %v982, %v982
          %v1175 = vmul.f32 %v983, %v983
          %v1176 = vmul.f32 %v984, %v984
          %v1177 = vmul.f32 %v985, %v985
          %v1178 = vmul.f32 %v986, %v986
          %v1179 = vmul.f32 %v987, %v987
          %v1180 = vmul.f32 %v988, %v988
          %v1181 = vmul.f32 %v989, %v989
          %v1182 = vmul.f32 %v990, %v990
          %v1183 = vmul.f32 %v991, %v991
          %v1184 = vmul.f32 %v992, %v992
          %v1185 = vmul.f32 %v993, %v993
          %v1186 = vmul.f32 %v994, %v994
          %v1187 = vmul.f32 %v995, %v995
          %v1188 = vmul.f32 %v996, %v996
          %v1189 = vmul.f32 %v997, %v997
          %v1190 = vmul.f32 %v998, %v998
          %v1191 = vmul.f32 %v999, %v999
          %v1192 = vmul.f32 %v1000, %v1000
          %v1193 = vmul.f32 %v1001, %v1001
          %v1194 = vmul.f32 %v1002, %v1002
          %v1195 = vmul.f32 %v1003, %v1003
          %v1196 = vmul.f32 %v1004, %v1004
          %v1197 = vmul.f32 %v1005, %v1005
          %v1198 = vmul.f32 %v1006, %v1006
          %v1199 = vmul.f32 %v1007, %v1007
          %v1200 = vmul.f32 %v1008, %v1008
          %v1201 = vmul.f32 %v1009, %v1009
          %v1202 = vmul.f32 %v1010, %v1010
          %v1203 = vmul.f32 %v1011, %v1011
          %v1204 = vmul.f32 %v1012, %v1012
          %v1205 = vmul.f32 %v1013, %v1013
          %v1206 = vmul.f32 %v1014, %v1014
          %v1207 = vmul.f32 %v1015, %v1015
          %v1208 = vmul.f32 %v1016, %v1016
          %v1209 = vmul.f32 %v1019, %v1019
          %v1210 = vmul.f32 %v1020, %v1020
          %v1211 = vmul.f32 %v1021, %v1021
          %v1212 = vmul.f32 %v1022, %v1022
          %v1213 = vmul.f32 %v1023, %v1023
          %v1214 = vmul.f32 %v1024, %v1024
          %v1215 = vmul.f32 %v1025, %v1025
          %v1216 = vmul.f32 %v1026, %v1026
          %v1217 = vmul.f32 %v1027, %v1027
          %v1218 = vmul.f32 %v1028, %v1028
          %v1219 = vmul.f32 %v1029, %v1029
          %v1220 = vmul.f32 %v1030, %v1030
          %v1221 = vmul.f32 %v1031, %v1031
          %v1222 = vmul.f32 %v1032, %v1032
          %v1223 = vmul.f32 %v1033, %v1033
          %v1224 = vmul.f32 %v1034, %v1034
          %v1225 = vmul.f32 %v1035, %v1035
          %v1226 = vmul.f32 %v1036, %v1036
          %v1227 = vmul.f32 %v1037, %v1037
          %v1228 = vmul.f32 %v1038, %v1038
          %v1229 = vmul.f32 %v1039, %v1039
          %v1230 = vmul.f32 %v1040, %v1040
          %v1231 = vmul.f32 %v1041, %v1041
          %v1232 = vmul.f32 %v1042, %v1042
          %v1233 = vmul.f32 %v1043, %v1043
          %v1234 = vmul.f32 %v1044, %v1044
          %v1235 = vmul.f32 %v1045, %v1045
          %v1236 = vmul.f32 %v1046, %v1046
          %v1237 = vmul.f32 %v1047, %v1047
          %v1238 = vmul.f32 %v1048, %v1048
          %v1239 = vmul.f32 %v1049, %v1049
          %v1240 = vmul.f32 %v1050, %v1050
          %v1241 = vmul.f32 %v1051, %v1051
          %v1242 = vmul.f32 %v1052, %v1052
          %v1243 = vmul.f32 %v1053, %v1053
          %v1244 = vmul.f32 %v1054, %v1054
          %v1245 = vmul.f32 %v1055, %v1055
          %v1246 = vmul.f32 %v1056, %v1056
          %v1247 = vmul.f32 %v1057, %v1057
          %v1248 = vmul.f32 %v1058, %v1058
          %v1249 = vmul.f32 %v1059, %v1059
          %v1250 = vmul.f32 %v1060, %v1060
          %v1251 = vmul.f32 %v1061, %v1061
          %v1252 = vmul.f32 %v1062, %v1062
          %v1253 = vmul.f32 %v1063, %v1063
          %v1254 = vmul.f32 %v1064, %v1064
          %v1255 = vmul.f32 %v1065, %v1065
          %v1256 = vmul.f32 %v1066, %v1066
          %v1257 = vmul.f32 %v969, %v1019
          %v1258 = vmul.f32 %v970, %v1020
          %v1259 = vmul.f32 %v971, %v1021
          %v1260 = vmul.f32 %v972, %v1022
          %v1261 = vmul.f32 %v973, %v1023
          %v1262 = vmul.f32 %v974, %v1024
          %v1263 = vmul.f32 %v975, %v1025
          %v1264 = vmul.f32 %v976, %v1026
          %v1265 = vmul.f32 %v977, %v1027
          %v1266 = vmul.f32 %v978, %v1028
          %v1267 = vmul.f32 %v979, %v1029
          %v1268 = vmul.f32 %v980, %v1030
          %v1269 = vmul.f32 %v981, %v1031
          %v1270 = vmul.f32 %v982, %v1032
          %v1271 = vmul.f32 %v983, %v1033
          %v1272 = vmul.f32 %v984, %v1034
          %v1273 = vmul.f32 %v985, %v1035
          %v1274 = vmul.f32 %v986, %v1036
          %v1275 = vmul.f32 %v987, %v1037
          %v1276 = vmul.f32 %v988, %v1038
          %v1277 = vmul.f32 %v989, %v1039
          %v1278 = vmul.f32 %v990, %v1040
          %v1279 = vmul.f32 %v991, %v1041
          %v1280 = vmul.f32 %v992, %v1042
          %v1281 = vmul.f32 %v993, %v1043
          %v1282 = vmul.f32 %v994, %v1044
          %v1283 = vmul.f32 %v995, %v1045
          %v1284 = vmul.f32 %v996, %v1046
          %v1285 = vmul.f32 %v997, %v1047
          %v1286 = vmul.f32 %v998, %v1048
          %v1287 = vmul.f32 %v999, %v1049
          %v1288 = vmul.f32 %v1000, %v1050
          %v1289 = vmul.f32 %v1001, %v1051
          %v1290 = vmul.f32 %v1002, %v1052
          %v1291 = vmul.f32 %v1003, %v1053
          %v1292 = vmul.f32 %v1004, %v1054
          %v1293 = vmul.f32 %v1005, %v1055
          %v1294 = vmul.f32 %v1006, %v1056
          %v1295 = vmul.f32 %v1007, %v1057
          %v1296 = vmul.f32 %v1008, %v1058
          %v1297 = vmul.f32 %v1009, %v1059
          %v1298 = vmul.f32 %v1010, %v1060
          %v1299 = vmul.f32 %v1011, %v1061
          %v1300 = vmul.f32 %v1012, %v1062
          %v1301 = vmul.f32 %v1013, %v1063
          %v1302 = vmul.f32 %v1014, %v1064
          %v1303 = vmul.f32 %v1015, %v1065
          %v1304 = vmul.f32 %v1016, %v1066
          %vm1305 = vcmask 523264
          %v1307 = vsel %vm1305, %v1068, 0
          %v1310 = vsel %vm1305, %v1070, 0
          %v1313 = vsel %vm1305, %v1072, 0
          %v1316 = vsel %vm1305, %v1074, 0
          %v1319 = vsel %vm1305, %v1076, 0
          %v1322 = vsel %vm1305, %v1078, 0
          %v1325 = vsel %vm1305, %v1080, 0
          %v1328 = vsel %vm1305, %v1082, 0
          %v1331 = vsel %vm1305, %v1084, 0
          %v1334 = vsel %vm1305, %v1086, 0
          %v1337 = vsel %vm1305, %v1088, 0
          %v1340 = vsel %vm1305, %v1090, 0
          %v1343 = vsel %vm1305, %v1092, 0
          %v1346 = vsel %vm1305, %v1094, 0
          %v1349 = vsel %vm1305, %v1096, 0
          %v1352 = vsel %vm1305, %v1098, 0
          %v1355 = vsel %vm1305, %v1100, 0
          %v1358 = vsel %vm1305, %v1102, 0
          %v1361 = vsel %vm1305, %v1104, 0
          %v1364 = vsel %vm1305, %v1106, 0
          %v1367 = vsel %vm1305, %v1108, 0
          %v1370 = vsel %vm1305, %v1110, 0
          %v1373 = vsel %vm1305, %v1112, 0
          %1375 = vmatprep.subr.mxu0 %v970
          %1376 = vmatpush1.msra.mxu0 %v969
          %1377 = vmatprep.subr.mxu0 %v972
          %1378 = vmatpush1.msra.mxu0 %v971
          %1379 = vmatprep.subr.mxu0 %v974
          %1380 = vmatpush1.msra.mxu0 %v973
          %1381 = vmatprep.subr.mxu0 %v976
          %1382 = vmatpush1.msra.mxu0 %v975
          %1383 = vmatprep.subr.mxu0 %v978
          %1384 = vmatpush1.msra.mxu0 %v977
          %1385 = vmatprep.subr.mxu0 %v980
          %1386 = vmatpush1.msra.mxu0 %v979
          %1387 = vmatprep.subr.mxu0 %v982
          %1388 = vmatpush1.msra.mxu0 %v981
          %1389 = vmatprep.subr.mxu0 %v984
          %1390 = vmatpush1.msra.mxu0 %v983
          %1391 = vmatprep.subr.mxu0 %v986
          %1392 = vmatpush1.msra.mxu0 %v985
          %1393 = vmatprep.subr.mxu0 %v988
          %1394 = vmatpush1.msra.mxu0 %v987
          %1395 = vmatprep.subr.mxu0 %v990
          %1396 = vmatpush1.msra.mxu0 %v989
          %1397 = vmatprep.subr.mxu0 %v992
          %1398 = vmatpush1.msra.mxu0 %v991
          %1399 = vmatprep.subr.mxu0 %v994
          %1400 = vmatpush1.msra.mxu0 %v993
          %1401 = vmatprep.subr.mxu0 %v996
          %1402 = vmatpush1.msra.mxu0 %v995
          %1403 = vmatprep.subr.mxu0 %v998
          %1404 = vmatpush1.msra.mxu0 %v997
          %1405 = vmatprep.subr.mxu0 %v1000
          %1406 = vmatpush1.msra.mxu0 %v999
          %1407 = vmatprep.subr.mxu0 %v1002
          %1408 = vmatpush1.msra.mxu0 %v1001
          %1409 = vmatprep.subr.mxu0 %v1004
          %1410 = vmatpush1.msra.mxu0 %v1003
          %1411 = vmatprep.subr.mxu0 %v1006
          %1412 = vmatpush1.msra.mxu0 %v1005
          %1413 = vmatprep.subr.mxu0 %v1008
          %1414 = vmatpush1.msra.mxu0 %v1007
          %1415 = vmatprep.subr.mxu0 %v1010
          %1416 = vmatpush1.msra.mxu0 %v1009
          %1417 = vmatprep.subr.mxu0 %v1012
          %1418 = vmatpush1.msra.mxu0 %v1011
          %1419 = vmatprep.subr.mxu0 %v1014
          %1420 = vmatpush1.msra.mxu0 %v1013
          %1421 = vmatprep.subr.mxu0 %v1016
          %1422 = vmatpush1.msra.mxu0 %v1015
          %1423 = vmatprep.subr.mxu0 0.0
          %1424 = vmatpush1.msra.mxu0 0.0
          %1425 = vmatprep.subr.mxu0 0.0
          %1426 = vmatpush1.msra.mxu0 0.0
          %1427 = vmatprep.subr.mxu0 0.0
          %1428 = vmatpush1.msra.mxu0 0.0
          %1429 = vmatprep.subr.mxu0 0.0
          %1430 = vmatpush1.msra.mxu0 0.0
          %1431 = vmatprep.subr.mxu0 0.0
          %1432 = vmatpush1.msra.mxu0 0.0
          %1433 = vmatprep.subr.mxu0 0.0
          %1434 = vmatpush1.msra.mxu0 0.0
          %1435 = vmatprep.subr.mxu0 0.0
          %1436 = vmatpush1.msra.mxu0 0.0
          %1437 = vmatprep.subr.mxu0 0.0
          %1438 = vmatpush1.msra.mxu0 0.0
          %1439 = vmatprep.mubr.f32.mxu0 %v1307
          %1440 = vmatmul.mubr.f32.gmra.mrb[0].mxu0 %v1067
          %v1441 = vpop.f32.mrb[0].mxu0
          %v1442 = vadd.f32 0.0, %v1441
          %v1443 = vpop.f32.mrb[0].mxu0
          %v1444 = vadd.f32 0.0, %v1443
          %1445 = vmatprep.mubr.f32.mxu0 %v1310
          %1446 = vmatmul.mubr.f32.gmra.mrb[0].mxu0 %v1069
          %v1447 = vpop.f32.mrb[0].mxu0
          %v1448 = vadd.f32 0.0, %v1447
          %v1449 = vpop.f32.mrb[0].mxu0
          %v1450 = vadd.f32 0.0, %v1449
          %1451 = vmatprep.mubr.f32.mxu0 %v1313
          %1452 = vmatmul.mubr.f32.gmra.mrb[0].mxu0 %v1071
          %v1453 = vpop.f32.mrb[0].mxu0
          %v1454 = vadd.f32 0.0, %v1453
          %v1455 = vpop.f32.mrb[0].mxu0
          %v1456 = vadd.f32 0.0, %v1455
          %1457 = vmatprep.mubr.f32.mxu0 %v1316
          %1458 = vmatmul.mubr.f32.gmra.mrb[0].mxu0 %v1073
          %v1459 = vpop.f32.mrb[0].mxu0
          %v1460 = vadd.f32 0.0, %v1459
          %v1461 = vpop.f32.mrb[0].mxu0
          %v1462 = vadd.f32 0.0, %v1461
          %1463 = vmatprep.mubr.f32.mxu0 %v1319
          %1464 = vmatmul.mubr.f32.gmra.mrb[0].mxu0 %v1075
          %v1465 = vpop.f32.mrb[0].mxu0
          %v1466 = vadd.f32 0.0, %v1465
          %v1467 = vpop.f32.mrb[0].mxu0
          %v1468 = vadd.f32 0.0, %v1467
          %1469 = vmatprep.mubr.f32.mxu0 %v1322
          %1470 = vmatmul.mubr.f32.gmra.mrb[0].mxu0 %v1077
          %v1471 = vpop.f32.mrb[0].mxu0
          %v1472 = vadd.f32 0.0, %v1471
          %v1473 = vpop.f32.mrb[0].mxu0
          %v1474 = vadd.f32 0.0, %v1473
          %1475 = vmatprep.mubr.f32.mxu0 %v1325
          %1476 = vmatmul.mubr.f32.gmra.mrb[0].mxu0 %v1079
          %v1477 = vpop.f32.mrb[0].mxu0
          %v1478 = vadd.f32 0.0, %v1477
          %v1479 = vpop.f32.mrb[0].mxu0
          %v1480 = vadd.f32 0.0, %v1479
          %1481 = vmatprep.mubr.f32.mxu0 %v1328
          %1482 = vmatmul.mubr.f32.gmra.mrb[0].mxu0 %v1081
          %v1483 = vpop.f32.mrb[0].mxu0
          %v1484 = vadd.f32 0.0, %v1483
          %v1485 = vpop.f32.mrb[0].mxu0
          %v1486 = vadd.f32 0.0, %v1485
          %1487 = vmatprep.mubr.f32.mxu0 %v1331
          %1488 = vmatmul.mubr.f32.gmra.mrb[0].mxu0 %v1083
          %v1489 = vpop.f32.mrb[0].mxu0
          %v1490 = vadd.f32 0.0, %v1489
          %v1491 = vpop.f32.mrb[0].mxu0
          %v1492 = vadd.f32 0.0, %v1491
          %1493 = vmatprep.mubr.f32.mxu0 %v1334
          %1494 = vmatmul.mubr.f32.gmra.mrb[0].mxu0 %v1085
          %v1495 = vpop.f32.mrb[0].mxu0
          %v1496 = vadd.f32 0.0, %v1495
          %v1497 = vpop.f32.mrb[0].mxu0
          %v1498 = vadd.f32 0.0, %v1497
          %1499 = vmatprep.mubr.f32.mxu0 %v1337
          %1500 = vmatmul.mubr.f32.gmra.mrb[0].mxu0 %v1087
          %v1501 = vpop.f32.mrb[0].mxu0
          %v1502 = vadd.f32 0.0, %v1501
          %v1503 = vpop.f32.mrb[0].mxu0
          %v1504 = vadd.f32 0.0, %v1503
          %1505 = vmatprep.mubr.f32.mxu0 %v1340
          %1506 = vmatmul.mubr.f32.gmra.mrb[0].mxu0 %v1089
          %v1507 = vpop.f32.mrb[0].mxu0
          %v1508 = vadd.f32 0.0, %v1507
          %v1509 = vpop.f32.mrb[0].mxu0
          %v1510 = vadd.f32 0.0, %v1509
          %1511 = vmatprep.mubr.f32.mxu0 %v1343
          %1512 = vmatmul.mubr.f32.gmra.mrb[0].mxu0 %v1091
          %v1513 = vpop.f32.mrb[0].mxu0
          %v1514 = vadd.f32 0.0, %v1513
          %v1515 = vpop.f32.mrb[0].mxu0
          %v1516 = vadd.f32 0.0, %v1515
          %1517 = vmatprep.mubr.f32.mxu0 %v1346
          %1518 = vmatmul.mubr.f32.gmra.mrb[0].mxu0 %v1093
          %v1519 = vpop.f32.mrb[0].mxu0
          %v1520 = vadd.f32 0.0, %v1519
          %v1521 = vpop.f32.mrb[0].mxu0
          %v1522 = vadd.f32 0.0, %v1521
          %1523 = vmatprep.mubr.f32.mxu0 %v1349
          %1524 = vmatmul.mubr.f32.gmra.mrb[0].mxu0 %v1095
          %v1525 = vpop.f32.mrb[0].mxu0
          %v1526 = vadd.f32 0.0, %v1525
          %v1527 = vpop.f32.mrb[0].mxu0
          %v1528 = vadd.f32 0.0, %v1527
          %1529 = vmatprep.mubr.f32.mxu0 %v1352
          %1530 = vmatmul.mubr.f32.gmra.mrb[0].mxu0 %v1097
          %v1531 = vpop.f32.mrb[0].mxu0
          %v1532 = vadd.f32 0.0, %v1531
          %v1533 = vpop.f32.mrb[0].mxu0
          %v1534 = vadd.f32 0.0, %v1533
          %1535 = vmatprep.mubr.f32.mxu0 %v1355
          %1536 = vmatmul.mubr.f32.gmra.mrb[0].mxu0 %v1099
          %v1537 = vpop.f32.mrb[0].mxu0
          %v1538 = vadd.f32 0.0, %v1537
          %v1539 = vpop.f32.mrb[0].mxu0
          %v1540 = vadd.f32 0.0, %v1539
          %1541 = vmatprep.mubr.f32.mxu0 %v1358
          %1542 = vmatmul.mubr.f32.gmra.mrb[0].mxu0 %v1101
          %v1543 = vpop.f32.mrb[0].mxu0
          %v1544 = vadd.f32 0.0, %v1543
          %v1545 = vpop.f32.mrb[0].mxu0
          %v1546 = vadd.f32 0.0, %v1545
          %1547 = vmatprep.mubr.f32.mxu0 %v1361
          %1548 = vmatmul.mubr.f32.gmra.mrb[0].mxu0 %v1103
          %v1549 = vpop.f32.mrb[0].mxu0
          %v1550 = vadd.f32 0.0, %v1549
          %v1551 = vpop.f32.mrb[0].mxu0
          %v1552 = vadd.f32 0.0, %v1551
          %1553 = vmatprep.mubr.f32.mxu0 %v1364
          %1554 = vmatmul.mubr.f32.gmra.mrb[0].mxu0 %v1105
          %v1555 = vpop.f32.mrb[0].mxu0
          %v1556 = vadd.f32 0.0, %v1555
          %v1557 = vpop.f32.mrb[0].mxu0
          %v1558 = vadd.f32 0.0, %v1557
          %1559 = vmatprep.mubr.f32.mxu0 %v1367
          %1560 = vmatmul.mubr.f32.gmra.mrb[0].mxu0 %v1107
          %v1561 = vpop.f32.mrb[0].mxu0
          %v1562 = vadd.f32 0.0, %v1561
          %v1563 = vpop.f32.mrb[0].mxu0
          %v1564 = vadd.f32 0.0, %v1563
          %1565 = vmatprep.mubr.f32.mxu0 %v1370
          %1566 = vmatmul.mubr.f32.gmra.mrb[0].mxu0 %v1109
          %v1567 = vpop.f32.mrb[0].mxu0
          %v1568 = vadd.f32 0.0, %v1567
          %v1569 = vpop.f32.mrb[0].mxu0
          %v1570 = vadd.f32 0.0, %v1569
          %1571 = vmatprep.mubr.f32.mxu0 %v1373
          %1572 = vmatmul.mubr.f32.gmra.mrb[0].mxu0 %v1111
          %v1573 = vpop.f32.mrb[0].mxu0
          %v1574 = vadd.f32 0.0, %v1573
          %v1575 = vpop.f32.mrb[0].mxu0
          %v1576 = vadd.f32 0.0, %v1575
          %1577 = vdwg.mxu0
          %1578 = vmatprep.subr.mxu0 %v1020
          %1579 = vmatpush1.msra.mxu0 %v1019
          %1580 = vmatprep.subr.mxu0 %v1022
          %1581 = vmatpush1.msra.mxu0 %v1021
          %1582 = vmatprep.subr.mxu0 %v1024
          %1583 = vmatpush1.msra.mxu0 %v1023
          %1584 = vmatprep.subr.mxu0 %v1026
          %1585 = vmatpush1.msra.mxu0 %v1025
          %1586 = vmatprep.subr.mxu0 %v1028
          %1587 = vmatpush1.msra.mxu0 %v1027
          %1588 = vmatprep.subr.mxu0 %v1030
          %1589 = vmatpush1.msra.mxu0 %v1029
          %1590 = vmatprep.subr.mxu0 %v1032
          %1591 = vmatpush1.msra.mxu0 %v1031
          %1592 = vmatprep.subr.mxu0 %v1034
          %1593 = vmatpush1.msra.mxu0 %v1033
          %1594 = vmatprep.subr.mxu0 %v1036
          %1595 = vmatpush1.msra.mxu0 %v1035
          %1596 = vmatprep.subr.mxu0 %v1038
          %1597 = vmatpush1.msra.mxu0 %v1037
          %1598 = vmatprep.subr.mxu0 %v1040
          %1599 = vmatpush1.msra.mxu0 %v1039
          %1600 = vmatprep.subr.mxu0 %v1042
          %1601 = vmatpush1.msra.mxu0 %v1041
          %1602 = vmatprep.subr.mxu0 %v1044
          %1603 = vmatpush1.msra.mxu0 %v1043
          %1604 = vmatprep.subr.mxu0 %v1046
          %1605 = vmatpush1.msra.mxu0 %v1045
          %1606 = vmatprep.subr.mxu0 %v1048
          %1607 = vmatpush1.msra.mxu0 %v1047
          %1608 = vmatprep.subr.mxu0 %v1050
          %1609 = vmatpush1.msra.mxu0 %v1049
          %1610 = vmatprep.subr.mxu0 %v1052
          %1611 = vmatpush1.msra.mxu0 %v1051
          %1612 = vmatprep.subr.mxu0 %v1054
          %1613 = vmatpush1.msra.mxu0 %v1053
          %1614 = vmatprep.subr.mxu0 %v1056
          %1615 = vmatpush1.msra.mxu0 %v1055
          %1616 = vmatprep.subr.mxu0 %v1058
          %1617 = vmatpush1.msra.mxu0 %v1057
          %1618 = vmatprep.subr.mxu0 %v1060
          %1619 = vmatpush1.msra.mxu0 %v1059
          %1620 = vmatprep.subr.mxu0 %v1062
          %1621 = vmatpush1.msra.mxu0 %v1061
          %1622 = vmatprep.subr.mxu0 %v1064
          %1623 = vmatpush1.msra.mxu0 %v1063
          %1624 = vmatprep.subr.mxu0 %v1066
          %1625 = vmatpush1.msra.mxu0 %v1065
          %1626 = vmatprep.subr.mxu0 0.0
          %1627 = vmatpush1.msra.mxu0 0.0
          %1628 = vmatprep.subr.mxu0 0.0
          %1629 = vmatpush1.msra.mxu0 0.0
          %1630 = vmatprep.subr.mxu0 0.0
          %1631 = vmatpush1.msra.mxu0 0.0
          %1632 = vmatprep.subr.mxu0 0.0
          %1633 = vmatpush1.msra.mxu0 0.0
          %1634 = vmatprep.subr.mxu0 0.0
          %1635 = vmatpush1.msra.mxu0 0.0
          %1636 = vmatprep.subr.mxu0 0.0
          %1637 = vmatpush1.msra.mxu0 0.0
          %1638 = vmatprep.subr.mxu0 0.0
          %1639 = vmatpush1.msra.mxu0 0.0
          %1640 = vmatprep.subr.mxu0 0.0
          %1641 = vmatpush1.msra.mxu0 0.0
          %1642 = vmatprep.mubr.f32.mxu0 %v1307
          %1643 = vmatmul.mubr.f32.gmra.mrb[0].mxu0 %v1067
          %v1644 = vpop.f32.mrb[0].mxu0
          %v1645 = vadd.f32 0.0, %v1644
          %v1646 = vpop.f32.mrb[0].mxu0
          %v1647 = vadd.f32 0.0, %v1646
          %1648 = vmatprep.mubr.f32.mxu0 %v1310
          %1649 = vmatmul.mubr.f32.gmra.mrb[0].mxu0 %v1069
          %v1650 = vpop.f32.mrb[0].mxu0
          %v1651 = vadd.f32 0.0, %v1650
          %v1652 = vpop.f32.mrb[0].mxu0
          %v1653 = vadd.f32 0.0, %v1652
          %1654 = vmatprep.mubr.f32.mxu0 %v1313
          %1655 = vmatmul.mubr.f32.gmra.mrb[0].mxu0 %v1071
          %v1656 = vpop.f32.mrb[0].mxu0
          %v1657 = vadd.f32 0.0, %v1656
          %v1658 = vpop.f32.mrb[0].mxu0
          %v1659 = vadd.f32 0.0, %v1658
          %1660 = vmatprep.mubr.f32.mxu0 %v1316
          %1661 = vmatmul.mubr.f32.gmra.mrb[0].mxu0 %v1073
          %v1662 = vpop.f32.mrb[0].mxu0
          %v1663 = vadd.f32 0.0, %v1662
          %v1664 = vpop.f32.mrb[0].mxu0
          %v1665 = vadd.f32 0.0, %v1664
          %1666 = vmatprep.mubr.f32.mxu0 %v1319
          %1667 = vmatmul.mubr.f32.gmra.mrb[0].mxu0 %v1075
          %v1668 = vpop.f32.mrb[0].mxu0
          %v1669 = vadd.f32 0.0, %v1668
          %v1670 = vpop.f32.mrb[0].mxu0
          %v1671 = vadd.f32 0.0, %v1670
          %1672 = vmatprep.mubr.f32.mxu0 %v1322
          %1673 = vmatmul.mubr.f32.gmra.mrb[0].mxu0 %v1077
          %v1674 = vpop.f32.mrb[0].mxu0
          %v1675 = vadd.f32 0.0, %v1674
          %v1676 = vpop.f32.mrb[0].mxu0
          %v1677 = vadd.f32 0.0, %v1676
          %1678 = vmatprep.mubr.f32.mxu0 %v1325
          %1679 = vmatmul.mubr.f32.gmra.mrb[0].mxu0 %v1079
          %v1680 = vpop.f32.mrb[0].mxu0
          %v1681 = vadd.f32 0.0, %v1680
          %v1682 = vpop.f32.mrb[0].mxu0
          %v1683 = vadd.f32 0.0, %v1682
          %1684 = vmatprep.mubr.f32.mxu0 %v1328
          %1685 = vmatmul.mubr.f32.gmra.mrb[0].mxu0 %v1081
          %v1686 = vpop.f32.mrb[0].mxu0
          %v1687 = vadd.f32 0.0, %v1686
          %v1688 = vpop.f32.mrb[0].mxu0
          %v1689 = vadd.f32 0.0, %v1688
          %1690 = vmatprep.mubr.f32.mxu0 %v1331
          %1691 = vmatmul.mubr.f32.gmra.mrb[0].mxu0 %v1083
          %v1692 = vpop.f32.mrb[0].mxu0
          %v1693 = vadd.f32 0.0, %v1692
          %v1694 = vpop.f32.mrb[0].mxu0
          %v1695 = vadd.f32 0.0, %v1694
          %1696 = vmatprep.mubr.f32.mxu0 %v1334
          %1697 = vmatmul.mubr.f32.gmra.mrb[0].mxu0 %v1085
          %v1698 = vpop.f32.mrb[0].mxu0
          %v1699 = vadd.f32 0.0, %v1698
          %v1700 = vpop.f32.mrb[0].mxu0
          %v1701 = vadd.f32 0.0, %v1700
          %1702 = vmatprep.mubr.f32.mxu0 %v1337
          %1703 = vmatmul.mubr.f32.gmra.mrb[0].mxu0 %v1087
          %v1704 = vpop.f32.mrb[0].mxu0
          %v1705 = vadd.f32 0.0, %v1704
          %v1706 = vpop.f32.mrb[0].mxu0
          %v1707 = vadd.f32 0.0, %v1706
          %1708 = vmatprep.mubr.f32.mxu0 %v1340
          %1709 = vmatmul.mubr.f32.gmra.mrb[0].mxu0 %v1089
          %v1710 = vpop.f32.mrb[0].mxu0
          %v1711 = vadd.f32 0.0, %v1710
          %v1712 = vpop.f32.mrb[0].mxu0
          %v1713 = vadd.f32 0.0, %v1712
          %1714 = vmatprep.mubr.f32.mxu0 %v1343
          %1715 = vmatmul.mubr.f32.gmra.mrb[0].mxu0 %v1091
          %v1716 = vpop.f32.mrb[0].mxu0
          %v1717 = vadd.f32 0.0, %v1716
          %v1718 = vpop.f32.mrb[0].mxu0
          %v1719 = vadd.f32 0.0, %v1718
          %1720 = vmatprep.mubr.f32.mxu0 %v1346
          %1721 = vmatmul.mubr.f32.gmra.mrb[0].mxu0 %v1093
          %v1722 = vpop.f32.mrb[0].mxu0
          %v1723 = vadd.f32 0.0, %v1722
          %v1724 = vpop.f32.mrb[0].mxu0
          %v1725 = vadd.f32 0.0, %v1724
          %1726 = vmatprep.mubr.f32.mxu0 %v1349
          %1727 = vmatmul.mubr.f32.gmra.mrb[0].mxu0 %v1095
          %v1728 = vpop.f32.mrb[0].mxu0
          %v1729 = vadd.f32 0.0, %v1728
          %v1730 = vpop.f32.mrb[0].mxu0
          %v1731 = vadd.f32 0.0, %v1730
          %1732 = vmatprep.mubr.f32.mxu0 %v1352
          %1733 = vmatmul.mubr.f32.gmra.mrb[0].mxu0 %v1097
          %v1734 = vpop.f32.mrb[0].mxu0
          %v1735 = vadd.f32 0.0, %v1734
          %v1736 = vpop.f32.mrb[0].mxu0
          %v1737 = vadd.f32 0.0, %v1736
          %1738 = vmatprep.mubr.f32.mxu0 %v1355
          %1739 = vmatmul.mubr.f32.gmra.mrb[0].mxu0 %v1099
          %v1740 = vpop.f32.mrb[0].mxu0
          %v1741 = vadd.f32 0.0, %v1740
          %v1742 = vpop.f32.mrb[0].mxu0
          %v1743 = vadd.f32 0.0, %v1742
          %1744 = vmatprep.mubr.f32.mxu0 %v1358
          %1745 = vmatmul.mubr.f32.gmra.mrb[0].mxu0 %v1101
          %v1746 = vpop.f32.mrb[0].mxu0
          %v1747 = vadd.f32 0.0, %v1746
          %v1748 = vpop.f32.mrb[0].mxu0
          %v1749 = vadd.f32 0.0, %v1748
          %1750 = vmatprep.mubr.f32.mxu0 %v1361
          %1751 = vmatmul.mubr.f32.gmra.mrb[0].mxu0 %v1103
          %v1752 = vpop.f32.mrb[0].mxu0
          %v1753 = vadd.f32 0.0, %v1752
          %v1754 = vpop.f32.mrb[0].mxu0
          %v1755 = vadd.f32 0.0, %v1754
          %1756 = vmatprep.mubr.f32.mxu0 %v1364
          %1757 = vmatmul.mubr.f32.gmra.mrb[0].mxu0 %v1105
          %v1758 = vpop.f32.mrb[0].mxu0
          %v1759 = vadd.f32 0.0, %v1758
          %v1760 = vpop.f32.mrb[0].mxu0
          %v1761 = vadd.f32 0.0, %v1760
          %1762 = vmatprep.mubr.f32.mxu0 %v1367
          %1763 = vmatmul.mubr.f32.gmra.mrb[0].mxu0 %v1107
          %v1764 = vpop.f32.mrb[0].mxu0
          %v1765 = vadd.f32 0.0, %v1764
          %v1766 = vpop.f32.mrb[0].mxu0
          %v1767 = vadd.f32 0.0, %v1766
          %1768 = vmatprep.mubr.f32.mxu0 %v1370
          %1769 = vmatmul.mubr.f32.gmra.mrb[0].mxu0 %v1109
          %v1770 = vpop.f32.mrb[0].mxu0
          %v1771 = vadd.f32 0.0, %v1770
          %v1772 = vpop.f32.mrb[0].mxu0
          %v1773 = vadd.f32 0.0, %v1772
          %1774 = vmatprep.mubr.f32.mxu0 %v1373
          %1775 = vmatmul.mubr.f32.gmra.mrb[0].mxu0 %v1111
          %v1776 = vpop.f32.mrb[0].mxu0
          %v1777 = vadd.f32 0.0, %v1776
          %v1778 = vpop.f32.mrb[0].mxu0
          %v1779 = vadd.f32 0.0, %v1778
          %1780 = vdwg.mxu0
          %1781 = vmatprep.subr.mxu0 %v1162
          %1782 = vmatpush1.msra.mxu0 %v1161
          %1783 = vmatprep.subr.mxu0 %v1164
          %1784 = vmatpush1.msra.mxu0 %v1163
          %1785 = vmatprep.subr.mxu0 %v1166
          %1786 = vmatpush1.msra.mxu0 %v1165
          %1787 = vmatprep.subr.mxu0 %v1168
          %1788 = vmatpush1.msra.mxu0 %v1167
          %1789 = vmatprep.subr.mxu0 %v1170
          %1790 = vmatpush1.msra.mxu0 %v1169
          %1791 = vmatprep.subr.mxu0 %v1172
          %1792 = vmatpush1.msra.mxu0 %v1171
          %1793 = vmatprep.subr.mxu0 %v1174
          %1794 = vmatpush1.msra.mxu0 %v1173
          %1795 = vmatprep.subr.mxu0 %v1176
          %1796 = vmatpush1.msra.mxu0 %v1175
          %1797 = vmatprep.subr.mxu0 %v1178
          %1798 = vmatpush1.msra.mxu0 %v1177
          %1799 = vmatprep.subr.mxu0 %v1180
          %1800 = vmatpush1.msra.mxu0 %v1179
          %1801 = vmatprep.subr.mxu0 %v1182
          %1802 = vmatpush1.msra.mxu0 %v1181
          %1803 = vmatprep.subr.mxu0 %v1184
          %1804 = vmatpush1.msra.mxu0 %v1183
          %1805 = vmatprep.subr.mxu0 %v1186
          %1806 = vmatpush1.msra.mxu0 %v1185
          %1807 = vmatprep.subr.mxu0 %v1188
          %1808 = vmatpush1.msra.mxu0 %v1187
          %1809 = vmatprep.subr.mxu0 %v1190
          %1810 = vmatpush1.msra.mxu0 %v1189
          %1811 = vmatprep.subr.mxu0 %v1192
          %1812 = vmatpush1.msra.mxu0 %v1191
          %1813 = vmatprep.subr.mxu0 %v1194
          %1814 = vmatpush1.msra.mxu0 %v1193
          %1815 = vmatprep.subr.mxu0 %v1196
          %1816 = vmatpush1.msra.mxu0 %v1195
          %1817 = vmatprep.subr.mxu0 %v1198
          %1818 = vmatpush1.msra.mxu0 %v1197
          %1819 = vmatprep.subr.mxu0 %v1200
          %1820 = vmatpush1.msra.mxu0 %v1199
          %1821 = vmatprep.subr.mxu0 %v1202
          %1822 = vmatpush1.msra.mxu0 %v1201
          %1823 = vmatprep.subr.mxu0 %v1204
          %1824 = vmatpush1.msra.mxu0 %v1203
          %1825 = vmatprep.subr.mxu0 %v1206
          %1826 = vmatpush1.msra.mxu0 %v1205
          %1827 = vmatprep.subr.mxu0 %v1208
          %1828 = vmatpush1.msra.mxu0 %v1207
          %1829 = vmatprep.subr.mxu0 0.0
          %1830 = vmatpush1.msra.mxu0 0.0
          %1831 = vmatprep.subr.mxu0 0.0
          %1832 = vmatpush1.msra.mxu0 0.0
          %1833 = vmatprep.subr.mxu0 0.0
          %1834 = vmatpush1.msra.mxu0 0.0
          %1835 = vmatprep.subr.mxu0 0.0
          %1836 = vmatpush1.msra.mxu0 0.0
          %1837 = vmatprep.subr.mxu0 0.0
          %1838 = vmatpush1.msra.mxu0 0.0
          %1839 = vmatprep.subr.mxu0 0.0
          %1840 = vmatpush1.msra.mxu0 0.0
          %1841 = vmatprep.subr.mxu0 0.0
          %1842 = vmatpush1.msra.mxu0 0.0
          %1843 = vmatprep.subr.mxu0 0.0
          %1844 = vmatpush1.msra.mxu0 0.0
          %1845 = vmatprep.mubr.f32.mxu0 %v1307
          %1846 = vmatmul.mubr.f32.gmra.mrb[0].mxu0 %v1067
          %v1847 = vpop.f32.mrb[0].mxu0
          %v1848 = vadd.f32 0.0, %v1847
          %v1849 = vpop.f32.mrb[0].mxu0
          %v1850 = vadd.f32 0.0, %v1849
          %1851 = vmatprep.mubr.f32.mxu0 %v1310
          %1852 = vmatmul.mubr.f32.gmra.mrb[0].mxu0 %v1069
          %v1853 = vpop.f32.mrb[0].mxu0
          %v1854 = vadd.f32 0.0, %v1853
          %v1855 = vpop.f32.mrb[0].mxu0
          %v1856 = vadd.f32 0.0, %v1855
          %1857 = vmatprep.mubr.f32.mxu0 %v1313
          %1858 = vmatmul.mubr.f32.gmra.mrb[0].mxu0 %v1071
          %v1859 = vpop.f32.mrb[0].mxu0
          %v1860 = vadd.f32 0.0, %v1859
          %v1861 = vpop.f32.mrb[0].mxu0
          %v1862 = vadd.f32 0.0, %v1861
          %1863 = vmatprep.mubr.f32.mxu0 %v1316
          %1864 = vmatmul.mubr.f32.gmra.mrb[0].mxu0 %v1073
          %v1865 = vpop.f32.mrb[0].mxu0
          %v1866 = vadd.f32 0.0, %v1865
          %v1867 = vpop.f32.mrb[0].mxu0
          %v1868 = vadd.f32 0.0, %v1867
          %1869 = vmatprep.mubr.f32.mxu0 %v1319
          %1870 = vmatmul.mubr.f32.gmra.mrb[0].mxu0 %v1075
          %v1871 = vpop.f32.mrb[0].mxu0
          %v1872 = vadd.f32 0.0, %v1871
          %v1873 = vpop.f32.mrb[0].mxu0
          %v1874 = vadd.f32 0.0, %v1873
          %1875 = vmatprep.mubr.f32.mxu0 %v1322
          %1876 = vmatmul.mubr.f32.gmra.mrb[0].mxu0 %v1077
          %v1877 = vpop.f32.mrb[0].mxu0
          %v1878 = vadd.f32 0.0, %v1877
          %v1879 = vpop.f32.mrb[0].mxu0
          %v1880 = vadd.f32 0.0, %v1879
          %1881 = vmatprep.mubr.f32.mxu0 %v1325
          %1882 = vmatmul.mubr.f32.gmra.mrb[0].mxu0 %v1079
          %v1883 = vpop.f32.mrb[0].mxu0
          %v1884 = vadd.f32 0.0, %v1883
          %v1885 = vpop.f32.mrb[0].mxu0
          %v1886 = vadd.f32 0.0, %v1885
          %1887 = vmatprep.mubr.f32.mxu0 %v1328
          %1888 = vmatmul.mubr.f32.gmra.mrb[0].mxu0 %v1081
          %v1889 = vpop.f32.mrb[0].mxu0
          %v1890 = vadd.f32 0.0, %v1889
          %v1891 = vpop.f32.mrb[0].mxu0
          %v1892 = vadd.f32 0.0, %v1891
          %1893 = vmatprep.mubr.f32.mxu0 %v1331
          %1894 = vmatmul.mubr.f32.gmra.mrb[0].mxu0 %v1083
          %v1895 = vpop.f32.mrb[0].mxu0
          %v1896 = vadd.f32 0.0, %v1895
          %v1897 = vpop.f32.mrb[0].mxu0
          %v1898 = vadd.f32 0.0, %v1897
          %1899 = vmatprep.mubr.f32.mxu0 %v1334
          %1900 = vmatmul.mubr.f32.gmra.mrb[0].mxu0 %v1085
          %v1901 = vpop.f32.mrb[0].mxu0
          %v1902 = vadd.f32 0.0, %v1901
          %v1903 = vpop.f32.mrb[0].mxu0
          %v1904 = vadd.f32 0.0, %v1903
          %1905 = vmatprep.mubr.f32.mxu0 %v1337
          %1906 = vmatmul.mubr.f32.gmra.mrb[0].mxu0 %v1087
          %v1907 = vpop.f32.mrb[0].mxu0
          %v1908 = vadd.f32 0.0, %v1907
          %v1909 = vpop.f32.mrb[0].mxu0
          %v1910 = vadd.f32 0.0, %v1909
          %1911 = vmatprep.mubr.f32.mxu0 %v1340
          %1912 = vmatmul.mubr.f32.gmra.mrb[0].mxu0 %v1089
          %v1913 = vpop.f32.mrb[0].mxu0
          %v1914 = vadd.f32 0.0, %v1913
          %v1915 = vpop.f32.mrb[0].mxu0
          %v1916 = vadd.f32 0.0, %v1915
          %1917 = vmatprep.mubr.f32.mxu0 %v1343
          %1918 = vmatmul.mubr.f32.gmra.mrb[0].mxu0 %v1091
          %v1919 = vpop.f32.mrb[0].mxu0
          %v1920 = vadd.f32 0.0, %v1919
          %v1921 = vpop.f32.mrb[0].mxu0
          %v1922 = vadd.f32 0.0, %v1921
          %1923 = vmatprep.mubr.f32.mxu0 %v1346
          %1924 = vmatmul.mubr.f32.gmra.mrb[0].mxu0 %v1093
          %v1925 = vpop.f32.mrb[0].mxu0
          %v1926 = vadd.f32 0.0, %v1925
          %v1927 = vpop.f32.mrb[0].mxu0
          %v1928 = vadd.f32 0.0, %v1927
          %1929 = vmatprep.mubr.f32.mxu0 %v1349
          %1930 = vmatmul.mubr.f32.gmra.mrb[0].mxu0 %v1095
          %v1931 = vpop.f32.mrb[0].mxu0
          %v1932 = vadd.f32 0.0, %v1931
          %v1933 = vpop.f32.mrb[0].mxu0
          %v1934 = vadd.f32 0.0, %v1933
          %1935 = vmatprep.mubr.f32.mxu0 %v1352
          %1936 = vmatmul.mubr.f32.gmra.mrb[0].mxu0 %v1097
          %v1937 = vpop.f32.mrb[0].mxu0
          %v1938 = vadd.f32 0.0, %v1937
          %v1939 = vpop.f32.mrb[0].mxu0
          %v1940 = vadd.f32 0.0, %v1939
          %1941 = vmatprep.mubr.f32.mxu0 %v1355
          %1942 = vmatmul.mubr.f32.gmra.mrb[0].mxu0 %v1099
          %v1943 = vpop.f32.mrb[0].mxu0
          %v1944 = vadd.f32 0.0, %v1943
          %v1945 = vpop.f32.mrb[0].mxu0
          %v1946 = vadd.f32 0.0, %v1945
          %1947 = vmatprep.mubr.f32.mxu0 %v1358
          %1948 = vmatmul.mubr.f32.gmra.mrb[0].mxu0 %v1101
          %v1949 = vpop.f32.mrb[0].mxu0
          %v1950 = vadd.f32 0.0, %v1949
          %v1951 = vpop.f32.mrb[0].mxu0
          %v1952 = vadd.f32 0.0, %v1951
          %1953 = vmatprep.mubr.f32.mxu0 %v1361
          %1954 = vmatmul.mubr.f32.gmra.mrb[0].mxu0 %v1103
          %v1955 = vpop.f32.mrb[0].mxu0
          %v1956 = vadd.f32 0.0, %v1955
          %v1957 = vpop.f32.mrb[0].mxu0
          %v1958 = vadd.f32 0.0, %v1957
          %1959 = vmatprep.mubr.f32.mxu0 %v1364
          %1960 = vmatmul.mubr.f32.gmra.mrb[0].mxu0 %v1105
          %v1961 = vpop.f32.mrb[0].mxu0
          %v1962 = vadd.f32 0.0, %v1961
          %v1963 = vpop.f32.mrb[0].mxu0
          %v1964 = vadd.f32 0.0, %v1963
          %1965 = vmatprep.mubr.f32.mxu0 %v1367
          %1966 = vmatmul.mubr.f32.gmra.mrb[0].mxu0 %v1107
          %v1967 = vpop.f32.mrb[0].mxu0
          %v1968 = vadd.f32 0.0, %v1967
          %v1969 = vpop.f32.mrb[0].mxu0
          %v1970 = vadd.f32 0.0, %v1969
          %1971 = vmatprep.mubr.f32.mxu0 %v1370
          %1972 = vmatmul.mubr.f32.gmra.mrb[0].mxu0 %v1109
          %v1973 = vpop.f32.mrb[0].mxu0
          %v1974 = vadd.f32 0.0, %v1973
          %v1975 = vpop.f32.mrb[0].mxu0
          %v1976 = vadd.f32 0.0, %v1975
          %1977 = vmatprep.mubr.f32.mxu0 %v1373
          %1978 = vmatmul.mubr.f32.gmra.mrb[0].mxu0 %v1111
          %v1979 = vpop.f32.mrb[0].mxu0
          %v1980 = vadd.f32 0.0, %v1979
          %v1981 = vpop.f32.mrb[0].mxu0
          %v1982 = vadd.f32 0.0, %v1981
          %1983 = vdwg.mxu0
          %1984 = vmatprep.subr.mxu0 %v1210
          %1985 = vmatpush1.msra.mxu0 %v1209
          %1986 = vmatprep.subr.mxu0 %v1212
          %1987 = vmatpush1.msra.mxu0 %v1211
          %1988 = vmatprep.subr.mxu0 %v1214
          %1989 = vmatpush1.msra.mxu0 %v1213
          %1990 = vmatprep.subr.mxu0 %v1216
          %1991 = vmatpush1.msra.mxu0 %v1215
          %1992 = vmatprep.subr.mxu0 %v1218
          %1993 = vmatpush1.msra.mxu0 %v1217
          %1994 = vmatprep.subr.mxu0 %v1220
          %1995 = vmatpush1.msra.mxu0 %v1219
          %1996 = vmatprep.subr.mxu0 %v1222
          %1997 = vmatpush1.msra.mxu0 %v1221
          %1998 = vmatprep.subr.mxu0 %v1224
          %1999 = vmatpush1.msra.mxu0 %v1223
          %2000 = vmatprep.subr.mxu0 %v1226
          %2001 = vmatpush1.msra.mxu0 %v1225
          %2002 = vmatprep.subr.mxu0 %v1228
          %2003 = vmatpush1.msra.mxu0 %v1227
          %2004 = vmatprep.subr.mxu0 %v1230
          %2005 = vmatpush1.msra.mxu0 %v1229
          %2006 = vmatprep.subr.mxu0 %v1232
          %2007 = vmatpush1.msra.mxu0 %v1231
          %2008 = vmatprep.subr.mxu0 %v1234
          %2009 = vmatpush1.msra.mxu0 %v1233
          %2010 = vmatprep.subr.mxu0 %v1236
          %2011 = vmatpush1.msra.mxu0 %v1235
          %2012 = vmatprep.subr.mxu0 %v1238
          %2013 = vmatpush1.msra.mxu0 %v1237
          %2014 = vmatprep.subr.mxu0 %v1240
          %2015 = vmatpush1.msra.mxu0 %v1239
          %2016 = vmatprep.subr.mxu0 %v1242
          %2017 = vmatpush1.msra.mxu0 %v1241
          %2018 = vmatprep.subr.mxu0 %v1244
          %2019 = vmatpush1.msra.mxu0 %v1243
          %2020 = vmatprep.subr.mxu0 %v1246
          %2021 = vmatpush1.msra.mxu0 %v1245
          %2022 = vmatprep.subr.mxu0 %v1248
          %2023 = vmatpush1.msra.mxu0 %v1247
          %2024 = vmatprep.subr.mxu0 %v1250
          %2025 = vmatpush1.msra.mxu0 %v1249
          %2026 = vmatprep.subr.mxu0 %v1252
          %2027 = vmatpush1.msra.mxu0 %v1251
          %2028 = vmatprep.subr.mxu0 %v1254
          %2029 = vmatpush1.msra.mxu0 %v1253
          %2030 = vmatprep.subr.mxu0 %v1256
          %2031 = vmatpush1.msra.mxu0 %v1255
          %2032 = vmatprep.subr.mxu0 0.0
          %2033 = vmatpush1.msra.mxu0 0.0
          %2034 = vmatprep.subr.mxu0 0.0
          %2035 = vmatpush1.msra.mxu0 0.0
          %2036 = vmatprep.subr.mxu0 0.0
          %2037 = vmatpush1.msra.mxu0 0.0
          %2038 = vmatprep.subr.mxu0 0.0
          %2039 = vmatpush1.msra.mxu0 0.0
          %2040 = vmatprep.subr.mxu0 0.0
          %2041 = vmatpush1.msra.mxu0 0.0
          %2042 = vmatprep.subr.mxu0 0.0
          %2043 = vmatpush1.msra.mxu0 0.0
          %2044 = vmatprep.subr.mxu0 0.0
          %2045 = vmatpush1.msra.mxu0 0.0
          %2046 = vmatprep.subr.mxu0 0.0
          %2047 = vmatpush1.msra.mxu0 0.0
          %2048 = vmatprep.mubr.f32.mxu0 %v1307
          %2049 = vmatmul.mubr.f32.gmra.mrb[0].mxu0 %v1067
          %v2050 = vpop.f32.mrb[0].mxu0
          %v2051 = vadd.f32 0.0, %v2050
          %v2052 = vpop.f32.mrb[0].mxu0
          %v2053 = vadd.f32 0.0, %v2052
          %2054 = vmatprep.mubr.f32.mxu0 %v1310
          %2055 = vmatmul.mubr.f32.gmra.mrb[0].mxu0 %v1069
          %v2056 = vpop.f32.mrb[0].mxu0
          %v2057 = vadd.f32 0.0, %v2056
          %v2058 = vpop.f32.mrb[0].mxu0
          %v2059 = vadd.f32 0.0, %v2058
          %2060 = vmatprep.mubr.f32.mxu0 %v1313
          %2061 = vmatmul.mubr.f32.gmra.mrb[0].mxu0 %v1071
          %v2062 = vpop.f32.mrb[0].mxu0
          %v2063 = vadd.f32 0.0, %v2062
          %v2064 = vpop.f32.mrb[0].mxu0
          %v2065 = vadd.f32 0.0, %v2064
          %2066 = vmatprep.mubr.f32.mxu0 %v1316
          %2067 = vmatmul.mubr.f32.gmra.mrb[0].mxu0 %v1073
          %v2068 = vpop.f32.mrb[0].mxu0
          %v2069 = vadd.f32 0.0, %v2068
          %v2070 = vpop.f32.mrb[0].mxu0
          %v2071 = vadd.f32 0.0, %v2070
          %2072 = vmatprep.mubr.f32.mxu0 %v1319
          %2073 = vmatmul.mubr.f32.gmra.mrb[0].mxu0 %v1075
          %v2074 = vpop.f32.mrb[0].mxu0
          %v2075 = vadd.f32 0.0, %v2074
          %v2076 = vpop.f32.mrb[0].mxu0
          %v2077 = vadd.f32 0.0, %v2076
          %2078 = vmatprep.mubr.f32.mxu0 %v1322
          %2079 = vmatmul.mubr.f32.gmra.mrb[0].mxu0 %v1077
          %v2080 = vpop.f32.mrb[0].mxu0
          %v2081 = vadd.f32 0.0, %v2080
          %v2082 = vpop.f32.mrb[0].mxu0
          %v2083 = vadd.f32 0.0, %v2082
          %2084 = vmatprep.mubr.f32.mxu0 %v1325
          %2085 = vmatmul.mubr.f32.gmra.mrb[0].mxu0 %v1079
          %v2086 = vpop.f32.mrb[0].mxu0
          %v2087 = vadd.f32 0.0, %v2086
          %v2088 = vpop.f32.mrb[0].mxu0
          %v2089 = vadd.f32 0.0, %v2088
          %2090 = vmatprep.mubr.f32.mxu0 %v1328
          %2091 = vmatmul.mubr.f32.gmra.mrb[0].mxu0 %v1081
          %v2092 = vpop.f32.mrb[0].mxu0
          %v2093 = vadd.f32 0.0, %v2092
          %v2094 = vpop.f32.mrb[0].mxu0
          %v2095 = vadd.f32 0.0, %v2094
          %2096 = vmatprep.mubr.f32.mxu0 %v1331
          %2097 = vmatmul.mubr.f32.gmra.mrb[0].mxu0 %v1083
          %v2098 = vpop.f32.mrb[0].mxu0
          %v2099 = vadd.f32 0.0, %v2098
          %v2100 = vpop.f32.mrb[0].mxu0
          %v2101 = vadd.f32 0.0, %v2100
          %2102 = vmatprep.mubr.f32.mxu0 %v1334
          %2103 = vmatmul.mubr.f32.gmra.mrb[0].mxu0 %v1085
          %v2104 = vpop.f32.mrb[0].mxu0
          %v2105 = vadd.f32 0.0, %v2104
          %v2106 = vpop.f32.mrb[0].mxu0
          %v2107 = vadd.f32 0.0, %v2106
          %2108 = vmatprep.mubr.f32.mxu0 %v1337
          %2109 = vmatmul.mubr.f32.gmra.mrb[0].mxu0 %v1087
          %v2110 = vpop.f32.mrb[0].mxu0
          %v2111 = vadd.f32 0.0, %v2110
          %v2112 = vpop.f32.mrb[0].mxu0
          %v2113 = vadd.f32 0.0, %v2112
          %2114 = vmatprep.mubr.f32.mxu0 %v1340
          %2115 = vmatmul.mubr.f32.gmra.mrb[0].mxu0 %v1089
          %v2116 = vpop.f32.mrb[0].mxu0
          %v2117 = vadd.f32 0.0, %v2116
          %v2118 = vpop.f32.mrb[0].mxu0
          %v2119 = vadd.f32 0.0, %v2118
          %2120 = vmatprep.mubr.f32.mxu0 %v1343
          %2121 = vmatmul.mubr.f32.gmra.mrb[0].mxu0 %v1091
          %v2122 = vpop.f32.mrb[0].mxu0
          %v2123 = vadd.f32 0.0, %v2122
          %v2124 = vpop.f32.mrb[0].mxu0
          %v2125 = vadd.f32 0.0, %v2124
          %2126 = vmatprep.mubr.f32.mxu0 %v1346
          %2127 = vmatmul.mubr.f32.gmra.mrb[0].mxu0 %v1093
          %v2128 = vpop.f32.mrb[0].mxu0
          %v2129 = vadd.f32 0.0, %v2128
          %v2130 = vpop.f32.mrb[0].mxu0
          %v2131 = vadd.f32 0.0, %v2130
          %2132 = vmatprep.mubr.f32.mxu0 %v1349
          %2133 = vmatmul.mubr.f32.gmra.mrb[0].mxu0 %v1095
          %v2134 = vpop.f32.mrb[0].mxu0
          %v2135 = vadd.f32 0.0, %v2134
          %v2136 = vpop.f32.mrb[0].mxu0
          %v2137 = vadd.f32 0.0, %v2136
          %2138 = vmatprep.mubr.f32.mxu0 %v1352
          %2139 = vmatmul.mubr.f32.gmra.mrb[0].mxu0 %v1097
          %v2140 = vpop.f32.mrb[0].mxu0
          %v2141 = vadd.f32 0.0, %v2140
          %v2142 = vpop.f32.mrb[0].mxu0
          %v2143 = vadd.f32 0.0, %v2142
          %2144 = vmatprep.mubr.f32.mxu0 %v1355
          %2145 = vmatmul.mubr.f32.gmra.mrb[0].mxu0 %v1099
          %v2146 = vpop.f32.mrb[0].mxu0
          %v2147 = vadd.f32 0.0, %v2146
          %v2148 = vpop.f32.mrb[0].mxu0
          %v2149 = vadd.f32 0.0, %v2148
          %2150 = vmatprep.mubr.f32.mxu0 %v1358
          %2151 = vmatmul.mubr.f32.gmra.mrb[0].mxu0 %v1101
          %v2152 = vpop.f32.mrb[0].mxu0
          %v2153 = vadd.f32 0.0, %v2152
          %v2154 = vpop.f32.mrb[0].mxu0
          %v2155 = vadd.f32 0.0, %v2154
          %2156 = vmatprep.mubr.f32.mxu0 %v1361
          %2157 = vmatmul.mubr.f32.gmra.mrb[0].mxu0 %v1103
          %v2158 = vpop.f32.mrb[0].mxu0
          %v2159 = vadd.f32 0.0, %v2158
          %v2160 = vpop.f32.mrb[0].mxu0
          %v2161 = vadd.f32 0.0, %v2160
          %2162 = vmatprep.mubr.f32.mxu0 %v1364
          %2163 = vmatmul.mubr.f32.gmra.mrb[0].mxu0 %v1105
          %v2164 = vpop.f32.mrb[0].mxu0
          %v2165 = vadd.f32 0.0, %v2164
          %v2166 = vpop.f32.mrb[0].mxu0
          %v2167 = vadd.f32 0.0, %v2166
          %2168 = vmatprep.mubr.f32.mxu0 %v1367
          %2169 = vmatmul.mubr.f32.gmra.mrb[0].mxu0 %v1107
          %v2170 = vpop.f32.mrb[0].mxu0
          %v2171 = vadd.f32 0.0, %v2170
          %v2172 = vpop.f32.mrb[0].mxu0
          %v2173 = vadd.f32 0.0, %v2172
          %2174 = vmatprep.mubr.f32.mxu0 %v1370
          %2175 = vmatmul.mubr.f32.gmra.mrb[0].mxu0 %v1109
          %v2176 = vpop.f32.mrb[0].mxu0
          %v2177 = vadd.f32 0.0, %v2176
          %v2178 = vpop.f32.mrb[0].mxu0
          %v2179 = vadd.f32 0.0, %v2178
          %2180 = vmatprep.mubr.f32.mxu0 %v1373
          %2181 = vmatmul.mubr.f32.gmra.mrb[0].mxu0 %v1111
          %v2182 = vpop.f32.mrb[0].mxu0
          %v2183 = vadd.f32 0.0, %v2182
          %v2184 = vpop.f32.mrb[0].mxu0
          %v2185 = vadd.f32 0.0, %v2184
          %2186 = vdwg.mxu0
          %2187 = vmatprep.subr.mxu0 %v1258
          %2188 = vmatpush1.msra.mxu0 %v1257
          %2189 = vmatprep.subr.mxu0 %v1260
          %2190 = vmatpush1.msra.mxu0 %v1259
          %2191 = vmatprep.subr.mxu0 %v1262
          %2192 = vmatpush1.msra.mxu0 %v1261
          %2193 = vmatprep.subr.mxu0 %v1264
          %2194 = vmatpush1.msra.mxu0 %v1263
          %2195 = vmatprep.subr.mxu0 %v1266
          %2196 = vmatpush1.msra.mxu0 %v1265
          %2197 = vmatprep.subr.mxu0 %v1268
          %2198 = vmatpush1.msra.mxu0 %v1267
          %2199 = vmatprep.subr.mxu0 %v1270
          %2200 = vmatpush1.msra.mxu0 %v1269
          %2201 = vmatprep.subr.mxu0 %v1272
          %2202 = vmatpush1.msra.mxu0 %v1271
          %2203 = vmatprep.subr.mxu0 %v1274
          %2204 = vmatpush1.msra.mxu0 %v1273
          %2205 = vmatprep.subr.mxu0 %v1276
          %2206 = vmatpush1.msra.mxu0 %v1275
          %2207 = vmatprep.subr.mxu0 %v1278
          %2208 = vmatpush1.msra.mxu0 %v1277
          %2209 = vmatprep.subr.mxu0 %v1280
          %2210 = vmatpush1.msra.mxu0 %v1279
          %2211 = vmatprep.subr.mxu0 %v1282
          %2212 = vmatpush1.msra.mxu0 %v1281
          %2213 = vmatprep.subr.mxu0 %v1284
          %2214 = vmatpush1.msra.mxu0 %v1283
          %2215 = vmatprep.subr.mxu0 %v1286
          %2216 = vmatpush1.msra.mxu0 %v1285
          %2217 = vmatprep.subr.mxu0 %v1288
          %2218 = vmatpush1.msra.mxu0 %v1287
          %2219 = vmatprep.subr.mxu0 %v1290
          %2220 = vmatpush1.msra.mxu0 %v1289
          %2221 = vmatprep.subr.mxu0 %v1292
          %2222 = vmatpush1.msra.mxu0 %v1291
          %2223 = vmatprep.subr.mxu0 %v1294
          %2224 = vmatpush1.msra.mxu0 %v1293
          %2225 = vmatprep.subr.mxu0 %v1296
          %2226 = vmatpush1.msra.mxu0 %v1295
          %2227 = vmatprep.subr.mxu0 %v1298
          %2228 = vmatpush1.msra.mxu0 %v1297
          %2229 = vmatprep.subr.mxu0 %v1300
          %2230 = vmatpush1.msra.mxu0 %v1299
          %2231 = vmatprep.subr.mxu0 %v1302
          %2232 = vmatpush1.msra.mxu0 %v1301
          %2233 = vmatprep.subr.mxu0 %v1304
          %2234 = vmatpush1.msra.mxu0 %v1303
          %2235 = vmatprep.subr.mxu0 0.0
          %2236 = vmatpush1.msra.mxu0 0.0
          %2237 = vmatprep.subr.mxu0 0.0
          %2238 = vmatpush1.msra.mxu0 0.0
          %2239 = vmatprep.subr.mxu0 0.0
          %2240 = vmatpush1.msra.mxu0 0.0
          %2241 = vmatprep.subr.mxu0 0.0
          %2242 = vmatpush1.msra.mxu0 0.0
          %2243 = vmatprep.subr.mxu0 0.0
          %2244 = vmatpush1.msra.mxu0 0.0
          %2245 = vmatprep.subr.mxu0 0.0
          %2246 = vmatpush1.msra.mxu0 0.0
          %2247 = vmatprep.subr.mxu0 0.0
          %2248 = vmatpush1.msra.mxu0 0.0
          %2249 = vmatprep.subr.mxu0 0.0
          %2250 = vmatpush1.msra.mxu0 0.0
          %2251 = vmatprep.mubr.f32.mxu0 %v1307
          %2252 = vmatmul.mubr.f32.gmra.mrb[0].mxu0 %v1067
          %v2253 = vpop.f32.mrb[0].mxu0
          %v2254 = vadd.f32 0.0, %v2253
          %v2255 = vpop.f32.mrb[0].mxu0
          %v2256 = vadd.f32 0.0, %v2255
          %2257 = vmatprep.mubr.f32.mxu0 %v1310
          %2258 = vmatmul.mubr.f32.gmra.mrb[0].mxu0 %v1069
          %v2259 = vpop.f32.mrb[0].mxu0
          %v2260 = vadd.f32 0.0, %v2259
          %v2261 = vpop.f32.mrb[0].mxu0
          %v2262 = vadd.f32 0.0, %v2261
          %2263 = vmatprep.mubr.f32.mxu0 %v1313
          %2264 = vmatmul.mubr.f32.gmra.mrb[0].mxu0 %v1071
          %v2265 = vpop.f32.mrb[0].mxu0
          %v2266 = vadd.f32 0.0, %v2265
          %v2267 = vpop.f32.mrb[0].mxu0
          %v2268 = vadd.f32 0.0, %v2267
          %2269 = vmatprep.mubr.f32.mxu0 %v1316
          %2270 = vmatmul.mubr.f32.gmra.mrb[0].mxu0 %v1073
          %v2271 = vpop.f32.mrb[0].mxu0
          %v2272 = vadd.f32 0.0, %v2271
          %v2273 = vpop.f32.mrb[0].mxu0
          %v2274 = vadd.f32 0.0, %v2273
          %2275 = vmatprep.mubr.f32.mxu0 %v1319
          %2276 = vmatmul.mubr.f32.gmra.mrb[0].mxu0 %v1075
          %v2277 = vpop.f32.mrb[0].mxu0
          %v2278 = vadd.f32 0.0, %v2277
          %v2279 = vpop.f32.mrb[0].mxu0
          %v2280 = vadd.f32 0.0, %v2279
          %2281 = vmatprep.mubr.f32.mxu0 %v1322
          %2282 = vmatmul.mubr.f32.gmra.mrb[0].mxu0 %v1077
          %v2283 = vpop.f32.mrb[0].mxu0
          %v2284 = vadd.f32 0.0, %v2283
          %v2285 = vpop.f32.mrb[0].mxu0
          %v2286 = vadd.f32 0.0, %v2285
          %2287 = vmatprep.mubr.f32.mxu0 %v1325
          %2288 = vmatmul.mubr.f32.gmra.mrb[0].mxu0 %v1079
          %v2289 = vpop.f32.mrb[0].mxu0
          %v2290 = vadd.f32 0.0, %v2289
          %v2291 = vpop.f32.mrb[0].mxu0
          %v2292 = vadd.f32 0.0, %v2291
          %2293 = vmatprep.mubr.f32.mxu0 %v1328
          %2294 = vmatmul.mubr.f32.gmra.mrb[0].mxu0 %v1081
          %v2295 = vpop.f32.mrb[0].mxu0
          %v2296 = vadd.f32 0.0, %v2295
          %v2297 = vpop.f32.mrb[0].mxu0
          %v2298 = vadd.f32 0.0, %v2297
          %2299 = vmatprep.mubr.f32.mxu0 %v1331
          %2300 = vmatmul.mubr.f32.gmra.mrb[0].mxu0 %v1083
          %v2301 = vpop.f32.mrb[0].mxu0
          %v2302 = vadd.f32 0.0, %v2301
          %v2303 = vpop.f32.mrb[0].mxu0
          %v2304 = vadd.f32 0.0, %v2303
          %2305 = vmatprep.mubr.f32.mxu0 %v1334
          %2306 = vmatmul.mubr.f32.gmra.mrb[0].mxu0 %v1085
          %v2307 = vpop.f32.mrb[0].mxu0
          %v2308 = vadd.f32 0.0, %v2307
          %v2309 = vpop.f32.mrb[0].mxu0
          %v2310 = vadd.f32 0.0, %v2309
          %2311 = vmatprep.mubr.f32.mxu0 %v1337
          %2312 = vmatmul.mubr.f32.gmra.mrb[0].mxu0 %v1087
          %v2313 = vpop.f32.mrb[0].mxu0
          %v2314 = vadd.f32 0.0, %v2313
          %v2315 = vpop.f32.mrb[0].mxu0
          %v2316 = vadd.f32 0.0, %v2315
          %2317 = vmatprep.mubr.f32.mxu0 %v1340
          %2318 = vmatmul.mubr.f32.gmra.mrb[0].mxu0 %v1089
          %v2319 = vpop.f32.mrb[0].mxu0
          %v2320 = vadd.f32 0.0, %v2319
          %v2321 = vpop.f32.mrb[0].mxu0
          %v2322 = vadd.f32 0.0, %v2321
          %2323 = vmatprep.mubr.f32.mxu0 %v1343
          %2324 = vmatmul.mubr.f32.gmra.mrb[0].mxu0 %v1091
          %v2325 = vpop.f32.mrb[0].mxu0
          %v2326 = vadd.f32 0.0, %v2325
          %v2327 = vpop.f32.mrb[0].mxu0
          %v2328 = vadd.f32 0.0, %v2327
          %2329 = vmatprep.mubr.f32.mxu0 %v1346
          %2330 = vmatmul.mubr.f32.gmra.mrb[0].mxu0 %v1093
          %v2331 = vpop.f32.mrb[0].mxu0
          %v2332 = vadd.f32 0.0, %v2331
          %v2333 = vpop.f32.mrb[0].mxu0
          %v2334 = vadd.f32 0.0, %v2333
          %2335 = vmatprep.mubr.f32.mxu0 %v1349
          %2336 = vmatmul.mubr.f32.gmra.mrb[0].mxu0 %v1095
          %v2337 = vpop.f32.mrb[0].mxu0
          %v2338 = vadd.f32 0.0, %v2337
          %v2339 = vpop.f32.mrb[0].mxu0
          %v2340 = vadd.f32 0.0, %v2339
          %2341 = vmatprep.mubr.f32.mxu0 %v1352
          %2342 = vmatmul.mubr.f32.gmra.mrb[0].mxu0 %v1097
          %v2343 = vpop.f32.mrb[0].mxu0
          %v2344 = vadd.f32 0.0, %v2343
          %v2345 = vpop.f32.mrb[0].mxu0
          %v2346 = vadd.f32 0.0, %v2345
          %2347 = vmatprep.mubr.f32.mxu0 %v1355
          %2348 = vmatmul.mubr.f32.gmra.mrb[0].mxu0 %v1099
          %v2349 = vpop.f32.mrb[0].mxu0
          %v2350 = vadd.f32 0.0, %v2349
          %v2351 = vpop.f32.mrb[0].mxu0
          %v2352 = vadd.f32 0.0, %v2351
          %2353 = vmatprep.mubr.f32.mxu0 %v1358
          %2354 = vmatmul.mubr.f32.gmra.mrb[0].mxu0 %v1101
          %v2355 = vpop.f32.mrb[0].mxu0
          %v2356 = vadd.f32 0.0, %v2355
          %v2357 = vpop.f32.mrb[0].mxu0
          %v2358 = vadd.f32 0.0, %v2357
          %2359 = vmatprep.mubr.f32.mxu0 %v1361
          %2360 = vmatmul.mubr.f32.gmra.mrb[0].mxu0 %v1103
          %v2361 = vpop.f32.mrb[0].mxu0
          %v2362 = vadd.f32 0.0, %v2361
          %v2363 = vpop.f32.mrb[0].mxu0
          %v2364 = vadd.f32 0.0, %v2363
          %2365 = vmatprep.mubr.f32.mxu0 %v1364
          %2366 = vmatmul.mubr.f32.gmra.mrb[0].mxu0 %v1105
          %v2367 = vpop.f32.mrb[0].mxu0
          %v2368 = vadd.f32 0.0, %v2367
          %v2369 = vpop.f32.mrb[0].mxu0
          %v2370 = vadd.f32 0.0, %v2369
          %2371 = vmatprep.mubr.f32.mxu0 %v1367
          %2372 = vmatmul.mubr.f32.gmra.mrb[0].mxu0 %v1107
          %v2373 = vpop.f32.mrb[0].mxu0
          %v2374 = vadd.f32 0.0, %v2373
          %v2375 = vpop.f32.mrb[0].mxu0
          %v2376 = vadd.f32 0.0, %v2375
          %2377 = vmatprep.mubr.f32.mxu0 %v1370
          %2378 = vmatmul.mubr.f32.gmra.mrb[0].mxu0 %v1109
          %v2379 = vpop.f32.mrb[0].mxu0
          %v2380 = vadd.f32 0.0, %v2379
          %v2381 = vpop.f32.mrb[0].mxu0
          %v2382 = vadd.f32 0.0, %v2381
          %2383 = vmatprep.mubr.f32.mxu0 %v1373
          %2384 = vmatmul.mubr.f32.gmra.mrb[0].mxu0 %v1111
          %v2385 = vpop.f32.mrb[0].mxu0
          %v2386 = vadd.f32 0.0, %v2385
          %v2387 = vpop.f32.mrb[0].mxu0
          %v2388 = vadd.f32 0.0, %v2387
          %2389 = vdwg.mxu0
          %v2391 = vsel %vm1305, %v1444, 0
          %v2394 = vsel %vm1305, %v1450, 0
          %v2397 = vsel %vm1305, %v1456, 0
          %v2400 = vsel %vm1305, %v1462, 0
          %v2403 = vsel %vm1305, %v1468, 0
          %v2406 = vsel %vm1305, %v1474, 0
          %v2409 = vsel %vm1305, %v1480, 0
          %v2412 = vsel %vm1305, %v1486, 0
          %v2415 = vsel %vm1305, %v1492, 0
          %v2418 = vsel %vm1305, %v1498, 0
          %v2421 = vsel %vm1305, %v1504, 0
          %v2424 = vsel %vm1305, %v1510, 0
          %v2427 = vsel %vm1305, %v1516, 0
          %v2430 = vsel %vm1305, %v1522, 0
          %v2433 = vsel %vm1305, %v1528, 0
          %v2436 = vsel %vm1305, %v1534, 0
          %v2439 = vsel %vm1305, %v1540, 0
          %v2442 = vsel %vm1305, %v1546, 0
          %v2445 = vsel %vm1305, %v1552, 0
          %v2448 = vsel %vm1305, %v1558, 0
          %v2451 = vsel %vm1305, %v1564, 0
          %v2454 = vsel %vm1305, %v1570, 0
          %v2457 = vsel %vm1305, %v1576, 0
          %v2460 = vsel %vm1305, %v1647, 0
          %v2463 = vsel %vm1305, %v1653, 0
          %v2466 = vsel %vm1305, %v1659, 0
          %v2469 = vsel %vm1305, %v1665, 0
          %v2472 = vsel %vm1305, %v1671, 0
          %v2475 = vsel %vm1305, %v1677, 0
          %v2478 = vsel %vm1305, %v1683, 0
          %v2481 = vsel %vm1305, %v1689, 0
          %v2484 = vsel %vm1305, %v1695, 0
          %v2487 = vsel %vm1305, %v1701, 0
          %v2490 = vsel %vm1305, %v1707, 0
          %v2493 = vsel %vm1305, %v1713, 0
          %v2496 = vsel %vm1305, %v1719, 0
          %v2499 = vsel %vm1305, %v1725, 0
          %v2502 = vsel %vm1305, %v1731, 0
          %v2505 = vsel %vm1305, %v1737, 0
          %v2508 = vsel %vm1305, %v1743, 0
          %v2511 = vsel %vm1305, %v1749, 0
          %v2514 = vsel %vm1305, %v1755, 0
          %v2517 = vsel %vm1305, %v1761, 0
          %v2520 = vsel %vm1305, %v1767, 0
          %v2523 = vsel %vm1305, %v1773, 0
          %v2526 = vsel %vm1305, %v1779, 0
          %v2529 = vsel %vm1305, %v1850, 0
          %v2532 = vsel %vm1305, %v1856, 0
          %v2535 = vsel %vm1305, %v1862, 0
          %v2538 = vsel %vm1305, %v1868, 0
          %v2541 = vsel %vm1305, %v1874, 0
          %v2544 = vsel %vm1305, %v1880, 0
          %v2547 = vsel %vm1305, %v1886, 0
          %v2550 = vsel %vm1305, %v1892, 0
          %v2553 = vsel %vm1305, %v1898, 0
          %v2556 = vsel %vm1305, %v1904, 0
          %v2559 = vsel %vm1305, %v1910, 0
          %v2562 = vsel %vm1305, %v1916, 0
          %v2565 = vsel %vm1305, %v1922, 0
          %v2568 = vsel %vm1305, %v1928, 0
          %v2571 = vsel %vm1305, %v1934, 0
          %v2574 = vsel %vm1305, %v1940, 0
          %v2577 = vsel %vm1305, %v1946, 0
          %v2580 = vsel %vm1305, %v1952, 0
          %v2583 = vsel %vm1305, %v1958, 0
          %v2586 = vsel %vm1305, %v1964, 0
          %v2589 = vsel %vm1305, %v1970, 0
          %v2592 = vsel %vm1305, %v1976, 0
          %v2595 = vsel %vm1305, %v1982, 0
          %v2598 = vsel %vm1305, %v2053, 0
          %v2601 = vsel %vm1305, %v2059, 0
          %v2604 = vsel %vm1305, %v2065, 0
          %v2607 = vsel %vm1305, %v2071, 0
          %v2610 = vsel %vm1305, %v2077, 0
          %v2613 = vsel %vm1305, %v2083, 0
          %v2616 = vsel %vm1305, %v2089, 0
          %v2619 = vsel %vm1305, %v2095, 0
          %v2622 = vsel %vm1305, %v2101, 0
          %v2625 = vsel %vm1305, %v2107, 0
          %v2628 = vsel %vm1305, %v2113, 0
          %v2631 = vsel %vm1305, %v2119, 0
          %v2634 = vsel %vm1305, %v2125, 0
          %v2637 = vsel %vm1305, %v2131, 0
          %v2640 = vsel %vm1305, %v2137, 0
          %v2643 = vsel %vm1305, %v2143, 0
          %v2646 = vsel %vm1305, %v2149, 0
          %v2649 = vsel %vm1305, %v2155, 0
          %v2652 = vsel %vm1305, %v2161, 0
          %v2655 = vsel %vm1305, %v2167, 0
          %v2658 = vsel %vm1305, %v2173, 0
          %v2661 = vsel %vm1305, %v2179, 0
          %v2664 = vsel %vm1305, %v2185, 0
          %v2667 = vsel %vm1305, %v2256, 0
          %v2670 = vsel %vm1305, %v2262, 0
          %v2673 = vsel %vm1305, %v2268, 0
          %v2676 = vsel %vm1305, %v2274, 0
          %v2679 = vsel %vm1305, %v2280, 0
          %v2682 = vsel %vm1305, %v2286, 0
          %v2685 = vsel %vm1305, %v2292, 0
          %v2688 = vsel %vm1305, %v2298, 0
          %v2691 = vsel %vm1305, %v2304, 0
          %v2694 = vsel %vm1305, %v2310, 0
          %v2697 = vsel %vm1305, %v2316, 0
          %v2700 = vsel %vm1305, %v2322, 0
          %v2703 = vsel %vm1305, %v2328, 0
          %v2706 = vsel %vm1305, %v2334, 0
          %v2709 = vsel %vm1305, %v2340, 0
          %v2712 = vsel %vm1305, %v2346, 0
          %v2715 = vsel %vm1305, %v2352, 0
          %v2718 = vsel %vm1305, %v2358, 0
          %v2721 = vsel %vm1305, %v2364, 0
          %v2724 = vsel %vm1305, %v2370, 0
          %v2727 = vsel %vm1305, %v2376, 0
          %v2730 = vsel %vm1305, %v2382, 0
          %v2733 = vsel %vm1305, %v2388, 0
          %2735 = vmatprep.subr.mxu0 %v1114
          %2736 = vmatpush1.msra.mxu0 %v1113
          %2737 = vmatprep.subr.mxu0 %v1116
          %2738 = vmatpush1.msra.mxu0 %v1115
          %2739 = vmatprep.subr.mxu0 %v1118
          %2740 = vmatpush1.msra.mxu0 %v1117
          %2741 = vmatprep.subr.mxu0 %v1120
          %2742 = vmatpush1.msra.mxu0 %v1119
          %2743 = vmatprep.subr.mxu0 %v1122
          %2744 = vmatpush1.msra.mxu0 %v1121
          %2745 = vmatprep.subr.mxu0 %v1124
          %2746 = vmatpush1.msra.mxu0 %v1123
          %2747 = vmatprep.subr.mxu0 %v1126
          %2748 = vmatpush1.msra.mxu0 %v1125
          %2749 = vmatprep.subr.mxu0 %v1128
          %2750 = vmatpush1.msra.mxu0 %v1127
          %2751 = vmatprep.subr.mxu0 %v1130
          %2752 = vmatpush1.msra.mxu0 %v1129
          %2753 = vmatprep.subr.mxu0 %v1132
          %2754 = vmatpush1.msra.mxu0 %v1131
          %2755 = vmatprep.subr.mxu0 %v1134
          %2756 = vmatpush1.msra.mxu0 %v1133
          %2757 = vmatprep.subr.mxu0 %v1136
          %2758 = vmatpush1.msra.mxu0 %v1135
          %2759 = vmatprep.subr.mxu0 %v1138
          %2760 = vmatpush1.msra.mxu0 %v1137
          %2761 = vmatprep.subr.mxu0 %v1140
          %2762 = vmatpush1.msra.mxu0 %v1139
          %2763 = vmatprep.subr.mxu0 %v1142
          %2764 = vmatpush1.msra.mxu0 %v1141
          %2765 = vmatprep.subr.mxu0 %v1144
          %2766 = vmatpush1.msra.mxu0 %v1143
          %2767 = vmatprep.subr.mxu0 %v1146
          %2768 = vmatpush1.msra.mxu0 %v1145
          %2769 = vmatprep.subr.mxu0 %v1148
          %2770 = vmatpush1.msra.mxu0 %v1147
          %2771 = vmatprep.subr.mxu0 %v1150
          %2772 = vmatpush1.msra.mxu0 %v1149
          %2773 = vmatprep.subr.mxu0 %v1152
          %2774 = vmatpush1.msra.mxu0 %v1151
          %2775 = vmatprep.subr.mxu0 %v1154
          %2776 = vmatpush1.msra.mxu0 %v1153
          %2777 = vmatprep.subr.mxu0 %v1156
          %2778 = vmatpush1.msra.mxu0 %v1155
          %2779 = vmatprep.subr.mxu0 %v1158
          %2780 = vmatpush1.msra.mxu0 %v1157
          %2781 = vmatprep.subr.mxu0 %v1160
          %2782 = vmatpush1.msra.mxu0 %v1159
          %2783 = vmatprep.subr.mxu0 0.0
          %2784 = vmatpush1.msra.mxu0 0.0
          %2785 = vmatprep.subr.mxu0 0.0
          %2786 = vmatpush1.msra.mxu0 0.0
          %2787 = vmatprep.subr.mxu0 0.0
          %2788 = vmatpush1.msra.mxu0 0.0
          %2789 = vmatprep.subr.mxu0 0.0
          %2790 = vmatpush1.msra.mxu0 0.0
          %2791 = vmatprep.subr.mxu0 0.0
          %2792 = vmatpush1.msra.mxu0 0.0
          %2793 = vmatprep.subr.mxu0 0.0
          %2794 = vmatpush1.msra.mxu0 0.0
          %2795 = vmatprep.subr.mxu0 0.0
          %2796 = vmatpush1.msra.mxu0 0.0
          %2797 = vmatprep.subr.mxu0 0.0
          %2798 = vmatpush1.msra.mxu0 0.0
          %2799 = vmatprep.mubr.f32.mxu0 %v2391
          %2800 = vmatmul.mubr.f32.gmra.mrb[0].mxu0 %v1442
          %v2801 = vpop.f32.mrb[0].mxu0
          %v2802 = vadd.f32 0.0, %v2801
          %v2803 = vpop.f32.mrb[0].mxu0
          %v2804 = vadd.f32 0.0, %v2803
          %2805 = vmatprep.mubr.f32.mxu0 %v2394
          %2806 = vmatmul.mubr.f32.gmra.mrb[0].mxu0 %v1448
          %v2807 = vpop.f32.mrb[0].mxu0
          %v2808 = vadd.f32 0.0, %v2807
          %v2809 = vpop.f32.mrb[0].mxu0
          %v2810 = vadd.f32 0.0, %v2809
          %2811 = vmatprep.mubr.f32.mxu0 %v2397
          %2812 = vmatmul.mubr.f32.gmra.mrb[0].mxu0 %v1454
          %v2813 = vpop.f32.mrb[0].mxu0
          %v2814 = vadd.f32 0.0, %v2813
          %v2815 = vpop.f32.mrb[0].mxu0
          %v2816 = vadd.f32 0.0, %v2815
          %2817 = vmatprep.mubr.f32.mxu0 %v2400
          %2818 = vmatmul.mubr.f32.gmra.mrb[0].mxu0 %v1460
          %v2819 = vpop.f32.mrb[0].mxu0
          %v2820 = vadd.f32 0.0, %v2819
          %v2821 = vpop.f32.mrb[0].mxu0
          %v2822 = vadd.f32 0.0, %v2821
          %2823 = vmatprep.mubr.f32.mxu0 %v2403
          %2824 = vmatmul.mubr.f32.gmra.mrb[0].mxu0 %v1466
          %v2825 = vpop.f32.mrb[0].mxu0
          %v2826 = vadd.f32 0.0, %v2825
          %v2827 = vpop.f32.mrb[0].mxu0
          %v2828 = vadd.f32 0.0, %v2827
          %2829 = vmatprep.mubr.f32.mxu0 %v2406
          %2830 = vmatmul.mubr.f32.gmra.mrb[0].mxu0 %v1472
          %v2831 = vpop.f32.mrb[0].mxu0
          %v2832 = vadd.f32 0.0, %v2831
          %v2833 = vpop.f32.mrb[0].mxu0
          %v2834 = vadd.f32 0.0, %v2833
          %2835 = vmatprep.mubr.f32.mxu0 %v2409
          %2836 = vmatmul.mubr.f32.gmra.mrb[0].mxu0 %v1478
          %v2837 = vpop.f32.mrb[0].mxu0
          %v2838 = vadd.f32 0.0, %v2837
          %v2839 = vpop.f32.mrb[0].mxu0
          %v2840 = vadd.f32 0.0, %v2839
          %2841 = vmatprep.mubr.f32.mxu0 %v2412
          %2842 = vmatmul.mubr.f32.gmra.mrb[0].mxu0 %v1484
          %v2843 = vpop.f32.mrb[0].mxu0
          %v2844 = vadd.f32 0.0, %v2843
          %v2845 = vpop.f32.mrb[0].mxu0
          %v2846 = vadd.f32 0.0, %v2845
          %2847 = vmatprep.mubr.f32.mxu0 %v2415
          %2848 = vmatmul.mubr.f32.gmra.mrb[0].mxu0 %v1490
          %v2849 = vpop.f32.mrb[0].mxu0
          %v2850 = vadd.f32 0.0, %v2849
          %v2851 = vpop.f32.mrb[0].mxu0
          %v2852 = vadd.f32 0.0, %v2851
          %2853 = vmatprep.mubr.f32.mxu0 %v2418
          %2854 = vmatmul.mubr.f32.gmra.mrb[0].mxu0 %v1496
          %v2855 = vpop.f32.mrb[0].mxu0
          %v2856 = vadd.f32 0.0, %v2855
          %v2857 = vpop.f32.mrb[0].mxu0
          %v2858 = vadd.f32 0.0, %v2857
          %2859 = vmatprep.mubr.f32.mxu0 %v2421
          %2860 = vmatmul.mubr.f32.gmra.mrb[0].mxu0 %v1502
          %v2861 = vpop.f32.mrb[0].mxu0
          %v2862 = vadd.f32 0.0, %v2861
          %v2863 = vpop.f32.mrb[0].mxu0
          %v2864 = vadd.f32 0.0, %v2863
          %2865 = vmatprep.mubr.f32.mxu0 %v2424
          %2866 = vmatmul.mubr.f32.gmra.mrb[0].mxu0 %v1508
          %v2867 = vpop.f32.mrb[0].mxu0
          %v2868 = vadd.f32 0.0, %v2867
          %v2869 = vpop.f32.mrb[0].mxu0
          %v2870 = vadd.f32 0.0, %v2869
          %2871 = vmatprep.mubr.f32.mxu0 %v2427
          %2872 = vmatmul.mubr.f32.gmra.mrb[0].mxu0 %v1514
          %v2873 = vpop.f32.mrb[0].mxu0
          %v2874 = vadd.f32 0.0, %v2873
          %v2875 = vpop.f32.mrb[0].mxu0
          %v2876 = vadd.f32 0.0, %v2875
          %2877 = vmatprep.mubr.f32.mxu0 %v2430
          %2878 = vmatmul.mubr.f32.gmra.mrb[0].mxu0 %v1520
          %v2879 = vpop.f32.mrb[0].mxu0
          %v2880 = vadd.f32 0.0, %v2879
          %v2881 = vpop.f32.mrb[0].mxu0
          %v2882 = vadd.f32 0.0, %v2881
          %2883 = vmatprep.mubr.f32.mxu0 %v2433
          %2884 = vmatmul.mubr.f32.gmra.mrb[0].mxu0 %v1526
          %v2885 = vpop.f32.mrb[0].mxu0
          %v2886 = vadd.f32 0.0, %v2885
          %v2887 = vpop.f32.mrb[0].mxu0
          %v2888 = vadd.f32 0.0, %v2887
          %2889 = vmatprep.mubr.f32.mxu0 %v2436
          %2890 = vmatmul.mubr.f32.gmra.mrb[0].mxu0 %v1532
          %v2891 = vpop.f32.mrb[0].mxu0
          %v2892 = vadd.f32 0.0, %v2891
          %v2893 = vpop.f32.mrb[0].mxu0
          %v2894 = vadd.f32 0.0, %v2893
          %2895 = vmatprep.mubr.f32.mxu0 %v2439
          %2896 = vmatmul.mubr.f32.gmra.mrb[0].mxu0 %v1538
          %v2897 = vpop.f32.mrb[0].mxu0
          %v2898 = vadd.f32 0.0, %v2897
          %v2899 = vpop.f32.mrb[0].mxu0
          %v2900 = vadd.f32 0.0, %v2899
          %2901 = vmatprep.mubr.f32.mxu0 %v2442
          %2902 = vmatmul.mubr.f32.gmra.mrb[0].mxu0 %v1544
          %v2903 = vpop.f32.mrb[0].mxu0
          %v2904 = vadd.f32 0.0, %v2903
          %v2905 = vpop.f32.mrb[0].mxu0
          %v2906 = vadd.f32 0.0, %v2905
          %2907 = vmatprep.mubr.f32.mxu0 %v2445
          %2908 = vmatmul.mubr.f32.gmra.mrb[0].mxu0 %v1550
          %v2909 = vpop.f32.mrb[0].mxu0
          %v2910 = vadd.f32 0.0, %v2909
          %v2911 = vpop.f32.mrb[0].mxu0
          %v2912 = vadd.f32 0.0, %v2911
          %2913 = vmatprep.mubr.f32.mxu0 %v2448
          %2914 = vmatmul.mubr.f32.gmra.mrb[0].mxu0 %v1556
          %v2915 = vpop.f32.mrb[0].mxu0
          %v2916 = vadd.f32 0.0, %v2915
          %v2917 = vpop.f32.mrb[0].mxu0
          %v2918 = vadd.f32 0.0, %v2917
          %2919 = vmatprep.mubr.f32.mxu0 %v2451
          %2920 = vmatmul.mubr.f32.gmra.mrb[0].mxu0 %v1562
          %v2921 = vpop.f32.mrb[0].mxu0
          %v2922 = vadd.f32 0.0, %v2921
          %v2923 = vpop.f32.mrb[0].mxu0
          %v2924 = vadd.f32 0.0, %v2923
          %2925 = vmatprep.mubr.f32.mxu0 %v2454
          %2926 = vmatmul.mubr.f32.gmra.mrb[0].mxu0 %v1568
          %v2927 = vpop.f32.mrb[0].mxu0
          %v2928 = vadd.f32 0.0, %v2927
          %v2929 = vpop.f32.mrb[0].mxu0
          %v2930 = vadd.f32 0.0, %v2929
          %2931 = vmatprep.mubr.f32.mxu0 %v2457
          %2932 = vmatmul.mubr.f32.gmra.mrb[0].mxu0 %v1574
          %v2933 = vpop.f32.mrb[0].mxu0
          %v2934 = vadd.f32 0.0, %v2933
          %v2935 = vpop.f32.mrb[0].mxu0
          %v2936 = vadd.f32 0.0, %v2935
          %2937 = vmatprep.mubr.f32.mxu0 %v2460
          %2938 = vmatmul.mubr.f32.gmra.mrb[0].mxu0 %v1645
          %v2939 = vpop.f32.mrb[0].mxu0
          %v2940 = vadd.f32 0.0, %v2939
          %v2941 = vpop.f32.mrb[0].mxu0
          %v2942 = vadd.f32 0.0, %v2941
          %2943 = vmatprep.mubr.f32.mxu0 %v2463
          %2944 = vmatmul.mubr.f32.gmra.mrb[0].mxu0 %v1651
          %v2945 = vpop.f32.mrb[0].mxu0
          %v2946 = vadd.f32 0.0, %v2945
          %v2947 = vpop.f32.mrb[0].mxu0
          %v2948 = vadd.f32 0.0, %v2947
          %2949 = vmatprep.mubr.f32.mxu0 %v2466
          %2950 = vmatmul.mubr.f32.gmra.mrb[0].mxu0 %v1657
          %v2951 = vpop.f32.mrb[0].mxu0
          %v2952 = vadd.f32 0.0, %v2951
          %v2953 = vpop.f32.mrb[0].mxu0
          %v2954 = vadd.f32 0.0, %v2953
          %2955 = vmatprep.mubr.f32.mxu0 %v2469
          %2956 = vmatmul.mubr.f32.gmra.mrb[0].mxu0 %v1663
          %v2957 = vpop.f32.mrb[0].mxu0
          %v2958 = vadd.f32 0.0, %v2957
          %v2959 = vpop.f32.mrb[0].mxu0
          %v2960 = vadd.f32 0.0, %v2959
          %2961 = vmatprep.mubr.f32.mxu0 %v2472
          %2962 = vmatmul.mubr.f32.gmra.mrb[0].mxu0 %v1669
          %v2963 = vpop.f32.mrb[0].mxu0
          %v2964 = vadd.f32 0.0, %v2963
          %v2965 = vpop.f32.mrb[0].mxu0
          %v2966 = vadd.f32 0.0, %v2965
          %2967 = vmatprep.mubr.f32.mxu0 %v2475
          %2968 = vmatmul.mubr.f32.gmra.mrb[0].mxu0 %v1675
          %v2969 = vpop.f32.mrb[0].mxu0
          %v2970 = vadd.f32 0.0, %v2969
          %v2971 = vpop.f32.mrb[0].mxu0
          %v2972 = vadd.f32 0.0, %v2971
          %2973 = vmatprep.mubr.f32.mxu0 %v2478
          %2974 = vmatmul.mubr.f32.gmra.mrb[0].mxu0 %v1681
          %v2975 = vpop.f32.mrb[0].mxu0
          %v2976 = vadd.f32 0.0, %v2975
          %v2977 = vpop.f32.mrb[0].mxu0
          %v2978 = vadd.f32 0.0, %v2977
          %2979 = vmatprep.mubr.f32.mxu0 %v2481
          %2980 = vmatmul.mubr.f32.gmra.mrb[0].mxu0 %v1687
          %v2981 = vpop.f32.mrb[0].mxu0
          %v2982 = vadd.f32 0.0, %v2981
          %v2983 = vpop.f32.mrb[0].mxu0
          %v2984 = vadd.f32 0.0, %v2983
          %2985 = vmatprep.mubr.f32.mxu0 %v2484
          %2986 = vmatmul.mubr.f32.gmra.mrb[0].mxu0 %v1693
          %v2987 = vpop.f32.mrb[0].mxu0
          %v2988 = vadd.f32 0.0, %v2987
          %v2989 = vpop.f32.mrb[0].mxu0
          %v2990 = vadd.f32 0.0, %v2989
          %2991 = vmatprep.mubr.f32.mxu0 %v2487
          %2992 = vmatmul.mubr.f32.gmra.mrb[0].mxu0 %v1699
          %v2993 = vpop.f32.mrb[0].mxu0
          %v2994 = vadd.f32 0.0, %v2993
          %v2995 = vpop.f32.mrb[0].mxu0
          %v2996 = vadd.f32 0.0, %v2995
          %2997 = vmatprep.mubr.f32.mxu0 %v2490
          %2998 = vmatmul.mubr.f32.gmra.mrb[0].mxu0 %v1705
          %v2999 = vpop.f32.mrb[0].mxu0
          %v3000 = vadd.f32 0.0, %v2999
          %v3001 = vpop.f32.mrb[0].mxu0
          %v3002 = vadd.f32 0.0, %v3001
          %3003 = vmatprep.mubr.f32.mxu0 %v2493
          %3004 = vmatmul.mubr.f32.gmra.mrb[0].mxu0 %v1711
          %v3005 = vpop.f32.mrb[0].mxu0
          %v3006 = vadd.f32 0.0, %v3005
          %v3007 = vpop.f32.mrb[0].mxu0
          %v3008 = vadd.f32 0.0, %v3007
          %3009 = vmatprep.mubr.f32.mxu0 %v2496
          %3010 = vmatmul.mubr.f32.gmra.mrb[0].mxu0 %v1717
          %v3011 = vpop.f32.mrb[0].mxu0
          %v3012 = vadd.f32 0.0, %v3011
          %v3013 = vpop.f32.mrb[0].mxu0
          %v3014 = vadd.f32 0.0, %v3013
          %3015 = vmatprep.mubr.f32.mxu0 %v2499
          %3016 = vmatmul.mubr.f32.gmra.mrb[0].mxu0 %v1723
          %v3017 = vpop.f32.mrb[0].mxu0
          %v3018 = vadd.f32 0.0, %v3017
          %v3019 = vpop.f32.mrb[0].mxu0
          %v3020 = vadd.f32 0.0, %v3019
          %3021 = vmatprep.mubr.f32.mxu0 %v2502
          %3022 = vmatmul.mubr.f32.gmra.mrb[0].mxu0 %v1729
          %v3023 = vpop.f32.mrb[0].mxu0
          %v3024 = vadd.f32 0.0, %v3023
          %v3025 = vpop.f32.mrb[0].mxu0
          %v3026 = vadd.f32 0.0, %v3025
          %3027 = vmatprep.mubr.f32.mxu0 %v2505
          %3028 = vmatmul.mubr.f32.gmra.mrb[0].mxu0 %v1735
          %v3029 = vpop.f32.mrb[0].mxu0
          %v3030 = vadd.f32 0.0, %v3029
          %v3031 = vpop.f32.mrb[0].mxu0
          %v3032 = vadd.f32 0.0, %v3031
          %3033 = vmatprep.mubr.f32.mxu0 %v2508
          %3034 = vmatmul.mubr.f32.gmra.mrb[0].mxu0 %v1741
          %v3035 = vpop.f32.mrb[0].mxu0
          %v3036 = vadd.f32 0.0, %v3035
          %v3037 = vpop.f32.mrb[0].mxu0
          %v3038 = vadd.f32 0.0, %v3037
          %3039 = vmatprep.mubr.f32.mxu0 %v2511
          %3040 = vmatmul.mubr.f32.gmra.mrb[0].mxu0 %v1747
          %v3041 = vpop.f32.mrb[0].mxu0
          %v3042 = vadd.f32 0.0, %v3041
          %v3043 = vpop.f32.mrb[0].mxu0
          %v3044 = vadd.f32 0.0, %v3043
          %3045 = vmatprep.mubr.f32.mxu0 %v2514
          %3046 = vmatmul.mubr.f32.gmra.mrb[0].mxu0 %v1753
          %v3047 = vpop.f32.mrb[0].mxu0
          %v3048 = vadd.f32 0.0, %v3047
          %v3049 = vpop.f32.mrb[0].mxu0
          %v3050 = vadd.f32 0.0, %v3049
          %3051 = vmatprep.mubr.f32.mxu0 %v2517
          %3052 = vmatmul.mubr.f32.gmra.mrb[0].mxu0 %v1759
          %v3053 = vpop.f32.mrb[0].mxu0
          %v3054 = vadd.f32 0.0, %v3053
          %v3055 = vpop.f32.mrb[0].mxu0
          %v3056 = vadd.f32 0.0, %v3055
          %3057 = vmatprep.mubr.f32.mxu0 %v2520
          %3058 = vmatmul.mubr.f32.gmra.mrb[0].mxu0 %v1765
          %v3059 = vpop.f32.mrb[0].mxu0
          %v3060 = vadd.f32 0.0, %v3059
          %v3061 = vpop.f32.mrb[0].mxu0
          %v3062 = vadd.f32 0.0, %v3061
          %3063 = vmatprep.mubr.f32.mxu0 %v2523
          %3064 = vmatmul.mubr.f32.gmra.mrb[0].mxu0 %v1771
          %v3065 = vpop.f32.mrb[0].mxu0
          %v3066 = vadd.f32 0.0, %v3065
          %v3067 = vpop.f32.mrb[0].mxu0
          %v3068 = vadd.f32 0.0, %v3067
          %3069 = vmatprep.mubr.f32.mxu0 %v2526
          %3070 = vmatmul.mubr.f32.gmra.mrb[0].mxu0 %v1777
          %v3071 = vpop.f32.mrb[0].mxu0
          %v3072 = vadd.f32 0.0, %v3071
          %v3073 = vpop.f32.mrb[0].mxu0
          %v3074 = vadd.f32 0.0, %v3073
          %3075 = vmatprep.mubr.f32.mxu0 %v2529
          %3076 = vmatmul.mubr.f32.gmra.mrb[0].mxu0 %v1848
          %v3077 = vpop.f32.mrb[0].mxu0
          %v3078 = vadd.f32 0.0, %v3077
          %v3079 = vpop.f32.mrb[0].mxu0
          %v3080 = vadd.f32 0.0, %v3079
          %3081 = vmatprep.mubr.f32.mxu0 %v2532
          %3082 = vmatmul.mubr.f32.gmra.mrb[0].mxu0 %v1854
          %v3083 = vpop.f32.mrb[0].mxu0
          %v3084 = vadd.f32 0.0, %v3083
          %v3085 = vpop.f32.mrb[0].mxu0
          %v3086 = vadd.f32 0.0, %v3085
          %3087 = vmatprep.mubr.f32.mxu0 %v2535
          %3088 = vmatmul.mubr.f32.gmra.mrb[0].mxu0 %v1860
          %v3089 = vpop.f32.mrb[0].mxu0
          %v3090 = vadd.f32 0.0, %v3089
          %v3091 = vpop.f32.mrb[0].mxu0
          %v3092 = vadd.f32 0.0, %v3091
          %3093 = vmatprep.mubr.f32.mxu0 %v2538
          %3094 = vmatmul.mubr.f32.gmra.mrb[0].mxu0 %v1866
          %v3095 = vpop.f32.mrb[0].mxu0
          %v3096 = vadd.f32 0.0, %v3095
          %v3097 = vpop.f32.mrb[0].mxu0
          %v3098 = vadd.f32 0.0, %v3097
          %3099 = vmatprep.mubr.f32.mxu0 %v2541
          %3100 = vmatmul.mubr.f32.gmra.mrb[0].mxu0 %v1872
          %v3101 = vpop.f32.mrb[0].mxu0
          %v3102 = vadd.f32 0.0, %v3101
          %v3103 = vpop.f32.mrb[0].mxu0
          %v3104 = vadd.f32 0.0, %v3103
          %3105 = vmatprep.mubr.f32.mxu0 %v2544
          %3106 = vmatmul.mubr.f32.gmra.mrb[0].mxu0 %v1878
          %v3107 = vpop.f32.mrb[0].mxu0
          %v3108 = vadd.f32 0.0, %v3107
          %v3109 = vpop.f32.mrb[0].mxu0
          %v3110 = vadd.f32 0.0, %v3109
          %3111 = vmatprep.mubr.f32.mxu0 %v2547
          %3112 = vmatmul.mubr.f32.gmra.mrb[0].mxu0 %v1884
          %v3113 = vpop.f32.mrb[0].mxu0
          %v3114 = vadd.f32 0.0, %v3113
          %v3115 = vpop.f32.mrb[0].mxu0
          %v3116 = vadd.f32 0.0, %v3115
          %3117 = vmatprep.mubr.f32.mxu0 %v2550
          %3118 = vmatmul.mubr.f32.gmra.mrb[0].mxu0 %v1890
          %v3119 = vpop.f32.mrb[0].mxu0
          %v3120 = vadd.f32 0.0, %v3119
          %v3121 = vpop.f32.mrb[0].mxu0
          %v3122 = vadd.f32 0.0, %v3121
          %3123 = vmatprep.mubr.f32.mxu0 %v2553
          %3124 = vmatmul.mubr.f32.gmra.mrb[0].mxu0 %v1896
          %v3125 = vpop.f32.mrb[0].mxu0
          %v3126 = vadd.f32 0.0, %v3125
          %v3127 = vpop.f32.mrb[0].mxu0
          %v3128 = vadd.f32 0.0, %v3127
          %3129 = vmatprep.mubr.f32.mxu0 %v2556
          %3130 = vmatmul.mubr.f32.gmra.mrb[0].mxu0 %v1902
          %v3131 = vpop.f32.mrb[0].mxu0
          %v3132 = vadd.f32 0.0, %v3131
          %v3133 = vpop.f32.mrb[0].mxu0
          %v3134 = vadd.f32 0.0, %v3133
          %3135 = vmatprep.mubr.f32.mxu0 %v2559
          %3136 = vmatmul.mubr.f32.gmra.mrb[0].mxu0 %v1908
          %v3137 = vpop.f32.mrb[0].mxu0
          %v3138 = vadd.f32 0.0, %v3137
          %v3139 = vpop.f32.mrb[0].mxu0
          %v3140 = vadd.f32 0.0, %v3139
          %3141 = vmatprep.mubr.f32.mxu0 %v2562
          %3142 = vmatmul.mubr.f32.gmra.mrb[0].mxu0 %v1914
          %v3143 = vpop.f32.mrb[0].mxu0
          %v3144 = vadd.f32 0.0, %v3143
          %v3145 = vpop.f32.mrb[0].mxu0
          %v3146 = vadd.f32 0.0, %v3145
          %3147 = vmatprep.mubr.f32.mxu0 %v2565
          %3148 = vmatmul.mubr.f32.gmra.mrb[0].mxu0 %v1920
          %v3149 = vpop.f32.mrb[0].mxu0
          %v3150 = vadd.f32 0.0, %v3149
          %v3151 = vpop.f32.mrb[0].mxu0
          %v3152 = vadd.f32 0.0, %v3151
          %3153 = vmatprep.mubr.f32.mxu0 %v2568
          %3154 = vmatmul.mubr.f32.gmra.mrb[0].mxu0 %v1926
          %v3155 = vpop.f32.mrb[0].mxu0
          %v3156 = vadd.f32 0.0, %v3155
          %v3157 = vpop.f32.mrb[0].mxu0
          %v3158 = vadd.f32 0.0, %v3157
          %3159 = vmatprep.mubr.f32.mxu0 %v2571
          %3160 = vmatmul.mubr.f32.gmra.mrb[0].mxu0 %v1932
          %v3161 = vpop.f32.mrb[0].mxu0
          %v3162 = vadd.f32 0.0, %v3161
          %v3163 = vpop.f32.mrb[0].mxu0
          %v3164 = vadd.f32 0.0, %v3163
          %3165 = vmatprep.mubr.f32.mxu0 %v2574
          %3166 = vmatmul.mubr.f32.gmra.mrb[0].mxu0 %v1938
          %v3167 = vpop.f32.mrb[0].mxu0
          %v3168 = vadd.f32 0.0, %v3167
          %v3169 = vpop.f32.mrb[0].mxu0
          %v3170 = vadd.f32 0.0, %v3169
          %3171 = vmatprep.mubr.f32.mxu0 %v2577
          %3172 = vmatmul.mubr.f32.gmra.mrb[0].mxu0 %v1944
          %v3173 = vpop.f32.mrb[0].mxu0
          %v3174 = vadd.f32 0.0, %v3173
          %v3175 = vpop.f32.mrb[0].mxu0
          %v3176 = vadd.f32 0.0, %v3175
          %3177 = vmatprep.mubr.f32.mxu0 %v2580
          %3178 = vmatmul.mubr.f32.gmra.mrb[0].mxu0 %v1950
          %v3179 = vpop.f32.mrb[0].mxu0
          %v3180 = vadd.f32 0.0, %v3179
          %v3181 = vpop.f32.mrb[0].mxu0
          %v3182 = vadd.f32 0.0, %v3181
          %3183 = vmatprep.mubr.f32.mxu0 %v2583
          %3184 = vmatmul.mubr.f32.gmra.mrb[0].mxu0 %v1956
          %v3185 = vpop.f32.mrb[0].mxu0
          %v3186 = vadd.f32 0.0, %v3185
          %v3187 = vpop.f32.mrb[0].mxu0
          %v3188 = vadd.f32 0.0, %v3187
          %3189 = vmatprep.mubr.f32.mxu0 %v2586
          %3190 = vmatmul.mubr.f32.gmra.mrb[0].mxu0 %v1962
          %v3191 = vpop.f32.mrb[0].mxu0
          %v3192 = vadd.f32 0.0, %v3191
          %v3193 = vpop.f32.mrb[0].mxu0
          %v3194 = vadd.f32 0.0, %v3193
          %3195 = vmatprep.mubr.f32.mxu0 %v2589
          %3196 = vmatmul.mubr.f32.gmra.mrb[0].mxu0 %v1968
          %v3197 = vpop.f32.mrb[0].mxu0
          %v3198 = vadd.f32 0.0, %v3197
          %v3199 = vpop.f32.mrb[0].mxu0
          %v3200 = vadd.f32 0.0, %v3199
          %3201 = vmatprep.mubr.f32.mxu0 %v2592
          %3202 = vmatmul.mubr.f32.gmra.mrb[0].mxu0 %v1974
          %v3203 = vpop.f32.mrb[0].mxu0
          %v3204 = vadd.f32 0.0, %v3203
          %v3205 = vpop.f32.mrb[0].mxu0
          %v3206 = vadd.f32 0.0, %v3205
          %3207 = vmatprep.mubr.f32.mxu0 %v2595
          %3208 = vmatmul.mubr.f32.gmra.mrb[0].mxu0 %v1980
          %v3209 = vpop.f32.mrb[0].mxu0
          %v3210 = vadd.f32 0.0, %v3209
          %v3211 = vpop.f32.mrb[0].mxu0
          %v3212 = vadd.f32 0.0, %v3211
          %3213 = vmatprep.mubr.f32.mxu0 %v2598
          %3214 = vmatmul.mubr.f32.gmra.mrb[0].mxu0 %v2051
          %v3215 = vpop.f32.mrb[0].mxu0
          %v3216 = vadd.f32 0.0, %v3215
          %v3217 = vpop.f32.mrb[0].mxu0
          %v3218 = vadd.f32 0.0, %v3217
          %3219 = vmatprep.mubr.f32.mxu0 %v2601
          %3220 = vmatmul.mubr.f32.gmra.mrb[0].mxu0 %v2057
          %v3221 = vpop.f32.mrb[0].mxu0
          %v3222 = vadd.f32 0.0, %v3221
          %v3223 = vpop.f32.mrb[0].mxu0
          %v3224 = vadd.f32 0.0, %v3223
          %3225 = vmatprep.mubr.f32.mxu0 %v2604
          %3226 = vmatmul.mubr.f32.gmra.mrb[0].mxu0 %v2063
          %v3227 = vpop.f32.mrb[0].mxu0
          %v3228 = vadd.f32 0.0, %v3227
          %v3229 = vpop.f32.mrb[0].mxu0
          %v3230 = vadd.f32 0.0, %v3229
          %3231 = vmatprep.mubr.f32.mxu0 %v2607
          %3232 = vmatmul.mubr.f32.gmra.mrb[0].mxu0 %v2069
          %v3233 = vpop.f32.mrb[0].mxu0
          %v3234 = vadd.f32 0.0, %v3233
          %v3235 = vpop.f32.mrb[0].mxu0
          %v3236 = vadd.f32 0.0, %v3235
          %3237 = vmatprep.mubr.f32.mxu0 %v2610
          %3238 = vmatmul.mubr.f32.gmra.mrb[0].mxu0 %v2075
          %v3239 = vpop.f32.mrb[0].mxu0
          %v3240 = vadd.f32 0.0, %v3239
          %v3241 = vpop.f32.mrb[0].mxu0
          %v3242 = vadd.f32 0.0, %v3241
          %3243 = vmatprep.mubr.f32.mxu0 %v2613
          %3244 = vmatmul.mubr.f32.gmra.mrb[0].mxu0 %v2081
          %v3245 = vpop.f32.mrb[0].mxu0
          %v3246 = vadd.f32 0.0, %v3245
          %v3247 = vpop.f32.mrb[0].mxu0
          %v3248 = vadd.f32 0.0, %v3247
          %3249 = vmatprep.mubr.f32.mxu0 %v2616
          %3250 = vmatmul.mubr.f32.gmra.mrb[0].mxu0 %v2087
          %v3251 = vpop.f32.mrb[0].mxu0
          %v3252 = vadd.f32 0.0, %v3251
          %v3253 = vpop.f32.mrb[0].mxu0
          %v3254 = vadd.f32 0.0, %v3253
          %3255 = vmatprep.mubr.f32.mxu0 %v2619
          %3256 = vmatmul.mubr.f32.gmra.mrb[0].mxu0 %v2093
          %v3257 = vpop.f32.mrb[0].mxu0
          %v3258 = vadd.f32 0.0, %v3257
          %v3259 = vpop.f32.mrb[0].mxu0
          %v3260 = vadd.f32 0.0, %v3259
          %3261 = vmatprep.mubr.f32.mxu0 %v2622
          %3262 = vmatmul.mubr.f32.gmra.mrb[0].mxu0 %v2099
          %v3263 = vpop.f32.mrb[0].mxu0
          %v3264 = vadd.f32 0.0, %v3263
          %v3265 = vpop.f32.mrb[0].mxu0
          %v3266 = vadd.f32 0.0, %v3265
          %3267 = vmatprep.mubr.f32.mxu0 %v2625
          %3268 = vmatmul.mubr.f32.gmra.mrb[0].mxu0 %v2105
          %v3269 = vpop.f32.mrb[0].mxu0
          %v3270 = vadd.f32 0.0, %v3269
          %v3271 = vpop.f32.mrb[0].mxu0
          %v3272 = vadd.f32 0.0, %v3271
          %3273 = vmatprep.mubr.f32.mxu0 %v2628
          %3274 = vmatmul.mubr.f32.gmra.mrb[0].mxu0 %v2111
          %v3275 = vpop.f32.mrb[0].mxu0
          %v3276 = vadd.f32 0.0, %v3275
          %v3277 = vpop.f32.mrb[0].mxu0
          %v3278 = vadd.f32 0.0, %v3277
          %3279 = vmatprep.mubr.f32.mxu0 %v2631
          %3280 = vmatmul.mubr.f32.gmra.mrb[0].mxu0 %v2117
          %v3281 = vpop.f32.mrb[0].mxu0
          %v3282 = vadd.f32 0.0, %v3281
          %v3283 = vpop.f32.mrb[0].mxu0
          %v3284 = vadd.f32 0.0, %v3283
          %3285 = vmatprep.mubr.f32.mxu0 %v2634
          %3286 = vmatmul.mubr.f32.gmra.mrb[0].mxu0 %v2123
          %v3287 = vpop.f32.mrb[0].mxu0
          %v3288 = vadd.f32 0.0, %v3287
          %v3289 = vpop.f32.mrb[0].mxu0
          %v3290 = vadd.f32 0.0, %v3289
          %3291 = vmatprep.mubr.f32.mxu0 %v2637
          %3292 = vmatmul.mubr.f32.gmra.mrb[0].mxu0 %v2129
          %v3293 = vpop.f32.mrb[0].mxu0
          %v3294 = vadd.f32 0.0, %v3293
          %v3295 = vpop.f32.mrb[0].mxu0
          %v3296 = vadd.f32 0.0, %v3295
          %3297 = vmatprep.mubr.f32.mxu0 %v2640
          %3298 = vmatmul.mubr.f32.gmra.mrb[0].mxu0 %v2135
          %v3299 = vpop.f32.mrb[0].mxu0
          %v3300 = vadd.f32 0.0, %v3299
          %v3301 = vpop.f32.mrb[0].mxu0
          %v3302 = vadd.f32 0.0, %v3301
          %3303 = vmatprep.mubr.f32.mxu0 %v2643
          %3304 = vmatmul.mubr.f32.gmra.mrb[0].mxu0 %v2141
          %v3305 = vpop.f32.mrb[0].mxu0
          %v3306 = vadd.f32 0.0, %v3305
          %v3307 = vpop.f32.mrb[0].mxu0
          %v3308 = vadd.f32 0.0, %v3307
          %3309 = vmatprep.mubr.f32.mxu0 %v2646
          %3310 = vmatmul.mubr.f32.gmra.mrb[0].mxu0 %v2147
          %v3311 = vpop.f32.mrb[0].mxu0
          %v3312 = vadd.f32 0.0, %v3311
          %v3313 = vpop.f32.mrb[0].mxu0
          %v3314 = vadd.f32 0.0, %v3313
          %3315 = vmatprep.mubr.f32.mxu0 %v2649
          %3316 = vmatmul.mubr.f32.gmra.mrb[0].mxu0 %v2153
          %v3317 = vpop.f32.mrb[0].mxu0
          %v3318 = vadd.f32 0.0, %v3317
          %v3319 = vpop.f32.mrb[0].mxu0
          %v3320 = vadd.f32 0.0, %v3319
          %3321 = vmatprep.mubr.f32.mxu0 %v2652
          %3322 = vmatmul.mubr.f32.gmra.mrb[0].mxu0 %v2159
          %v3323 = vpop.f32.mrb[0].mxu0
          %v3324 = vadd.f32 0.0, %v3323
          %v3325 = vpop.f32.mrb[0].mxu0
          %v3326 = vadd.f32 0.0, %v3325
          %3327 = vmatprep.mubr.f32.mxu0 %v2655
          %3328 = vmatmul.mubr.f32.gmra.mrb[0].mxu0 %v2165
          %v3329 = vpop.f32.mrb[0].mxu0
          %v3330 = vadd.f32 0.0, %v3329
          %v3331 = vpop.f32.mrb[0].mxu0
          %v3332 = vadd.f32 0.0, %v3331
          %3333 = vmatprep.mubr.f32.mxu0 %v2658
          %3334 = vmatmul.mubr.f32.gmra.mrb[0].mxu0 %v2171
          %v3335 = vpop.f32.mrb[0].mxu0
          %v3336 = vadd.f32 0.0, %v3335
          %v3337 = vpop.f32.mrb[0].mxu0
          %v3338 = vadd.f32 0.0, %v3337
          %3339 = vmatprep.mubr.f32.mxu0 %v2661
          %3340 = vmatmul.mubr.f32.gmra.mrb[0].mxu0 %v2177
          %v3341 = vpop.f32.mrb[0].mxu0
          %v3342 = vadd.f32 0.0, %v3341
          %v3343 = vpop.f32.mrb[0].mxu0
          %v3344 = vadd.f32 0.0, %v3343
          %3345 = vmatprep.mubr.f32.mxu0 %v2664
          %3346 = vmatmul.mubr.f32.gmra.mrb[0].mxu0 %v2183
          %v3347 = vpop.f32.mrb[0].mxu0
          %v3348 = vadd.f32 0.0, %v3347
          %v3349 = vpop.f32.mrb[0].mxu0
          %v3350 = vadd.f32 0.0, %v3349
          %3351 = vmatprep.mubr.f32.mxu0 %v2667
          %3352 = vmatmul.mubr.f32.gmra.mrb[0].mxu0 %v2254
          %v3353 = vpop.f32.mrb[0].mxu0
          %v3354 = vadd.f32 0.0, %v3353
          %v3355 = vpop.f32.mrb[0].mxu0
          %v3356 = vadd.f32 0.0, %v3355
          %3357 = vmatprep.mubr.f32.mxu0 %v2670
          %3358 = vmatmul.mubr.f32.gmra.mrb[0].mxu0 %v2260
          %v3359 = vpop.f32.mrb[0].mxu0
          %v3360 = vadd.f32 0.0, %v3359
          %v3361 = vpop.f32.mrb[0].mxu0
          %v3362 = vadd.f32 0.0, %v3361
          %3363 = vmatprep.mubr.f32.mxu0 %v2673
          %3364 = vmatmul.mubr.f32.gmra.mrb[0].mxu0 %v2266
          %v3365 = vpop.f32.mrb[0].mxu0
          %v3366 = vadd.f32 0.0, %v3365
          %v3367 = vpop.f32.mrb[0].mxu0
          %v3368 = vadd.f32 0.0, %v3367
          %3369 = vmatprep.mubr.f32.mxu0 %v2676
          %3370 = vmatmul.mubr.f32.gmra.mrb[0].mxu0 %v2272
          %v3371 = vpop.f32.mrb[0].mxu0
          %v3372 = vadd.f32 0.0, %v3371
          %v3373 = vpop.f32.mrb[0].mxu0
          %v3374 = vadd.f32 0.0, %v3373
          %3375 = vmatprep.mubr.f32.mxu0 %v2679
          %3376 = vmatmul.mubr.f32.gmra.mrb[0].mxu0 %v2278
          %v3377 = vpop.f32.mrb[0].mxu0
          %v3378 = vadd.f32 0.0, %v3377
          %v3379 = vpop.f32.mrb[0].mxu0
          %v3380 = vadd.f32 0.0, %v3379
          %3381 = vmatprep.mubr.f32.mxu0 %v2682
          %3382 = vmatmul.mubr.f32.gmra.mrb[0].mxu0 %v2284
          %v3383 = vpop.f32.mrb[0].mxu0
          %v3384 = vadd.f32 0.0, %v3383
          %v3385 = vpop.f32.mrb[0].mxu0
          %v3386 = vadd.f32 0.0, %v3385
          %3387 = vmatprep.mubr.f32.mxu0 %v2685
          %3388 = vmatmul.mubr.f32.gmra.mrb[0].mxu0 %v2290
          %v3389 = vpop.f32.mrb[0].mxu0
          %v3390 = vadd.f32 0.0, %v3389
          %v3391 = vpop.f32.mrb[0].mxu0
          %v3392 = vadd.f32 0.0, %v3391
          %3393 = vmatprep.mubr.f32.mxu0 %v2688
          %3394 = vmatmul.mubr.f32.gmra.mrb[0].mxu0 %v2296
          %v3395 = vpop.f32.mrb[0].mxu0
          %v3396 = vadd.f32 0.0, %v3395
          %v3397 = vpop.f32.mrb[0].mxu0
          %v3398 = vadd.f32 0.0, %v3397
          %3399 = vmatprep.mubr.f32.mxu0 %v2691
          %3400 = vmatmul.mubr.f32.gmra.mrb[0].mxu0 %v2302
          %v3401 = vpop.f32.mrb[0].mxu0
          %v3402 = vadd.f32 0.0, %v3401
          %v3403 = vpop.f32.mrb[0].mxu0
          %v3404 = vadd.f32 0.0, %v3403
          %3405 = vmatprep.mubr.f32.mxu0 %v2694
          %3406 = vmatmul.mubr.f32.gmra.mrb[0].mxu0 %v2308
          %v3407 = vpop.f32.mrb[0].mxu0
          %v3408 = vadd.f32 0.0, %v3407
          %v3409 = vpop.f32.mrb[0].mxu0
          %v3410 = vadd.f32 0.0, %v3409
          %3411 = vmatprep.mubr.f32.mxu0 %v2697
          %3412 = vmatmul.mubr.f32.gmra.mrb[0].mxu0 %v2314
          %v3413 = vpop.f32.mrb[0].mxu0
          %v3414 = vadd.f32 0.0, %v3413
          %v3415 = vpop.f32.mrb[0].mxu0
          %v3416 = vadd.f32 0.0, %v3415
          %3417 = vmatprep.mubr.f32.mxu0 %v2700
          %3418 = vmatmul.mubr.f32.gmra.mrb[0].mxu0 %v2320
          %v3419 = vpop.f32.mrb[0].mxu0
          %v3420 = vadd.f32 0.0, %v3419
          %v3421 = vpop.f32.mrb[0].mxu0
          %v3422 = vadd.f32 0.0, %v3421
          %3423 = vmatprep.mubr.f32.mxu0 %v2703
          %3424 = vmatmul.mubr.f32.gmra.mrb[0].mxu0 %v2326
          %v3425 = vpop.f32.mrb[0].mxu0
          %v3426 = vadd.f32 0.0, %v3425
          %v3427 = vpop.f32.mrb[0].mxu0
          %v3428 = vadd.f32 0.0, %v3427
          %3429 = vmatprep.mubr.f32.mxu0 %v2706
          %3430 = vmatmul.mubr.f32.gmra.mrb[0].mxu0 %v2332
          %v3431 = vpop.f32.mrb[0].mxu0
          %v3432 = vadd.f32 0.0, %v3431
          %v3433 = vpop.f32.mrb[0].mxu0
          %v3434 = vadd.f32 0.0, %v3433
          %3435 = vmatprep.mubr.f32.mxu0 %v2709
          %3436 = vmatmul.mubr.f32.gmra.mrb[0].mxu0 %v2338
          %v3437 = vpop.f32.mrb[0].mxu0
          %v3438 = vadd.f32 0.0, %v3437
          %v3439 = vpop.f32.mrb[0].mxu0
          %v3440 = vadd.f32 0.0, %v3439
          %3441 = vmatprep.mubr.f32.mxu0 %v2712
          %3442 = vmatmul.mubr.f32.gmra.mrb[0].mxu0 %v2344
          %v3443 = vpop.f32.mrb[0].mxu0
          %v3444 = vadd.f32 0.0, %v3443
          %v3445 = vpop.f32.mrb[0].mxu0
          %v3446 = vadd.f32 0.0, %v3445
          %3447 = vmatprep.mubr.f32.mxu0 %v2715
          %3448 = vmatmul.mubr.f32.gmra.mrb[0].mxu0 %v2350
          %v3449 = vpop.f32.mrb[0].mxu0
          %v3450 = vadd.f32 0.0, %v3449
          %v3451 = vpop.f32.mrb[0].mxu0
          %v3452 = vadd.f32 0.0, %v3451
          %3453 = vmatprep.mubr.f32.mxu0 %v2718
          %3454 = vmatmul.mubr.f32.gmra.mrb[0].mxu0 %v2356
          %v3455 = vpop.f32.mrb[0].mxu0
          %v3456 = vadd.f32 0.0, %v3455
          %v3457 = vpop.f32.mrb[0].mxu0
          %v3458 = vadd.f32 0.0, %v3457
          %3459 = vmatprep.mubr.f32.mxu0 %v2721
          %3460 = vmatmul.mubr.f32.gmra.mrb[0].mxu0 %v2362
          %v3461 = vpop.f32.mrb[0].mxu0
          %v3462 = vadd.f32 0.0, %v3461
          %v3463 = vpop.f32.mrb[0].mxu0
          %v3464 = vadd.f32 0.0, %v3463
          %3465 = vmatprep.mubr.f32.mxu0 %v2724
          %3466 = vmatmul.mubr.f32.gmra.mrb[0].mxu0 %v2368
          %v3467 = vpop.f32.mrb[0].mxu0
          %v3468 = vadd.f32 0.0, %v3467
          %v3469 = vpop.f32.mrb[0].mxu0
          %v3470 = vadd.f32 0.0, %v3469
          %3471 = vmatprep.mubr.f32.mxu0 %v2727
          %3472 = vmatmul.mubr.f32.gmra.mrb[0].mxu0 %v2374
          %v3473 = vpop.f32.mrb[0].mxu0
          %v3474 = vadd.f32 0.0, %v3473
          %v3475 = vpop.f32.mrb[0].mxu0
          %v3476 = vadd.f32 0.0, %v3475
          %3477 = vmatprep.mubr.f32.mxu0 %v2730
          %3478 = vmatmul.mubr.f32.gmra.mrb[0].mxu0 %v2380
          %v3479 = vpop.f32.mrb[0].mxu0
          %v3480 = vadd.f32 0.0, %v3479
          %v3481 = vpop.f32.mrb[0].mxu0
          %v3482 = vadd.f32 0.0, %v3481
          %3483 = vmatprep.mubr.f32.mxu0 %v2733
          %3484 = vmatmul.mubr.f32.gmra.mrb[0].mxu0 %v2386
          %v3485 = vpop.f32.mrb[0].mxu0
          %v3486 = vadd.f32 0.0, %v3485
          %v3487 = vpop.f32.mrb[0].mxu0
          %v3488 = vadd.f32 0.0, %v3487
          %3489 = vdwg.mxu0
          %v3490 = vmul.f32 %v2802, %v2802
          %v3491 = vmul.f32 %v2804, %v2804
          %v3492 = vmul.f32 %v2808, %v2808
          %v3493 = vmul.f32 %v2810, %v2810
          %v3494 = vmul.f32 %v2814, %v2814
          %v3495 = vmul.f32 %v2816, %v2816
          %v3496 = vmul.f32 %v2820, %v2820
          %v3497 = vmul.f32 %v2822, %v2822
          %v3498 = vmul.f32 %v2826, %v2826
          %v3499 = vmul.f32 %v2828, %v2828
          %v3500 = vmul.f32 %v2832, %v2832
          %v3501 = vmul.f32 %v2834, %v2834
          %v3502 = vmul.f32 %v2838, %v2838
          %v3503 = vmul.f32 %v2840, %v2840
          %v3504 = vmul.f32 %v2844, %v2844
          %v3505 = vmul.f32 %v2846, %v2846
          %v3506 = vmul.f32 %v2850, %v2850
          %v3507 = vmul.f32 %v2852, %v2852
          %v3508 = vmul.f32 %v2856, %v2856
          %v3509 = vmul.f32 %v2858, %v2858
          %v3510 = vmul.f32 %v2862, %v2862
          %v3511 = vmul.f32 %v2864, %v2864
          %v3512 = vmul.f32 %v2868, %v2868
          %v3513 = vmul.f32 %v2870, %v2870
          %v3514 = vmul.f32 %v2874, %v2874
          %v3515 = vmul.f32 %v2876, %v2876
          %v3516 = vmul.f32 %v2880, %v2880
          %v3517 = vmul.f32 %v2882, %v2882
          %v3518 = vmul.f32 %v2886, %v2886
          %v3519 = vmul.f32 %v2888, %v2888
          %v3520 = vmul.f32 %v2892, %v2892
          %v3521 = vmul.f32 %v2894, %v2894
          %v3522 = vmul.f32 %v2898, %v2898
          %v3523 = vmul.f32 %v2900, %v2900
          %v3524 = vmul.f32 %v2904, %v2904
          %v3525 = vmul.f32 %v2906, %v2906
          %v3526 = vmul.f32 %v2910, %v2910
          %v3527 = vmul.f32 %v2912, %v2912
          %v3528 = vmul.f32 %v2916, %v2916
          %v3529 = vmul.f32 %v2918, %v2918
          %v3530 = vmul.f32 %v2922, %v2922
          %v3531 = vmul.f32 %v2924, %v2924
          %v3532 = vmul.f32 %v2928, %v2928
          %v3533 = vmul.f32 %v2930, %v2930
          %v3534 = vmul.f32 %v2934, %v2934
          %v3535 = vmul.f32 %v2936, %v2936
          %v3536 = vmul.f32 %v2940, %v2940
          %v3537 = vmul.f32 %v2942, %v2942
          %v3538 = vmul.f32 %v2946, %v2946
          %v3539 = vmul.f32 %v2948, %v2948
          %v3540 = vmul.f32 %v2952, %v2952
          %v3541 = vmul.f32 %v2954, %v2954
          %v3542 = vmul.f32 %v2958, %v2958
          %v3543 = vmul.f32 %v2960, %v2960
          %v3544 = vmul.f32 %v2964, %v2964
          %v3545 = vmul.f32 %v2966, %v2966
          %v3546 = vmul.f32 %v2970, %v2970
          %v3547 = vmul.f32 %v2972, %v2972
          %v3548 = vmul.f32 %v2976, %v2976
          %v3549 = vmul.f32 %v2978, %v2978
          %v3550 = vmul.f32 %v2982, %v2982
          %v3551 = vmul.f32 %v2984, %v2984
          %v3552 = vmul.f32 %v2988, %v2988
          %v3553 = vmul.f32 %v2990, %v2990
          %v3554 = vmul.f32 %v2994, %v2994
          %v3555 = vmul.f32 %v2996, %v2996
          %v3556 = vmul.f32 %v3000, %v3000
          %v3557 = vmul.f32 %v3002, %v3002
          %v3558 = vmul.f32 %v3006, %v3006
          %v3559 = vmul.f32 %v3008, %v3008
          %v3560 = vmul.f32 %v3012, %v3012
          %v3561 = vmul.f32 %v3014, %v3014
          %v3562 = vmul.f32 %v3018, %v3018
          %v3563 = vmul.f32 %v3020, %v3020
          %v3564 = vmul.f32 %v3024, %v3024
          %v3565 = vmul.f32 %v3026, %v3026
          %v3566 = vmul.f32 %v3030, %v3030
          %v3567 = vmul.f32 %v3032, %v3032
          %v3568 = vmul.f32 %v3036, %v3036
          %v3569 = vmul.f32 %v3038, %v3038
          %v3570 = vmul.f32 %v3042, %v3042
          %v3571 = vmul.f32 %v3044, %v3044
          %v3572 = vmul.f32 %v3048, %v3048
          %v3573 = vmul.f32 %v3050, %v3050
          %v3574 = vmul.f32 %v3054, %v3054
          %v3575 = vmul.f32 %v3056, %v3056
          %v3576 = vmul.f32 %v3060, %v3060
          %v3577 = vmul.f32 %v3062, %v3062
          %v3578 = vmul.f32 %v3066, %v3066
          %v3579 = vmul.f32 %v3068, %v3068
          %v3580 = vmul.f32 %v3072, %v3072
          %v3581 = vmul.f32 %v3074, %v3074
          %v3582 = vmul.f32 %v2802, %v2940
          %v3583 = vmul.f32 %v2804, %v2942
          %v3584 = vmul.f32 %v2808, %v2946
          %v3585 = vmul.f32 %v2810, %v2948
          %v3586 = vmul.f32 %v2814, %v2952
          %v3587 = vmul.f32 %v2816, %v2954
          %v3588 = vmul.f32 %v2820, %v2958
          %v3589 = vmul.f32 %v2822, %v2960
          %v3590 = vmul.f32 %v2826, %v2964
          %v3591 = vmul.f32 %v2828, %v2966
          %v3592 = vmul.f32 %v2832, %v2970
          %v3593 = vmul.f32 %v2834, %v2972
          %v3594 = vmul.f32 %v2838, %v2976
          %v3595 = vmul.f32 %v2840, %v2978
          %v3596 = vmul.f32 %v2844, %v2982
          %v3597 = vmul.f32 %v2846, %v2984
          %v3598 = vmul.f32 %v2850, %v2988
          %v3599 = vmul.f32 %v2852, %v2990
          %v3600 = vmul.f32 %v2856, %v2994
          %v3601 = vmul.f32 %v2858, %v2996
          %v3602 = vmul.f32 %v2862, %v3000
          %v3603 = vmul.f32 %v2864, %v3002
          %v3604 = vmul.f32 %v2868, %v3006
          %v3605 = vmul.f32 %v2870, %v3008
          %v3606 = vmul.f32 %v2874, %v3012
          %v3607 = vmul.f32 %v2876, %v3014
          %v3608 = vmul.f32 %v2880, %v3018
          %v3609 = vmul.f32 %v2882, %v3020
          %v3610 = vmul.f32 %v2886, %v3024
          %v3611 = vmul.f32 %v2888, %v3026
          %v3612 = vmul.f32 %v2892, %v3030
          %v3613 = vmul.f32 %v2894, %v3032
          %v3614 = vmul.f32 %v2898, %v3036
          %v3615 = vmul.f32 %v2900, %v3038
          %v3616 = vmul.f32 %v2904, %v3042
          %v3617 = vmul.f32 %v2906, %v3044
          %v3618 = vmul.f32 %v2910, %v3048
          %v3619 = vmul.f32 %v2912, %v3050
          %v3620 = vmul.f32 %v2916, %v3054
          %v3621 = vmul.f32 %v2918, %v3056
          %v3622 = vmul.f32 %v2922, %v3060
          %v3623 = vmul.f32 %v2924, %v3062
          %v3624 = vmul.f32 %v2928, %v3066
          %v3625 = vmul.f32 %v2930, %v3068
          %v3626 = vmul.f32 %v2934, %v3072
          %v3627 = vmul.f32 %v2936, %v3074
          %v3628 = vmul.f32 %v3582, 2.0
          %v3629 = vmul.f32 %v3583, 2.0
          %v3630 = vmul.f32 %v3584, 2.0
          %v3631 = vmul.f32 %v3585, 2.0
          %v3632 = vmul.f32 %v3586, 2.0
          %v3633 = vmul.f32 %v3587, 2.0
          %v3634 = vmul.f32 %v3588, 2.0
          %v3635 = vmul.f32 %v3589, 2.0
          %v3636 = vmul.f32 %v3590, 2.0
          %v3637 = vmul.f32 %v3591, 2.0
          %v3638 = vmul.f32 %v3592, 2.0
          %v3639 = vmul.f32 %v3593, 2.0
          %v3640 = vmul.f32 %v3594, 2.0
          %v3641 = vmul.f32 %v3595, 2.0
          %v3642 = vmul.f32 %v3596, 2.0
          %v3643 = vmul.f32 %v3597, 2.0
          %v3644 = vmul.f32 %v3598, 2.0
          %v3645 = vmul.f32 %v3599, 2.0
          %v3646 = vmul.f32 %v3600, 2.0
          %v3647 = vmul.f32 %v3601, 2.0
          %v3648 = vmul.f32 %v3602, 2.0
          %v3649 = vmul.f32 %v3603, 2.0
          %v3650 = vmul.f32 %v3604, 2.0
          %v3651 = vmul.f32 %v3605, 2.0
          %v3652 = vmul.f32 %v3606, 2.0
          %v3653 = vmul.f32 %v3607, 2.0
          %v3654 = vmul.f32 %v3608, 2.0
          %v3655 = vmul.f32 %v3609, 2.0
          %v3656 = vmul.f32 %v3610, 2.0
          %v3657 = vmul.f32 %v3611, 2.0
          %v3658 = vmul.f32 %v3612, 2.0
          %v3659 = vmul.f32 %v3613, 2.0
          %v3660 = vmul.f32 %v3614, 2.0
          %v3661 = vmul.f32 %v3615, 2.0
          %v3662 = vmul.f32 %v3616, 2.0
          %v3663 = vmul.f32 %v3617, 2.0
          %v3664 = vmul.f32 %v3618, 2.0
          %v3665 = vmul.f32 %v3619, 2.0
          %v3666 = vmul.f32 %v3620, 2.0
          %v3667 = vmul.f32 %v3621, 2.0
          %v3668 = vmul.f32 %v3622, 2.0
          %v3669 = vmul.f32 %v3623, 2.0
          %v3670 = vmul.f32 %v3624, 2.0
          %v3671 = vmul.f32 %v3625, 2.0
          %v3672 = vmul.f32 %v3626, 2.0
          %v3673 = vmul.f32 %v3627, 2.0
          %v3674 = vadd.f32 %v3628, 6.5025
          %v3675 = vadd.f32 %v3629, 6.5025
          %v3676 = vadd.f32 %v3630, 6.5025
          %v3677 = vadd.f32 %v3631, 6.5025
          %v3678 = vadd.f32 %v3632, 6.5025
          %v3679 = vadd.f32 %v3633, 6.5025
          %v3680 = vadd.f32 %v3634, 6.5025
          %v3681 = vadd.f32 %v3635, 6.5025
          %v3682 = vadd.f32 %v3636, 6.5025
          %v3683 = vadd.f32 %v3637, 6.5025
          %v3684 = vadd.f32 %v3638, 6.5025
          %v3685 = vadd.f32 %v3639, 6.5025
          %v3686 = vadd.f32 %v3640, 6.5025
          %v3687 = vadd.f32 %v3641, 6.5025
          %v3688 = vadd.f32 %v3642, 6.5025
          %v3689 = vadd.f32 %v3643, 6.5025
          %v3690 = vadd.f32 %v3644, 6.5025
          %v3691 = vadd.f32 %v3645, 6.5025
          %v3692 = vadd.f32 %v3646, 6.5025
          %v3693 = vadd.f32 %v3647, 6.5025
          %v3694 = vadd.f32 %v3648, 6.5025
          %v3695 = vadd.f32 %v3649, 6.5025
          %v3696 = vadd.f32 %v3650, 6.5025
          %v3697 = vadd.f32 %v3651, 6.5025
          %v3698 = vadd.f32 %v3652, 6.5025
          %v3699 = vadd.f32 %v3653, 6.5025
          %v3700 = vadd.f32 %v3654, 6.5025
          %v3701 = vadd.f32 %v3655, 6.5025
          %v3702 = vadd.f32 %v3656, 6.5025
          %v3703 = vadd.f32 %v3657, 6.5025
          %v3704 = vadd.f32 %v3658, 6.5025
          %v3705 = vadd.f32 %v3659, 6.5025
          %v3706 = vadd.f32 %v3660, 6.5025
          %v3707 = vadd.f32 %v3661, 6.5025
          %v3708 = vadd.f32 %v3662, 6.5025
          %v3709 = vadd.f32 %v3663, 6.5025
          %v3710 = vadd.f32 %v3664, 6.5025
          %v3711 = vadd.f32 %v3665, 6.5025
          %v3712 = vadd.f32 %v3666, 6.5025
          %v3713 = vadd.f32 %v3667, 6.5025
          %v3714 = vadd.f32 %v3668, 6.5025
          %v3715 = vadd.f32 %v3669, 6.5025
          %v3716 = vadd.f32 %v3670, 6.5025
          %v3717 = vadd.f32 %v3671, 6.5025
          %v3718 = vadd.f32 %v3672, 6.5025
          %v3719 = vadd.f32 %v3673, 6.5025
          %v3720 = vadd.f32 %v3490, %v3536
          %v3721 = vadd.f32 %v3491, %v3537
          %v3722 = vadd.f32 %v3492, %v3538
          %v3723 = vadd.f32 %v3493, %v3539
          %v3724 = vadd.f32 %v3494, %v3540
          %v3725 = vadd.f32 %v3495, %v3541
          %v3726 = vadd.f32 %v3496, %v3542
          %v3727 = vadd.f32 %v3497, %v3543
          %v3728 = vadd.f32 %v3498, %v3544
          %v3729 = vadd.f32 %v3499, %v3545
          %v3730 = vadd.f32 %v3500, %v3546
          %v3731 = vadd.f32 %v3501, %v3547
          %v3732 = vadd.f32 %v3502, %v3548
          %v3733 = vadd.f32 %v3503, %v3549
          %v3734 = vadd.f32 %v3504, %v3550
          %v3735 = vadd.f32 %v3505, %v3551
          %v3736 = vadd.f32 %v3506, %v3552
          %v3737 = vadd.f32 %v3507, %v3553
          %v3738 = vadd.f32 %v3508, %v3554
          %v3739 = vadd.f32 %v3509, %v3555
          %v3740 = vadd.f32 %v3510, %v3556
          %v3741 = vadd.f32 %v3511, %v3557
          %v3742 = vadd.f32 %v3512, %v3558
          %v3743 = vadd.f32 %v3513, %v3559
          %v3744 = vadd.f32 %v3514, %v3560
          %v3745 = vadd.f32 %v3515, %v3561
          %v3746 = vadd.f32 %v3516, %v3562
          %v3747 = vadd.f32 %v3517, %v3563
          %v3748 = vadd.f32 %v3518, %v3564
          %v3749 = vadd.f32 %v3519, %v3565
          %v3750 = vadd.f32 %v3520, %v3566
          %v3751 = vadd.f32 %v3521, %v3567
          %v3752 = vadd.f32 %v3522, %v3568
          %v3753 = vadd.f32 %v3523, %v3569
          %v3754 = vadd.f32 %v3524, %v3570
          %v3755 = vadd.f32 %v3525, %v3571
          %v3756 = vadd.f32 %v3526, %v3572
          %v3757 = vadd.f32 %v3527, %v3573
          %v3758 = vadd.f32 %v3528, %v3574
          %v3759 = vadd.f32 %v3529, %v3575
          %v3760 = vadd.f32 %v3530, %v3576
          %v3761 = vadd.f32 %v3531, %v3577
          %v3762 = vadd.f32 %v3532, %v3578
          %v3763 = vadd.f32 %v3533, %v3579
          %v3764 = vadd.f32 %v3534, %v3580
          %v3765 = vadd.f32 %v3535, %v3581
          %v3766 = vadd.f32 %v3720, 6.5025
          %v3767 = vadd.f32 %v3721, 6.5025
          %v3768 = vadd.f32 %v3722, 6.5025
          %v3769 = vadd.f32 %v3723, 6.5025
          %v3770 = vadd.f32 %v3724, 6.5025
          %v3771 = vadd.f32 %v3725, 6.5025
          %v3772 = vadd.f32 %v3726, 6.5025
          %v3773 = vadd.f32 %v3727, 6.5025
          %v3774 = vadd.f32 %v3728, 6.5025
          %v3775 = vadd.f32 %v3729, 6.5025
          %v3776 = vadd.f32 %v3730, 6.5025
          %v3777 = vadd.f32 %v3731, 6.5025
          %v3778 = vadd.f32 %v3732, 6.5025
          %v3779 = vadd.f32 %v3733, 6.5025
          %v3780 = vadd.f32 %v3734, 6.5025
          %v3781 = vadd.f32 %v3735, 6.5025
          %v3782 = vadd.f32 %v3736, 6.5025
          %v3783 = vadd.f32 %v3737, 6.5025
          %v3784 = vadd.f32 %v3738, 6.5025
          %v3785 = vadd.f32 %v3739, 6.5025
          %v3786 = vadd.f32 %v3740, 6.5025
          %v3787 = vadd.f32 %v3741, 6.5025
          %v3788 = vadd.f32 %v3742, 6.5025
          %v3789 = vadd.f32 %v3743, 6.5025
          %v3790 = vadd.f32 %v3744, 6.5025
          %v3791 = vadd.f32 %v3745, 6.5025
          %v3792 = vadd.f32 %v3746, 6.5025
          %v3793 = vadd.f32 %v3747, 6.5025
          %v3794 = vadd.f32 %v3748, 6.5025
          %v3795 = vadd.f32 %v3749, 6.5025
          %v3796 = vadd.f32 %v3750, 6.5025
          %v3797 = vadd.f32 %v3751, 6.5025
          %v3798 = vadd.f32 %v3752, 6.5025
          %v3799 = vadd.f32 %v3753, 6.5025
          %v3800 = vadd.f32 %v3754, 6.5025
          %v3801 = vadd.f32 %v3755, 6.5025
          %v3802 = vadd.f32 %v3756, 6.5025
          %v3803 = vadd.f32 %v3757, 6.5025
          %v3804 = vadd.f32 %v3758, 6.5025
          %v3805 = vadd.f32 %v3759, 6.5025
          %v3806 = vadd.f32 %v3760, 6.5025
          %v3807 = vadd.f32 %v3761, 6.5025
          %v3808 = vadd.f32 %v3762, 6.5025
          %v3809 = vadd.f32 %v3763, 6.5025
          %v3810 = vadd.f32 %v3764, 6.5025
          %v3811 = vadd.f32 %v3765, 6.5025
          %v3812 = vsub.f32 %v3354, %v3582
          %v3813 = vsub.f32 %v3356, %v3583
          %v3814 = vsub.f32 %v3360, %v3584
          %v3815 = vsub.f32 %v3362, %v3585
          %v3816 = vsub.f32 %v3366, %v3586
          %v3817 = vsub.f32 %v3368, %v3587
          %v3818 = vsub.f32 %v3372, %v3588
          %v3819 = vsub.f32 %v3374, %v3589
          %v3820 = vsub.f32 %v3378, %v3590
          %v3821 = vsub.f32 %v3380, %v3591
          %v3822 = vsub.f32 %v3384, %v3592
          %v3823 = vsub.f32 %v3386, %v3593
          %v3824 = vsub.f32 %v3390, %v3594
          %v3825 = vsub.f32 %v3392, %v3595
          %v3826 = vsub.f32 %v3396, %v3596
          %v3827 = vsub.f32 %v3398, %v3597
          %v3828 = vsub.f32 %v3402, %v3598
          %v3829 = vsub.f32 %v3404, %v3599
          %v3830 = vsub.f32 %v3408, %v3600
          %v3831 = vsub.f32 %v3410, %v3601
          %v3832 = vsub.f32 %v3414, %v3602
          %v3833 = vsub.f32 %v3416, %v3603
          %v3834 = vsub.f32 %v3420, %v3604
          %v3835 = vsub.f32 %v3422, %v3605
          %v3836 = vsub.f32 %v3426, %v3606
          %v3837 = vsub.f32 %v3428, %v3607
          %v3838 = vsub.f32 %v3432, %v3608
          %v3839 = vsub.f32 %v3434, %v3609
          %v3840 = vsub.f32 %v3438, %v3610
          %v3841 = vsub.f32 %v3440, %v3611
          %v3842 = vsub.f32 %v3444, %v3612
          %v3843 = vsub.f32 %v3446, %v3613
          %v3844 = vsub.f32 %v3450, %v3614
          %v3845 = vsub.f32 %v3452, %v3615
          %v3846 = vsub.f32 %v3456, %v3616
          %v3847 = vsub.f32 %v3458, %v3617
          %v3848 = vsub.f32 %v3462, %v3618
          %v3849 = vsub.f32 %v3464, %v3619
          %v3850 = vsub.f32 %v3468, %v3620
          %v3851 = vsub.f32 %v3470, %v3621
          %v3852 = vsub.f32 %v3474, %v3622
          %v3853 = vsub.f32 %v3476, %v3623
          %v3854 = vsub.f32 %v3480, %v3624
          %v3855 = vsub.f32 %v3482, %v3625
          %v3856 = vsub.f32 %v3486, %v3626
          %v3857 = vsub.f32 %v3488, %v3627
          %v3858 = vmul.f32 %v3812, 2.0
          %v3859 = vmul.f32 %v3813, 2.0
          %v3860 = vmul.f32 %v3814, 2.0
          %v3861 = vmul.f32 %v3815, 2.0
          %v3862 = vmul.f32 %v3816, 2.0
          %v3863 = vmul.f32 %v3817, 2.0
          %v3864 = vmul.f32 %v3818, 2.0
          %v3865 = vmul.f32 %v3819, 2.0
          %v3866 = vmul.f32 %v3820, 2.0
          %v3867 = vmul.f32 %v3821, 2.0
          %v3868 = vmul.f32 %v3822, 2.0
          %v3869 = vmul.f32 %v3823, 2.0
          %v3870 = vmul.f32 %v3824, 2.0
          %v3871 = vmul.f32 %v3825, 2.0
          %v3872 = vmul.f32 %v3826, 2.0
          %v3873 = vmul.f32 %v3827, 2.0
          %v3874 = vmul.f32 %v3828, 2.0
          %v3875 = vmul.f32 %v3829, 2.0
          %v3876 = vmul.f32 %v3830, 2.0
          %v3877 = vmul.f32 %v3831, 2.0
          %v3878 = vmul.f32 %v3832, 2.0
          %v3879 = vmul.f32 %v3833, 2.0
          %v3880 = vmul.f32 %v3834, 2.0
          %v3881 = vmul.f32 %v3835, 2.0
          %v3882 = vmul.f32 %v3836, 2.0
          %v3883 = vmul.f32 %v3837, 2.0
          %v3884 = vmul.f32 %v3838, 2.0
          %v3885 = vmul.f32 %v3839, 2.0
          %v3886 = vmul.f32 %v3840, 2.0
          %v3887 = vmul.f32 %v3841, 2.0
          %v3888 = vmul.f32 %v3842, 2.0
          %v3889 = vmul.f32 %v3843, 2.0
          %v3890 = vmul.f32 %v3844, 2.0
          %v3891 = vmul.f32 %v3845, 2.0
          %v3892 = vmul.f32 %v3846, 2.0
          %v3893 = vmul.f32 %v3847, 2.0
          %v3894 = vmul.f32 %v3848, 2.0
          %v3895 = vmul.f32 %v3849, 2.0
          %v3896 = vmul.f32 %v3850, 2.0
          %v3897 = vmul.f32 %v3851, 2.0
          %v3898 = vmul.f32 %v3852, 2.0
          %v3899 = vmul.f32 %v3853, 2.0
          %v3900 = vmul.f32 %v3854, 2.0
          %v3901 = vmul.f32 %v3855, 2.0
          %v3902 = vmul.f32 %v3856, 2.0
          %v3903 = vmul.f32 %v3857, 2.0
          %v3904 = vadd.f32 %v3858, 58.5225
          %v3905 = vadd.f32 %v3859, 58.5225
          %v3906 = vadd.f32 %v3860, 58.5225
          %v3907 = vadd.f32 %v3861, 58.5225
          %v3908 = vadd.f32 %v3862, 58.5225
          %v3909 = vadd.f32 %v3863, 58.5225
          %v3910 = vadd.f32 %v3864, 58.5225
          %v3911 = vadd.f32 %v3865, 58.5225
          %v3912 = vadd.f32 %v3866, 58.5225
          %v3913 = vadd.f32 %v3867, 58.5225
          %v3914 = vadd.f32 %v3868, 58.5225
          %v3915 = vadd.f32 %v3869, 58.5225
          %v3916 = vadd.f32 %v3870, 58.5225
          %v3917 = vadd.f32 %v3871, 58.5225
          %v3918 = vadd.f32 %v3872, 58.5225
          %v3919 = vadd.f32 %v3873, 58.5225
          %v3920 = vadd.f32 %v3874, 58.5225
          %v3921 = vadd.f32 %v3875, 58.5225
          %v3922 = vadd.f32 %v3876, 58.5225
          %v3923 = vadd.f32 %v3877, 58.5225
          %v3924 = vadd.f32 %v3878, 58.5225
          %v3925 = vadd.f32 %v3879, 58.5225
          %v3926 = vadd.f32 %v3880, 58.5225
          %v3927 = vadd.f32 %v3881, 58.5225
          %v3928 = vadd.f32 %v3882, 58.5225
          %v3929 = vadd.f32 %v3883, 58.5225
          %v3930 = vadd.f32 %v3884, 58.5225
          %v3931 = vadd.f32 %v3885, 58.5225
          %v3932 = vadd.f32 %v3886, 58.5225
          %v3933 = vadd.f32 %v3887, 58.5225
          %v3934 = vadd.f32 %v3888, 58.5225
          %v3935 = vadd.f32 %v3889, 58.5225
          %v3936 = vadd.f32 %v3890, 58.5225
          %v3937 = vadd.f32 %v3891, 58.5225
          %v3938 = vadd.f32 %v3892, 58.5225
          %v3939 = vadd.f32 %v3893, 58.5225
          %v3940 = vadd.f32 %v3894, 58.5225
          %v3941 = vadd.f32 %v3895, 58.5225
          %v3942 = vadd.f32 %v3896, 58.5225
          %v3943 = vadd.f32 %v3897, 58.5225
          %v3944 = vadd.f32 %v3898, 58.5225
          %v3945 = vadd.f32 %v3899, 58.5225
          %v3946 = vadd.f32 %v3900, 58.5225
          %v3947 = vadd.f32 %v3901, 58.5225
          %v3948 = vadd.f32 %v3902, 58.5225
          %v3949 = vadd.f32 %v3903, 58.5225
          %v3950 = vsub.f32 %v3078, %v3490
          %v3951 = vsub.f32 %v3080, %v3491
          %v3952 = vsub.f32 %v3084, %v3492
          %v3953 = vsub.f32 %v3086, %v3493
          %v3954 = vsub.f32 %v3090, %v3494
          %v3955 = vsub.f32 %v3092, %v3495
          %v3956 = vsub.f32 %v3096, %v3496
          %v3957 = vsub.f32 %v3098, %v3497
          %v3958 = vsub.f32 %v3102, %v3498
          %v3959 = vsub.f32 %v3104, %v3499
          %v3960 = vsub.f32 %v3108, %v3500
          %v3961 = vsub.f32 %v3110, %v3501
          %v3962 = vsub.f32 %v3114, %v3502
          %v3963 = vsub.f32 %v3116, %v3503
          %v3964 = vsub.f32 %v3120, %v3504
          %v3965 = vsub.f32 %v3122, %v3505
          %v3966 = vsub.f32 %v3126, %v3506
          %v3967 = vsub.f32 %v3128, %v3507
          %v3968 = vsub.f32 %v3132, %v3508
          %v3969 = vsub.f32 %v3134, %v3509
          %v3970 = vsub.f32 %v3138, %v3510
          %v3971 = vsub.f32 %v3140, %v3511
          %v3972 = vsub.f32 %v3144, %v3512
          %v3973 = vsub.f32 %v3146, %v3513
          %v3974 = vsub.f32 %v3150, %v3514
          %v3975 = vsub.f32 %v3152, %v3515
          %v3976 = vsub.f32 %v3156, %v3516
          %v3977 = vsub.f32 %v3158, %v3517
          %v3978 = vsub.f32 %v3162, %v3518
          %v3979 = vsub.f32 %v3164, %v3519
          %v3980 = vsub.f32 %v3168, %v3520
          %v3981 = vsub.f32 %v3170, %v3521
          %v3982 = vsub.f32 %v3174, %v3522
          %v3983 = vsub.f32 %v3176, %v3523
          %v3984 = vsub.f32 %v3180, %v3524
          %v3985 = vsub.f32 %v3182, %v3525
          %v3986 = vsub.f32 %v3186, %v3526
          %v3987 = vsub.f32 %v3188, %v3527
          %v3988 = vsub.f32 %v3192, %v3528
          %v3989 = vsub.f32 %v3194, %v3529
          %v3990 = vsub.f32 %v3198, %v3530
          %v3991 = vsub.f32 %v3200, %v3531
          %v3992 = vsub.f32 %v3204, %v3532
          %v3993 = vsub.f32 %v3206, %v3533
          %v3994 = vsub.f32 %v3210, %v3534
          %v3995 = vsub.f32 %v3212, %v3535
          %v3996 = vsub.f32 %v3216, %v3536
          %v3997 = vsub.f32 %v3218, %v3537
          %v3998 = vsub.f32 %v3222, %v3538
          %v3999 = vsub.f32 %v3224, %v3539
          %v4000 = vsub.f32 %v3228, %v3540
          %v4001 = vsub.f32 %v3230, %v3541
          %v4002 = vsub.f32 %v3234, %v3542
          %v4003 = vsub.f32 %v3236, %v3543
          %v4004 = vsub.f32 %v3240, %v3544
          %v4005 = vsub.f32 %v3242, %v3545
          %v4006 = vsub.f32 %v3246, %v3546
          %v4007 = vsub.f32 %v3248, %v3547
          %v4008 = vsub.f32 %v3252, %v3548
          %v4009 = vsub.f32 %v3254, %v3549
          %v4010 = vsub.f32 %v3258, %v3550
          %v4011 = vsub.f32 %v3260, %v3551
          %v4012 = vsub.f32 %v3264, %v3552
          %v4013 = vsub.f32 %v3266, %v3553
          %v4014 = vsub.f32 %v3270, %v3554
          %v4015 = vsub.f32 %v3272, %v3555
          %v4016 = vsub.f32 %v3276, %v3556
          %v4017 = vsub.f32 %v3278, %v3557
          %v4018 = vsub.f32 %v3282, %v3558
          %v4019 = vsub.f32 %v3284, %v3559
          %v4020 = vsub.f32 %v3288, %v3560
          %v4021 = vsub.f32 %v3290, %v3561
          %v4022 = vsub.f32 %v3294, %v3562
          %v4023 = vsub.f32 %v3296, %v3563
          %v4024 = vsub.f32 %v3300, %v3564
          %v4025 = vsub.f32 %v3302, %v3565
          %v4026 = vsub.f32 %v3306, %v3566
          %v4027 = vsub.f32 %v3308, %v3567
          %v4028 = vsub.f32 %v3312, %v3568
          %v4029 = vsub.f32 %v3314, %v3569
          %v4030 = vsub.f32 %v3318, %v3570
          %v4031 = vsub.f32 %v3320, %v3571
          %v4032 = vsub.f32 %v3324, %v3572
          %v4033 = vsub.f32 %v3326, %v3573
          %v4034 = vsub.f32 %v3330, %v3574
          %v4035 = vsub.f32 %v3332, %v3575
          %v4036 = vsub.f32 %v3336, %v3576
          %v4037 = vsub.f32 %v3338, %v3577
          %v4038 = vsub.f32 %v3342, %v3578
          %v4039 = vsub.f32 %v3344, %v3579
          %v4040 = vsub.f32 %v3348, %v3580
          %v4041 = vsub.f32 %v3350, %v3581
          %v4042 = vadd.f32 %v3950, %v3996
          %v4043 = vadd.f32 %v3951, %v3997
          %v4044 = vadd.f32 %v3952, %v3998
          %v4045 = vadd.f32 %v3953, %v3999
          %v4046 = vadd.f32 %v3954, %v4000
          %v4047 = vadd.f32 %v3955, %v4001
          %v4048 = vadd.f32 %v3956, %v4002
          %v4049 = vadd.f32 %v3957, %v4003
          %v4050 = vadd.f32 %v3958, %v4004
          %v4051 = vadd.f32 %v3959, %v4005
          %v4052 = vadd.f32 %v3960, %v4006
          %v4053 = vadd.f32 %v3961, %v4007
          %v4054 = vadd.f32 %v3962, %v4008
          %v4055 = vadd.f32 %v3963, %v4009
          %v4056 = vadd.f32 %v3964, %v4010
          %v4057 = vadd.f32 %v3965, %v4011
          %v4058 = vadd.f32 %v3966, %v4012
          %v4059 = vadd.f32 %v3967, %v4013
          %v4060 = vadd.f32 %v3968, %v4014
          %v4061 = vadd.f32 %v3969, %v4015
          %v4062 = vadd.f32 %v3970, %v4016
          %v4063 = vadd.f32 %v3971, %v4017
          %v4064 = vadd.f32 %v3972, %v4018
          %v4065 = vadd.f32 %v3973, %v4019
          %v4066 = vadd.f32 %v3974, %v4020
          %v4067 = vadd.f32 %v3975, %v4021
          %v4068 = vadd.f32 %v3976, %v4022
          %v4069 = vadd.f32 %v3977, %v4023
          %v4070 = vadd.f32 %v3978, %v4024
          %v4071 = vadd.f32 %v3979, %v4025
          %v4072 = vadd.f32 %v3980, %v4026
          %v4073 = vadd.f32 %v3981, %v4027
          %v4074 = vadd.f32 %v3982, %v4028
          %v4075 = vadd.f32 %v3983, %v4029
          %v4076 = vadd.f32 %v3984, %v4030
          %v4077 = vadd.f32 %v3985, %v4031
          %v4078 = vadd.f32 %v3986, %v4032
          %v4079 = vadd.f32 %v3987, %v4033
          %v4080 = vadd.f32 %v3988, %v4034
          %v4081 = vadd.f32 %v3989, %v4035
          %v4082 = vadd.f32 %v3990, %v4036
          %v4083 = vadd.f32 %v3991, %v4037
          %v4084 = vadd.f32 %v3992, %v4038
          %v4085 = vadd.f32 %v3993, %v4039
          %v4086 = vadd.f32 %v3994, %v4040
          %v4087 = vadd.f32 %v3995, %v4041
          %v4088 = vadd.f32 %v4042, 58.5225
          %v4089 = vadd.f32 %v4043, 58.5225
          %v4090 = vadd.f32 %v4044, 58.5225
          %v4091 = vadd.f32 %v4045, 58.5225
          %v4092 = vadd.f32 %v4046, 58.5225
          %v4093 = vadd.f32 %v4047, 58.5225
          %v4094 = vadd.f32 %v4048, 58.5225
          %v4095 = vadd.f32 %v4049, 58.5225
          %v4096 = vadd.f32 %v4050, 58.5225
          %v4097 = vadd.f32 %v4051, 58.5225
          %v4098 = vadd.f32 %v4052, 58.5225
          %v4099 = vadd.f32 %v4053, 58.5225
          %v4100 = vadd.f32 %v4054, 58.5225
          %v4101 = vadd.f32 %v4055, 58.5225
          %v4102 = vadd.f32 %v4056, 58.5225
          %v4103 = vadd.f32 %v4057, 58.5225
          %v4104 = vadd.f32 %v4058, 58.5225
          %v4105 = vadd.f32 %v4059, 58.5225
          %v4106 = vadd.f32 %v4060, 58.5225
          %v4107 = vadd.f32 %v4061, 58.5225
          %v4108 = vadd.f32 %v4062, 58.5225
          %v4109 = vadd.f32 %v4063, 58.5225
          %v4110 = vadd.f32 %v4064, 58.5225
          %v4111 = vadd.f32 %v4065, 58.5225
          %v4112 = vadd.f32 %v4066, 58.5225
          %v4113 = vadd.f32 %v4067, 58.5225
          %v4114 = vadd.f32 %v4068, 58.5225
          %v4115 = vadd.f32 %v4069, 58.5225
          %v4116 = vadd.f32 %v4070, 58.5225
          %v4117 = vadd.f32 %v4071, 58.5225
          %v4118 = vadd.f32 %v4072, 58.5225
          %v4119 = vadd.f32 %v4073, 58.5225
          %v4120 = vadd.f32 %v4074, 58.5225
          %v4121 = vadd.f32 %v4075, 58.5225
          %v4122 = vadd.f32 %v4076, 58.5225
          %v4123 = vadd.f32 %v4077, 58.5225
          %v4124 = vadd.f32 %v4078, 58.5225
          %v4125 = vadd.f32 %v4079, 58.5225
          %v4126 = vadd.f32 %v4080, 58.5225
          %v4127 = vadd.f32 %v4081, 58.5225
          %v4128 = vadd.f32 %v4082, 58.5225
          %v4129 = vadd.f32 %v4083, 58.5225
          %v4130 = vadd.f32 %v4084, 58.5225
          %v4131 = vadd.f32 %v4085, 58.5225
          %v4132 = vadd.f32 %v4086, 58.5225
          %v4133 = vadd.f32 %v4087, 58.5225
          %v4134 = vrcp.pop %v4088
          %v4135 = vmul.f32 %v3904, %v4134
          %v4136 = vrcp.pop %v4089
          %v4137 = vmul.f32 %v3905, %v4136
          %v4138 = vrcp.pop %v4090
          %v4139 = vmul.f32 %v3906, %v4138
          %v4140 = vrcp.pop %v4091
          %v4141 = vmul.f32 %v3907, %v4140
          %v4142 = vrcp.pop %v4092
          %v4143 = vmul.f32 %v3908, %v4142
          %v4144 = vrcp.pop %v4093
          %v4145 = vmul.f32 %v3909, %v4144
          %v4146 = vrcp.pop %v4094
          %v4147 = vmul.f32 %v3910, %v4146
          %v4148 = vrcp.pop %v4095
          %v4149 = vmul.f32 %v3911, %v4148
          %v4150 = vrcp.pop %v4096
          %v4151 = vmul.f32 %v3912, %v4150
          %v4152 = vrcp.pop %v4097
          %v4153 = vmul.f32 %v3913, %v4152
          %v4154 = vrcp.pop %v4098
          %v4155 = vmul.f32 %v3914, %v4154
          %v4156 = vrcp.pop %v4099
          %v4157 = vmul.f32 %v3915, %v4156
          %v4158 = vrcp.pop %v4100
          %v4159 = vmul.f32 %v3916, %v4158
          %v4160 = vrcp.pop %v4101
          %v4161 = vmul.f32 %v3917, %v4160
          %v4162 = vrcp.pop %v4102
          %v4163 = vmul.f32 %v3918, %v4162
          %v4164 = vrcp.pop %v4103
          %v4165 = vmul.f32 %v3919, %v4164
          %v4166 = vrcp.pop %v4104
          %v4167 = vmul.f32 %v3920, %v4166
          %v4168 = vrcp.pop %v4105
          %v4169 = vmul.f32 %v3921, %v4168
          %v4170 = vrcp.pop %v4106
          %v4171 = vmul.f32 %v3922, %v4170
          %v4172 = vrcp.pop %v4107
          %v4173 = vmul.f32 %v3923, %v4172
          %v4174 = vrcp.pop %v4108
          %v4175 = vmul.f32 %v3924, %v4174
          %v4176 = vrcp.pop %v4109
          %v4177 = vmul.f32 %v3925, %v4176
          %v4178 = vrcp.pop %v4110
          %v4179 = vmul.f32 %v3926, %v4178
          %v4180 = vrcp.pop %v4111
          %v4181 = vmul.f32 %v3927, %v4180
          %v4182 = vrcp.pop %v4112
          %v4183 = vmul.f32 %v3928, %v4182
          %v4184 = vrcp.pop %v4113
          %v4185 = vmul.f32 %v3929, %v4184
          %v4186 = vrcp.pop %v4114
          %v4187 = vmul.f32 %v3930, %v4186
          %v4188 = vrcp.pop %v4115
          %v4189 = vmul.f32 %v3931, %v4188
          %v4190 = vrcp.pop %v4116
          %v4191 = vmul.f32 %v3932, %v4190
          %v4192 = vrcp.pop %v4117
          %v4193 = vmul.f32 %v3933, %v4192
          %v4194 = vrcp.pop %v4118
          %v4195 = vmul.f32 %v3934, %v4194
          %v4196 = vrcp.pop %v4119
          %v4197 = vmul.f32 %v3935, %v4196
          %v4198 = vrcp.pop %v4120
          %v4199 = vmul.f32 %v3936, %v4198
          %v4200 = vrcp.pop %v4121
          %v4201 = vmul.f32 %v3937, %v4200
          %v4202 = vrcp.pop %v4122
          %v4203 = vmul.f32 %v3938, %v4202
          %v4204 = vrcp.pop %v4123
          %v4205 = vmul.f32 %v3939, %v4204
          %v4206 = vrcp.pop %v4124
          %v4207 = vmul.f32 %v3940, %v4206
          %v4208 = vrcp.pop %v4125
          %v4209 = vmul.f32 %v3941, %v4208
          %v4210 = vrcp.pop %v4126
          %v4211 = vmul.f32 %v3942, %v4210
          %v4212 = vrcp.pop %v4127
          %v4213 = vmul.f32 %v3943, %v4212
          %v4214 = vrcp.pop %v4128
          %v4215 = vmul.f32 %v3944, %v4214
          %v4216 = vrcp.pop %v4129
          %v4217 = vmul.f32 %v3945, %v4216
          %v4218 = vrcp.pop %v4130
          %v4219 = vmul.f32 %v3946, %v4218
          %v4220 = vrcp.pop %v4131
          %v4221 = vmul.f32 %v3947, %v4220
          %v4222 = vrcp.pop %v4132
          %v4223 = vmul.f32 %v3948, %v4222
          %v4224 = vrcp.pop %v4133
          %v4225 = vmul.f32 %v3949, %v4224
          %v4226 = vrcp.pop %v3766
          %v4227 = vmul.f32 %v3674, %v4226
          %v4228 = vrcp.pop %v3767
          %v4229 = vmul.f32 %v3675, %v4228
          %v4230 = vrcp.pop %v3768
          %v4231 = vmul.f32 %v3676, %v4230
          %v4232 = vrcp.pop %v3769
          %v4233 = vmul.f32 %v3677, %v4232
          %v4234 = vrcp.pop %v3770
          %v4235 = vmul.f32 %v3678, %v4234
          %v4236 = vrcp.pop %v3771
          %v4237 = vmul.f32 %v3679, %v4236
          %v4238 = vrcp.pop %v3772
          %v4239 = vmul.f32 %v3680, %v4238
          %v4240 = vrcp.pop %v3773
          %v4241 = vmul.f32 %v3681, %v4240
          %v4242 = vrcp.pop %v3774
          %v4243 = vmul.f32 %v3682, %v4242
          %v4244 = vrcp.pop %v3775
          %v4245 = vmul.f32 %v3683, %v4244
          %v4246 = vrcp.pop %v3776
          %v4247 = vmul.f32 %v3684, %v4246
          %v4248 = vrcp.pop %v3777
          %v4249 = vmul.f32 %v3685, %v4248
          %v4250 = vrcp.pop %v3778
          %v4251 = vmul.f32 %v3686, %v4250
          %v4252 = vrcp.pop %v3779
          %v4253 = vmul.f32 %v3687, %v4252
          %v4254 = vrcp.pop %v3780
          %v4255 = vmul.f32 %v3688, %v4254
          %v4256 = vrcp.pop %v3781
          %v4257 = vmul.f32 %v3689, %v4256
          %v4258 = vrcp.pop %v3782
          %v4259 = vmul.f32 %v3690, %v4258
          %v4260 = vrcp.pop %v3783
          %v4261 = vmul.f32 %v3691, %v4260
          %v4262 = vrcp.pop %v3784
          %v4263 = vmul.f32 %v3692, %v4262
          %v4264 = vrcp.pop %v3785
          %v4265 = vmul.f32 %v3693, %v4264
          %v4266 = vrcp.pop %v3786
          %v4267 = vmul.f32 %v3694, %v4266
          %v4268 = vrcp.pop %v3787
          %v4269 = vmul.f32 %v3695, %v4268
          %v4270 = vrcp.pop %v3788
          %v4271 = vmul.f32 %v3696, %v4270
          %v4272 = vrcp.pop %v3789
          %v4273 = vmul.f32 %v3697, %v4272
          %v4274 = vrcp.pop %v3790
          %v4275 = vmul.f32 %v3698, %v4274
          %v4276 = vrcp.pop %v3791
          %v4277 = vmul.f32 %v3699, %v4276
          %v4278 = vrcp.pop %v3792
          %v4279 = vmul.f32 %v3700, %v4278
          %v4280 = vrcp.pop %v3793
          %v4281 = vmul.f32 %v3701, %v4280
          %v4282 = vrcp.pop %v3794
          %v4283 = vmul.f32 %v3702, %v4282
          %v4284 = vrcp.pop %v3795
          %v4285 = vmul.f32 %v3703, %v4284
          %v4286 = vrcp.pop %v3796
          %v4287 = vmul.f32 %v3704, %v4286
          %v4288 = vrcp.pop %v3797
          %v4289 = vmul.f32 %v3705, %v4288
          %v4290 = vrcp.pop %v3798
          %v4291 = vmul.f32 %v3706, %v4290
          %v4292 = vrcp.pop %v3799
          %v4293 = vmul.f32 %v3707, %v4292
          %v4294 = vrcp.pop %v3800
          %v4295 = vmul.f32 %v3708, %v4294
          %v4296 = vrcp.pop %v3801
          %v4297 = vmul.f32 %v3709, %v4296
          %v4298 = vrcp.pop %v3802
          %v4299 = vmul.f32 %v3710, %v4298
          %v4300 = vrcp.pop %v3803
          %v4301 = vmul.f32 %v3711, %v4300
          %v4302 = vrcp.pop %v3804
          %v4303 = vmul.f32 %v3712, %v4302
          %v4304 = vrcp.pop %v3805
          %v4305 = vmul.f32 %v3713, %v4304
          %v4306 = vrcp.pop %v3806
          %v4307 = vmul.f32 %v3714, %v4306
          %v4308 = vrcp.pop %v3807
          %v4309 = vmul.f32 %v3715, %v4308
          %v4310 = vrcp.pop %v3808
          %v4311 = vmul.f32 %v3716, %v4310
          %v4312 = vrcp.pop %v3809
          %v4313 = vmul.f32 %v3717, %v4312
          %v4314 = vrcp.pop %v3810
          %v4315 = vmul.f32 %v3718, %v4314
          %v4316 = vrcp.pop %v3811
          %v4317 = vmul.f32 %v3719, %v4316
          %v4318 = vmul.f32 %v4227, %v4135
          %v4319 = vmul.f32 %v4229, %v4137
          %v4320 = vmul.f32 %v4231, %v4139
          %v4321 = vmul.f32 %v4233, %v4141
          %v4322 = vmul.f32 %v4235, %v4143
          %v4323 = vmul.f32 %v4237, %v4145
          %v4324 = vmul.f32 %v4239, %v4147
          %v4325 = vmul.f32 %v4241, %v4149
          %v4326 = vmul.f32 %v4243, %v4151
          %v4327 = vmul.f32 %v4245, %v4153
          %v4328 = vmul.f32 %v4247, %v4155
          %v4329 = vmul.f32 %v4249, %v4157
          %v4330 = vmul.f32 %v4251, %v4159
          %v4331 = vmul.f32 %v4253, %v4161
          %v4332 = vmul.f32 %v4255, %v4163
          %v4333 = vmul.f32 %v4257, %v4165
          %v4334 = vmul.f32 %v4259, %v4167
          %v4335 = vmul.f32 %v4261, %v4169
          %v4336 = vmul.f32 %v4263, %v4171
          %v4337 = vmul.f32 %v4265, %v4173
          %v4338 = vmul.f32 %v4267, %v4175
          %v4339 = vmul.f32 %v4269, %v4177
          %v4340 = vmul.f32 %v4271, %v4179
          %v4341 = vmul.f32 %v4273, %v4181
          %v4342 = vmul.f32 %v4275, %v4183
          %v4343 = vmul.f32 %v4277, %v4185
          %v4344 = vmul.f32 %v4279, %v4187
          %v4345 = vmul.f32 %v4281, %v4189
          %v4346 = vmul.f32 %v4283, %v4191
          %v4347 = vmul.f32 %v4285, %v4193
          %v4348 = vmul.f32 %v4287, %v4195
          %v4349 = vmul.f32 %v4289, %v4197
          %v4350 = vmul.f32 %v4291, %v4199
          %v4351 = vmul.f32 %v4293, %v4201
          %v4352 = vmul.f32 %v4295, %v4203
          %v4353 = vmul.f32 %v4297, %v4205
          %v4354 = vmul.f32 %v4299, %v4207
          %v4355 = vmul.f32 %v4301, %v4209
          %v4356 = vmul.f32 %v4303, %v4211
          %v4357 = vmul.f32 %v4305, %v4213
          %v4358 = vmul.f32 %v4307, %v4215
          %v4359 = vmul.f32 %v4309, %v4217
          %v4360 = vmul.f32 %v4311, %v4219
          %v4361 = vmul.f32 %v4313, %v4221
          %v4362 = vmul.f32 %v4315, %v4223
          %v4363 = vmul.f32 %v4317, %v4225
          %vm4364 = vcmask 441344
          %v4365 = vsel %vm4364, %v4319, 0.0
          %v4366 = vadd.f32 %v4318, %v4365
          %v4367 = vadd.f32 %v4366, %v4320
          %v4368 = vsel %vm4364, %v4321, 0.0
          %v4369 = vadd.f32 %v4367, %v4368
          %v4370 = vadd.f32 %v4369, %v4322
          %v4371 = vsel %vm4364, %v4323, 0.0
          %v4372 = vadd.f32 %v4370, %v4371
          %v4373 = vadd.f32 %v4372, %v4324
          %v4374 = vsel %vm4364, %v4325, 0.0
          %v4375 = vadd.f32 %v4373, %v4374
          %v4376 = vadd.f32 %v4375, %v4326
          %v4377 = vsel %vm4364, %v4327, 0.0
          %v4378 = vadd.f32 %v4376, %v4377
          %v4379 = vadd.f32 %v4378, %v4328
          %v4380 = vsel %vm4364, %v4329, 0.0
          %v4381 = vadd.f32 %v4379, %v4380
          %v4382 = vadd.f32 %v4381, %v4330
          %v4383 = vsel %vm4364, %v4331, 0.0
          %v4384 = vadd.f32 %v4382, %v4383
          %v4385 = vadd.f32 %v4384, %v4332
          %v4386 = vsel %vm4364, %v4333, 0.0
          %v4387 = vadd.f32 %v4385, %v4386
          %v4388 = vadd.f32 %v4387, %v4334
          %v4389 = vsel %vm4364, %v4335, 0.0
          %v4390 = vadd.f32 %v4388, %v4389
          %v4391 = vadd.f32 %v4390, %v4336
          %v4392 = vsel %vm4364, %v4337, 0.0
          %v4393 = vadd.f32 %v4391, %v4392
          %v4394 = vadd.f32 %v4393, %v4338
          %v4395 = vsel %vm4364, %v4339, 0.0
          %v4396 = vadd.f32 %v4394, %v4395
          %v4397 = vadd.f32 %v4396, %v4340
          %v4398 = vsel %vm4364, %v4341, 0.0
          %v4399 = vadd.f32 %v4397, %v4398
          %v4400 = vadd.f32 %v4399, %v4342
          %v4401 = vsel %vm4364, %v4343, 0.0
          %v4402 = vadd.f32 %v4400, %v4401
          %v4403 = vadd.f32 %v4402, %v4344
          %v4404 = vsel %vm4364, %v4345, 0.0
          %v4405 = vadd.f32 %v4403, %v4404
          %v4406 = vadd.f32 %v4405, %v4346
          %v4407 = vsel %vm4364, %v4347, 0.0
          %v4408 = vadd.f32 %v4406, %v4407
          %v4409 = vadd.f32 %v4408, %v4348
          %v4410 = vsel %vm4364, %v4349, 0.0
          %v4411 = vadd.f32 %v4409, %v4410
          %v4412 = vadd.f32 %v4411, %v4350
          %v4413 = vsel %vm4364, %v4351, 0.0
          %v4414 = vadd.f32 %v4412, %v4413
          %v4415 = vadd.f32 %v4414, %v4352
          %v4416 = vsel %vm4364, %v4353, 0.0
          %v4417 = vadd.f32 %v4415, %v4416
          %v4418 = vadd.f32 %v4417, %v4354
          %v4419 = vsel %vm4364, %v4355, 0.0
          %v4420 = vadd.f32 %v4418, %v4419
          %v4421 = vadd.f32 %v4420, %v4356
          %v4422 = vsel %vm4364, %v4357, 0.0
          %v4423 = vadd.f32 %v4421, %v4422
          %v4424 = vadd.f32 %v4423, %v4358
          %v4425 = vsel %vm4364, %v4359, 0.0
          %v4426 = vadd.f32 %v4424, %v4425
          %v4427 = vadd.f32 %v4426, %v4360
          %v4428 = vsel %vm4364, %v4361, 0.0
          %v4429 = vadd.f32 %v4427, %v4428
          %vm4430 = vcmask 1045504
          %v4431 = vsel %vm4430, %v4362, 0.0
          %v4432 = vadd.f32 %v4429, %v4431
          %vm4433 = vcmask 439296
          %v4434 = vsel %vm4433, %v4363, 0.0
          %v4435 = vadd.f32 %v4432, %v4434
          %4436 = vadd.xlane.f32.xlu0 %v4435
          %v4437 = vpop.xlane.xlu0 %4436
          %v4438 = vrot.slane %v4437, 4
          %v4439 = vadd.f32 %v4437, %v4438
          %v4440 = vrot.slane %v4439, 2
          %v4441 = vadd.f32 %v4439, %v4440
          %v4442 = vrot.slane %v4441, 1
          %v4443 = vadd.f32 %v4441, %v4442
          %s4444 = vtos %v4443
          %s4445 = smul.f32 %s4444, 3.018959e-05
          %v4446 = vsel %vm4364, %v4137, 0.0
          %v4447 = vadd.f32 %v4135, %v4446
          %v4448 = vadd.f32 %v4447, %v4139
          %v4449 = vsel %vm4364, %v4141, 0.0
          %v4450 = vadd.f32 %v4448, %v4449
          %v4451 = vadd.f32 %v4450, %v4143
          %v4452 = vsel %vm4364, %v4145, 0.0
          %v4453 = vadd.f32 %v4451, %v4452
          %v4454 = vadd.f32 %v4453, %v4147
          %v4455 = vsel %vm4364, %v4149, 0.0
          %v4456 = vadd.f32 %v4454, %v4455
          %v4457 = vadd.f32 %v4456, %v4151
          %v4458 = vsel %vm4364, %v4153, 0.0
          %v4459 = vadd.f32 %v4457, %v4458
          %v4460 = vadd.f32 %v4459, %v4155
          %v4461 = vsel %vm4364, %v4157, 0.0
          %v4462 = vadd.f32 %v4460, %v4461
          %v4463 = vadd.f32 %v4462, %v4159
          %v4464 = vsel %vm4364, %v4161, 0.0
          %v4465 = vadd.f32 %v4463, %v4464
          %v4466 = vadd.f32 %v4465, %v4163
          %v4467 = vsel %vm4364, %v4165, 0.0
          %v4468 = vadd.f32 %v4466, %v4467
          %v4469 = vadd.f32 %v4468, %v4167
          %v4470 = vsel %vm4364, %v4169, 0.0
          %v4471 = vadd.f32 %v4469, %v4470
          %v4472 = vadd.f32 %v4471, %v4171
          %v4473 = vsel %vm4364, %v4173, 0.0
          %v4474 = vadd.f32 %v4472, %v4473
          %v4475 = vadd.f32 %v4474, %v4175
          %v4476 = vsel %vm4364, %v4177, 0.0
          %v4477 = vadd.f32 %v4475, %v4476
          %v4478 = vadd.f32 %v4477, %v4179
          %v4479 = vsel %vm4364, %v4181, 0.0
          %v4480 = vadd.f32 %v4478, %v4479
          %v4481 = vadd.f32 %v4480, %v4183
          %v4482 = vsel %vm4364, %v4185, 0.0
          %v4483 = vadd.f32 %v4481, %v4482
          %v4484 = vadd.f32 %v4483, %v4187
          %v4485 = vsel %vm4364, %v4189, 0.0
          %v4486 = vadd.f32 %v4484, %v4485
          %v4487 = vadd.f32 %v4486, %v4191
          %v4488 = vsel %vm4364, %v4193, 0.0
          %v4489 = vadd.f32 %v4487, %v4488
          %v4490 = vadd.f32 %v4489, %v4195
          %v4491 = vsel %vm4364, %v4197, 0.0
          %v4492 = vadd.f32 %v4490, %v4491
          %v4493 = vadd.f32 %v4492, %v4199
          %v4494 = vsel %vm4364, %v4201, 0.0
          %v4495 = vadd.f32 %v4493, %v4494
          %v4496 = vadd.f32 %v4495, %v4203
          %v4497 = vsel %vm4364, %v4205, 0.0
          %v4498 = vadd.f32 %v4496, %v4497
          %v4499 = vadd.f32 %v4498, %v4207
          %v4500 = vsel %vm4364, %v4209, 0.0
          %v4501 = vadd.f32 %v4499, %v4500
          %v4502 = vadd.f32 %v4501, %v4211
          %v4503 = vsel %vm4364, %v4213, 0.0
          %v4504 = vadd.f32 %v4502, %v4503
          %v4505 = vadd.f32 %v4504, %v4215
          %v4506 = vsel %vm4364, %v4217, 0.0
          %v4507 = vadd.f32 %v4505, %v4506
          %v4508 = vadd.f32 %v4507, %v4219
          %v4509 = vsel %vm4364, %v4221, 0.0
          %v4510 = vadd.f32 %v4508, %v4509
          %v4511 = vsel %vm4430, %v4223, 0.0
          %v4512 = vadd.f32 %v4510, %v4511
          %v4513 = vsel %vm4433, %v4225, 0.0
          %v4514 = vadd.f32 %v4512, %v4513
          %4515 = vadd.xlane.f32.xlu0 %v4514
          %v4516 = vpop.xlane.xlu0 %4515
          %v4517 = vrot.slane %v4516, 4
          %v4518 = vadd.f32 %v4516, %v4517
          %v4519 = vrot.slane %v4518, 2
          %v4520 = vadd.f32 %v4518, %v4519
          %v4521 = vrot.slane %v4520, 1
          %v4522 = vadd.f32 %v4520, %v4521
          %s4523 = vtos %v4522
          %s4524 = smul.f32 %s4523, 3.018959e-05
          %v4525 = vstv %s959
          %vm4526 = vcmp.eq.s32.totalorder %v957, %v4525
          %vm4527 = vcmp.eq.s32.totalorder %v954, 0
          %vm4528 = vcmp.eq.s32.totalorder %v955, 0
          %vm4529 = vmand %vm4527, %vm4526
          %vm4530 = vmand %vm4528, %vm4526
          %v4531 = vstv %s4445
          %v4532 = vsel %vm4529, %v4531, %v964
          %v4533 = vsel %vm4530, %v4531, %v965
          %vm4534 = vcmp.eq.s32.totalorder %v954, 1
          %vm4535 = vcmp.eq.s32.totalorder %v955, 1
          %vm4536 = vmand %vm4534, %vm4526
          %vm4537 = vmand %vm4535, %vm4526
          %v4538 = vstv %s4524
          %v4539 = vsel %vm4536, %v4538, %v4532
          %v4540 = vsel %vm4537, %v4538, %v4533
          %v4541 = vld [vmem:[#allocation21] sm:$0xff]
          %v4542 = vld [vmem:[#allocation21 + $0x8] sm:$0xff]
          %v4543 = vld [vmem:[#allocation21 + $0x10] sm:$0xff]
          %v4544 = vld [vmem:[#allocation21 + $0x18] sm:$0xff]
          %v4545 = vld [vmem:[#allocation21 + $0x20] sm:$0xff]
          %v4546 = vld [vmem:[#allocation21 + $0x28] sm:$0xff]
          %v4547 = vld [vmem:[#allocation21 + $0x30] sm:$0xff]
          %v4548 = vld [vmem:[#allocation21 + $0x38] sm:$0xff]
          %v4549 = vld [vmem:[#allocation21 + $0x40] sm:$0xff]
          %v4550 = vld [vmem:[#allocation21 + $0x48] sm:$0xff]
          %v4551 = vld [vmem:[#allocation21 + $0x50] sm:$0xff]
          %v4552 = vld [vmem:[#allocation21 + $0x58] sm:$0xff]
          %v4553 = vld [vmem:[#allocation21 + $0x60] sm:$0xff]
          %v4554 = vld [vmem:[#allocation21 + $0x68] sm:$0xff]
          %v4555 = vld [vmem:[#allocation21 + $0x70] sm:$0xff]
          %v4556 = vld [vmem:[#allocation21 + $0x78] sm:$0xff]
          %v4557 = vld [vmem:[#allocation21 + $0x80] sm:$0xff]
          %v4558 = vld [vmem:[#allocation21 + $0x88] sm:$0xff]
          %v4559 = vld [vmem:[#allocation21 + $0x90] sm:$0xff]
          %v4560 = vld [vmem:[#allocation21 + $0x98] sm:$0xff]
          %v4561 = vld [vmem:[#allocation21 + $0xa0] sm:$0xff]
          %v4562 = vld [vmem:[#allocation21 + $0xa8] sm:$0xff]
          %v4563 = vld [vmem:[#allocation21 + $0xb0] sm:$0xff]
          %v4564 = vld [vmem:[#allocation21 + $0xb8] sm:$0xff]
          %v4565 = vld [vmem:[#allocation27] sm:$0xff]
          %v4566 = vld [vmem:[#allocation27 + $0x8] sm:$0xff]
          %v4567 = vld [vmem:[#allocation27 + $0x10] sm:$0xff]
          %v4568 = vld [vmem:[#allocation27 + $0x18] sm:$0xff]
          %v4569 = vld [vmem:[#allocation27 + $0x20] sm:$0xff]
          %v4570 = vld [vmem:[#allocation27 + $0x28] sm:$0xff]
          %v4571 = vld [vmem:[#allocation27 + $0x30] sm:$0xff]
          %v4572 = vld [vmem:[#allocation27 + $0x38] sm:$0xff]
          %v4573 = vld [vmem:[#allocation27 + $0x40] sm:$0xff]
          %v4574 = vld [vmem:[#allocation27 + $0x48] sm:$0xff]
          %v4575 = vld [vmem:[#allocation27 + $0x50] sm:$0xff]
          %v4576 = vld [vmem:[#allocation27 + $0x58] sm:$0xff]
          %v4577 = vld [vmem:[#allocation27 + $0x60] sm:$0xff]
          %v4578 = vld [vmem:[#allocation27 + $0x68] sm:$0xff]
          %v4579 = vld [vmem:[#allocation27 + $0x70] sm:$0xff]
          %v4580 = vld [vmem:[#allocation27 + $0x78] sm:$0xff]
          %v4581 = vld [vmem:[#allocation27 + $0x80] sm:$0xff]
          %v4582 = vld [vmem:[#allocation27 + $0x88] sm:$0xff]
          %v4583 = vld [vmem:[#allocation27 + $0x90] sm:$0xff]
          %v4584 = vld [vmem:[#allocation27 + $0x98] sm:$0xff]
          %v4585 = vld [vmem:[#allocation27 + $0xa0] sm:$0xff]
          %v4586 = vld [vmem:[#allocation27 + $0xa8] sm:$0xff]
          %v4587 = vld [vmem:[#allocation27 + $0xb0] sm:$0xff]
          %v4588 = vld [vmem:[#allocation27 + $0xb8] sm:$0xff]
          %v4590 = vsel %vm1305, %v4542, 0
          %v4593 = vsel %vm1305, %v4544, 0
          %v4596 = vsel %vm1305, %v4546, 0
          %v4599 = vsel %vm1305, %v4548, 0
          %v4602 = vsel %vm1305, %v4550, 0
          %v4605 = vsel %vm1305, %v4552, 0
          %v4608 = vsel %vm1305, %v4554, 0
          %v4611 = vsel %vm1305, %v4556, 0
          %v4614 = vsel %vm1305, %v4558, 0
          %v4617 = vsel %vm1305, %v4560, 0
          %v4620 = vsel %vm1305, %v4562, 0
          %v4623 = vsel %vm1305, %v4564, 0
          %4625 = vmatprep.subr.mxu0 %v970
          %4626 = vmatpush1.msra.mxu0 %v969
          %4627 = vmatprep.subr.mxu0 %v972
          %4628 = vmatpush1.msra.mxu0 %v971
          %4629 = vmatprep.subr.mxu0 %v974
          %4630 = vmatpush1.msra.mxu0 %v973
          %4631 = vmatprep.subr.mxu0 %v976
          %4632 = vmatpush1.msra.mxu0 %v975
          %4633 = vmatprep.subr.mxu0 %v978
          %4634 = vmatpush1.msra.mxu0 %v977
          %4635 = vmatprep.subr.mxu0 %v980
          %4636 = vmatpush1.msra.mxu0 %v979
          %4637 = vmatprep.subr.mxu0 %v982
          %4638 = vmatpush1.msra.mxu0 %v981
          %4639 = vmatprep.subr.mxu0 %v984
          %4640 = vmatpush1.msra.mxu0 %v983
          %4641 = vmatprep.subr.mxu0 %v986
          %4642 = vmatpush1.msra.mxu0 %v985
          %4643 = vmatprep.subr.mxu0 %v988
          %4644 = vmatpush1.msra.mxu0 %v987
          %4645 = vmatprep.subr.mxu0 %v990
          %4646 = vmatpush1.msra.mxu0 %v989
          %4647 = vmatprep.subr.mxu0 %v992
          %4648 = vmatpush1.msra.mxu0 %v991
          %4649 = vmatprep.subr.mxu0 %v994
          %4650 = vmatpush1.msra.mxu0 %v993
          %4651 = vmatprep.subr.mxu0 %v996
          %4652 = vmatpush1.msra.mxu0 %v995
          %4653 = vmatprep.subr.mxu0 %v998
          %4654 = vmatpush1.msra.mxu0 %v997
          %4655 = vmatprep.subr.mxu0 %v1000
          %4656 = vmatpush1.msra.mxu0 %v999
          %4657 = vmatprep.subr.mxu0 %v1002
          %4658 = vmatpush1.msra.mxu0 %v1001
          %4659 = vmatprep.subr.mxu0 %v1004
          %4660 = vmatpush1.msra.mxu0 %v1003
          %4661 = vmatprep.subr.mxu0 %v1006
          %4662 = vmatpush1.msra.mxu0 %v1005
          %4663 = vmatprep.subr.mxu0 %v1008
          %4664 = vmatpush1.msra.mxu0 %v1007
          %4665 = vmatprep.subr.mxu0 %v1010
          %4666 = vmatpush1.msra.mxu0 %v1009
          %4667 = vmatprep.subr.mxu0 %v1012
          %4668 = vmatpush1.msra.mxu0 %v1011
          %4669 = vmatprep.subr.mxu0 %v1014
          %4670 = vmatpush1.msra.mxu0 %v1013
          %4671 = vmatprep.subr.mxu0 %v1016
          %4672 = vmatpush1.msra.mxu0 %v1015
          %4673 = vmatprep.subr.mxu0 0.0
          %4674 = vmatpush1.msra.mxu0 0.0
          %4675 = vmatprep.subr.mxu0 0.0
          %4676 = vmatpush1.msra.mxu0 0.0
          %4677 = vmatprep.subr.mxu0 0.0
          %4678 = vmatpush1.msra.mxu0 0.0
          %4679 = vmatprep.subr.mxu0 0.0
          %4680 = vmatpush1.msra.mxu0 0.0
          %4681 = vmatprep.subr.mxu0 0.0
          %4682 = vmatpush1.msra.mxu0 0.0
          %4683 = vmatprep.subr.mxu0 0.0
          %4684 = vmatpush1.msra.mxu0 0.0
          %4685 = vmatprep.subr.mxu0 0.0
          %4686 = vmatpush1.msra.mxu0 0.0
          %4687 = vmatprep.subr.mxu0 0.0
          %4688 = vmatpush1.msra.mxu0 0.0
          %4689 = vmatprep.mubr.f32.mxu0 %v4590
          %4690 = vmatmul.mubr.f32.gmra.mrb[0].mxu0 %v4541
          %v4691 = vpop.f32.mrb[0].mxu0
          %v4692 = vadd.f32 0.0, %v4691
          %v4693 = vpop.f32.mrb[0].mxu0
          %v4694 = vadd.f32 0.0, %v4693
          %4695 = vmatprep.mubr.f32.mxu0 %v4593
          %4696 = vmatmul.mubr.f32.gmra.mrb[0].mxu0 %v4543
          %v4697 = vpop.f32.mrb[0].mxu0
          %v4698 = vadd.f32 0.0, %v4697
          %v4699 = vpop.f32.mrb[0].mxu0
          %v4700 = vadd.f32 0.0, %v4699
          %4701 = vmatprep.mubr.f32.mxu0 %v4596
          %4702 = vmatmul.mubr.f32.gmra.mrb[0].mxu0 %v4545
          %v4703 = vpop.f32.mrb[0].mxu0
          %v4704 = vadd.f32 0.0, %v4703
          %v4705 = vpop.f32.mrb[0].mxu0
          %v4706 = vadd.f32 0.0, %v4705
          %4707 = vmatprep.mubr.f32.mxu0 %v4599
          %4708 = vmatmul.mubr.f32.gmra.mrb[0].mxu0 %v4547
          %v4709 = vpop.f32.mrb[0].mxu0
          %v4710 = vadd.f32 0.0, %v4709
          %v4711 = vpop.f32.mrb[0].mxu0
          %v4712 = vadd.f32 0.0, %v4711
          %4713 = vmatprep.mubr.f32.mxu0 %v4602
          %4714 = vmatmul.mubr.f32.gmra.mrb[0].mxu0 %v4549
          %v4715 = vpop.f32.mrb[0].mxu0
          %v4716 = vadd.f32 0.0, %v4715
          %v4717 = vpop.f32.mrb[0].mxu0
          %v4718 = vadd.f32 0.0, %v4717
          %4719 = vmatprep.mubr.f32.mxu0 %v4605
          %4720 = vmatmul.mubr.f32.gmra.mrb[0].mxu0 %v4551
          %v4721 = vpop.f32.mrb[0].mxu0
          %v4722 = vadd.f32 0.0, %v4721
          %v4723 = vpop.f32.mrb[0].mxu0
          %v4724 = vadd.f32 0.0, %v4723
          %4725 = vmatprep.mubr.f32.mxu0 %v4608
          %4726 = vmatmul.mubr.f32.gmra.mrb[0].mxu0 %v4553
          %v4727 = vpop.f32.mrb[0].mxu0
          %v4728 = vadd.f32 0.0, %v4727
          %v4729 = vpop.f32.mrb[0].mxu0
          %v4730 = vadd.f32 0.0, %v4729
          %4731 = vmatprep.mubr.f32.mxu0 %v4611
          %4732 = vmatmul.mubr.f32.gmra.mrb[0].mxu0 %v4555
          %v4733 = vpop.f32.mrb[0].mxu0
          %v4734 = vadd.f32 0.0, %v4733
          %v4735 = vpop.f32.mrb[0].mxu0
          %v4736 = vadd.f32 0.0, %v4735
          %4737 = vmatprep.mubr.f32.mxu0 %v4614
          %4738 = vmatmul.mubr.f32.gmra.mrb[0].mxu0 %v4557
          %v4739 = vpop.f32.mrb[0].mxu0
          %v4740 = vadd.f32 0.0, %v4739
          %v4741 = vpop.f32.mrb[0].mxu0
          %v4742 = vadd.f32 0.0, %v4741
          %4743 = vmatprep.mubr.f32.mxu0 %v4617
          %4744 = vmatmul.mubr.f32.gmra.mrb[0].mxu0 %v4559
          %v4745 = vpop.f32.mrb[0].mxu0
          %v4746 = vadd.f32 0.0, %v4745
          %v4747 = vpop.f32.mrb[0].mxu0
          %v4748 = vadd.f32 0.0, %v4747
          %4749 = vmatprep.mubr.f32.mxu0 %v4620
          %4750 = vmatmul.mubr.f32.gmra.mrb[0].mxu0 %v4561
          %v4751 = vpop.f32.mrb[0].mxu0
          %v4752 = vadd.f32 0.0, %v4751
          %v4753 = vpop.f32.mrb[0].mxu0
          %v4754 = vadd.f32 0.0, %v4753
          %4755 = vmatprep.mubr.f32.mxu0 %v4623
          %4756 = vmatmul.mubr.f32.gmra.mrb[0].mxu0 %v4563
          %v4757 = vpop.f32.mrb[0].mxu0
          %v4758 = vadd.f32 0.0, %v4757
          %v4759 = vpop.f32.mrb[0].mxu0
          %v4760 = vadd.f32 0.0, %v4759
          %4761 = vdwg.mxu0
          %v4763 = vsel %vm1305, %v4694, 0
          %v4766 = vsel %vm1305, %v4700, 0
          %v4769 = vsel %vm1305, %v4706, 0
          %v4772 = vsel %vm1305, %v4712, 0
          %v4775 = vsel %vm1305, %v4718, 0
          %v4778 = vsel %vm1305, %v4724, 0
          %v4781 = vsel %vm1305, %v4730, 0
          %v4784 = vsel %vm1305, %v4736, 0
          %v4787 = vsel %vm1305, %v4742, 0
          %v4790 = vsel %vm1305, %v4748, 0
          %v4793 = vsel %vm1305, %v4754, 0
          %v4796 = vsel %vm1305, %v4760, 0
          %4798 = vmatprep.subr.mxu0 0.0
          %4799 = vmatpush1.msra.mxu0 %v4565
          %4800 = vmatprep.subr.mxu0 0.0
          %4801 = vmatpush1.msra.mxu0 %v4566
          %4802 = vmatprep.subr.mxu0 0.0
          %4803 = vmatpush1.msra.mxu0 %v4567
          %4804 = vmatprep.subr.mxu0 0.0
          %4805 = vmatpush1.msra.mxu0 %v4568
          %4806 = vmatprep.subr.mxu0 0.0
          %4807 = vmatpush1.msra.mxu0 %v4569
          %4808 = vmatprep.subr.mxu0 0.0
          %4809 = vmatpush1.msra.mxu0 %v4570
          %4810 = vmatprep.subr.mxu0 0.0
          %4811 = vmatpush1.msra.mxu0 %v4571
          %4812 = vmatprep.subr.mxu0 0.0
          %4813 = vmatpush1.msra.mxu0 %v4572
          %4814 = vmatprep.subr.mxu0 0.0
          %4815 = vmatpush1.msra.mxu0 %v4573
          %4816 = vmatprep.subr.mxu0 0.0
          %4817 = vmatpush1.msra.mxu0 %v4574
          %4818 = vmatprep.subr.mxu0 0.0
          %4819 = vmatpush1.msra.mxu0 %v4575
          %4820 = vmatprep.subr.mxu0 0.0
          %4821 = vmatpush1.msra.mxu0 %v4576
          %4822 = vmatprep.subr.mxu0 0.0
          %4823 = vmatpush1.msra.mxu0 %v4577
          %4824 = vmatprep.subr.mxu0 0.0
          %4825 = vmatpush1.msra.mxu0 %v4578
          %4826 = vmatprep.subr.mxu0 0.0
          %4827 = vmatpush1.msra.mxu0 %v4579
          %4828 = vmatprep.subr.mxu0 0.0
          %4829 = vmatpush1.msra.mxu0 %v4580
          %4830 = vmatprep.subr.mxu0 0.0
          %4831 = vmatpush1.msra.mxu0 %v4581
          %4832 = vmatprep.subr.mxu0 0.0
          %4833 = vmatpush1.msra.mxu0 %v4582
          %4834 = vmatprep.subr.mxu0 0.0
          %4835 = vmatpush1.msra.mxu0 %v4583
          %4836 = vmatprep.subr.mxu0 0.0
          %4837 = vmatpush1.msra.mxu0 %v4584
          %4838 = vmatprep.subr.mxu0 0.0
          %4839 = vmatpush1.msra.mxu0 %v4585
          %4840 = vmatprep.subr.mxu0 0.0
          %4841 = vmatpush1.msra.mxu0 %v4586
          %4842 = vmatprep.subr.mxu0 0.0
          %4843 = vmatpush1.msra.mxu0 %v4587
          %4844 = vmatprep.subr.mxu0 0.0
          %4845 = vmatpush1.msra.mxu0 %v4588
          %4846 = vmatprep.subr.mxu0 0.0
          %4847 = vmatpush1.msra.mxu0 0.0
          %4848 = vmatprep.subr.mxu0 0.0
          %4849 = vmatpush1.msra.mxu0 0.0
          %4850 = vmatprep.subr.mxu0 0.0
          %4851 = vmatpush1.msra.mxu0 0.0
          %4852 = vmatprep.subr.mxu0 0.0
          %4853 = vmatpush1.msra.mxu0 0.0
          %4854 = vmatprep.subr.mxu0 0.0
          %4855 = vmatpush1.msra.mxu0 0.0
          %4856 = vmatprep.subr.mxu0 0.0
          %4857 = vmatpush1.msra.mxu0 0.0
          %4858 = vmatprep.subr.mxu0 0.0
          %4859 = vmatpush1.msra.mxu0 0.0
          %4860 = vmatprep.subr.mxu0 0.0
          %4861 = vmatpush1.msra.mxu0 0.0
          %4862 = vmatprep.mubr.f32.mxu0 %v4763
          %4863 = vmatmul.mubr.f32.gmra.mrb[0].mxu0 %v4692
          %v4864 = vpop.f32.mrb[0].mxu0
          %v4865 = vadd.f32 0.0, %v4864
          %v4866 = vpop.f32.mrb[0].mxu0
          %4867 = vmatprep.mubr.f32.mxu0 %v4766
          %4868 = vmatmul.mubr.f32.gmra.mrb[0].mxu0 %v4698
          %v4869 = vpop.f32.mrb[0].mxu0
          %v4870 = vadd.f32 0.0, %v4869
          %v4871 = vpop.f32.mrb[0].mxu0
          %4872 = vmatprep.mubr.f32.mxu0 %v4769
          %4873 = vmatmul.mubr.f32.gmra.mrb[0].mxu0 %v4704
          %v4874 = vpop.f32.mrb[0].mxu0
          %v4875 = vadd.f32 0.0, %v4874
          %v4876 = vpop.f32.mrb[0].mxu0
          %4877 = vmatprep.mubr.f32.mxu0 %v4772
          %4878 = vmatmul.mubr.f32.gmra.mrb[0].mxu0 %v4710
          %v4879 = vpop.f32.mrb[0].mxu0
          %v4880 = vadd.f32 0.0, %v4879
          %v4881 = vpop.f32.mrb[0].mxu0
          %4882 = vmatprep.mubr.f32.mxu0 %v4775
          %4883 = vmatmul.mubr.f32.gmra.mrb[0].mxu0 %v4716
          %v4884 = vpop.f32.mrb[0].mxu0
          %v4885 = vadd.f32 0.0, %v4884
          %v4886 = vpop.f32.mrb[0].mxu0
          %4887 = vmatprep.mubr.f32.mxu0 %v4778
          %4888 = vmatmul.mubr.f32.gmra.mrb[0].mxu0 %v4722
          %v4889 = vpop.f32.mrb[0].mxu0
          %v4890 = vadd.f32 0.0, %v4889
          %v4891 = vpop.f32.mrb[0].mxu0
          %4892 = vmatprep.mubr.f32.mxu0 %v4781
          %4893 = vmatmul.mubr.f32.gmra.mrb[0].mxu0 %v4728
          %v4894 = vpop.f32.mrb[0].mxu0
          %v4895 = vadd.f32 0.0, %v4894
          %v4896 = vpop.f32.mrb[0].mxu0
          %4897 = vmatprep.mubr.f32.mxu0 %v4784
          %4898 = vmatmul.mubr.f32.gmra.mrb[0].mxu0 %v4734
          %v4899 = vpop.f32.mrb[0].mxu0
          %v4900 = vadd.f32 0.0, %v4899
          %v4901 = vpop.f32.mrb[0].mxu0
          %4902 = vmatprep.mubr.f32.mxu0 %v4787
          %4903 = vmatmul.mubr.f32.gmra.mrb[0].mxu0 %v4740
          %v4904 = vpop.f32.mrb[0].mxu0
          %v4905 = vadd.f32 0.0, %v4904
          %v4906 = vpop.f32.mrb[0].mxu0
          %4907 = vmatprep.mubr.f32.mxu0 %v4790
          %4908 = vmatmul.mubr.f32.gmra.mrb[0].mxu0 %v4746
          %v4909 = vpop.f32.mrb[0].mxu0
          %v4910 = vadd.f32 0.0, %v4909
          %v4911 = vpop.f32.mrb[0].mxu0
          %4912 = vmatprep.mubr.f32.mxu0 %v4793
          %4913 = vmatmul.mubr.f32.gmra.mrb[0].mxu0 %v4752
          %v4914 = vpop.f32.mrb[0].mxu0
          %v4915 = vadd.f32 0.0, %v4914
          %v4916 = vpop.f32.mrb[0].mxu0
          %4917 = vmatprep.mubr.f32.mxu0 %v4796
          %4918 = vmatmul.mubr.f32.gmra.mrb[0].mxu0 %v4758
          %v4919 = vpop.f32.mrb[0].mxu0
          %v4920 = vadd.f32 0.0, %v4919
          %v4921 = vpop.f32.mrb[0].mxu0
          %4922 = vdwg.mxu0
          %4923 = vmatprep.subr.mxu0 %v1020
          %4924 = vmatpush1.msra.mxu0 %v1019
          %4925 = vmatprep.subr.mxu0 %v1022
          %4926 = vmatpush1.msra.mxu0 %v1021
          %4927 = vmatprep.subr.mxu0 %v1024
          %4928 = vmatpush1.msra.mxu0 %v1023
          %4929 = vmatprep.subr.mxu0 %v1026
          %4930 = vmatpush1.msra.mxu0 %v1025
          %4931 = vmatprep.subr.mxu0 %v1028
          %4932 = vmatpush1.msra.mxu0 %v1027
          %4933 = vmatprep.subr.mxu0 %v1030
          %4934 = vmatpush1.msra.mxu0 %v1029
          %4935 = vmatprep.subr.mxu0 %v1032
          %4936 = vmatpush1.msra.mxu0 %v1031
          %4937 = vmatprep.subr.mxu0 %v1034
          %4938 = vmatpush1.msra.mxu0 %v1033
          %4939 = vmatprep.subr.mxu0 %v1036
          %4940 = vmatpush1.msra.mxu0 %v1035
          %4941 = vmatprep.subr.mxu0 %v1038
          %4942 = vmatpush1.msra.mxu0 %v1037
          %4943 = vmatprep.subr.mxu0 %v1040
          %4944 = vmatpush1.msra.mxu0 %v1039
          %4945 = vmatprep.subr.mxu0 %v1042
          %4946 = vmatpush1.msra.mxu0 %v1041
          %4947 = vmatprep.subr.mxu0 %v1044
          %4948 = vmatpush1.msra.mxu0 %v1043
          %4949 = vmatprep.subr.mxu0 %v1046
          %4950 = vmatpush1.msra.mxu0 %v1045
          %4951 = vmatprep.subr.mxu0 %v1048
          %4952 = vmatpush1.msra.mxu0 %v1047
          %4953 = vmatprep.subr.mxu0 %v1050
          %4954 = vmatpush1.msra.mxu0 %v1049
          %4955 = vmatprep.subr.mxu0 %v1052
          %4956 = vmatpush1.msra.mxu0 %v1051
          %4957 = vmatprep.subr.mxu0 %v1054
          %4958 = vmatpush1.msra.mxu0 %v1053
          %4959 = vmatprep.subr.mxu0 %v1056
          %4960 = vmatpush1.msra.mxu0 %v1055
          %4961 = vmatprep.subr.mxu0 %v1058
          %4962 = vmatpush1.msra.mxu0 %v1057
          %4963 = vmatprep.subr.mxu0 %v1060
          %4964 = vmatpush1.msra.mxu0 %v1059
          %4965 = vmatprep.subr.mxu0 %v1062
          %4966 = vmatpush1.msra.mxu0 %v1061
          %4967 = vmatprep.subr.mxu0 %v1064
          %4968 = vmatpush1.msra.mxu0 %v1063
          %4969 = vmatprep.subr.mxu0 %v1066
          %4970 = vmatpush1.msra.mxu0 %v1065
          %4971 = vmatprep.subr.mxu0 0.0
          %4972 = vmatpush1.msra.mxu0 0.0
          %4973 = vmatprep.subr.mxu0 0.0
          %4974 = vmatpush1.msra.mxu0 0.0
          %4975 = vmatprep.subr.mxu0 0.0
          %4976 = vmatpush1.msra.mxu0 0.0
          %4977 = vmatprep.subr.mxu0 0.0
          %4978 = vmatpush1.msra.mxu0 0.0
          %4979 = vmatprep.subr.mxu0 0.0
          %4980 = vmatpush1.msra.mxu0 0.0
          %4981 = vmatprep.subr.mxu0 0.0
          %4982 = vmatpush1.msra.mxu0 0.0
          %4983 = vmatprep.subr.mxu0 0.0
          %4984 = vmatpush1.msra.mxu0 0.0
          %4985 = vmatprep.subr.mxu0 0.0
          %4986 = vmatpush1.msra.mxu0 0.0
          %4987 = vmatprep.mubr.f32.mxu0 %v4590
          %4988 = vmatmul.mubr.f32.gmra.mrb[0].mxu0 %v4541
          %v4989 = vpop.f32.mrb[0].mxu0
          %v4990 = vadd.f32 0.0, %v4989
          %v4991 = vpop.f32.mrb[0].mxu0
          %v4992 = vadd.f32 0.0, %v4991
          %4993 = vmatprep.mubr.f32.mxu0 %v4593
          %4994 = vmatmul.mubr.f32.gmra.mrb[0].mxu0 %v4543
          %v4995 = vpop.f32.mrb[0].mxu0
          %v4996 = vadd.f32 0.0, %v4995
          %v4997 = vpop.f32.mrb[0].mxu0
          %v4998 = vadd.f32 0.0, %v4997
          %4999 = vmatprep.mubr.f32.mxu0 %v4596
          %5000 = vmatmul.mubr.f32.gmra.mrb[0].mxu0 %v4545
          %v5001 = vpop.f32.mrb[0].mxu0
          %v5002 = vadd.f32 0.0, %v5001
          %v5003 = vpop.f32.mrb[0].mxu0
          %v5004 = vadd.f32 0.0, %v5003
          %5005 = vmatprep.mubr.f32.mxu0 %v4599
          %5006 = vmatmul.mubr.f32.gmra.mrb[0].mxu0 %v4547
          %v5007 = vpop.f32.mrb[0].mxu0
          %v5008 = vadd.f32 0.0, %v5007
          %v5009 = vpop.f32.mrb[0].mxu0
          %v5010 = vadd.f32 0.0, %v5009
          %5011 = vmatprep.mubr.f32.mxu0 %v4602
          %5012 = vmatmul.mubr.f32.gmra.mrb[0].mxu0 %v4549
          %v5013 = vpop.f32.mrb[0].mxu0
          %v5014 = vadd.f32 0.0, %v5013
          %v5015 = vpop.f32.mrb[0].mxu0
          %v5016 = vadd.f32 0.0, %v5015
          %5017 = vmatprep.mubr.f32.mxu0 %v4605
          %5018 = vmatmul.mubr.f32.gmra.mrb[0].mxu0 %v4551
          %v5019 = vpop.f32.mrb[0].mxu0
          %v5020 = vadd.f32 0.0, %v5019
          %v5021 = vpop.f32.mrb[0].mxu0
          %v5022 = vadd.f32 0.0, %v5021
          %5023 = vmatprep.mubr.f32.mxu0 %v4608
          %5024 = vmatmul.mubr.f32.gmra.mrb[0].mxu0 %v4553
          %v5025 = vpop.f32.mrb[0].mxu0
          %v5026 = vadd.f32 0.0, %v5025
          %v5027 = vpop.f32.mrb[0].mxu0
          %v5028 = vadd.f32 0.0, %v5027
          %5029 = vmatprep.mubr.f32.mxu0 %v4611
          %5030 = vmatmul.mubr.f32.gmra.mrb[0].mxu0 %v4555
          %v5031 = vpop.f32.mrb[0].mxu0
          %v5032 = vadd.f32 0.0, %v5031
          %v5033 = vpop.f32.mrb[0].mxu0
          %v5034 = vadd.f32 0.0, %v5033
          %5035 = vmatprep.mubr.f32.mxu0 %v4614
          %5036 = vmatmul.mubr.f32.gmra.mrb[0].mxu0 %v4557
          %v5037 = vpop.f32.mrb[0].mxu0
          %v5038 = vadd.f32 0.0, %v5037
          %v5039 = vpop.f32.mrb[0].mxu0
          %v5040 = vadd.f32 0.0, %v5039
          %5041 = vmatprep.mubr.f32.mxu0 %v4617
          %5042 = vmatmul.mubr.f32.gmra.mrb[0].mxu0 %v4559
          %v5043 = vpop.f32.mrb[0].mxu0
          %v5044 = vadd.f32 0.0, %v5043
          %v5045 = vpop.f32.mrb[0].mxu0
          %v5046 = vadd.f32 0.0, %v5045
          %5047 = vmatprep.mubr.f32.mxu0 %v4620
          %5048 = vmatmul.mubr.f32.gmra.mrb[0].mxu0 %v4561
          %v5049 = vpop.f32.mrb[0].mxu0
          %v5050 = vadd.f32 0.0, %v5049
          %v5051 = vpop.f32.mrb[0].mxu0
          %v5052 = vadd.f32 0.0, %v5051
          %5053 = vmatprep.mubr.f32.mxu0 %v4623
          %5054 = vmatmul.mubr.f32.gmra.mrb[0].mxu0 %v4563
          %v5055 = vpop.f32.mrb[0].mxu0
          %v5056 = vadd.f32 0.0, %v5055
          %v5057 = vpop.f32.mrb[0].mxu0
          %v5058 = vadd.f32 0.0, %v5057
          %5059 = vdwg.mxu0
          %v5061 = vsel %vm1305, %v4992, 0
          %v5064 = vsel %vm1305, %v4998, 0
          %v5067 = vsel %vm1305, %v5004, 0
          %v5070 = vsel %vm1305, %v5010, 0
          %v5073 = vsel %vm1305, %v5016, 0
          %v5076 = vsel %vm1305, %v5022, 0
          %v5079 = vsel %vm1305, %v5028, 0
          %v5082 = vsel %vm1305, %v5034, 0
          %v5085 = vsel %vm1305, %v5040, 0
          %v5088 = vsel %vm1305, %v5046, 0
          %v5091 = vsel %vm1305, %v5052, 0
          %v5094 = vsel %vm1305, %v5058, 0
          %5096 = vmatprep.subr.mxu0 0.0
          %5097 = vmatpush1.msra.mxu0 %v4565
          %5098 = vmatprep.subr.mxu0 0.0
          %5099 = vmatpush1.msra.mxu0 %v4566
          %5100 = vmatprep.subr.mxu0 0.0
          %5101 = vmatpush1.msra.mxu0 %v4567
          %5102 = vmatprep.subr.mxu0 0.0
          %5103 = vmatpush1.msra.mxu0 %v4568
          %5104 = vmatprep.subr.mxu0 0.0
          %5105 = vmatpush1.msra.mxu0 %v4569
          %5106 = vmatprep.subr.mxu0 0.0
          %5107 = vmatpush1.msra.mxu0 %v4570
          %5108 = vmatprep.subr.mxu0 0.0
          %5109 = vmatpush1.msra.mxu0 %v4571
          %5110 = vmatprep.subr.mxu0 0.0
          %5111 = vmatpush1.msra.mxu0 %v4572
          %5112 = vmatprep.subr.mxu0 0.0
          %5113 = vmatpush1.msra.mxu0 %v4573
          %5114 = vmatprep.subr.mxu0 0.0
          %5115 = vmatpush1.msra.mxu0 %v4574
          %5116 = vmatprep.subr.mxu0 0.0
          %5117 = vmatpush1.msra.mxu0 %v4575
          %5118 = vmatprep.subr.mxu0 0.0
          %5119 = vmatpush1.msra.mxu0 %v4576
          %5120 = vmatprep.subr.mxu0 0.0
          %5121 = vmatpush1.msra.mxu0 %v4577
          %5122 = vmatprep.subr.mxu0 0.0
          %5123 = vmatpush1.msra.mxu0 %v4578
          %5124 = vmatprep.subr.mxu0 0.0
          %5125 = vmatpush1.msra.mxu0 %v4579
          %5126 = vmatprep.subr.mxu0 0.0
          %5127 = vmatpush1.msra.mxu0 %v4580
          %5128 = vmatprep.subr.mxu0 0.0
          %5129 = vmatpush1.msra.mxu0 %v4581
          %5130 = vmatprep.subr.mxu0 0.0
          %5131 = vmatpush1.msra.mxu0 %v4582
          %5132 = vmatprep.subr.mxu0 0.0
          %5133 = vmatpush1.msra.mxu0 %v4583
          %5134 = vmatprep.subr.mxu0 0.0
          %5135 = vmatpush1.msra.mxu0 %v4584
          %5136 = vmatprep.subr.mxu0 0.0
          %5137 = vmatpush1.msra.mxu0 %v4585
          %5138 = vmatprep.subr.mxu0 0.0
          %5139 = vmatpush1.msra.mxu0 %v4586
          %5140 = vmatprep.subr.mxu0 0.0
          %5141 = vmatpush1.msra.mxu0 %v4587
          %5142 = vmatprep.subr.mxu0 0.0
          %5143 = vmatpush1.msra.mxu0 %v4588
          %5144 = vmatprep.subr.mxu0 0.0
          %5145 = vmatpush1.msra.mxu0 0.0
          %5146 = vmatprep.subr.mxu0 0.0
          %5147 = vmatpush1.msra.mxu0 0.0
          %5148 = vmatprep.subr.mxu0 0.0
          %5149 = vmatpush1.msra.mxu0 0.0
          %5150 = vmatprep.subr.mxu0 0.0
          %5151 = vmatpush1.msra.mxu0 0.0
          %5152 = vmatprep.subr.mxu0 0.0
          %5153 = vmatpush1.msra.mxu0 0.0
          %5154 = vmatprep.subr.mxu0 0.0
          %5155 = vmatpush1.msra.mxu0 0.0
          %5156 = vmatprep.subr.mxu0 0.0
          %5157 = vmatpush1.msra.mxu0 0.0
          %5158 = vmatprep.subr.mxu0 0.0
          %5159 = vmatpush1.msra.mxu0 0.0
          %5160 = vmatprep.mubr.f32.mxu0 %v5061
          %5161 = vmatmul.mubr.f32.gmra.mrb[0].mxu0 %v4990
          %v5162 = vpop.f32.mrb[0].mxu0
          %v5163 = vadd.f32 0.0, %v5162
          %v5164 = vpop.f32.mrb[0].mxu0
          %5165 = vmatprep.mubr.f32.mxu0 %v5064
          %5166 = vmatmul.mubr.f32.gmra.mrb[0].mxu0 %v4996
          %v5167 = vpop.f32.mrb[0].mxu0
          %v5168 = vadd.f32 0.0, %v5167
          %v5169 = vpop.f32.mrb[0].mxu0
          %5170 = vmatprep.mubr.f32.mxu0 %v5067
          %5171 = vmatmul.mubr.f32.gmra.mrb[0].mxu0 %v5002
          %v5172 = vpop.f32.mrb[0].mxu0
          %v5173 = vadd.f32 0.0, %v5172
          %v5174 = vpop.f32.mrb[0].mxu0
          %5175 = vmatprep.mubr.f32.mxu0 %v5070
          %5176 = vmatmul.mubr.f32.gmra.mrb[0].mxu0 %v5008
          %v5177 = vpop.f32.mrb[0].mxu0
          %v5178 = vadd.f32 0.0, %v5177
          %v5179 = vpop.f32.mrb[0].mxu0
          %5180 = vmatprep.mubr.f32.mxu0 %v5073
          %5181 = vmatmul.mubr.f32.gmra.mrb[0].mxu0 %v5014
          %v5182 = vpop.f32.mrb[0].mxu0
          %v5183 = vadd.f32 0.0, %v5182
          %v5184 = vpop.f32.mrb[0].mxu0
          %5185 = vmatprep.mubr.f32.mxu0 %v5076
          %5186 = vmatmul.mubr.f32.gmra.mrb[0].mxu0 %v5020
          %v5187 = vpop.f32.mrb[0].mxu0
          %v5188 = vadd.f32 0.0, %v5187
          %v5189 = vpop.f32.mrb[0].mxu0
          %5190 = vmatprep.mubr.f32.mxu0 %v5079
          %5191 = vmatmul.mubr.f32.gmra.mrb[0].mxu0 %v5026
          %v5192 = vpop.f32.mrb[0].mxu0
          %v5193 = vadd.f32 0.0, %v5192
          %v5194 = vpop.f32.mrb[0].mxu0
          %5195 = vmatprep.mubr.f32.mxu0 %v5082
          %5196 = vmatmul.mubr.f32.gmra.mrb[0].mxu0 %v5032
          %v5197 = vpop.f32.mrb[0].mxu0
          %v5198 = vadd.f32 0.0, %v5197
          %v5199 = vpop.f32.mrb[0].mxu0
          %5200 = vmatprep.mubr.f32.mxu0 %v5085
          %5201 = vmatmul.mubr.f32.gmra.mrb[0].mxu0 %v5038
          %v5202 = vpop.f32.mrb[0].mxu0
          %v5203 = vadd.f32 0.0, %v5202
          %v5204 = vpop.f32.mrb[0].mxu0
          %5205 = vmatprep.mubr.f32.mxu0 %v5088
          %5206 = vmatmul.mubr.f32.gmra.mrb[0].mxu0 %v5044
          %v5207 = vpop.f32.mrb[0].mxu0
          %v5208 = vadd.f32 0.0, %v5207
          %v5209 = vpop.f32.mrb[0].mxu0
          %5210 = vmatprep.mubr.f32.mxu0 %v5091
          %5211 = vmatmul.mubr.f32.gmra.mrb[0].mxu0 %v5050
          %v5212 = vpop.f32.mrb[0].mxu0
          %v5213 = vadd.f32 0.0, %v5212
          %v5214 = vpop.f32.mrb[0].mxu0
          %5215 = vmatprep.mubr.f32.mxu0 %v5094
          %5216 = vmatmul.mubr.f32.gmra.mrb[0].mxu0 %v5056
          %v5217 = vpop.f32.mrb[0].mxu0
          %v5218 = vadd.f32 0.0, %v5217
          %v5219 = vpop.f32.mrb[0].mxu0
          %5220 = vdwg.mxu0
          %v5221 = vld [vmem:[#allocation7] sm:$0xff]
          %v5222 = vld [vmem:[#allocation7 + $0x8] sm:$0xff]
          %v5223 = vld [vmem:[#allocation7 + $0x10] sm:$0xff]
          %v5224 = vld [vmem:[#allocation7 + $0x18] sm:$0xff]
          %v5225 = vld [vmem:[#allocation7 + $0x20] sm:$0xff]
          %v5226 = vld [vmem:[#allocation7 + $0x28] sm:$0xff]
          %v5227 = vld [vmem:[#allocation7 + $0x30] sm:$0xff]
          %v5228 = vld [vmem:[#allocation7 + $0x38] sm:$0xff]
          %v5229 = vld [vmem:[#allocation7 + $0x40] sm:$0xff]
          %v5230 = vld [vmem:[#allocation7 + $0x48] sm:$0xff]
          %v5231 = vld [vmem:[#allocation7 + $0x50] sm:$0xff]
          %v5232 = vld [vmem:[#allocation15] sm:$0xff]
          %v5233 = vld [vmem:[#allocation15 + $0x8] sm:$0xff]
          %v5234 = vld [vmem:[#allocation15 + $0x10] sm:$0xff]
          %v5235 = vld [vmem:[#allocation15 + $0x18] sm:$0xff]
          %v5236 = vld [vmem:[#allocation15 + $0x20] sm:$0xff]
          %v5237 = vld [vmem:[#allocation15 + $0x28] sm:$0xff]
          %v5238 = vld [vmem:[#allocation15 + $0x30] sm:$0xff]
          %v5239 = vld [vmem:[#allocation15 + $0x38] sm:$0xff]
          %v5240 = vld [vmem:[#allocation15 + $0x40] sm:$0xff]
          %v5241 = vld [vmem:[#allocation15 + $0x48] sm:$0xff]
          %v5242 = vld [vmem:[#allocation15 + $0x50] sm:$0xff]
          %v5243 = vld [vmem:[#allocation15 + $0x58] sm:$0xff]
          %v5244 = vmul.f32 %v4865, %v4865
          %v5245 = vmul.f32 %v4870, %v4870
          %v5246 = vmul.f32 %v4875, %v4875
          %v5247 = vmul.f32 %v4880, %v4880
          %v5248 = vmul.f32 %v4885, %v4885
          %v5249 = vmul.f32 %v4890, %v4890
          %v5250 = vmul.f32 %v4895, %v4895
          %v5251 = vmul.f32 %v4900, %v4900
          %v5252 = vmul.f32 %v4905, %v4905
          %v5253 = vmul.f32 %v4910, %v4910
          %v5254 = vmul.f32 %v4915, %v4915
          %v5255 = vmul.f32 %v4920, %v4920
          %v5256 = vmul.f32 %v5163, %v5163
          %v5257 = vmul.f32 %v5168, %v5168
          %v5258 = vmul.f32 %v5173, %v5173
          %v5259 = vmul.f32 %v5178, %v5178
          %v5260 = vmul.f32 %v5183, %v5183
          %v5261 = vmul.f32 %v5188, %v5188
          %v5262 = vmul.f32 %v5193, %v5193
          %v5263 = vmul.f32 %v5198, %v5198
          %v5264 = vmul.f32 %v5203, %v5203
          %v5265 = vmul.f32 %v5208, %v5208
          %v5266 = vmul.f32 %v5213, %v5213
          %v5267 = vmul.f32 %v5218, %v5218
          %v5268 = vmul.f32 %v4865, %v5163
          %v5269 = vmul.f32 %v4870, %v5168
          %v5270 = vmul.f32 %v4875, %v5173
          %v5271 = vmul.f32 %v4880, %v5178
          %v5272 = vmul.f32 %v4885, %v5183
          %v5273 = vmul.f32 %v4890, %v5188
          %v5274 = vmul.f32 %v4895, %v5193
          %v5275 = vmul.f32 %v4900, %v5198
          %v5276 = vmul.f32 %v4905, %v5203
          %v5277 = vmul.f32 %v4910, %v5208
          %v5278 = vmul.f32 %v4915, %v5213
          %v5279 = vmul.f32 %v4920, %v5218
          %vm5280 = vcmask 785408
          %v5282 = vsel %vm5280, %v5221, 0
          %v5285 = vsel %vm5280, %v5222, 0
          %v5288 = vsel %vm5280, %v5223, 0
          %v5291 = vsel %vm5280, %v5224, 0
          %v5294 = vsel %vm5280, %v5225, 0
          %v5297 = vsel %vm5280, %v5226, 0
          %v5300 = vsel %vm5280, %v5227, 0
          %v5303 = vsel %vm5280, %v5228, 0
          %v5306 = vsel %vm5280, %v5229, 0
          %v5309 = vsel %vm5280, %v5230, 0
          %v5312 = vsel %vm5280, %v5231, 0
          %5314 = vmatprep.subr.mxu0 0.0
          %5315 = vmatpush1.msra.mxu0 %v4865
          %5316 = vmatprep.subr.mxu0 0.0
          %5317 = vmatpush1.msra.mxu0 %v4870
          %5318 = vmatprep.subr.mxu0 0.0
          %5319 = vmatpush1.msra.mxu0 %v4875
          %5320 = vmatprep.subr.mxu0 0.0
          %5321 = vmatpush1.msra.mxu0 %v4880
          %5322 = vmatprep.subr.mxu0 0.0
          %5323 = vmatpush1.msra.mxu0 %v4885
          %5324 = vmatprep.subr.mxu0 0.0
          %5325 = vmatpush1.msra.mxu0 %v4890
          %5326 = vmatprep.subr.mxu0 0.0
          %5327 = vmatpush1.msra.mxu0 %v4895
          %5328 = vmatprep.subr.mxu0 0.0
          %5329 = vmatpush1.msra.mxu0 %v4900
          %5330 = vmatprep.subr.mxu0 0.0
          %5331 = vmatpush1.msra.mxu0 %v4905
          %5332 = vmatprep.subr.mxu0 0.0
          %5333 = vmatpush1.msra.mxu0 %v4910
          %5334 = vmatprep.subr.mxu0 0.0
          %5335 = vmatpush1.msra.mxu0 %v4915
          %5336 = vmatprep.subr.mxu0 0.0
          %5337 = vmatpush1.msra.mxu0 %v4920
          %5338 = vmatprep.subr.mxu0 0.0
          %5339 = vmatpush1.msra.mxu0 0.0
          %5340 = vmatprep.subr.mxu0 0.0
          %5341 = vmatpush1.msra.mxu0 0.0
          %5342 = vmatprep.subr.mxu0 0.0
          %5343 = vmatpush1.msra.mxu0 0.0
          %5344 = vmatprep.subr.mxu0 0.0
          %5345 = vmatpush1.msra.mxu0 0.0
          %5346 = vmatprep.subr.mxu0 0.0
          %5347 = vmatpush1.msra.mxu0 0.0
          %5348 = vmatprep.subr.mxu0 0.0
          %5349 = vmatpush1.msra.mxu0 0.0
          %5350 = vmatprep.subr.mxu0 0.0
          %5351 = vmatpush1.msra.mxu0 0.0
          %5352 = vmatprep.subr.mxu0 0.0
          %5353 = vmatpush1.msra.mxu0 0.0
          %5354 = vmatprep.subr.mxu0 0.0
          %5355 = vmatpush1.msra.mxu0 0.0
          %5356 = vmatprep.subr.mxu0 0.0
          %5357 = vmatpush1.msra.mxu0 0.0
          %5358 = vmatprep.subr.mxu0 0.0
          %5359 = vmatpush1.msra.mxu0 0.0
          %5360 = vmatprep.subr.mxu0 0.0
          %5361 = vmatpush1.msra.mxu0 0.0
          %5362 = vmatprep.subr.mxu0 0.0
          %5363 = vmatpush1.msra.mxu0 0.0
          %5364 = vmatprep.subr.mxu0 0.0
          %5365 = vmatpush1.msra.mxu0 0.0
          %5366 = vmatprep.subr.mxu0 0.0
          %5367 = vmatpush1.msra.mxu0 0.0
          %5368 = vmatprep.subr.mxu0 0.0
          %5369 = vmatpush1.msra.mxu0 0.0
          %5370 = vmatprep.subr.mxu0 0.0
          %5371 = vmatpush1.msra.mxu0 0.0
          %5372 = vmatprep.subr.mxu0 0.0
          %5373 = vmatpush1.msra.mxu0 0.0
          %5374 = vmatprep.subr.mxu0 0.0
          %5375 = vmatpush1.msra.mxu0 0.0
          %5376 = vmatprep.subr.mxu0 0.0
          %5377 = vmatpush1.msra.mxu0 0.0
          %5378 = vmatprep.mubr.f32.mxu0 0.0
          %5379 = vmatmul.mubr.f32.gmra.mrb[0].mxu0 %v5282
          %v5380 = vpop.f32.mrb[0].mxu0
          %v5381 = vadd.f32 0.0, %v5380
          %v5382 = vpop.f32.mrb[0].mxu0
          %5383 = vmatprep.mubr.f32.mxu0 0.0
          %5384 = vmatmul.mubr.f32.gmra.mrb[0].mxu0 %v5285
          %v5385 = vpop.f32.mrb[0].mxu0
          %v5386 = vadd.f32 0.0, %v5385
          %v5387 = vpop.f32.mrb[0].mxu0
          %5388 = vmatprep.mubr.f32.mxu0 0.0
          %5389 = vmatmul.mubr.f32.gmra.mrb[0].mxu0 %v5288
          %v5390 = vpop.f32.mrb[0].mxu0
          %v5391 = vadd.f32 0.0, %v5390
          %v5392 = vpop.f32.mrb[0].mxu0
          %5393 = vmatprep.mubr.f32.mxu0 0.0
          %5394 = vmatmul.mubr.f32.gmra.mrb[0].mxu0 %v5291
          %v5395 = vpop.f32.mrb[0].mxu0
          %v5396 = vadd.f32 0.0, %v5395
          %v5397 = vpop.f32.mrb[0].mxu0
          %5398 = vmatprep.mubr.f32.mxu0 0.0
          %5399 = vmatmul.mubr.f32.gmra.mrb[0].mxu0 %v5294
          %v5400 = vpop.f32.mrb[0].mxu0
          %v5401 = vadd.f32 0.0, %v5400
          %v5402 = vpop.f32.mrb[0].mxu0
          %5403 = vmatprep.mubr.f32.mxu0 0.0
          %5404 = vmatmul.mubr.f32.gmra.mrb[0].mxu0 %v5297
          %v5405 = vpop.f32.mrb[0].mxu0
          %v5406 = vadd.f32 0.0, %v5405
          %v5407 = vpop.f32.mrb[0].mxu0
          %5408 = vmatprep.mubr.f32.mxu0 0.0
          %5409 = vmatmul.mubr.f32.gmra.mrb[0].mxu0 %v5300
          %v5410 = vpop.f32.mrb[0].mxu0
          %v5411 = vadd.f32 0.0, %v5410
          %v5412 = vpop.f32.mrb[0].mxu0
          %5413 = vmatprep.mubr.f32.mxu0 0.0
          %5414 = vmatmul.mubr.f32.gmra.mrb[0].mxu0 %v5303
          %v5415 = vpop.f32.mrb[0].mxu0
          %v5416 = vadd.f32 0.0, %v5415
          %v5417 = vpop.f32.mrb[0].mxu0
          %5418 = vmatprep.mubr.f32.mxu0 0.0
          %5419 = vmatmul.mubr.f32.gmra.mrb[0].mxu0 %v5306
          %v5420 = vpop.f32.mrb[0].mxu0
          %v5421 = vadd.f32 0.0, %v5420
          %v5422 = vpop.f32.mrb[0].mxu0
          %5423 = vmatprep.mubr.f32.mxu0 0.0
          %5424 = vmatmul.mubr.f32.gmra.mrb[0].mxu0 %v5309
          %v5425 = vpop.f32.mrb[0].mxu0
          %v5426 = vadd.f32 0.0, %v5425
          %v5427 = vpop.f32.mrb[0].mxu0
          %5428 = vmatprep.mubr.f32.mxu0 0.0
          %5429 = vmatmul.mubr.f32.gmra.mrb[0].mxu0 %v5312
          %v5430 = vpop.f32.mrb[0].mxu0
          %v5431 = vadd.f32 0.0, %v5430
          %v5432 = vpop.f32.mrb[0].mxu0
          %5433 = vdwg.mxu0
          %5434 = vmatprep.subr.mxu0 0.0
          %5435 = vmatpush1.msra.mxu0 %v5163
          %5436 = vmatprep.subr.mxu0 0.0
          %5437 = vmatpush1.msra.mxu0 %v5168
          %5438 = vmatprep.subr.mxu0 0.0
          %5439 = vmatpush1.msra.mxu0 %v5173
          %5440 = vmatprep.subr.mxu0 0.0
          %5441 = vmatpush1.msra.mxu0 %v5178
          %5442 = vmatprep.subr.mxu0 0.0
          %5443 = vmatpush1.msra.mxu0 %v5183
          %5444 = vmatprep.subr.mxu0 0.0
          %5445 = vmatpush1.msra.mxu0 %v5188
          %5446 = vmatprep.subr.mxu0 0.0
          %5447 = vmatpush1.msra.mxu0 %v5193
          %5448 = vmatprep.subr.mxu0 0.0
          %5449 = vmatpush1.msra.mxu0 %v5198
          %5450 = vmatprep.subr.mxu0 0.0
          %5451 = vmatpush1.msra.mxu0 %v5203
          %5452 = vmatprep.subr.mxu0 0.0
          %5453 = vmatpush1.msra.mxu0 %v5208
          %5454 = vmatprep.subr.mxu0 0.0
          %5455 = vmatpush1.msra.mxu0 %v5213
          %5456 = vmatprep.subr.mxu0 0.0
          %5457 = vmatpush1.msra.mxu0 %v5218
          %5458 = vmatprep.subr.mxu0 0.0
          %5459 = vmatpush1.msra.mxu0 0.0
          %5460 = vmatprep.subr.mxu0 0.0
          %5461 = vmatpush1.msra.mxu0 0.0
          %5462 = vmatprep.subr.mxu0 0.0
          %5463 = vmatpush1.msra.mxu0 0.0
          %5464 = vmatprep.subr.mxu0 0.0
          %5465 = vmatpush1.msra.mxu0 0.0
          %5466 = vmatprep.subr.mxu0 0.0
          %5467 = vmatpush1.msra.mxu0 0.0
          %5468 = vmatprep.subr.mxu0 0.0
          %5469 = vmatpush1.msra.mxu0 0.0
          %5470 = vmatprep.subr.mxu0 0.0
          %5471 = vmatpush1.msra.mxu0 0.0
          %5472 = vmatprep.subr.mxu0 0.0
          %5473 = vmatpush1.msra.mxu0 0.0
          %5474 = vmatprep.subr.mxu0 0.0
          %5475 = vmatpush1.msra.mxu0 0.0
          %5476 = vmatprep.subr.mxu0 0.0
          %5477 = vmatpush1.msra.mxu0 0.0
          %5478 = vmatprep.subr.mxu0 0.0
          %5479 = vmatpush1.msra.mxu0 0.0
          %5480 = vmatprep.subr.mxu0 0.0
          %5481 = vmatpush1.msra.mxu0 0.0
          %5482 = vmatprep.subr.mxu0 0.0
          %5483 = vmatpush1.msra.mxu0 0.0
          %5484 = vmatprep.subr.mxu0 0.0
          %5485 = vmatpush1.msra.mxu0 0.0
          %5486 = vmatprep.subr.mxu0 0.0
          %5487 = vmatpush1.msra.mxu0 0.0
          %5488 = vmatprep.subr.mxu0 0.0
          %5489 = vmatpush1.msra.mxu0 0.0
          %5490 = vmatprep.subr.mxu0 0.0
          %5491 = vmatpush1.msra.mxu0 0.0
          %5492 = vmatprep.subr.mxu0 0.0
          %5493 = vmatpush1.msra.mxu0 0.0
          %5494 = vmatprep.subr.mxu0 0.0
          %5495 = vmatpush1.msra.mxu0 0.0
          %5496 = vmatprep.subr.mxu0 0.0
          %5497 = vmatpush1.msra.mxu0 0.0
          %5498 = vmatprep.mubr.f32.mxu0 0.0
          %5499 = vmatmul.mubr.f32.gmra.mrb[0].mxu0 %v5282
          %v5500 = vpop.f32.mrb[0].mxu0
          %v5501 = vadd.f32 0.0, %v5500
          %v5502 = vpop.f32.mrb[0].mxu0
          %5503 = vmatprep.mubr.f32.mxu0 0.0
          %5504 = vmatmul.mubr.f32.gmra.mrb[0].mxu0 %v5285
          %v5505 = vpop.f32.mrb[0].mxu0
          %v5506 = vadd.f32 0.0, %v5505
          %v5507 = vpop.f32.mrb[0].mxu0
          %5508 = vmatprep.mubr.f32.mxu0 0.0
          %5509 = vmatmul.mubr.f32.gmra.mrb[0].mxu0 %v5288
          %v5510 = vpop.f32.mrb[0].mxu0
          %v5511 = vadd.f32 0.0, %v5510
          %v5512 = vpop.f32.mrb[0].mxu0
          %5513 = vmatprep.mubr.f32.mxu0 0.0
          %5514 = vmatmul.mubr.f32.gmra.mrb[0].mxu0 %v5291
          %v5515 = vpop.f32.mrb[0].mxu0
          %v5516 = vadd.f32 0.0, %v5515
          %v5517 = vpop.f32.mrb[0].mxu0
          %5518 = vmatprep.mubr.f32.mxu0 0.0
          %5519 = vmatmul.mubr.f32.gmra.mrb[0].mxu0 %v5294
          %v5520 = vpop.f32.mrb[0].mxu0
          %v5521 = vadd.f32 0.0, %v5520
          %v5522 = vpop.f32.mrb[0].mxu0
          %5523 = vmatprep.mubr.f32.mxu0 0.0
          %5524 = vmatmul.mubr.f32.gmra.mrb[0].mxu0 %v5297
          %v5525 = vpop.f32.mrb[0].mxu0
          %v5526 = vadd.f32 0.0, %v5525
          %v5527 = vpop.f32.mrb[0].mxu0
          %5528 = vmatprep.mubr.f32.mxu0 0.0
          %5529 = vmatmul.mubr.f32.gmra.mrb[0].mxu0 %v5300
          %v5530 = vpop.f32.mrb[0].mxu0
          %v5531 = vadd.f32 0.0, %v5530
          %v5532 = vpop.f32.mrb[0].mxu0
          %5533 = vmatprep.mubr.f32.mxu0 0.0
          %5534 = vmatmul.mubr.f32.gmra.mrb[0].mxu0 %v5303
          %v5535 = vpop.f32.mrb[0].mxu0
          %v5536 = vadd.f32 0.0, %v5535
          %v5537 = vpop.f32.mrb[0].mxu0
          %5538 = vmatprep.mubr.f32.mxu0 0.0
          %5539 = vmatmul.mubr.f32.gmra.mrb[0].mxu0 %v5306
          %v5540 = vpop.f32.mrb[0].mxu0
          %v5541 = vadd.f32 0.0, %v5540
          %v5542 = vpop.f32.mrb[0].mxu0
          %5543 = vmatprep.mubr.f32.mxu0 0.0
          %5544 = vmatmul.mubr.f32.gmra.mrb[0].mxu0 %v5309
          %v5545 = vpop.f32.mrb[0].mxu0
          %v5546 = vadd.f32 0.0, %v5545
          %v5547 = vpop.f32.mrb[0].mxu0
          %5548 = vmatprep.mubr.f32.mxu0 0.0
          %5549 = vmatmul.mubr.f32.gmra.mrb[0].mxu0 %v5312
          %v5550 = vpop.f32.mrb[0].mxu0
          %v5551 = vadd.f32 0.0, %v5550
          %v5552 = vpop.f32.mrb[0].mxu0
          %5553 = vdwg.mxu0
          %5554 = vmatprep.subr.mxu0 0.0
          %5555 = vmatpush1.msra.mxu0 %v5244
          %5556 = vmatprep.subr.mxu0 0.0
          %5557 = vmatpush1.msra.mxu0 %v5245
          %5558 = vmatprep.subr.mxu0 0.0
          %5559 = vmatpush1.msra.mxu0 %v5246
          %5560 = vmatprep.subr.mxu0 0.0
          %5561 = vmatpush1.msra.mxu0 %v5247
          %5562 = vmatprep.subr.mxu0 0.0
          %5563 = vmatpush1.msra.mxu0 %v5248
          %5564 = vmatprep.subr.mxu0 0.0
          %5565 = vmatpush1.msra.mxu0 %v5249
          %5566 = vmatprep.subr.mxu0 0.0
          %5567 = vmatpush1.msra.mxu0 %v5250
          %5568 = vmatprep.subr.mxu0 0.0
          %5569 = vmatpush1.msra.mxu0 %v5251
          %5570 = vmatprep.subr.mxu0 0.0
          %5571 = vmatpush1.msra.mxu0 %v5252
          %5572 = vmatprep.subr.mxu0 0.0
          %5573 = vmatpush1.msra.mxu0 %v5253
          %5574 = vmatprep.subr.mxu0 0.0
          %5575 = vmatpush1.msra.mxu0 %v5254
          %5576 = vmatprep.subr.mxu0 0.0
          %5577 = vmatpush1.msra.mxu0 %v5255
          %5578 = vmatprep.subr.mxu0 0.0
          %5579 = vmatpush1.msra.mxu0 0.0
          %5580 = vmatprep.subr.mxu0 0.0
          %5581 = vmatpush1.msra.mxu0 0.0
          %5582 = vmatprep.subr.mxu0 0.0
          %5583 = vmatpush1.msra.mxu0 0.0
          %5584 = vmatprep.subr.mxu0 0.0
          %5585 = vmatpush1.msra.mxu0 0.0
          %5586 = vmatprep.subr.mxu0 0.0
          %5587 = vmatpush1.msra.mxu0 0.0
          %5588 = vmatprep.subr.mxu0 0.0
          %5589 = vmatpush1.msra.mxu0 0.0
          %5590 = vmatprep.subr.mxu0 0.0
          %5591 = vmatpush1.msra.mxu0 0.0
          %5592 = vmatprep.subr.mxu0 0.0
          %5593 = vmatpush1.msra.mxu0 0.0
          %5594 = vmatprep.subr.mxu0 0.0
          %5595 = vmatpush1.msra.mxu0 0.0
          %5596 = vmatprep.subr.mxu0 0.0
          %5597 = vmatpush1.msra.mxu0 0.0
          %5598 = vmatprep.subr.mxu0 0.0
          %5599 = vmatpush1.msra.mxu0 0.0
          %5600 = vmatprep.subr.mxu0 0.0
          %5601 = vmatpush1.msra.mxu0 0.0
          %5602 = vmatprep.subr.mxu0 0.0
          %5603 = vmatpush1.msra.mxu0 0.0
          %5604 = vmatprep.subr.mxu0 0.0
          %5605 = vmatpush1.msra.mxu0 0.0
          %5606 = vmatprep.subr.mxu0 0.0
          %5607 = vmatpush1.msra.mxu0 0.0
          %5608 = vmatprep.subr.mxu0 0.0
          %5609 = vmatpush1.msra.mxu0 0.0
          %5610 = vmatprep.subr.mxu0 0.0
          %5611 = vmatpush1.msra.mxu0 0.0
          %5612 = vmatprep.subr.mxu0 0.0
          %5613 = vmatpush1.msra.mxu0 0.0
          %5614 = vmatprep.subr.mxu0 0.0
          %5615 = vmatpush1.msra.mxu0 0.0
          %5616 = vmatprep.subr.mxu0 0.0
          %5617 = vmatpush1.msra.mxu0 0.0
          %5618 = vmatprep.mubr.f32.mxu0 0.0
          %5619 = vmatmul.mubr.f32.gmra.mrb[0].mxu0 %v5282
          %v5620 = vpop.f32.mrb[0].mxu0
          %v5621 = vadd.f32 0.0, %v5620
          %v5622 = vpop.f32.mrb[0].mxu0
          %5623 = vmatprep.mubr.f32.mxu0 0.0
          %5624 = vmatmul.mubr.f32.gmra.mrb[0].mxu0 %v5285
          %v5625 = vpop.f32.mrb[0].mxu0
          %v5626 = vadd.f32 0.0, %v5625
          %v5627 = vpop.f32.mrb[0].mxu0
          %5628 = vmatprep.mubr.f32.mxu0 0.0
          %5629 = vmatmul.mubr.f32.gmra.mrb[0].mxu0 %v5288
          %v5630 = vpop.f32.mrb[0].mxu0
          %v5631 = vadd.f32 0.0, %v5630
          %v5632 = vpop.f32.mrb[0].mxu0
          %5633 = vmatprep.mubr.f32.mxu0 0.0
          %5634 = vmatmul.mubr.f32.gmra.mrb[0].mxu0 %v5291
          %v5635 = vpop.f32.mrb[0].mxu0
          %v5636 = vadd.f32 0.0, %v5635
          %v5637 = vpop.f32.mrb[0].mxu0
          %5638 = vmatprep.mubr.f32.mxu0 0.0
          %5639 = vmatmul.mubr.f32.gmra.mrb[0].mxu0 %v5294
          %v5640 = vpop.f32.mrb[0].mxu0
          %v5641 = vadd.f32 0.0, %v5640
          %v5642 = vpop.f32.mrb[0].mxu0
          %5643 = vmatprep.mubr.f32.mxu0 0.0
          %5644 = vmatmul.mubr.f32.gmra.mrb[0].mxu0 %v5297
          %v5645 = vpop.f32.mrb[0].mxu0
          %v5646 = vadd.f32 0.0, %v5645
          %v5647 = vpop.f32.mrb[0].mxu0
          %5648 = vmatprep.mubr.f32.mxu0 0.0
          %5649 = vmatmul.mubr.f32.gmra.mrb[0].mxu0 %v5300
          %v5650 = vpop.f32.mrb[0].mxu0
          %v5651 = vadd.f32 0.0, %v5650
          %v5652 = vpop.f32.mrb[0].mxu0
          %5653 = vmatprep.mubr.f32.mxu0 0.0
          %5654 = vmatmul.mubr.f32.gmra.mrb[0].mxu0 %v5303
          %v5655 = vpop.f32.mrb[0].mxu0
          %v5656 = vadd.f32 0.0, %v5655
          %v5657 = vpop.f32.mrb[0].mxu0
          %5658 = vmatprep.mubr.f32.mxu0 0.0
          %5659 = vmatmul.mubr.f32.gmra.mrb[0].mxu0 %v5306
          %v5660 = vpop.f32.mrb[0].mxu0
          %v5661 = vadd.f32 0.0, %v5660
          %v5662 = vpop.f32.mrb[0].mxu0
          %5663 = vmatprep.mubr.f32.mxu0 0.0
          %5664 = vmatmul.mubr.f32.gmra.mrb[0].mxu0 %v5309
          %v5665 = vpop.f32.mrb[0].mxu0
          %v5666 = vadd.f32 0.0, %v5665
          %v5667 = vpop.f32.mrb[0].mxu0
          %5668 = vmatprep.mubr.f32.mxu0 0.0
          %5669 = vmatmul.mubr.f32.gmra.mrb[0].mxu0 %v5312
          %v5670 = vpop.f32.mrb[0].mxu0
          %v5671 = vadd.f32 0.0, %v5670
          %v5672 = vpop.f32.mrb[0].mxu0
          %5673 = vdwg.mxu0
          %5674 = vmatprep.subr.mxu0 0.0
          %5675 = vmatpush1.msra.mxu0 %v5256
          %5676 = vmatprep.subr.mxu0 0.0
          %5677 = vmatpush1.msra.mxu0 %v5257
          %5678 = vmatprep.subr.mxu0 0.0
          %5679 = vmatpush1.msra.mxu0 %v5258
          %5680 = vmatprep.subr.mxu0 0.0
          %5681 = vmatpush1.msra.mxu0 %v5259
          %5682 = vmatprep.subr.mxu0 0.0
          %5683 = vmatpush1.msra.mxu0 %v5260
          %5684 = vmatprep.subr.mxu0 0.0
          %5685 = vmatpush1.msra.mxu0 %v5261
          %5686 = vmatprep.subr.mxu0 0.0
          %5687 = vmatpush1.msra.mxu0 %v5262
          %5688 = vmatprep.subr.mxu0 0.0
          %5689 = vmatpush1.msra.mxu0 %v5263
          %5690 = vmatprep.subr.mxu0 0.0
          %5691 = vmatpush1.msra.mxu0 %v5264
          %5692 = vmatprep.subr.mxu0 0.0
          %5693 = vmatpush1.msra.mxu0 %v5265
          %5694 = vmatprep.subr.mxu0 0.0
          %5695 = vmatpush1.msra.mxu0 %v5266
          %5696 = vmatprep.subr.mxu0 0.0
          %5697 = vmatpush1.msra.mxu0 %v5267
          %5698 = vmatprep.subr.mxu0 0.0
          %5699 = vmatpush1.msra.mxu0 0.0
          %5700 = vmatprep.subr.mxu0 0.0
          %5701 = vmatpush1.msra.mxu0 0.0
          %5702 = vmatprep.subr.mxu0 0.0
          %5703 = vmatpush1.msra.mxu0 0.0
          %5704 = vmatprep.subr.mxu0 0.0
          %5705 = vmatpush1.msra.mxu0 0.0
          %5706 = vmatprep.subr.mxu0 0.0
          %5707 = vmatpush1.msra.mxu0 0.0
          %5708 = vmatprep.subr.mxu0 0.0
          %5709 = vmatpush1.msra.mxu0 0.0
          %5710 = vmatprep.subr.mxu0 0.0
          %5711 = vmatpush1.msra.mxu0 0.0
          %5712 = vmatprep.subr.mxu0 0.0
          %5713 = vmatpush1.msra.mxu0 0.0
          %5714 = vmatprep.subr.mxu0 0.0
          %5715 = vmatpush1.msra.mxu0 0.0
          %5716 = vmatprep.subr.mxu0 0.0
          %5717 = vmatpush1.msra.mxu0 0.0
          %5718 = vmatprep.subr.mxu0 0.0
          %5719 = vmatpush1.msra.mxu0 0.0
          %5720 = vmatprep.subr.mxu0 0.0
          %5721 = vmatpush1.msra.mxu0 0.0
          %5722 = vmatprep.subr.mxu0 0.0
          %5723 = vmatpush1.msra.mxu0 0.0
          %5724 = vmatprep.subr.mxu0 0.0
          %5725 = vmatpush1.msra.mxu0 0.0
          %5726 = vmatprep.subr.mxu0 0.0
          %5727 = vmatpush1.msra.mxu0 0.0
          %5728 = vmatprep.subr.mxu0 0.0
          %5729 = vmatpush1.msra.mxu0 0.0
          %5730 = vmatprep.subr.mxu0 0.0
          %5731 = vmatpush1.msra.mxu0 0.0
          %5732 = vmatprep.subr.mxu0 0.0
          %5733 = vmatpush1.msra.mxu0 0.0
          %5734 = vmatprep.subr.mxu0 0.0
          %5735 = vmatpush1.msra.mxu0 0.0
          %5736 = vmatprep.subr.mxu0 0.0
          %5737 = vmatpush1.msra.mxu0 0.0
          %5738 = vmatprep.mubr.f32.mxu0 0.0
          %5739 = vmatmul.mubr.f32.gmra.mrb[0].mxu0 %v5282
          %v5740 = vpop.f32.mrb[0].mxu0
          %v5741 = vadd.f32 0.0, %v5740
          %v5742 = vpop.f32.mrb[0].mxu0
          %5743 = vmatprep.mubr.f32.mxu0 0.0
          %5744 = vmatmul.mubr.f32.gmra.mrb[0].mxu0 %v5285
          %v5745 = vpop.f32.mrb[0].mxu0
          %v5746 = vadd.f32 0.0, %v5745
          %v5747 = vpop.f32.mrb[0].mxu0
          %5748 = vmatprep.mubr.f32.mxu0 0.0
          %5749 = vmatmul.mubr.f32.gmra.mrb[0].mxu0 %v5288
          %v5750 = vpop.f32.mrb[0].mxu0
          %v5751 = vadd.f32 0.0, %v5750
          %v5752 = vpop.f32.mrb[0].mxu0
          %5753 = vmatprep.mubr.f32.mxu0 0.0
          %5754 = vmatmul.mubr.f32.gmra.mrb[0].mxu0 %v5291
          %v5755 = vpop.f32.mrb[0].mxu0
          %v5756 = vadd.f32 0.0, %v5755
          %v5757 = vpop.f32.mrb[0].mxu0
          %5758 = vmatprep.mubr.f32.mxu0 0.0
          %5759 = vmatmul.mubr.f32.gmra.mrb[0].mxu0 %v5294
          %v5760 = vpop.f32.mrb[0].mxu0
          %v5761 = vadd.f32 0.0, %v5760
          %v5762 = vpop.f32.mrb[0].mxu0
          %5763 = vmatprep.mubr.f32.mxu0 0.0
          %5764 = vmatmul.mubr.f32.gmra.mrb[0].mxu0 %v5297
          %v5765 = vpop.f32.mrb[0].mxu0
          %v5766 = vadd.f32 0.0, %v5765
          %v5767 = vpop.f32.mrb[0].mxu0
          %5768 = vmatprep.mubr.f32.mxu0 0.0
          %5769 = vmatmul.mubr.f32.gmra.mrb[0].mxu0 %v5300
          %v5770 = vpop.f32.mrb[0].mxu0
          %v5771 = vadd.f32 0.0, %v5770
          %v5772 = vpop.f32.mrb[0].mxu0
          %5773 = vmatprep.mubr.f32.mxu0 0.0
          %5774 = vmatmul.mubr.f32.gmra.mrb[0].mxu0 %v5303
          %v5775 = vpop.f32.mrb[0].mxu0
          %v5776 = vadd.f32 0.0, %v5775
          %v5777 = vpop.f32.mrb[0].mxu0
          %5778 = vmatprep.mubr.f32.mxu0 0.0
          %5779 = vmatmul.mubr.f32.gmra.mrb[0].mxu0 %v5306
          %v5780 = vpop.f32.mrb[0].mxu0
          %v5781 = vadd.f32 0.0, %v5780
          %v5782 = vpop.f32.mrb[0].mxu0
          %5783 = vmatprep.mubr.f32.mxu0 0.0
          %5784 = vmatmul.mubr.f32.gmra.mrb[0].mxu0 %v5309
          %v5785 = vpop.f32.mrb[0].mxu0
          %v5786 = vadd.f32 0.0, %v5785
          %v5787 = vpop.f32.mrb[0].mxu0
          %5788 = vmatprep.mubr.f32.mxu0 0.0
          %5789 = vmatmul.mubr.f32.gmra.mrb[0].mxu0 %v5312
          %v5790 = vpop.f32.mrb[0].mxu0
          %v5791 = vadd.f32 0.0, %v5790
          %v5792 = vpop.f32.mrb[0].mxu0
          %5793 = vdwg.mxu0
          %5794 = vmatprep.subr.mxu0 0.0
          %5795 = vmatpush1.msra.mxu0 %v5268
          %5796 = vmatprep.subr.mxu0 0.0
          %5797 = vmatpush1.msra.mxu0 %v5269
          %5798 = vmatprep.subr.mxu0 0.0
          %5799 = vmatpush1.msra.mxu0 %v5270
          %5800 = vmatprep.subr.mxu0 0.0
          %5801 = vmatpush1.msra.mxu0 %v5271
          %5802 = vmatprep.subr.mxu0 0.0
          %5803 = vmatpush1.msra.mxu0 %v5272
          %5804 = vmatprep.subr.mxu0 0.0
          %5805 = vmatpush1.msra.mxu0 %v5273
          %5806 = vmatprep.subr.mxu0 0.0
          %5807 = vmatpush1.msra.mxu0 %v5274
          %5808 = vmatprep.subr.mxu0 0.0
          %5809 = vmatpush1.msra.mxu0 %v5275
          %5810 = vmatprep.subr.mxu0 0.0
          %5811 = vmatpush1.msra.mxu0 %v5276
          %5812 = vmatprep.subr.mxu0 0.0
          %5813 = vmatpush1.msra.mxu0 %v5277
          %5814 = vmatprep.subr.mxu0 0.0
          %5815 = vmatpush1.msra.mxu0 %v5278
          %5816 = vmatprep.subr.mxu0 0.0
          %5817 = vmatpush1.msra.mxu0 %v5279
          %5818 = vmatprep.subr.mxu0 0.0
          %5819 = vmatpush1.msra.mxu0 0.0
          %5820 = vmatprep.subr.mxu0 0.0
          %5821 = vmatpush1.msra.mxu0 0.0
          %5822 = vmatprep.subr.mxu0 0.0
          %5823 = vmatpush1.msra.mxu0 0.0
          %5824 = vmatprep.subr.mxu0 0.0
          %5825 = vmatpush1.msra.mxu0 0.0
          %5826 = vmatprep.subr.mxu0 0.0
          %5827 = vmatpush1.msra.mxu0 0.0
          %5828 = vmatprep.subr.mxu0 0.0
          %5829 = vmatpush1.msra.mxu0 0.0
          %5830 = vmatprep.subr.mxu0 0.0
          %5831 = vmatpush1.msra.mxu0 0.0
          %5832 = vmatprep.subr.mxu0 0.0
          %5833 = vmatpush1.msra.mxu0 0.0
          %5834 = vmatprep.subr.mxu0 0.0
          %5835 = vmatpush1.msra.mxu0 0.0
          %5836 = vmatprep.subr.mxu0 0.0
          %5837 = vmatpush1.msra.mxu0 0.0
          %5838 = vmatprep.subr.mxu0 0.0
          %5839 = vmatpush1.msra.mxu0 0.0
          %5840 = vmatprep.subr.mxu0 0.0
          %5841 = vmatpush1.msra.mxu0 0.0
          %5842 = vmatprep.subr.mxu0 0.0
          %5843 = vmatpush1.msra.mxu0 0.0
          %5844 = vmatprep.subr.mxu0 0.0
          %5845 = vmatpush1.msra.mxu0 0.0
          %5846 = vmatprep.subr.mxu0 0.0
          %5847 = vmatpush1.msra.mxu0 0.0
          %5848 = vmatprep.subr.mxu0 0.0
          %5849 = vmatpush1.msra.mxu0 0.0
          %5850 = vmatprep.subr.mxu0 0.0
          %5851 = vmatpush1.msra.mxu0 0.0
          %5852 = vmatprep.subr.mxu0 0.0
          %5853 = vmatpush1.msra.mxu0 0.0
          %5854 = vmatprep.subr.mxu0 0.0
          %5855 = vmatpush1.msra.mxu0 0.0
          %5856 = vmatprep.subr.mxu0 0.0
          %5857 = vmatpush1.msra.mxu0 0.0
          %5858 = vmatprep.mubr.f32.mxu0 0.0
          %5859 = vmatmul.mubr.f32.gmra.mrb[0].mxu0 %v5282
          %v5860 = vpop.f32.mrb[0].mxu0
          %v5861 = vadd.f32 0.0, %v5860
          %v5862 = vpop.f32.mrb[0].mxu0
          %5863 = vmatprep.mubr.f32.mxu0 0.0
          %5864 = vmatmul.mubr.f32.gmra.mrb[0].mxu0 %v5285
          %v5865 = vpop.f32.mrb[0].mxu0
          %v5866 = vadd.f32 0.0, %v5865
          %v5867 = vpop.f32.mrb[0].mxu0
          %5868 = vmatprep.mubr.f32.mxu0 0.0
          %5869 = vmatmul.mubr.f32.gmra.mrb[0].mxu0 %v5288
          %v5870 = vpop.f32.mrb[0].mxu0
          %v5871 = vadd.f32 0.0, %v5870
          %v5872 = vpop.f32.mrb[0].mxu0
          %5873 = vmatprep.mubr.f32.mxu0 0.0
          %5874 = vmatmul.mubr.f32.gmra.mrb[0].mxu0 %v5291
          %v5875 = vpop.f32.mrb[0].mxu0
          %v5876 = vadd.f32 0.0, %v5875
          %v5877 = vpop.f32.mrb[0].mxu0
          %5878 = vmatprep.mubr.f32.mxu0 0.0
          %5879 = vmatmul.mubr.f32.gmra.mrb[0].mxu0 %v5294
          %v5880 = vpop.f32.mrb[0].mxu0
          %v5881 = vadd.f32 0.0, %v5880
          %v5882 = vpop.f32.mrb[0].mxu0
          %5883 = vmatprep.mubr.f32.mxu0 0.0
          %5884 = vmatmul.mubr.f32.gmra.mrb[0].mxu0 %v5297
          %v5885 = vpop.f32.mrb[0].mxu0
          %v5886 = vadd.f32 0.0, %v5885
          %v5887 = vpop.f32.mrb[0].mxu0
          %5888 = vmatprep.mubr.f32.mxu0 0.0
          %5889 = vmatmul.mubr.f32.gmra.mrb[0].mxu0 %v5300
          %v5890 = vpop.f32.mrb[0].mxu0
          %v5891 = vadd.f32 0.0, %v5890
          %v5892 = vpop.f32.mrb[0].mxu0
          %5893 = vmatprep.mubr.f32.mxu0 0.0
          %5894 = vmatmul.mubr.f32.gmra.mrb[0].mxu0 %v5303
          %v5895 = vpop.f32.mrb[0].mxu0
          %v5896 = vadd.f32 0.0, %v5895
          %v5897 = vpop.f32.mrb[0].mxu0
          %5898 = vmatprep.mubr.f32.mxu0 0.0
          %5899 = vmatmul.mubr.f32.gmra.mrb[0].mxu0 %v5306
          %v5900 = vpop.f32.mrb[0].mxu0
          %v5901 = vadd.f32 0.0, %v5900
          %v5902 = vpop.f32.mrb[0].mxu0
          %5903 = vmatprep.mubr.f32.mxu0 0.0
          %5904 = vmatmul.mubr.f32.gmra.mrb[0].mxu0 %v5309
          %v5905 = vpop.f32.mrb[0].mxu0
          %v5906 = vadd.f32 0.0, %v5905
          %v5907 = vpop.f32.mrb[0].mxu0
          %5908 = vmatprep.mubr.f32.mxu0 0.0
          %5909 = vmatmul.mubr.f32.gmra.mrb[0].mxu0 %v5312
          %v5910 = vpop.f32.mrb[0].mxu0
          %v5911 = vadd.f32 0.0, %v5910
          %v5912 = vpop.f32.mrb[0].mxu0
          %5913 = vdwg.mxu0
          %v5915 = vsel %vm5280, %v5381, 0
          %v5918 = vsel %vm5280, %v5386, 0
          %v5921 = vsel %vm5280, %v5391, 0
          %v5924 = vsel %vm5280, %v5396, 0
          %v5927 = vsel %vm5280, %v5401, 0
          %v5930 = vsel %vm5280, %v5406, 0
          %v5933 = vsel %vm5280, %v5411, 0
          %v5936 = vsel %vm5280, %v5416, 0
          %v5939 = vsel %vm5280, %v5421, 0
          %v5942 = vsel %vm5280, %v5426, 0
          %v5945 = vsel %vm5280, %v5431, 0
          %v5948 = vsel %vm5280, %v5501, 0
          %v5951 = vsel %vm5280, %v5506, 0
          %v5954 = vsel %vm5280, %v5511, 0
          %v5957 = vsel %vm5280, %v5516, 0
          %v5960 = vsel %vm5280, %v5521, 0
          %v5963 = vsel %vm5280, %v5526, 0
          %v5966 = vsel %vm5280, %v5531, 0
          %v5969 = vsel %vm5280, %v5536, 0
          %v5972 = vsel %vm5280, %v5541, 0
          %v5975 = vsel %vm5280, %v5546, 0
          %v5978 = vsel %vm5280, %v5551, 0
          %v5981 = vsel %vm5280, %v5621, 0
          %v5984 = vsel %vm5280, %v5626, 0
          %v5987 = vsel %vm5280, %v5631, 0
          %v5990 = vsel %vm5280, %v5636, 0
          %v5993 = vsel %vm5280, %v5641, 0
          %v5996 = vsel %vm5280, %v5646, 0
          %v5999 = vsel %vm5280, %v5651, 0
          %v6002 = vsel %vm5280, %v5656, 0
          %v6005 = vsel %vm5280, %v5661, 0
          %v6008 = vsel %vm5280, %v5666, 0
          %v6011 = vsel %vm5280, %v5671, 0
          %v6014 = vsel %vm5280, %v5741, 0
          %v6017 = vsel %vm5280, %v5746, 0
          %v6020 = vsel %vm5280, %v5751, 0
          %v6023 = vsel %vm5280, %v5756, 0
          %v6026 = vsel %vm5280, %v5761, 0
          %v6029 = vsel %vm5280, %v5766, 0
          %v6032 = vsel %vm5280, %v5771, 0
          %v6035 = vsel %vm5280, %v5776, 0
          %v6038 = vsel %vm5280, %v5781, 0
          %v6041 = vsel %vm5280, %v5786, 0
          %v6044 = vsel %vm5280, %v5791, 0
          %v6047 = vsel %vm5280, %v5861, 0
          %v6050 = vsel %vm5280, %v5866, 0
          %v6053 = vsel %vm5280, %v5871, 0
          %v6056 = vsel %vm5280, %v5876, 0
          %v6059 = vsel %vm5280, %v5881, 0
          %v6062 = vsel %vm5280, %v5886, 0
          %v6065 = vsel %vm5280, %v5891, 0
          %v6068 = vsel %vm5280, %v5896, 0
          %v6071 = vsel %vm5280, %v5901, 0
          %v6074 = vsel %vm5280, %v5906, 0
          %v6077 = vsel %vm5280, %v5911, 0
          %6079 = vmatprep.subr.mxu0 0.0
          %6080 = vmatpush1.msra.mxu0 %v5232
          %6081 = vmatprep.subr.mxu0 0.0
          %6082 = vmatpush1.msra.mxu0 %v5233
          %6083 = vmatprep.subr.mxu0 0.0
          %6084 = vmatpush1.msra.mxu0 %v5234
          %6085 = vmatprep.subr.mxu0 0.0
          %6086 = vmatpush1.msra.mxu0 %v5235
          %6087 = vmatprep.subr.mxu0 0.0
          %6088 = vmatpush1.msra.mxu0 %v5236
          %6089 = vmatprep.subr.mxu0 0.0
          %6090 = vmatpush1.msra.mxu0 %v5237
          %6091 = vmatprep.subr.mxu0 0.0
          %6092 = vmatpush1.msra.mxu0 %v5238
          %6093 = vmatprep.subr.mxu0 0.0
          %6094 = vmatpush1.msra.mxu0 %v5239
          %6095 = vmatprep.subr.mxu0 0.0
          %6096 = vmatpush1.msra.mxu0 %v5240
          %6097 = vmatprep.subr.mxu0 0.0
          %6098 = vmatpush1.msra.mxu0 %v5241
          %6099 = vmatprep.subr.mxu0 0.0
          %6100 = vmatpush1.msra.mxu0 %v5242
          %6101 = vmatprep.subr.mxu0 0.0
          %6102 = vmatpush1.msra.mxu0 %v5243
          %6103 = vmatprep.subr.mxu0 0.0
          %6104 = vmatpush1.msra.mxu0 0.0
          %6105 = vmatprep.subr.mxu0 0.0
          %6106 = vmatpush1.msra.mxu0 0.0
          %6107 = vmatprep.subr.mxu0 0.0
          %6108 = vmatpush1.msra.mxu0 0.0
          %6109 = vmatprep.subr.mxu0 0.0
          %6110 = vmatpush1.msra.mxu0 0.0
          %6111 = vmatprep.subr.mxu0 0.0
          %6112 = vmatpush1.msra.mxu0 0.0
          %6113 = vmatprep.subr.mxu0 0.0
          %6114 = vmatpush1.msra.mxu0 0.0
          %6115 = vmatprep.subr.mxu0 0.0
          %6116 = vmatpush1.msra.mxu0 0.0
          %6117 = vmatprep.subr.mxu0 0.0
          %6118 = vmatpush1.msra.mxu0 0.0
          %6119 = vmatprep.subr.mxu0 0.0
          %6120 = vmatpush1.msra.mxu0 0.0
          %6121 = vmatprep.subr.mxu0 0.0
          %6122 = vmatpush1.msra.mxu0 0.0
          %6123 = vmatprep.subr.mxu0 0.0
          %6124 = vmatpush1.msra.mxu0 0.0
          %6125 = vmatprep.subr.mxu0 0.0
          %6126 = vmatpush1.msra.mxu0 0.0
          %6127 = vmatprep.subr.mxu0 0.0
          %6128 = vmatpush1.msra.mxu0 0.0
          %6129 = vmatprep.subr.mxu0 0.0
          %6130 = vmatpush1.msra.mxu0 0.0
          %6131 = vmatprep.subr.mxu0 0.0
          %6132 = vmatpush1.msra.mxu0 0.0
          %6133 = vmatprep.subr.mxu0 0.0
          %6134 = vmatpush1.msra.mxu0 0.0
          %6135 = vmatprep.subr.mxu0 0.0
          %6136 = vmatpush1.msra.mxu0 0.0
          %6137 = vmatprep.subr.mxu0 0.0
          %6138 = vmatpush1.msra.mxu0 0.0
          %6139 = vmatprep.subr.mxu0 0.0
          %6140 = vmatpush1.msra.mxu0 0.0
          %6141 = vmatprep.subr.mxu0 0.0
          %6142 = vmatpush1.msra.mxu0 0.0
          %6143 = vmatprep.mubr.f32.mxu0 0.0
          %6144 = vmatmul.mubr.f32.gmra.mrb[0].mxu0 %v5915
          %v6145 = vpop.f32.mrb[0].mxu0
          %v6146 = vadd.f32 0.0, %v6145
          %v6147 = vpop.f32.mrb[0].mxu0
          %6148 = vmatprep.mubr.f32.mxu0 0.0
          %6149 = vmatmul.mubr.f32.gmra.mrb[0].mxu0 %v5918
          %v6150 = vpop.f32.mrb[0].mxu0
          %v6151 = vadd.f32 0.0, %v6150
          %v6152 = vpop.f32.mrb[0].mxu0
          %6153 = vmatprep.mubr.f32.mxu0 0.0
          %6154 = vmatmul.mubr.f32.gmra.mrb[0].mxu0 %v5921
          %v6155 = vpop.f32.mrb[0].mxu0
          %v6156 = vadd.f32 0.0, %v6155
          %v6157 = vpop.f32.mrb[0].mxu0
          %6158 = vmatprep.mubr.f32.mxu0 0.0
          %6159 = vmatmul.mubr.f32.gmra.mrb[0].mxu0 %v5924
          %v6160 = vpop.f32.mrb[0].mxu0
          %v6161 = vadd.f32 0.0, %v6160
          %v6162 = vpop.f32.mrb[0].mxu0
          %6163 = vmatprep.mubr.f32.mxu0 0.0
          %6164 = vmatmul.mubr.f32.gmra.mrb[0].mxu0 %v5927
          %v6165 = vpop.f32.mrb[0].mxu0
          %v6166 = vadd.f32 0.0, %v6165
          %v6167 = vpop.f32.mrb[0].mxu0
          %6168 = vmatprep.mubr.f32.mxu0 0.0
          %6169 = vmatmul.mubr.f32.gmra.mrb[0].mxu0 %v5930
          %v6170 = vpop.f32.mrb[0].mxu0
          %v6171 = vadd.f32 0.0, %v6170
          %v6172 = vpop.f32.mrb[0].mxu0
          %6173 = vmatprep.mubr.f32.mxu0 0.0
          %6174 = vmatmul.mubr.f32.gmra.mrb[0].mxu0 %v5933
          %v6175 = vpop.f32.mrb[0].mxu0
          %v6176 = vadd.f32 0.0, %v6175
          %v6177 = vpop.f32.mrb[0].mxu0
          %6178 = vmatprep.mubr.f32.mxu0 0.0
          %6179 = vmatmul.mubr.f32.gmra.mrb[0].mxu0 %v5936
          %v6180 = vpop.f32.mrb[0].mxu0
          %v6181 = vadd.f32 0.0, %v6180
          %v6182 = vpop.f32.mrb[0].mxu0
          %6183 = vmatprep.mubr.f32.mxu0 0.0
          %6184 = vmatmul.mubr.f32.gmra.mrb[0].mxu0 %v5939
          %v6185 = vpop.f32.mrb[0].mxu0
          %v6186 = vadd.f32 0.0, %v6185
          %v6187 = vpop.f32.mrb[0].mxu0
          %6188 = vmatprep.mubr.f32.mxu0 0.0
          %6189 = vmatmul.mubr.f32.gmra.mrb[0].mxu0 %v5942
          %v6190 = vpop.f32.mrb[0].mxu0
          %v6191 = vadd.f32 0.0, %v6190
          %v6192 = vpop.f32.mrb[0].mxu0
          %6193 = vmatprep.mubr.f32.mxu0 0.0
          %6194 = vmatmul.mubr.f32.gmra.mrb[0].mxu0 %v5945
          %v6195 = vpop.f32.mrb[0].mxu0
          %v6196 = vadd.f32 0.0, %v6195
          %v6197 = vpop.f32.mrb[0].mxu0
          %6198 = vmatprep.mubr.f32.mxu0 0.0
          %6199 = vmatmul.mubr.f32.gmra.mrb[0].mxu0 %v5948
          %v6200 = vpop.f32.mrb[0].mxu0
          %v6201 = vadd.f32 0.0, %v6200
          %v6202 = vpop.f32.mrb[0].mxu0
          %6203 = vmatprep.mubr.f32.mxu0 0.0
          %6204 = vmatmul.mubr.f32.gmra.mrb[0].mxu0 %v5951
          %v6205 = vpop.f32.mrb[0].mxu0
          %v6206 = vadd.f32 0.0, %v6205
          %v6207 = vpop.f32.mrb[0].mxu0
          %6208 = vmatprep.mubr.f32.mxu0 0.0
          %6209 = vmatmul.mubr.f32.gmra.mrb[0].mxu0 %v5954
          %v6210 = vpop.f32.mrb[0].mxu0
          %v6211 = vadd.f32 0.0, %v6210
          %v6212 = vpop.f32.mrb[0].mxu0
          %6213 = vmatprep.mubr.f32.mxu0 0.0
          %6214 = vmatmul.mubr.f32.gmra.mrb[0].mxu0 %v5957
          %v6215 = vpop.f32.mrb[0].mxu0
          %v6216 = vadd.f32 0.0, %v6215
          %v6217 = vpop.f32.mrb[0].mxu0
          %6218 = vmatprep.mubr.f32.mxu0 0.0
          %6219 = vmatmul.mubr.f32.gmra.mrb[0].mxu0 %v5960
          %v6220 = vpop.f32.mrb[0].mxu0
          %v6221 = vadd.f32 0.0, %v6220
          %v6222 = vpop.f32.mrb[0].mxu0
          %6223 = vmatprep.mubr.f32.mxu0 0.0
          %6224 = vmatmul.mubr.f32.gmra.mrb[0].mxu0 %v5963
          %v6225 = vpop.f32.mrb[0].mxu0
          %v6226 = vadd.f32 0.0, %v6225
          %v6227 = vpop.f32.mrb[0].mxu0
          %6228 = vmatprep.mubr.f32.mxu0 0.0
          %6229 = vmatmul.mubr.f32.gmra.mrb[0].mxu0 %v5966
          %v6230 = vpop.f32.mrb[0].mxu0
          %v6231 = vadd.f32 0.0, %v6230
          %v6232 = vpop.f32.mrb[0].mxu0
          %6233 = vmatprep.mubr.f32.mxu0 0.0
          %6234 = vmatmul.mubr.f32.gmra.mrb[0].mxu0 %v5969
          %v6235 = vpop.f32.mrb[0].mxu0
          %v6236 = vadd.f32 0.0, %v6235
          %v6237 = vpop.f32.mrb[0].mxu0
          %6238 = vmatprep.mubr.f32.mxu0 0.0
          %6239 = vmatmul.mubr.f32.gmra.mrb[0].mxu0 %v5972
          %v6240 = vpop.f32.mrb[0].mxu0
          %v6241 = vadd.f32 0.0, %v6240
          %v6242 = vpop.f32.mrb[0].mxu0
          %6243 = vmatprep.mubr.f32.mxu0 0.0
          %6244 = vmatmul.mubr.f32.gmra.mrb[0].mxu0 %v5975
          %v6245 = vpop.f32.mrb[0].mxu0
          %v6246 = vadd.f32 0.0, %v6245
          %v6247 = vpop.f32.mrb[0].mxu0
          %6248 = vmatprep.mubr.f32.mxu0 0.0
          %6249 = vmatmul.mubr.f32.gmra.mrb[0].mxu0 %v5978
          %v6250 = vpop.f32.mrb[0].mxu0
          %v6251 = vadd.f32 0.0, %v6250
          %v6252 = vpop.f32.mrb[0].mxu0
          %6253 = vmatprep.mubr.f32.mxu0 0.0
          %6254 = vmatmul.mubr.f32.gmra.mrb[0].mxu0 %v5981
          %v6255 = vpop.f32.mrb[0].mxu0
          %v6256 = vadd.f32 0.0, %v6255
          %v6257 = vpop.f32.mrb[0].mxu0
          %6258 = vmatprep.mubr.f32.mxu0 0.0
          %6259 = vmatmul.mubr.f32.gmra.mrb[0].mxu0 %v5984
          %v6260 = vpop.f32.mrb[0].mxu0
          %v6261 = vadd.f32 0.0, %v6260
          %v6262 = vpop.f32.mrb[0].mxu0
          %6263 = vmatprep.mubr.f32.mxu0 0.0
          %6264 = vmatmul.mubr.f32.gmra.mrb[0].mxu0 %v5987
          %v6265 = vpop.f32.mrb[0].mxu0
          %v6266 = vadd.f32 0.0, %v6265
          %v6267 = vpop.f32.mrb[0].mxu0
          %6268 = vmatprep.mubr.f32.mxu0 0.0
          %6269 = vmatmul.mubr.f32.gmra.mrb[0].mxu0 %v5990
          %v6270 = vpop.f32.mrb[0].mxu0
          %v6271 = vadd.f32 0.0, %v6270
          %v6272 = vpop.f32.mrb[0].mxu0
          %6273 = vmatprep.mubr.f32.mxu0 0.0
          %6274 = vmatmul.mubr.f32.gmra.mrb[0].mxu0 %v5993
          %v6275 = vpop.f32.mrb[0].mxu0
          %v6276 = vadd.f32 0.0, %v6275
          %v6277 = vpop.f32.mrb[0].mxu0
          %6278 = vmatprep.mubr.f32.mxu0 0.0
          %6279 = vmatmul.mubr.f32.gmra.mrb[0].mxu0 %v5996
          %v6280 = vpop.f32.mrb[0].mxu0
          %v6281 = vadd.f32 0.0, %v6280
          %v6282 = vpop.f32.mrb[0].mxu0
          %6283 = vmatprep.mubr.f32.mxu0 0.0
          %6284 = vmatmul.mubr.f32.gmra.mrb[0].mxu0 %v5999
          %v6285 = vpop.f32.mrb[0].mxu0
          %v6286 = vadd.f32 0.0, %v6285
          %v6287 = vpop.f32.mrb[0].mxu0
          %6288 = vmatprep.mubr.f32.mxu0 0.0
          %6289 = vmatmul.mubr.f32.gmra.mrb[0].mxu0 %v6002
          %v6290 = vpop.f32.mrb[0].mxu0
          %v6291 = vadd.f32 0.0, %v6290
          %v6292 = vpop.f32.mrb[0].mxu0
          %6293 = vmatprep.mubr.f32.mxu0 0.0
          %6294 = vmatmul.mubr.f32.gmra.mrb[0].mxu0 %v6005
          %v6295 = vpop.f32.mrb[0].mxu0
          %v6296 = vadd.f32 0.0, %v6295
          %v6297 = vpop.f32.mrb[0].mxu0
          %6298 = vmatprep.mubr.f32.mxu0 0.0
          %6299 = vmatmul.mubr.f32.gmra.mrb[0].mxu0 %v6008
          %v6300 = vpop.f32.mrb[0].mxu0
          %v6301 = vadd.f32 0.0, %v6300
          %v6302 = vpop.f32.mrb[0].mxu0
          %6303 = vmatprep.mubr.f32.mxu0 0.0
          %6304 = vmatmul.mubr.f32.gmra.mrb[0].mxu0 %v6011
          %v6305 = vpop.f32.mrb[0].mxu0
          %v6306 = vadd.f32 0.0, %v6305
          %v6307 = vpop.f32.mrb[0].mxu0
          %6308 = vmatprep.mubr.f32.mxu0 0.0
          %6309 = vmatmul.mubr.f32.gmra.mrb[0].mxu0 %v6014
          %v6310 = vpop.f32.mrb[0].mxu0
          %v6311 = vadd.f32 0.0, %v6310
          %v6312 = vpop.f32.mrb[0].mxu0
          %6313 = vmatprep.mubr.f32.mxu0 0.0
          %6314 = vmatmul.mubr.f32.gmra.mrb[0].mxu0 %v6017
          %v6315 = vpop.f32.mrb[0].mxu0
          %v6316 = vadd.f32 0.0, %v6315
          %v6317 = vpop.f32.mrb[0].mxu0
          %6318 = vmatprep.mubr.f32.mxu0 0.0
          %6319 = vmatmul.mubr.f32.gmra.mrb[0].mxu0 %v6020
          %v6320 = vpop.f32.mrb[0].mxu0
          %v6321 = vadd.f32 0.0, %v6320
          %v6322 = vpop.f32.mrb[0].mxu0
          %6323 = vmatprep.mubr.f32.mxu0 0.0
          %6324 = vmatmul.mubr.f32.gmra.mrb[0].mxu0 %v6023
          %v6325 = vpop.f32.mrb[0].mxu0
          %v6326 = vadd.f32 0.0, %v6325
          %v6327 = vpop.f32.mrb[0].mxu0
          %6328 = vmatprep.mubr.f32.mxu0 0.0
          %6329 = vmatmul.mubr.f32.gmra.mrb[0].mxu0 %v6026
          %v6330 = vpop.f32.mrb[0].mxu0
          %v6331 = vadd.f32 0.0, %v6330
          %v6332 = vpop.f32.mrb[0].mxu0
          %6333 = vmatprep.mubr.f32.mxu0 0.0
          %6334 = vmatmul.mubr.f32.gmra.mrb[0].mxu0 %v6029
          %v6335 = vpop.f32.mrb[0].mxu0
          %v6336 = vadd.f32 0.0, %v6335
          %v6337 = vpop.f32.mrb[0].mxu0
          %6338 = vmatprep.mubr.f32.mxu0 0.0
          %6339 = vmatmul.mubr.f32.gmra.mrb[0].mxu0 %v6032
          %v6340 = vpop.f32.mrb[0].mxu0
          %v6341 = vadd.f32 0.0, %v6340
          %v6342 = vpop.f32.mrb[0].mxu0
          %6343 = vmatprep.mubr.f32.mxu0 0.0
          %6344 = vmatmul.mubr.f32.gmra.mrb[0].mxu0 %v6035
          %v6345 = vpop.f32.mrb[0].mxu0
          %v6346 = vadd.f32 0.0, %v6345
          %v6347 = vpop.f32.mrb[0].mxu0
          %6348 = vmatprep.mubr.f32.mxu0 0.0
          %6349 = vmatmul.mubr.f32.gmra.mrb[0].mxu0 %v6038
          %v6350 = vpop.f32.mrb[0].mxu0
          %v6351 = vadd.f32 0.0, %v6350
          %v6352 = vpop.f32.mrb[0].mxu0
          %6353 = vmatprep.mubr.f32.mxu0 0.0
          %6354 = vmatmul.mubr.f32.gmra.mrb[0].mxu0 %v6041
          %v6355 = vpop.f32.mrb[0].mxu0
          %v6356 = vadd.f32 0.0, %v6355
          %v6357 = vpop.f32.mrb[0].mxu0
          %6358 = vmatprep.mubr.f32.mxu0 0.0
          %6359 = vmatmul.mubr.f32.gmra.mrb[0].mxu0 %v6044
          %v6360 = vpop.f32.mrb[0].mxu0
          %v6361 = vadd.f32 0.0, %v6360
          %v6362 = vpop.f32.mrb[0].mxu0
          %6363 = vmatprep.mubr.f32.mxu0 0.0
          %6364 = vmatmul.mubr.f32.gmra.mrb[0].mxu0 %v6047
          %v6365 = vpop.f32.mrb[0].mxu0
          %v6366 = vadd.f32 0.0, %v6365
          %v6367 = vpop.f32.mrb[0].mxu0
          %6368 = vmatprep.mubr.f32.mxu0 0.0
          %6369 = vmatmul.mubr.f32.gmra.mrb[0].mxu0 %v6050
          %v6370 = vpop.f32.mrb[0].mxu0
          %v6371 = vadd.f32 0.0, %v6370
          %v6372 = vpop.f32.mrb[0].mxu0
          %6373 = vmatprep.mubr.f32.mxu0 0.0
          %6374 = vmatmul.mubr.f32.gmra.mrb[0].mxu0 %v6053
          %v6375 = vpop.f32.mrb[0].mxu0
          %v6376 = vadd.f32 0.0, %v6375
          %v6377 = vpop.f32.mrb[0].mxu0
          %6378 = vmatprep.mubr.f32.mxu0 0.0
          %6379 = vmatmul.mubr.f32.gmra.mrb[0].mxu0 %v6056
          %v6380 = vpop.f32.mrb[0].mxu0
          %v6381 = vadd.f32 0.0, %v6380
          %v6382 = vpop.f32.mrb[0].mxu0
          %6383 = vmatprep.mubr.f32.mxu0 0.0
          %6384 = vmatmul.mubr.f32.gmra.mrb[0].mxu0 %v6059
          %v6385 = vpop.f32.mrb[0].mxu0
          %v6386 = vadd.f32 0.0, %v6385
          %v6387 = vpop.f32.mrb[0].mxu0
          %6388 = vmatprep.mubr.f32.mxu0 0.0
          %6389 = vmatmul.mubr.f32.gmra.mrb[0].mxu0 %v6062
          %v6390 = vpop.f32.mrb[0].mxu0
          %v6391 = vadd.f32 0.0, %v6390
          %v6392 = vpop.f32.mrb[0].mxu0
          %6393 = vmatprep.mubr.f32.mxu0 0.0
          %6394 = vmatmul.mubr.f32.gmra.mrb[0].mxu0 %v6065
          %v6395 = vpop.f32.mrb[0].mxu0
          %v6396 = vadd.f32 0.0, %v6395
          %v6397 = vpop.f32.mrb[0].mxu0
          %6398 = vmatprep.mubr.f32.mxu0 0.0
          %6399 = vmatmul.mubr.f32.gmra.mrb[0].mxu0 %v6068
          %v6400 = vpop.f32.mrb[0].mxu0
          %v6401 = vadd.f32 0.0, %v6400
          %v6402 = vpop.f32.mrb[0].mxu0
          %6403 = vmatprep.mubr.f32.mxu0 0.0
          %6404 = vmatmul.mubr.f32.gmra.mrb[0].mxu0 %v6071
          %v6405 = vpop.f32.mrb[0].mxu0
          %v6406 = vadd.f32 0.0, %v6405
          %v6407 = vpop.f32.mrb[0].mxu0
          %6408 = vmatprep.mubr.f32.mxu0 0.0
          %6409 = vmatmul.mubr.f32.gmra.mrb[0].mxu0 %v6074
          %v6410 = vpop.f32.mrb[0].mxu0
          %v6411 = vadd.f32 0.0, %v6410
          %v6412 = vpop.f32.mrb[0].mxu0
          %6413 = vmatprep.mubr.f32.mxu0 0.0
          %6414 = vmatmul.mubr.f32.gmra.mrb[0].mxu0 %v6077
          %v6415 = vpop.f32.mrb[0].mxu0
          %v6416 = vadd.f32 0.0, %v6415
          %v6417 = vpop.f32.mrb[0].mxu0
          %6418 = vdwg.mxu0
          %v6419 = vmul.f32 %v6146, %v6146
          %v6420 = vmul.f32 %v6151, %v6151
          %v6421 = vmul.f32 %v6156, %v6156
          %v6422 = vmul.f32 %v6161, %v6161
          %v6423 = vmul.f32 %v6166, %v6166
          %v6424 = vmul.f32 %v6171, %v6171
          %v6425 = vmul.f32 %v6176, %v6176
          %v6426 = vmul.f32 %v6181, %v6181
          %v6427 = vmul.f32 %v6186, %v6186
          %v6428 = vmul.f32 %v6191, %v6191
          %v6429 = vmul.f32 %v6196, %v6196
          %v6430 = vmul.f32 %v6201, %v6201
          %v6431 = vmul.f32 %v6206, %v6206
          %v6432 = vmul.f32 %v6211, %v6211
          %v6433 = vmul.f32 %v6216, %v6216
          %v6434 = vmul.f32 %v6221, %v6221
          %v6435 = vmul.f32 %v6226, %v6226
          %v6436 = vmul.f32 %v6231, %v6231
          %v6437 = vmul.f32 %v6236, %v6236
          %v6438 = vmul.f32 %v6241, %v6241
          %v6439 = vmul.f32 %v6246, %v6246
          %v6440 = vmul.f32 %v6251, %v6251
          %v6441 = vmul.f32 %v6146, %v6201
          %v6442 = vmul.f32 %v6151, %v6206
          %v6443 = vmul.f32 %v6156, %v6211
          %v6444 = vmul.f32 %v6161, %v6216
          %v6445 = vmul.f32 %v6166, %v6221
          %v6446 = vmul.f32 %v6171, %v6226
          %v6447 = vmul.f32 %v6176, %v6231
          %v6448 = vmul.f32 %v6181, %v6236
          %v6449 = vmul.f32 %v6186, %v6241
          %v6450 = vmul.f32 %v6191, %v6246
          %v6451 = vmul.f32 %v6196, %v6251
          %v6452 = vmul.f32 %v6441, 2.0
          %v6453 = vmul.f32 %v6442, 2.0
          %v6454 = vmul.f32 %v6443, 2.0
          %v6455 = vmul.f32 %v6444, 2.0
          %v6456 = vmul.f32 %v6445, 2.0
          %v6457 = vmul.f32 %v6446, 2.0
          %v6458 = vmul.f32 %v6447, 2.0
          %v6459 = vmul.f32 %v6448, 2.0
          %v6460 = vmul.f32 %v6449, 2.0
          %v6461 = vmul.f32 %v6450, 2.0
          %v6462 = vmul.f32 %v6451, 2.0
          %v6463 = vadd.f32 %v6452, 6.5025
          %v6464 = vadd.f32 %v6453, 6.5025
          %v6465 = vadd.f32 %v6454, 6.5025
          %v6466 = vadd.f32 %v6455, 6.5025
          %v6467 = vadd.f32 %v6456, 6.5025
          %v6468 = vadd.f32 %v6457, 6.5025
          %v6469 = vadd.f32 %v6458, 6.5025
          %v6470 = vadd.f32 %v6459, 6.5025
          %v6471 = vadd.f32 %v6460, 6.5025
          %v6472 = vadd.f32 %v6461, 6.5025
          %v6473 = vadd.f32 %v6462, 6.5025
          %v6474 = vadd.f32 %v6419, %v6430
          %v6475 = vadd.f32 %v6420, %v6431
          %v6476 = vadd.f32 %v6421, %v6432
          %v6477 = vadd.f32 %v6422, %v6433
          %v6478 = vadd.f32 %v6423, %v6434
          %v6479 = vadd.f32 %v6424, %v6435
          %v6480 = vadd.f32 %v6425, %v6436
          %v6481 = vadd.f32 %v6426, %v6437
          %v6482 = vadd.f32 %v6427, %v6438
          %v6483 = vadd.f32 %v6428, %v6439
          %v6484 = vadd.f32 %v6429, %v6440
          %v6485 = vadd.f32 %v6474, 6.5025
          %v6486 = vadd.f32 %v6475, 6.5025
          %v6487 = vadd.f32 %v6476, 6.5025
          %v6488 = vadd.f32 %v6477, 6.5025
          %v6489 = vadd.f32 %v6478, 6.5025
          %v6490 = vadd.f32 %v6479, 6.5025
          %v6491 = vadd.f32 %v6480, 6.5025
          %v6492 = vadd.f32 %v6481, 6.5025
          %v6493 = vadd.f32 %v6482, 6.5025
          %v6494 = vadd.f32 %v6483, 6.5025
          %v6495 = vadd.f32 %v6484, 6.5025
          %v6496 = vsub.f32 %v6366, %v6441
          %v6497 = vsub.f32 %v6371, %v6442
          %v6498 = vsub.f32 %v6376, %v6443
          %v6499 = vsub.f32 %v6381, %v6444
          %v6500 = vsub.f32 %v6386, %v6445
          %v6501 = vsub.f32 %v6391, %v6446
          %v6502 = vsub.f32 %v6396, %v6447
          %v6503 = vsub.f32 %v6401, %v6448
          %v6504 = vsub.f32 %v6406, %v6449
          %v6505 = vsub.f32 %v6411, %v6450
          %v6506 = vsub.f32 %v6416, %v6451
          %v6507 = vmul.f32 %v6496, 2.0
          %v6508 = vmul.f32 %v6497, 2.0
          %v6509 = vmul.f32 %v6498, 2.0
          %v6510 = vmul.f32 %v6499, 2.0
          %v6511 = vmul.f32 %v6500, 2.0
          %v6512 = vmul.f32 %v6501, 2.0
          %v6513 = vmul.f32 %v6502, 2.0
          %v6514 = vmul.f32 %v6503, 2.0
          %v6515 = vmul.f32 %v6504, 2.0
          %v6516 = vmul.f32 %v6505, 2.0
          %v6517 = vmul.f32 %v6506, 2.0
          %v6518 = vadd.f32 %v6507, 58.5225
          %v6519 = vadd.f32 %v6508, 58.5225
          %v6520 = vadd.f32 %v6509, 58.5225
          %v6521 = vadd.f32 %v6510, 58.5225
          %v6522 = vadd.f32 %v6511, 58.5225
          %v6523 = vadd.f32 %v6512, 58.5225
          %v6524 = vadd.f32 %v6513, 58.5225
          %v6525 = vadd.f32 %v6514, 58.5225
          %v6526 = vadd.f32 %v6515, 58.5225
          %v6527 = vadd.f32 %v6516, 58.5225
          %v6528 = vadd.f32 %v6517, 58.5225
          %v6529 = vsub.f32 %v6256, %v6419
          %v6530 = vsub.f32 %v6261, %v6420
          %v6531 = vsub.f32 %v6266, %v6421
          %v6532 = vsub.f32 %v6271, %v6422
          %v6533 = vsub.f32 %v6276, %v6423
          %v6534 = vsub.f32 %v6281, %v6424
          %v6535 = vsub.f32 %v6286, %v6425
          %v6536 = vsub.f32 %v6291, %v6426
          %v6537 = vsub.f32 %v6296, %v6427
          %v6538 = vsub.f32 %v6301, %v6428
          %v6539 = vsub.f32 %v6306, %v6429
          %v6540 = vsub.f32 %v6311, %v6430
          %v6541 = vsub.f32 %v6316, %v6431
          %v6542 = vsub.f32 %v6321, %v6432
          %v6543 = vsub.f32 %v6326, %v6433
          %v6544 = vsub.f32 %v6331, %v6434
          %v6545 = vsub.f32 %v6336, %v6435
          %v6546 = vsub.f32 %v6341, %v6436
          %v6547 = vsub.f32 %v6346, %v6437
          %v6548 = vsub.f32 %v6351, %v6438
          %v6549 = vsub.f32 %v6356, %v6439
          %v6550 = vsub.f32 %v6361, %v6440
          %v6551 = vadd.f32 %v6529, %v6540
          %v6552 = vadd.f32 %v6530, %v6541
          %v6553 = vadd.f32 %v6531, %v6542
          %v6554 = vadd.f32 %v6532, %v6543
          %v6555 = vadd.f32 %v6533, %v6544
          %v6556 = vadd.f32 %v6534, %v6545
          %v6557 = vadd.f32 %v6535, %v6546
          %v6558 = vadd.f32 %v6536, %v6547
          %v6559 = vadd.f32 %v6537, %v6548
          %v6560 = vadd.f32 %v6538, %v6549
          %v6561 = vadd.f32 %v6539, %v6550
          %v6562 = vadd.f32 %v6551, 58.5225
          %v6563 = vadd.f32 %v6552, 58.5225
          %v6564 = vadd.f32 %v6553, 58.5225
          %v6565 = vadd.f32 %v6554, 58.5225
          %v6566 = vadd.f32 %v6555, 58.5225
          %v6567 = vadd.f32 %v6556, 58.5225
          %v6568 = vadd.f32 %v6557, 58.5225
          %v6569 = vadd.f32 %v6558, 58.5225
          %v6570 = vadd.f32 %v6559, 58.5225
          %v6571 = vadd.f32 %v6560, 58.5225
          %v6572 = vadd.f32 %v6561, 58.5225
          %v6573 = vrcp.pop %v6562
          %v6574 = vmul.f32 %v6518, %v6573
          %v6575 = vrcp.pop %v6563
          %v6576 = vmul.f32 %v6519, %v6575
          %v6577 = vrcp.pop %v6564
          %v6578 = vmul.f32 %v6520, %v6577
          %v6579 = vrcp.pop %v6565
          %v6580 = vmul.f32 %v6521, %v6579
          %v6581 = vrcp.pop %v6566
          %v6582 = vmul.f32 %v6522, %v6581
          %v6583 = vrcp.pop %v6567
          %v6584 = vmul.f32 %v6523, %v6583
          %v6585 = vrcp.pop %v6568
          %v6586 = vmul.f32 %v6524, %v6585
          %v6587 = vrcp.pop %v6569
          %v6588 = vmul.f32 %v6525, %v6587
          %v6589 = vrcp.pop %v6570
          %v6590 = vmul.f32 %v6526, %v6589
          %v6591 = vrcp.pop %v6571
          %v6592 = vmul.f32 %v6527, %v6591
          %v6593 = vrcp.pop %v6572
          %v6594 = vmul.f32 %v6528, %v6593
          %v6595 = vrcp.pop %v6485
          %v6596 = vmul.f32 %v6463, %v6595
          %v6597 = vrcp.pop %v6486
          %v6598 = vmul.f32 %v6464, %v6597
          %v6599 = vrcp.pop %v6487
          %v6600 = vmul.f32 %v6465, %v6599
          %v6601 = vrcp.pop %v6488
          %v6602 = vmul.f32 %v6466, %v6601
          %v6603 = vrcp.pop %v6489
          %v6604 = vmul.f32 %v6467, %v6603
          %v6605 = vrcp.pop %v6490
          %v6606 = vmul.f32 %v6468, %v6605
          %v6607 = vrcp.pop %v6491
          %v6608 = vmul.f32 %v6469, %v6607
          %v6609 = vrcp.pop %v6492
          %v6610 = vmul.f32 %v6470, %v6609
          %v6611 = vrcp.pop %v6493
          %v6612 = vmul.f32 %v6471, %v6611
          %v6613 = vrcp.pop %v6494
          %v6614 = vmul.f32 %v6472, %v6613
          %v6615 = vrcp.pop %v6495
          %v6616 = vmul.f32 %v6473, %v6615
          %v6617 = vmul.f32 %v6596, %v6574
          %v6618 = vmul.f32 %v6598, %v6576
          %v6619 = vmul.f32 %v6600, %v6578
          %v6620 = vmul.f32 %v6602, %v6580
          %v6621 = vmul.f32 %v6604, %v6582
          %v6622 = vmul.f32 %v6606, %v6584
          %v6623 = vmul.f32 %v6608, %v6586
          %v6624 = vmul.f32 %v6610, %v6588
          %v6625 = vmul.f32 %v6612, %v6590
          %v6626 = vmul.f32 %v6614, %v6592
          %v6627 = vmul.f32 %v6616, %v6594
          %vm6628 = vcmask 703488
          %v6629 = vsel %vm6628, %v6617, 0.0
          %v6630 = vsel %vm6628, %v6618, 0.0
          %v6631 = vadd.f32 %v6629, %v6630
          %v6632 = vsel %vm6628, %v6619, 0.0
          %v6633 = vadd.f32 %v6631, %v6632
          %v6634 = vsel %vm6628, %v6620, 0.0
          %v6635 = vadd.f32 %v6633, %v6634
          %v6636 = vsel %vm6628, %v6621, 0.0
          %v6637 = vadd.f32 %v6635, %v6636
          %v6638 = vsel %vm6628, %v6622, 0.0
          %v6639 = vadd.f32 %v6637, %v6638
          %v6640 = vsel %vm6628, %v6623, 0.0
          %v6641 = vadd.f32 %v6639, %v6640
          %v6642 = vsel %vm6628, %v6624, 0.0
          %v6643 = vadd.f32 %v6641, %v6642
          %v6644 = vsel %vm6628, %v6625, 0.0
          %v6645 = vadd.f32 %v6643, %v6644
          %v6646 = vsel %vm6628, %v6626, 0.0
          %v6647 = vadd.f32 %v6645, %v6646
          %vm6648 = vcmask 701440
          %v6649 = vsel %vm6648, %v6627, 0.0
          %v6650 = vadd.f32 %v6647, %v6649
          %6651 = vadd.xlane.f32.xlu0 %v6650
          %v6652 = vpop.xlane.xlu0 %6651
          %v6653 = vrot.slane %v6652, 4
          %v6654 = vadd.f32 %v6652, %v6653
          %v6655 = vrot.slane %v6654, 2
          %v6656 = vadd.f32 %v6654, %v6655
          %v6657 = vrot.slane %v6656, 1
          %v6658 = vadd.f32 %v6656, %v6657
          %s6659 = vtos %v6658
          %s6660 = smul.f32 %s6659, 0.00013520822
          %v6661 = vsel %vm6628, %v6574, 0.0
          %v6662 = vsel %vm6628, %v6576, 0.0
          %v6663 = vadd.f32 %v6661, %v6662
          %v6664 = vsel %vm6628, %v6578, 0.0
          %v6665 = vadd.f32 %v6663, %v6664
          %v6666 = vsel %vm6628, %v6580, 0.0
          %v6667 = vadd.f32 %v6665, %v6666
          %v6668 = vsel %vm6628, %v6582, 0.0
          %v6669 = vadd.f32 %v6667, %v6668
          %v6670 = vsel %vm6628, %v6584, 0.0
          %v6671 = vadd.f32 %v6669, %v6670
          %v6672 = vsel %vm6628, %v6586, 0.0
          %v6673 = vadd.f32 %v6671, %v6672
          %v6674 = vsel %vm6628, %v6588, 0.0
          %v6675 = vadd.f32 %v6673, %v6674
          %v6676 = vsel %vm6628, %v6590, 0.0
          %v6677 = vadd.f32 %v6675, %v6676
          %v6678 = vsel %vm6628, %v6592, 0.0
          %v6679 = vadd.f32 %v6677, %v6678
          %v6680 = vsel %vm6648, %v6594, 0.0
          %v6681 = vadd.f32 %v6679, %v6680
          %6682 = vadd.xlane.f32.xlu0 %v6681
          %v6683 = vpop.xlane.xlu0 %6682
          %v6684 = vrot.slane %v6683, 4
          %v6685 = vadd.f32 %v6683, %v6684
          %v6686 = vrot.slane %v6685, 2
          %v6687 = vadd.f32 %v6685, %v6686
          %v6688 = vrot.slane %v6687, 1
          %v6689 = vadd.f32 %v6687, %v6688
          %s6690 = vtos %v6689
          %s6691 = smul.f32 %s6690, 0.00013520822
          %vm6692 = vcmp.eq.s32.totalorder %v954, 2
          %vm6693 = vcmp.eq.s32.totalorder %v955, 2
          %vm6694 = vmand %vm6692, %vm4526
          %vm6695 = vmand %vm6693, %vm4526
          %v6696 = vstv %s6660
          %v6697 = vsel %vm6694, %v6696, %v4539
          %v6698 = vsel %vm6695, %v6696, %v4540
          %vm6699 = vcmp.eq.s32.totalorder %v954, 3
          %vm6700 = vcmp.eq.s32.totalorder %v955, 3
          %vm6701 = vmand %vm6699, %vm4526
          %vm6702 = vmand %vm6700, %vm4526
          %v6703 = vstv %s6691
          %v6704 = vsel %vm6701, %v6703, %v6697
          %v6705 = vsel %vm6702, %v6703, %v6698
          %v6706 = vld [vmem:[#allocation22] sm:$0xff]
          %v6707 = vld [vmem:[#allocation22 + $0x8] sm:$0xff]
          %v6708 = vld [vmem:[#allocation22 + $0x10] sm:$0xff]
          %v6709 = vld [vmem:[#allocation22 + $0x18] sm:$0xff]
          %v6710 = vld [vmem:[#allocation22 + $0x20] sm:$0xff]
          %v6711 = vld [vmem:[#allocation22 + $0x28] sm:$0xff]
          %v6712 = vld [vmem:[#allocation28] sm:$0xff]
          %v6713 = vld [vmem:[#allocation28 + $0x8] sm:$0xff]
          %v6714 = vld [vmem:[#allocation28 + $0x10] sm:$0xff]
          %v6715 = vld [vmem:[#allocation28 + $0x18] sm:$0xff]
          %v6716 = vld [vmem:[#allocation28 + $0x20] sm:$0xff]
          %v6717 = vld [vmem:[#allocation28 + $0x28] sm:$0xff]
          %v6718 = vld [vmem:[#allocation28 + $0x30] sm:$0xff]
          %v6719 = vld [vmem:[#allocation28 + $0x38] sm:$0xff]
          %v6720 = vld [vmem:[#allocation28 + $0x40] sm:$0xff]
          %v6721 = vld [vmem:[#allocation28 + $0x48] sm:$0xff]
          %v6722 = vld [vmem:[#allocation28 + $0x50] sm:$0xff]
          %v6723 = vld [vmem:[#allocation28 + $0x58] sm:$0xff]
          %v6725 = vsel %vm5280, %v6706, 0
          %v6728 = vsel %vm5280, %v6707, 0
          %v6731 = vsel %vm5280, %v6708, 0
          %v6734 = vsel %vm5280, %v6709, 0
          %v6737 = vsel %vm5280, %v6710, 0
          %v6740 = vsel %vm5280, %v6711, 0
          %6742 = vmatprep.subr.mxu0 0.0
          %6743 = vmatpush1.msra.mxu0 %v4865
          %6744 = vmatprep.subr.mxu0 0.0
          %6745 = vmatpush1.msra.mxu0 %v4870
          %6746 = vmatprep.subr.mxu0 0.0
          %6747 = vmatpush1.msra.mxu0 %v4875
          %6748 = vmatprep.subr.mxu0 0.0
          %6749 = vmatpush1.msra.mxu0 %v4880
          %6750 = vmatprep.subr.mxu0 0.0
          %6751 = vmatpush1.msra.mxu0 %v4885
          %6752 = vmatprep.subr.mxu0 0.0
          %6753 = vmatpush1.msra.mxu0 %v4890
          %6754 = vmatprep.subr.mxu0 0.0
          %6755 = vmatpush1.msra.mxu0 %v4895
          %6756 = vmatprep.subr.mxu0 0.0
          %6757 = vmatpush1.msra.mxu0 %v4900
          %6758 = vmatprep.subr.mxu0 0.0
          %6759 = vmatpush1.msra.mxu0 %v4905
          %6760 = vmatprep.subr.mxu0 0.0
          %6761 = vmatpush1.msra.mxu0 %v4910
          %6762 = vmatprep.subr.mxu0 0.0
          %6763 = vmatpush1.msra.mxu0 %v4915
          %6764 = vmatprep.subr.mxu0 0.0
          %6765 = vmatpush1.msra.mxu0 %v4920
          %6766 = vmatprep.subr.mxu0 0.0
          %6767 = vmatpush1.msra.mxu0 0.0
          %6768 = vmatprep.subr.mxu0 0.0
          %6769 = vmatpush1.msra.mxu0 0.0
          %6770 = vmatprep.subr.mxu0 0.0
          %6771 = vmatpush1.msra.mxu0 0.0
          %6772 = vmatprep.subr.mxu0 0.0
          %6773 = vmatpush1.msra.mxu0 0.0
          %6774 = vmatprep.subr.mxu0 0.0
          %6775 = vmatpush1.msra.mxu0 0.0
          %6776 = vmatprep.subr.mxu0 0.0
          %6777 = vmatpush1.msra.mxu0 0.0
          %6778 = vmatprep.subr.mxu0 0.0
          %6779 = vmatpush1.msra.mxu0 0.0
          %6780 = vmatprep.subr.mxu0 0.0
          %6781 = vmatpush1.msra.mxu0 0.0
          %6782 = vmatprep.subr.mxu0 0.0
          %6783 = vmatpush1.msra.mxu0 0.0
          %6784 = vmatprep.subr.mxu0 0.0
          %6785 = vmatpush1.msra.mxu0 0.0
          %6786 = vmatprep.subr.mxu0 0.0
          %6787 = vmatpush1.msra.mxu0 0.0
          %6788 = vmatprep.subr.mxu0 0.0
          %6789 = vmatpush1.msra.mxu0 0.0
          %6790 = vmatprep.subr.mxu0 0.0
          %6791 = vmatpush1.msra.mxu0 0.0
          %6792 = vmatprep.subr.mxu0 0.0
          %6793 = vmatpush1.msra.mxu0 0.0
          %6794 = vmatprep.subr.mxu0 0.0
          %6795 = vmatpush1.msra.mxu0 0.0
          %6796 = vmatprep.subr.mxu0 0.0
          %6797 = vmatpush1.msra.mxu0 0.0
          %6798 = vmatprep.subr.mxu0 0.0
          %6799 = vmatpush1.msra.mxu0 0.0
          %6800 = vmatprep.subr.mxu0 0.0
          %6801 = vmatpush1.msra.mxu0 0.0
          %6802 = vmatprep.subr.mxu0 0.0
          %6803 = vmatpush1.msra.mxu0 0.0
          %6804 = vmatprep.subr.mxu0 0.0
          %6805 = vmatpush1.msra.mxu0 0.0
          %6806 = vmatprep.mubr.f32.mxu0 0.0
          %6807 = vmatmul.mubr.f32.gmra.mrb[0].mxu0 %v6725
          %v6808 = vpop.f32.mrb[0].mxu0
          %v6809 = vadd.f32 0.0, %v6808
          %v6810 = vpop.f32.mrb[0].mxu0
          %6811 = vmatprep.mubr.f32.mxu0 0.0
          %6812 = vmatmul.mubr.f32.gmra.mrb[0].mxu0 %v6728
          %v6813 = vpop.f32.mrb[0].mxu0
          %v6814 = vadd.f32 0.0, %v6813
          %v6815 = vpop.f32.mrb[0].mxu0
          %6816 = vmatprep.mubr.f32.mxu0 0.0
          %6817 = vmatmul.mubr.f32.gmra.mrb[0].mxu0 %v6731
          %v6818 = vpop.f32.mrb[0].mxu0
          %v6819 = vadd.f32 0.0, %v6818
          %v6820 = vpop.f32.mrb[0].mxu0
          %6821 = vmatprep.mubr.f32.mxu0 0.0
          %6822 = vmatmul.mubr.f32.gmra.mrb[0].mxu0 %v6734
          %v6823 = vpop.f32.mrb[0].mxu0
          %v6824 = vadd.f32 0.0, %v6823
          %v6825 = vpop.f32.mrb[0].mxu0
          %6826 = vmatprep.mubr.f32.mxu0 0.0
          %6827 = vmatmul.mubr.f32.gmra.mrb[0].mxu0 %v6737
          %v6828 = vpop.f32.mrb[0].mxu0
          %v6829 = vadd.f32 0.0, %v6828
          %v6830 = vpop.f32.mrb[0].mxu0
          %6831 = vmatprep.mubr.f32.mxu0 0.0
          %6832 = vmatmul.mubr.f32.gmra.mrb[0].mxu0 %v6740
          %v6833 = vpop.f32.mrb[0].mxu0
          %v6834 = vadd.f32 0.0, %v6833
          %v6835 = vpop.f32.mrb[0].mxu0
          %6836 = vdwg.mxu0
          %v6838 = vsel %vm5280, %v6809, 0
          %v6841 = vsel %vm5280, %v6814, 0
          %v6844 = vsel %vm5280, %v6819, 0
          %v6847 = vsel %vm5280, %v6824, 0
          %v6850 = vsel %vm5280, %v6829, 0
          %v6853 = vsel %vm5280, %v6834, 0
          %6855 = vmatprep.subr.mxu0 0.0
          %6856 = vmatpush1.msra.mxu0 %v6712
          %6857 = vmatprep.subr.mxu0 0.0
          %6858 = vmatpush1.msra.mxu0 %v6713
          %6859 = vmatprep.subr.mxu0 0.0
          %6860 = vmatpush1.msra.mxu0 %v6714
          %6861 = vmatprep.subr.mxu0 0.0
          %6862 = vmatpush1.msra.mxu0 %v6715
          %6863 = vmatprep.subr.mxu0 0.0
          %6864 = vmatpush1.msra.mxu0 %v6716
          %6865 = vmatprep.subr.mxu0 0.0
          %6866 = vmatpush1.msra.mxu0 %v6717
          %6867 = vmatprep.subr.mxu0 0.0
          %6868 = vmatpush1.msra.mxu0 %v6718
          %6869 = vmatprep.subr.mxu0 0.0
          %6870 = vmatpush1.msra.mxu0 %v6719
          %6871 = vmatprep.subr.mxu0 0.0
          %6872 = vmatpush1.msra.mxu0 %v6720
          %6873 = vmatprep.subr.mxu0 0.0
          %6874 = vmatpush1.msra.mxu0 %v6721
          %6875 = vmatprep.subr.mxu0 0.0
          %6876 = vmatpush1.msra.mxu0 %v6722
          %6877 = vmatprep.subr.mxu0 0.0
          %6878 = vmatpush1.msra.mxu0 %v6723
          %6879 = vmatprep.subr.mxu0 0.0
          %6880 = vmatpush1.msra.mxu0 0.0
          %6881 = vmatprep.subr.mxu0 0.0
          %6882 = vmatpush1.msra.mxu0 0.0
          %6883 = vmatprep.subr.mxu0 0.0
          %6884 = vmatpush1.msra.mxu0 0.0
          %6885 = vmatprep.subr.mxu0 0.0
          %6886 = vmatpush1.msra.mxu0 0.0
          %6887 = vmatprep.subr.mxu0 0.0
          %6888 = vmatpush1.msra.mxu0 0.0
          %6889 = vmatprep.subr.mxu0 0.0
          %6890 = vmatpush1.msra.mxu0 0.0
          %6891 = vmatprep.subr.mxu0 0.0
          %6892 = vmatpush1.msra.mxu0 0.0
          %6893 = vmatprep.subr.mxu0 0.0
          %6894 = vmatpush1.msra.mxu0 0.0
          %6895 = vmatprep.subr.mxu0 0.0
          %6896 = vmatpush1.msra.mxu0 0.0
          %6897 = vmatprep.subr.mxu0 0.0
          %6898 = vmatpush1.msra.mxu0 0.0
          %6899 = vmatprep.subr.mxu0 0.0
          %6900 = vmatpush1.msra.mxu0 0.0
          %6901 = vmatprep.subr.mxu0 0.0
          %6902 = vmatpush1.msra.mxu0 0.0
          %6903 = vmatprep.subr.mxu0 0.0
          %6904 = vmatpush1.msra.mxu0 0.0
          %6905 = vmatprep.subr.mxu0 0.0
          %6906 = vmatpush1.msra.mxu0 0.0
          %6907 = vmatprep.subr.mxu0 0.0
          %6908 = vmatpush1.msra.mxu0 0.0
          %6909 = vmatprep.subr.mxu0 0.0
          %6910 = vmatpush1.msra.mxu0 0.0
          %6911 = vmatprep.subr.mxu0 0.0
          %6912 = vmatpush1.msra.mxu0 0.0
          %6913 = vmatprep.subr.mxu0 0.0
          %6914 = vmatpush1.msra.mxu0 0.0
          %6915 = vmatprep.subr.mxu0 0.0
          %6916 = vmatpush1.msra.mxu0 0.0
          %6917 = vmatprep.subr.mxu0 0.0
          %6918 = vmatpush1.msra.mxu0 0.0
          %6919 = vmatprep.mubr.f32.mxu0 0.0
          %6920 = vmatmul.mubr.f32.gmra.mrb[0].mxu0 %v6838
          %v6921 = vpop.f32.mrb[0].mxu0
          %v6922 = vadd.f32 0.0, %v6921
          %v6923 = vpop.f32.mrb[0].mxu0
          %6924 = vmatprep.mubr.f32.mxu0 0.0
          %6925 = vmatmul.mubr.f32.gmra.mrb[0].mxu0 %v6841
          %v6926 = vpop.f32.mrb[0].mxu0
          %v6927 = vadd.f32 0.0, %v6926
          %v6928 = vpop.f32.mrb[0].mxu0
          %6929 = vmatprep.mubr.f32.mxu0 0.0
          %6930 = vmatmul.mubr.f32.gmra.mrb[0].mxu0 %v6844
          %v6931 = vpop.f32.mrb[0].mxu0
          %v6932 = vadd.f32 0.0, %v6931
          %v6933 = vpop.f32.mrb[0].mxu0
          %6934 = vmatprep.mubr.f32.mxu0 0.0
          %6935 = vmatmul.mubr.f32.gmra.mrb[0].mxu0 %v6847
          %v6936 = vpop.f32.mrb[0].mxu0
          %v6937 = vadd.f32 0.0, %v6936
          %v6938 = vpop.f32.mrb[0].mxu0
          %6939 = vmatprep.mubr.f32.mxu0 0.0
          %6940 = vmatmul.mubr.f32.gmra.mrb[0].mxu0 %v6850
          %v6941 = vpop.f32.mrb[0].mxu0
          %v6942 = vadd.f32 0.0, %v6941
          %v6943 = vpop.f32.mrb[0].mxu0
          %6944 = vmatprep.mubr.f32.mxu0 0.0
          %6945 = vmatmul.mubr.f32.gmra.mrb[0].mxu0 %v6853
          %v6946 = vpop.f32.mrb[0].mxu0
          %v6947 = vadd.f32 0.0, %v6946
          %v6948 = vpop.f32.mrb[0].mxu0
          %6949 = vdwg.mxu0
          %6950 = vmatprep.subr.mxu0 0.0
          %6951 = vmatpush1.msra.mxu0 %v5163
          %6952 = vmatprep.subr.mxu0 0.0
          %6953 = vmatpush1.msra.mxu0 %v5168
          %6954 = vmatprep.subr.mxu0 0.0
          %6955 = vmatpush1.msra.mxu0 %v5173
          %6956 = vmatprep.subr.mxu0 0.0
          %6957 = vmatpush1.msra.mxu0 %v5178
          %6958 = vmatprep.subr.mxu0 0.0
          %6959 = vmatpush1.msra.mxu0 %v5183
          %6960 = vmatprep.subr.mxu0 0.0
          %6961 = vmatpush1.msra.mxu0 %v5188
          %6962 = vmatprep.subr.mxu0 0.0
          %6963 = vmatpush1.msra.mxu0 %v5193
          %6964 = vmatprep.subr.mxu0 0.0
          %6965 = vmatpush1.msra.mxu0 %v5198
          %6966 = vmatprep.subr.mxu0 0.0
          %6967 = vmatpush1.msra.mxu0 %v5203
          %6968 = vmatprep.subr.mxu0 0.0
          %6969 = vmatpush1.msra.mxu0 %v5208
          %6970 = vmatprep.subr.mxu0 0.0
          %6971 = vmatpush1.msra.mxu0 %v5213
          %6972 = vmatprep.subr.mxu0 0.0
          %6973 = vmatpush1.msra.mxu0 %v5218
          %6974 = vmatprep.subr.mxu0 0.0
          %6975 = vmatpush1.msra.mxu0 0.0
          %6976 = vmatprep.subr.mxu0 0.0
          %6977 = vmatpush1.msra.mxu0 0.0
          %6978 = vmatprep.subr.mxu0 0.0
          %6979 = vmatpush1.msra.mxu0 0.0
          %6980 = vmatprep.subr.mxu0 0.0
          %6981 = vmatpush1.msra.mxu0 0.0
          %6982 = vmatprep.subr.mxu0 0.0
          %6983 = vmatpush1.msra.mxu0 0.0
          %6984 = vmatprep.subr.mxu0 0.0
          %6985 = vmatpush1.msra.mxu0 0.0
          %6986 = vmatprep.subr.mxu0 0.0
          %6987 = vmatpush1.msra.mxu0 0.0
          %6988 = vmatprep.subr.mxu0 0.0
          %6989 = vmatpush1.msra.mxu0 0.0
          %6990 = vmatprep.subr.mxu0 0.0
          %6991 = vmatpush1.msra.mxu0 0.0
          %6992 = vmatprep.subr.mxu0 0.0
          %6993 = vmatpush1.msra.mxu0 0.0
          %6994 = vmatprep.subr.mxu0 0.0
          %6995 = vmatpush1.msra.mxu0 0.0
          %6996 = vmatprep.subr.mxu0 0.0
          %6997 = vmatpush1.msra.mxu0 0.0
          %6998 = vmatprep.subr.mxu0 0.0
          %6999 = vmatpush1.msra.mxu0 0.0
          %7000 = vmatprep.subr.mxu0 0.0
          %7001 = vmatpush1.msra.mxu0 0.0
          %7002 = vmatprep.subr.mxu0 0.0
          %7003 = vmatpush1.msra.mxu0 0.0
          %7004 = vmatprep.subr.mxu0 0.0
          %7005 = vmatpush1.msra.mxu0 0.0
          %7006 = vmatprep.subr.mxu0 0.0
          %7007 = vmatpush1.msra.mxu0 0.0
          %7008 = vmatprep.subr.mxu0 0.0
          %7009 = vmatpush1.msra.mxu0 0.0
          %7010 = vmatprep.subr.mxu0 0.0
          %7011 = vmatpush1.msra.mxu0 0.0
          %7012 = vmatprep.subr.mxu0 0.0
          %7013 = vmatpush1.msra.mxu0 0.0
          %7014 = vmatprep.mubr.f32.mxu0 0.0
          %7015 = vmatmul.mubr.f32.gmra.mrb[0].mxu0 %v6725
          %v7016 = vpop.f32.mrb[0].mxu0
          %v7017 = vadd.f32 0.0, %v7016
          %v7018 = vpop.f32.mrb[0].mxu0
          %7019 = vmatprep.mubr.f32.mxu0 0.0
          %7020 = vmatmul.mubr.f32.gmra.mrb[0].mxu0 %v6728
          %v7021 = vpop.f32.mrb[0].mxu0
          %v7022 = vadd.f32 0.0, %v7021
          %v7023 = vpop.f32.mrb[0].mxu0
          %7024 = vmatprep.mubr.f32.mxu0 0.0
          %7025 = vmatmul.mubr.f32.gmra.mrb[0].mxu0 %v6731
          %v7026 = vpop.f32.mrb[0].mxu0
          %v7027 = vadd.f32 0.0, %v7026
          %v7028 = vpop.f32.mrb[0].mxu0
          %7029 = vmatprep.mubr.f32.mxu0 0.0
          %7030 = vmatmul.mubr.f32.gmra.mrb[0].mxu0 %v6734
          %v7031 = vpop.f32.mrb[0].mxu0
          %v7032 = vadd.f32 0.0, %v7031
          %v7033 = vpop.f32.mrb[0].mxu0
          %7034 = vmatprep.mubr.f32.mxu0 0.0
          %7035 = vmatmul.mubr.f32.gmra.mrb[0].mxu0 %v6737
          %v7036 = vpop.f32.mrb[0].mxu0
          %v7037 = vadd.f32 0.0, %v7036
          %v7038 = vpop.f32.mrb[0].mxu0
          %7039 = vmatprep.mubr.f32.mxu0 0.0
          %7040 = vmatmul.mubr.f32.gmra.mrb[0].mxu0 %v6740
          %v7041 = vpop.f32.mrb[0].mxu0
          %v7042 = vadd.f32 0.0, %v7041
          %v7043 = vpop.f32.mrb[0].mxu0
          %7044 = vdwg.mxu0
          %v7046 = vsel %vm5280, %v7017, 0
          %v7049 = vsel %vm5280, %v7022, 0
          %v7052 = vsel %vm5280, %v7027, 0
          %v7055 = vsel %vm5280, %v7032, 0
          %v7058 = vsel %vm5280, %v7037, 0
          %v7061 = vsel %vm5280, %v7042, 0
          %7063 = vmatprep.subr.mxu0 0.0
          %7064 = vmatpush1.msra.mxu0 %v6712
          %7065 = vmatprep.subr.mxu0 0.0
          %7066 = vmatpush1.msra.mxu0 %v6713
          %7067 = vmatprep.subr.mxu0 0.0
          %7068 = vmatpush1.msra.mxu0 %v6714
          %7069 = vmatprep.subr.mxu0 0.0
          %7070 = vmatpush1.msra.mxu0 %v6715
          %7071 = vmatprep.subr.mxu0 0.0
          %7072 = vmatpush1.msra.mxu0 %v6716
          %7073 = vmatprep.subr.mxu0 0.0
          %7074 = vmatpush1.msra.mxu0 %v6717
          %7075 = vmatprep.subr.mxu0 0.0
          %7076 = vmatpush1.msra.mxu0 %v6718
          %7077 = vmatprep.subr.mxu0 0.0
          %7078 = vmatpush1.msra.mxu0 %v6719
          %7079 = vmatprep.subr.mxu0 0.0
          %7080 = vmatpush1.msra.mxu0 %v6720
          %7081 = vmatprep.subr.mxu0 0.0
          %7082 = vmatpush1.msra.mxu0 %v6721
          %7083 = vmatprep.subr.mxu0 0.0
          %7084 = vmatpush1.msra.mxu0 %v6722
          %7085 = vmatprep.subr.mxu0 0.0
          %7086 = vmatpush1.msra.mxu0 %v6723
          %7087 = vmatprep.subr.mxu0 0.0
          %7088 = vmatpush1.msra.mxu0 0.0
          %7089 = vmatprep.subr.mxu0 0.0
          %7090 = vmatpush1.msra.mxu0 0.0
          %7091 = vmatprep.subr.mxu0 0.0
          %7092 = vmatpush1.msra.mxu0 0.0
          %7093 = vmatprep.subr.mxu0 0.0
          %7094 = vmatpush1.msra.mxu0 0.0
          %7095 = vmatprep.subr.mxu0 0.0
          %7096 = vmatpush1.msra.mxu0 0.0
          %7097 = vmatprep.subr.mxu0 0.0
          %7098 = vmatpush1.msra.mxu0 0.0
          %7099 = vmatprep.subr.mxu0 0.0
          %7100 = vmatpush1.msra.mxu0 0.0
          %7101 = vmatprep.subr.mxu0 0.0
          %7102 = vmatpush1.msra.mxu0 0.0
          %7103 = vmatprep.subr.mxu0 0.0
          %7104 = vmatpush1.msra.mxu0 0.0
          %7105 = vmatprep.subr.mxu0 0.0
          %7106 = vmatpush1.msra.mxu0 0.0
          %7107 = vmatprep.subr.mxu0 0.0
          %7108 = vmatpush1.msra.mxu0 0.0
          %7109 = vmatprep.subr.mxu0 0.0
          %7110 = vmatpush1.msra.mxu0 0.0
          %7111 = vmatprep.subr.mxu0 0.0
          %7112 = vmatpush1.msra.mxu0 0.0
          %7113 = vmatprep.subr.mxu0 0.0
          %7114 = vmatpush1.msra.mxu0 0.0
          %7115 = vmatprep.subr.mxu0 0.0
          %7116 = vmatpush1.msra.mxu0 0.0
          %7117 = vmatprep.subr.mxu0 0.0
          %7118 = vmatpush1.msra.mxu0 0.0
          %7119 = vmatprep.subr.mxu0 0.0
          %7120 = vmatpush1.msra.mxu0 0.0
          %7121 = vmatprep.subr.mxu0 0.0
          %7122 = vmatpush1.msra.mxu0 0.0
          %7123 = vmatprep.subr.mxu0 0.0
          %7124 = vmatpush1.msra.mxu0 0.0
          %7125 = vmatprep.subr.mxu0 0.0
          %7126 = vmatpush1.msra.mxu0 0.0
          %7127 = vmatprep.mubr.f32.mxu0 0.0
          %7128 = vmatmul.mubr.f32.gmra.mrb[0].mxu0 %v7046
          %v7129 = vpop.f32.mrb[0].mxu0
          %v7130 = vadd.f32 0.0, %v7129
          %v7131 = vpop.f32.mrb[0].mxu0
          %7132 = vmatprep.mubr.f32.mxu0 0.0
          %7133 = vmatmul.mubr.f32.gmra.mrb[0].mxu0 %v7049
          %v7134 = vpop.f32.mrb[0].mxu0
          %v7135 = vadd.f32 0.0, %v7134
          %v7136 = vpop.f32.mrb[0].mxu0
          %7137 = vmatprep.mubr.f32.mxu0 0.0
          %7138 = vmatmul.mubr.f32.gmra.mrb[0].mxu0 %v7052
          %v7139 = vpop.f32.mrb[0].mxu0
          %v7140 = vadd.f32 0.0, %v7139
          %v7141 = vpop.f32.mrb[0].mxu0
          %7142 = vmatprep.mubr.f32.mxu0 0.0
          %7143 = vmatmul.mubr.f32.gmra.mrb[0].mxu0 %v7055
          %v7144 = vpop.f32.mrb[0].mxu0
          %v7145 = vadd.f32 0.0, %v7144
          %v7146 = vpop.f32.mrb[0].mxu0
          %7147 = vmatprep.mubr.f32.mxu0 0.0
          %7148 = vmatmul.mubr.f32.gmra.mrb[0].mxu0 %v7058
          %v7149 = vpop.f32.mrb[0].mxu0
          %v7150 = vadd.f32 0.0, %v7149
          %v7151 = vpop.f32.mrb[0].mxu0
          %7152 = vmatprep.mubr.f32.mxu0 0.0
          %7153 = vmatmul.mubr.f32.gmra.mrb[0].mxu0 %v7061
          %v7154 = vpop.f32.mrb[0].mxu0
          %v7155 = vadd.f32 0.0, %v7154
          %v7156 = vpop.f32.mrb[0].mxu0
          %7157 = vdwg.mxu0
          %v7158 = vld [vmem:[#allocation9] sm:$0xff]
          %v7159 = vld [vmem:[#allocation9 + $0x8] sm:$0xff]
          %v7160 = vld [vmem:[#allocation9 + $0x10] sm:$0xff]
          %v7161 = vld [vmem:[#allocation9 + $0x18] sm:$0xff]
          %v7162 = vld [vmem:[#allocation9 + $0x20] sm:$0xff]
          %v7163 = vld [vmem:[#allocation16] sm:$0xff]
          %v7164 = vld [vmem:[#allocation16 + $0x8] sm:$0xff]
          %v7165 = vld [vmem:[#allocation16 + $0x10] sm:$0xff]
          %v7166 = vld [vmem:[#allocation16 + $0x18] sm:$0xff]
          %v7167 = vld [vmem:[#allocation16 + $0x20] sm:$0xff]
          %v7168 = vld [vmem:[#allocation16 + $0x28] sm:$0xff]
          %v7169 = vmul.f32 %v6922, %v6922
          %v7170 = vmul.f32 %v6927, %v6927
          %v7171 = vmul.f32 %v6932, %v6932
          %v7172 = vmul.f32 %v6937, %v6937
          %v7173 = vmul.f32 %v6942, %v6942
          %v7174 = vmul.f32 %v6947, %v6947
          %v7175 = vmul.f32 %v7130, %v7130
          %v7176 = vmul.f32 %v7135, %v7135
          %v7177 = vmul.f32 %v7140, %v7140
          %v7178 = vmul.f32 %v7145, %v7145
          %v7179 = vmul.f32 %v7150, %v7150
          %v7180 = vmul.f32 %v7155, %v7155
          %v7181 = vmul.f32 %v6922, %v7130
          %v7182 = vmul.f32 %v6927, %v7135
          %v7183 = vmul.f32 %v6932, %v7140
          %v7184 = vmul.f32 %v6937, %v7145
          %v7185 = vmul.f32 %v6942, %v7150
          %v7186 = vmul.f32 %v6947, %v7155
          %vm7187 = vcmask 392192
          %v7189 = vsel %vm7187, %v7158, 0
          %v7192 = vsel %vm7187, %v7159, 0
          %v7195 = vsel %vm7187, %v7160, 0
          %v7198 = vsel %vm7187, %v7161, 0
          %v7201 = vsel %vm7187, %v7162, 0
          %7203 = vmatprep.subr.mxu0 0.0
          %7204 = vmatpush1.msra.mxu0 %v6922
          %7205 = vmatprep.subr.mxu0 0.0
          %7206 = vmatpush1.msra.mxu0 %v6927
          %7207 = vmatprep.subr.mxu0 0.0
          %7208 = vmatpush1.msra.mxu0 %v6932
          %7209 = vmatprep.subr.mxu0 0.0
          %7210 = vmatpush1.msra.mxu0 %v6937
          %7211 = vmatprep.subr.mxu0 0.0
          %7212 = vmatpush1.msra.mxu0 %v6942
          %7213 = vmatprep.subr.mxu0 0.0
          %7214 = vmatpush1.msra.mxu0 %v6947
          %7215 = vmatprep.subr.mxu0 0.0
          %7216 = vmatpush1.msra.mxu0 0.0
          %7217 = vmatprep.subr.mxu0 0.0
          %7218 = vmatpush1.msra.mxu0 0.0
          %7219 = vmatprep.subr.mxu0 0.0
          %7220 = vmatpush1.msra.mxu0 0.0
          %7221 = vmatprep.subr.mxu0 0.0
          %7222 = vmatpush1.msra.mxu0 0.0
          %7223 = vmatprep.subr.mxu0 0.0
          %7224 = vmatpush1.msra.mxu0 0.0
          %7225 = vmatprep.subr.mxu0 0.0
          %7226 = vmatpush1.msra.mxu0 0.0
          %7227 = vmatprep.subr.mxu0 0.0
          %7228 = vmatpush1.msra.mxu0 0.0
          %7229 = vmatprep.subr.mxu0 0.0
          %7230 = vmatpush1.msra.mxu0 0.0
          %7231 = vmatprep.subr.mxu0 0.0
          %7232 = vmatpush1.msra.mxu0 0.0
          %7233 = vmatprep.subr.mxu0 0.0
          %7234 = vmatpush1.msra.mxu0 0.0
          %7235 = vmatprep.subr.mxu0 0.0
          %7236 = vmatpush1.msra.mxu0 0.0
          %7237 = vmatprep.subr.mxu0 0.0
          %7238 = vmatpush1.msra.mxu0 0.0
          %7239 = vmatprep.subr.mxu0 0.0
          %7240 = vmatpush1.msra.mxu0 0.0
          %7241 = vmatprep.subr.mxu0 0.0
          %7242 = vmatpush1.msra.mxu0 0.0
          %7243 = vmatprep.subr.mxu0 0.0
          %7244 = vmatpush1.msra.mxu0 0.0
          %7245 = vmatprep.subr.mxu0 0.0
          %7246 = vmatpush1.msra.mxu0 0.0
          %7247 = vmatprep.subr.mxu0 0.0
          %7248 = vmatpush1.msra.mxu0 0.0
          %7249 = vmatprep.subr.mxu0 0.0
          %7250 = vmatpush1.msra.mxu0 0.0
          %7251 = vmatprep.subr.mxu0 0.0
          %7252 = vmatpush1.msra.mxu0 0.0
          %7253 = vmatprep.subr.mxu0 0.0
          %7254 = vmatpush1.msra.mxu0 0.0
          %7255 = vmatprep.subr.mxu0 0.0
          %7256 = vmatpush1.msra.mxu0 0.0
          %7257 = vmatprep.subr.mxu0 0.0
          %7258 = vmatpush1.msra.mxu0 0.0
          %7259 = vmatprep.subr.mxu0 0.0
          %7260 = vmatpush1.msra.mxu0 0.0
          %7261 = vmatprep.subr.mxu0 0.0
          %7262 = vmatpush1.msra.mxu0 0.0
          %7263 = vmatprep.subr.mxu0 0.0
          %7264 = vmatpush1.msra.mxu0 0.0
          %7265 = vmatprep.subr.mxu0 0.0
          %7266 = vmatpush1.msra.mxu0 0.0
          %7267 = vmatprep.mubr.f32.mxu0 0.0
          %7268 = vmatmul.mubr.f32.gmra.mrb[0].mxu0 %v7189
          %v7269 = vpop.f32.mrb[0].mxu0
          %v7270 = vadd.f32 0.0, %v7269
          %v7271 = vpop.f32.mrb[0].mxu0
          %7272 = vmatprep.mubr.f32.mxu0 0.0
          %7273 = vmatmul.mubr.f32.gmra.mrb[0].mxu0 %v7192
          %v7274 = vpop.f32.mrb[0].mxu0
          %v7275 = vadd.f32 0.0, %v7274
          %v7276 = vpop.f32.mrb[0].mxu0
          %7277 = vmatprep.mubr.f32.mxu0 0.0
          %7278 = vmatmul.mubr.f32.gmra.mrb[0].mxu0 %v7195
          %v7279 = vpop.f32.mrb[0].mxu0
          %v7280 = vadd.f32 0.0, %v7279
          %v7281 = vpop.f32.mrb[0].mxu0
          %7282 = vmatprep.mubr.f32.mxu0 0.0
          %7283 = vmatmul.mubr.f32.gmra.mrb[0].mxu0 %v7198
          %v7284 = vpop.f32.mrb[0].mxu0
          %v7285 = vadd.f32 0.0, %v7284
          %v7286 = vpop.f32.mrb[0].mxu0
          %7287 = vmatprep.mubr.f32.mxu0 0.0
          %7288 = vmatmul.mubr.f32.gmra.mrb[0].mxu0 %v7201
          %v7289 = vpop.f32.mrb[0].mxu0
          %v7290 = vadd.f32 0.0, %v7289
          %v7291 = vpop.f32.mrb[0].mxu0
          %7292 = vdwg.mxu0
          %7293 = vmatprep.subr.mxu0 0.0
          %7294 = vmatpush1.msra.mxu0 %v7130
          %7295 = vmatprep.subr.mxu0 0.0
          %7296 = vmatpush1.msra.mxu0 %v7135
          %7297 = vmatprep.subr.mxu0 0.0
          %7298 = vmatpush1.msra.mxu0 %v7140
          %7299 = vmatprep.subr.mxu0 0.0
          %7300 = vmatpush1.msra.mxu0 %v7145
          %7301 = vmatprep.subr.mxu0 0.0
          %7302 = vmatpush1.msra.mxu0 %v7150
          %7303 = vmatprep.subr.mxu0 0.0
          %7304 = vmatpush1.msra.mxu0 %v7155
          %7305 = vmatprep.subr.mxu0 0.0
          %7306 = vmatpush1.msra.mxu0 0.0
          %7307 = vmatprep.subr.mxu0 0.0
          %7308 = vmatpush1.msra.mxu0 0.0
          %7309 = vmatprep.subr.mxu0 0.0
          %7310 = vmatpush1.msra.mxu0 0.0
          %7311 = vmatprep.subr.mxu0 0.0
          %7312 = vmatpush1.msra.mxu0 0.0
          %7313 = vmatprep.subr.mxu0 0.0
          %7314 = vmatpush1.msra.mxu0 0.0
          %7315 = vmatprep.subr.mxu0 0.0
          %7316 = vmatpush1.msra.mxu0 0.0
          %7317 = vmatprep.subr.mxu0 0.0
          %7318 = vmatpush1.msra.mxu0 0.0
          %7319 = vmatprep.subr.mxu0 0.0
          %7320 = vmatpush1.msra.mxu0 0.0
          %7321 = vmatprep.subr.mxu0 0.0
          %7322 = vmatpush1.msra.mxu0 0.0
          %7323 = vmatprep.subr.mxu0 0.0
          %7324 = vmatpush1.msra.mxu0 0.0
          %7325 = vmatprep.subr.mxu0 0.0
          %7326 = vmatpush1.msra.mxu0 0.0
          %7327 = vmatprep.subr.mxu0 0.0
          %7328 = vmatpush1.msra.mxu0 0.0
          %7329 = vmatprep.subr.mxu0 0.0
          %7330 = vmatpush1.msra.mxu0 0.0
          %7331 = vmatprep.subr.mxu0 0.0
          %7332 = vmatpush1.msra.mxu0 0.0
          %7333 = vmatprep.subr.mxu0 0.0
          %7334 = vmatpush1.msra.mxu0 0.0
          %7335 = vmatprep.subr.mxu0 0.0
          %7336 = vmatpush1.msra.mxu0 0.0
          %7337 = vmatprep.subr.mxu0 0.0
          %7338 = vmatpush1.msra.mxu0 0.0
          %7339 = vmatprep.subr.mxu0 0.0
          %7340 = vmatpush1.msra.mxu0 0.0
          %7341 = vmatprep.subr.mxu0 0.0
          %7342 = vmatpush1.msra.mxu0 0.0
          %7343 = vmatprep.subr.mxu0 0.0
          %7344 = vmatpush1.msra.mxu0 0.0
          %7345 = vmatprep.subr.mxu0 0.0
          %7346 = vmatpush1.msra.mxu0 0.0
          %7347 = vmatprep.subr.mxu0 0.0
          %7348 = vmatpush1.msra.mxu0 0.0
          %7349 = vmatprep.subr.mxu0 0.0
          %7350 = vmatpush1.msra.mxu0 0.0
          %7351 = vmatprep.subr.mxu0 0.0
          %7352 = vmatpush1.msra.mxu0 0.0
          %7353 = vmatprep.subr.mxu0 0.0
          %7354 = vmatpush1.msra.mxu0 0.0
          %7355 = vmatprep.subr.mxu0 0.0
          %7356 = vmatpush1.msra.mxu0 0.0
          %7357 = vmatprep.mubr.f32.mxu0 0.0
          %7358 = vmatmul.mubr.f32.gmra.mrb[0].mxu0 %v7189
          %v7359 = vpop.f32.mrb[0].mxu0
          %v7360 = vadd.f32 0.0, %v7359
          %v7361 = vpop.f32.mrb[0].mxu0
          %7362 = vmatprep.mubr.f32.mxu0 0.0
          %7363 = vmatmul.mubr.f32.gmra.mrb[0].mxu0 %v7192
          %v7364 = vpop.f32.mrb[0].mxu0
          %v7365 = vadd.f32 0.0, %v7364
          %v7366 = vpop.f32.mrb[0].mxu0
          %7367 = vmatprep.mubr.f32.mxu0 0.0
          %7368 = vmatmul.mubr.f32.gmra.mrb[0].mxu0 %v7195
          %v7369 = vpop.f32.mrb[0].mxu0
          %v7370 = vadd.f32 0.0, %v7369
          %v7371 = vpop.f32.mrb[0].mxu0
          %7372 = vmatprep.mubr.f32.mxu0 0.0
          %7373 = vmatmul.mubr.f32.gmra.mrb[0].mxu0 %v7198
          %v7374 = vpop.f32.mrb[0].mxu0
          %v7375 = vadd.f32 0.0, %v7374
          %v7376 = vpop.f32.mrb[0].mxu0
          %7377 = vmatprep.mubr.f32.mxu0 0.0
          %7378 = vmatmul.mubr.f32.gmra.mrb[0].mxu0 %v7201
          %v7379 = vpop.f32.mrb[0].mxu0
          %v7380 = vadd.f32 0.0, %v7379
          %v7381 = vpop.f32.mrb[0].mxu0
          %7382 = vdwg.mxu0
          %7383 = vmatprep.subr.mxu0 0.0
          %7384 = vmatpush1.msra.mxu0 %v7169
          %7385 = vmatprep.subr.mxu0 0.0
          %7386 = vmatpush1.msra.mxu0 %v7170
          %7387 = vmatprep.subr.mxu0 0.0
          %7388 = vmatpush1.msra.mxu0 %v7171
          %7389 = vmatprep.subr.mxu0 0.0
          %7390 = vmatpush1.msra.mxu0 %v7172
          %7391 = vmatprep.subr.mxu0 0.0
          %7392 = vmatpush1.msra.mxu0 %v7173
          %7393 = vmatprep.subr.mxu0 0.0
          %7394 = vmatpush1.msra.mxu0 %v7174
          %7395 = vmatprep.subr.mxu0 0.0
          %7396 = vmatpush1.msra.mxu0 0.0
          %7397 = vmatprep.subr.mxu0 0.0
          %7398 = vmatpush1.msra.mxu0 0.0
          %7399 = vmatprep.subr.mxu0 0.0
          %7400 = vmatpush1.msra.mxu0 0.0
          %7401 = vmatprep.subr.mxu0 0.0
          %7402 = vmatpush1.msra.mxu0 0.0
          %7403 = vmatprep.subr.mxu0 0.0
          %7404 = vmatpush1.msra.mxu0 0.0
          %7405 = vmatprep.subr.mxu0 0.0
          %7406 = vmatpush1.msra.mxu0 0.0
          %7407 = vmatprep.subr.mxu0 0.0
          %7408 = vmatpush1.msra.mxu0 0.0
          %7409 = vmatprep.subr.mxu0 0.0
          %7410 = vmatpush1.msra.mxu0 0.0
          %7411 = vmatprep.subr.mxu0 0.0
          %7412 = vmatpush1.msra.mxu0 0.0
          %7413 = vmatprep.subr.mxu0 0.0
          %7414 = vmatpush1.msra.mxu0 0.0
          %7415 = vmatprep.subr.mxu0 0.0
          %7416 = vmatpush1.msra.mxu0 0.0
          %7417 = vmatprep.subr.mxu0 0.0
          %7418 = vmatpush1.msra.mxu0 0.0
          %7419 = vmatprep.subr.mxu0 0.0
          %7420 = vmatpush1.msra.mxu0 0.0
          %7421 = vmatprep.subr.mxu0 0.0
          %7422 = vmatpush1.msra.mxu0 0.0
          %7423 = vmatprep.subr.mxu0 0.0
          %7424 = vmatpush1.msra.mxu0 0.0
          %7425 = vmatprep.subr.mxu0 0.0
          %7426 = vmatpush1.msra.mxu0 0.0
          %7427 = vmatprep.subr.mxu0 0.0
          %7428 = vmatpush1.msra.mxu0 0.0
          %7429 = vmatprep.subr.mxu0 0.0
          %7430 = vmatpush1.msra.mxu0 0.0
          %7431 = vmatprep.subr.mxu0 0.0
          %7432 = vmatpush1.msra.mxu0 0.0
          %7433 = vmatprep.subr.mxu0 0.0
          %7434 = vmatpush1.msra.mxu0 0.0
          %7435 = vmatprep.subr.mxu0 0.0
          %7436 = vmatpush1.msra.mxu0 0.0
          %7437 = vmatprep.subr.mxu0 0.0
          %7438 = vmatpush1.msra.mxu0 0.0
          %7439 = vmatprep.subr.mxu0 0.0
          %7440 = vmatpush1.msra.mxu0 0.0
          %7441 = vmatprep.subr.mxu0 0.0
          %7442 = vmatpush1.msra.mxu0 0.0
          %7443 = vmatprep.subr.mxu0 0.0
          %7444 = vmatpush1.msra.mxu0 0.0
          %7445 = vmatprep.subr.mxu0 0.0
          %7446 = vmatpush1.msra.mxu0 0.0
          %7447 = vmatprep.mubr.f32.mxu0 0.0
          %7448 = vmatmul.mubr.f32.gmra.mrb[0].mxu0 %v7189
          %v7449 = vpop.f32.mrb[0].mxu0
          %v7450 = vadd.f32 0.0, %v7449
          %v7451 = vpop.f32.mrb[0].mxu0
          %7452 = vmatprep.mubr.f32.mxu0 0.0
          %7453 = vmatmul.mubr.f32.gmra.mrb[0].mxu0 %v7192
          %v7454 = vpop.f32.mrb[0].mxu0
          %v7455 = vadd.f32 0.0, %v7454
          %v7456 = vpop.f32.mrb[0].mxu0
          %7457 = vmatprep.mubr.f32.mxu0 0.0
          %7458 = vmatmul.mubr.f32.gmra.mrb[0].mxu0 %v7195
          %v7459 = vpop.f32.mrb[0].mxu0
          %v7460 = vadd.f32 0.0, %v7459
          %v7461 = vpop.f32.mrb[0].mxu0
          %7462 = vmatprep.mubr.f32.mxu0 0.0
          %7463 = vmatmul.mubr.f32.gmra.mrb[0].mxu0 %v7198
          %v7464 = vpop.f32.mrb[0].mxu0
          %v7465 = vadd.f32 0.0, %v7464
          %v7466 = vpop.f32.mrb[0].mxu0
          %7467 = vmatprep.mubr.f32.mxu0 0.0
          %7468 = vmatmul.mubr.f32.gmra.mrb[0].mxu0 %v7201
          %v7469 = vpop.f32.mrb[0].mxu0
          %v7470 = vadd.f32 0.0, %v7469
          %v7471 = vpop.f32.mrb[0].mxu0
          %7472 = vdwg.mxu0
          %7473 = vmatprep.subr.mxu0 0.0
          %7474 = vmatpush1.msra.mxu0 %v7175
          %7475 = vmatprep.subr.mxu0 0.0
          %7476 = vmatpush1.msra.mxu0 %v7176
          %7477 = vmatprep.subr.mxu0 0.0
          %7478 = vmatpush1.msra.mxu0 %v7177
          %7479 = vmatprep.subr.mxu0 0.0
          %7480 = vmatpush1.msra.mxu0 %v7178
          %7481 = vmatprep.subr.mxu0 0.0
          %7482 = vmatpush1.msra.mxu0 %v7179
          %7483 = vmatprep.subr.mxu0 0.0
          %7484 = vmatpush1.msra.mxu0 %v7180
          %7485 = vmatprep.subr.mxu0 0.0
          %7486 = vmatpush1.msra.mxu0 0.0
          %7487 = vmatprep.subr.mxu0 0.0
          %7488 = vmatpush1.msra.mxu0 0.0
          %7489 = vmatprep.subr.mxu0 0.0
          %7490 = vmatpush1.msra.mxu0 0.0
          %7491 = vmatprep.subr.mxu0 0.0
          %7492 = vmatpush1.msra.mxu0 0.0
          %7493 = vmatprep.subr.mxu0 0.0
          %7494 = vmatpush1.msra.mxu0 0.0
          %7495 = vmatprep.subr.mxu0 0.0
          %7496 = vmatpush1.msra.mxu0 0.0
          %7497 = vmatprep.subr.mxu0 0.0
          %7498 = vmatpush1.msra.mxu0 0.0
          %7499 = vmatprep.subr.mxu0 0.0
          %7500 = vmatpush1.msra.mxu0 0.0
          %7501 = vmatprep.subr.mxu0 0.0
          %7502 = vmatpush1.msra.mxu0 0.0
          %7503 = vmatprep.subr.mxu0 0.0
          %7504 = vmatpush1.msra.mxu0 0.0
          %7505 = vmatprep.subr.mxu0 0.0
          %7506 = vmatpush1.msra.mxu0 0.0
          %7507 = vmatprep.subr.mxu0 0.0
          %7508 = vmatpush1.msra.mxu0 0.0
          %7509 = vmatprep.subr.mxu0 0.0
          %7510 = vmatpush1.msra.mxu0 0.0
          %7511 = vmatprep.subr.mxu0 0.0
          %7512 = vmatpush1.msra.mxu0 0.0
          %7513 = vmatprep.subr.mxu0 0.0
          %7514 = vmatpush1.msra.mxu0 0.0
          %7515 = vmatprep.subr.mxu0 0.0
          %7516 = vmatpush1.msra.mxu0 0.0
          %7517 = vmatprep.subr.mxu0 0.0
          %7518 = vmatpush1.msra.mxu0 0.0
          %7519 = vmatprep.subr.mxu0 0.0
          %7520 = vmatpush1.msra.mxu0 0.0
          %7521 = vmatprep.subr.mxu0 0.0
          %7522 = vmatpush1.msra.mxu0 0.0
          %7523 = vmatprep.subr.mxu0 0.0
          %7524 = vmatpush1.msra.mxu0 0.0
          %7525 = vmatprep.subr.mxu0 0.0
          %7526 = vmatpush1.msra.mxu0 0.0
          %7527 = vmatprep.subr.mxu0 0.0
          %7528 = vmatpush1.msra.mxu0 0.0
          %7529 = vmatprep.subr.mxu0 0.0
          %7530 = vmatpush1.msra.mxu0 0.0
          %7531 = vmatprep.subr.mxu0 0.0
          %7532 = vmatpush1.msra.mxu0 0.0
          %7533 = vmatprep.subr.mxu0 0.0
          %7534 = vmatpush1.msra.mxu0 0.0
          %7535 = vmatprep.subr.mxu0 0.0
          %7536 = vmatpush1.msra.mxu0 0.0
          %7537 = vmatprep.mubr.f32.mxu0 0.0
          %7538 = vmatmul.mubr.f32.gmra.mrb[0].mxu0 %v7189
          %v7539 = vpop.f32.mrb[0].mxu0
          %v7540 = vadd.f32 0.0, %v7539
          %v7541 = vpop.f32.mrb[0].mxu0
          %7542 = vmatprep.mubr.f32.mxu0 0.0
          %7543 = vmatmul.mubr.f32.gmra.mrb[0].mxu0 %v7192
          %v7544 = vpop.f32.mrb[0].mxu0
          %v7545 = vadd.f32 0.0, %v7544
          %v7546 = vpop.f32.mrb[0].mxu0
          %7547 = vmatprep.mubr.f32.mxu0 0.0
          %7548 = vmatmul.mubr.f32.gmra.mrb[0].mxu0 %v7195
          %v7549 = vpop.f32.mrb[0].mxu0
          %v7550 = vadd.f32 0.0, %v7549
          %v7551 = vpop.f32.mrb[0].mxu0
          %7552 = vmatprep.mubr.f32.mxu0 0.0
          %7553 = vmatmul.mubr.f32.gmra.mrb[0].mxu0 %v7198
          %v7554 = vpop.f32.mrb[0].mxu0
          %v7555 = vadd.f32 0.0, %v7554
          %v7556 = vpop.f32.mrb[0].mxu0
          %7557 = vmatprep.mubr.f32.mxu0 0.0
          %7558 = vmatmul.mubr.f32.gmra.mrb[0].mxu0 %v7201
          %v7559 = vpop.f32.mrb[0].mxu0
          %v7560 = vadd.f32 0.0, %v7559
          %v7561 = vpop.f32.mrb[0].mxu0
          %7562 = vdwg.mxu0
          %7563 = vmatprep.subr.mxu0 0.0
          %7564 = vmatpush1.msra.mxu0 %v7181
          %7565 = vmatprep.subr.mxu0 0.0
          %7566 = vmatpush1.msra.mxu0 %v7182
          %7567 = vmatprep.subr.mxu0 0.0
          %7568 = vmatpush1.msra.mxu0 %v7183
          %7569 = vmatprep.subr.mxu0 0.0
          %7570 = vmatpush1.msra.mxu0 %v7184
          %7571 = vmatprep.subr.mxu0 0.0
          %7572 = vmatpush1.msra.mxu0 %v7185
          %7573 = vmatprep.subr.mxu0 0.0
          %7574 = vmatpush1.msra.mxu0 %v7186
          %7575 = vmatprep.subr.mxu0 0.0
          %7576 = vmatpush1.msra.mxu0 0.0
          %7577 = vmatprep.subr.mxu0 0.0
          %7578 = vmatpush1.msra.mxu0 0.0
          %7579 = vmatprep.subr.mxu0 0.0
          %7580 = vmatpush1.msra.mxu0 0.0
          %7581 = vmatprep.subr.mxu0 0.0
          %7582 = vmatpush1.msra.mxu0 0.0
          %7583 = vmatprep.subr.mxu0 0.0
          %7584 = vmatpush1.msra.mxu0 0.0
          %7585 = vmatprep.subr.mxu0 0.0
          %7586 = vmatpush1.msra.mxu0 0.0
          %7587 = vmatprep.subr.mxu0 0.0
          %7588 = vmatpush1.msra.mxu0 0.0
          %7589 = vmatprep.subr.mxu0 0.0
          %7590 = vmatpush1.msra.mxu0 0.0
          %7591 = vmatprep.subr.mxu0 0.0
          %7592 = vmatpush1.msra.mxu0 0.0
          %7593 = vmatprep.subr.mxu0 0.0
          %7594 = vmatpush1.msra.mxu0 0.0
          %7595 = vmatprep.subr.mxu0 0.0
          %7596 = vmatpush1.msra.mxu0 0.0
          %7597 = vmatprep.subr.mxu0 0.0
          %7598 = vmatpush1.msra.mxu0 0.0
          %7599 = vmatprep.subr.mxu0 0.0
          %7600 = vmatpush1.msra.mxu0 0.0
          %7601 = vmatprep.subr.mxu0 0.0
          %7602 = vmatpush1.msra.mxu0 0.0
          %7603 = vmatprep.subr.mxu0 0.0
          %7604 = vmatpush1.msra.mxu0 0.0
          %7605 = vmatprep.subr.mxu0 0.0
          %7606 = vmatpush1.msra.mxu0 0.0
          %7607 = vmatprep.subr.mxu0 0.0
          %7608 = vmatpush1.msra.mxu0 0.0
          %7609 = vmatprep.subr.mxu0 0.0
          %7610 = vmatpush1.msra.mxu0 0.0
          %7611 = vmatprep.subr.mxu0 0.0
          %7612 = vmatpush1.msra.mxu0 0.0
          %7613 = vmatprep.subr.mxu0 0.0
          %7614 = vmatpush1.msra.mxu0 0.0
          %7615 = vmatprep.subr.mxu0 0.0
          %7616 = vmatpush1.msra.mxu0 0.0
          %7617 = vmatprep.subr.mxu0 0.0
          %7618 = vmatpush1.msra.mxu0 0.0
          %7619 = vmatprep.subr.mxu0 0.0
          %7620 = vmatpush1.msra.mxu0 0.0
          %7621 = vmatprep.subr.mxu0 0.0
          %7622 = vmatpush1.msra.mxu0 0.0
          %7623 = vmatprep.subr.mxu0 0.0
          %7624 = vmatpush1.msra.mxu0 0.0
          %7625 = vmatprep.subr.mxu0 0.0
          %7626 = vmatpush1.msra.mxu0 0.0
          %7627 = vmatprep.mubr.f32.mxu0 0.0
          %7628 = vmatmul.mubr.f32.gmra.mrb[0].mxu0 %v7189
          %v7629 = vpop.f32.mrb[0].mxu0
          %v7630 = vadd.f32 0.0, %v7629
          %v7631 = vpop.f32.mrb[0].mxu0
          %7632 = vmatprep.mubr.f32.mxu0 0.0
          %7633 = vmatmul.mubr.f32.gmra.mrb[0].mxu0 %v7192
          %v7634 = vpop.f32.mrb[0].mxu0
          %v7635 = vadd.f32 0.0, %v7634
          %v7636 = vpop.f32.mrb[0].mxu0
          %7637 = vmatprep.mubr.f32.mxu0 0.0
          %7638 = vmatmul.mubr.f32.gmra.mrb[0].mxu0 %v7195
          %v7639 = vpop.f32.mrb[0].mxu0
          %v7640 = vadd.f32 0.0, %v7639
          %v7641 = vpop.f32.mrb[0].mxu0
          %7642 = vmatprep.mubr.f32.mxu0 0.0
          %7643 = vmatmul.mubr.f32.gmra.mrb[0].mxu0 %v7198
          %v7644 = vpop.f32.mrb[0].mxu0
          %v7645 = vadd.f32 0.0, %v7644
          %v7646 = vpop.f32.mrb[0].mxu0
          %7647 = vmatprep.mubr.f32.mxu0 0.0
          %7648 = vmatmul.mubr.f32.gmra.mrb[0].mxu0 %v7201
          %v7649 = vpop.f32.mrb[0].mxu0
          %v7650 = vadd.f32 0.0, %v7649
          %v7651 = vpop.f32.mrb[0].mxu0
          %7652 = vdwg.mxu0
          %v7654 = vsel %vm7187, %v7270, 0
          %v7657 = vsel %vm7187, %v7275, 0
          %v7660 = vsel %vm7187, %v7280, 0
          %v7663 = vsel %vm7187, %v7285, 0
          %v7666 = vsel %vm7187, %v7290, 0
          %v7669 = vsel %vm7187, %v7360, 0
          %v7672 = vsel %vm7187, %v7365, 0
          %v7675 = vsel %vm7187, %v7370, 0
          %v7678 = vsel %vm7187, %v7375, 0
          %v7681 = vsel %vm7187, %v7380, 0
          %v7684 = vsel %vm7187, %v7450, 0
          %v7687 = vsel %vm7187, %v7455, 0
          %v7690 = vsel %vm7187, %v7460, 0
          %v7693 = vsel %vm7187, %v7465, 0
          %v7696 = vsel %vm7187, %v7470, 0
          %v7699 = vsel %vm7187, %v7540, 0
          %v7702 = vsel %vm7187, %v7545, 0
          %v7705 = vsel %vm7187, %v7550, 0
          %v7708 = vsel %vm7187, %v7555, 0
          %v7711 = vsel %vm7187, %v7560, 0
          %v7714 = vsel %vm7187, %v7630, 0
          %v7717 = vsel %vm7187, %v7635, 0
          %v7720 = vsel %vm7187, %v7640, 0
          %v7723 = vsel %vm7187, %v7645, 0
          %v7726 = vsel %vm7187, %v7650, 0
          %7728 = vmatprep.subr.mxu0 0.0
          %7729 = vmatpush1.msra.mxu0 %v7163
          %7730 = vmatprep.subr.mxu0 0.0
          %7731 = vmatpush1.msra.mxu0 %v7164
          %7732 = vmatprep.subr.mxu0 0.0
          %7733 = vmatpush1.msra.mxu0 %v7165
          %7734 = vmatprep.subr.mxu0 0.0
          %7735 = vmatpush1.msra.mxu0 %v7166
          %7736 = vmatprep.subr.mxu0 0.0
          %7737 = vmatpush1.msra.mxu0 %v7167
          %7738 = vmatprep.subr.mxu0 0.0
          %7739 = vmatpush1.msra.mxu0 %v7168
          %7740 = vmatprep.subr.mxu0 0.0
          %7741 = vmatpush1.msra.mxu0 0.0
          %7742 = vmatprep.subr.mxu0 0.0
          %7743 = vmatpush1.msra.mxu0 0.0
          %7744 = vmatprep.subr.mxu0 0.0
          %7745 = vmatpush1.msra.mxu0 0.0
          %7746 = vmatprep.subr.mxu0 0.0
          %7747 = vmatpush1.msra.mxu0 0.0
          %7748 = vmatprep.subr.mxu0 0.0
          %7749 = vmatpush1.msra.mxu0 0.0
          %7750 = vmatprep.subr.mxu0 0.0
          %7751 = vmatpush1.msra.mxu0 0.0
          %7752 = vmatprep.subr.mxu0 0.0
          %7753 = vmatpush1.msra.mxu0 0.0
          %7754 = vmatprep.subr.mxu0 0.0
          %7755 = vmatpush1.msra.mxu0 0.0
          %7756 = vmatprep.subr.mxu0 0.0
          %7757 = vmatpush1.msra.mxu0 0.0
          %7758 = vmatprep.subr.mxu0 0.0
          %7759 = vmatpush1.msra.mxu0 0.0
          %7760 = vmatprep.subr.mxu0 0.0
          %7761 = vmatpush1.msra.mxu0 0.0
          %7762 = vmatprep.subr.mxu0 0.0
          %7763 = vmatpush1.msra.mxu0 0.0
          %7764 = vmatprep.subr.mxu0 0.0
          %7765 = vmatpush1.msra.mxu0 0.0
          %7766 = vmatprep.subr.mxu0 0.0
          %7767 = vmatpush1.msra.mxu0 0.0
          %7768 = vmatprep.subr.mxu0 0.0
          %7769 = vmatpush1.msra.mxu0 0.0
          %7770 = vmatprep.subr.mxu0 0.0
          %7771 = vmatpush1.msra.mxu0 0.0
          %7772 = vmatprep.subr.mxu0 0.0
          %7773 = vmatpush1.msra.mxu0 0.0
          %7774 = vmatprep.subr.mxu0 0.0
          %7775 = vmatpush1.msra.mxu0 0.0
          %7776 = vmatprep.subr.mxu0 0.0
          %7777 = vmatpush1.msra.mxu0 0.0
          %7778 = vmatprep.subr.mxu0 0.0
          %7779 = vmatpush1.msra.mxu0 0.0
          %7780 = vmatprep.subr.mxu0 0.0
          %7781 = vmatpush1.msra.mxu0 0.0
          %7782 = vmatprep.subr.mxu0 0.0
          %7783 = vmatpush1.msra.mxu0 0.0
          %7784 = vmatprep.subr.mxu0 0.0
          %7785 = vmatpush1.msra.mxu0 0.0
          %7786 = vmatprep.subr.mxu0 0.0
          %7787 = vmatpush1.msra.mxu0 0.0
          %7788 = vmatprep.subr.mxu0 0.0
          %7789 = vmatpush1.msra.mxu0 0.0
          %7790 = vmatprep.subr.mxu0 0.0
          %7791 = vmatpush1.msra.mxu0 0.0
          %7792 = vmatprep.mubr.f32.mxu0 0.0
          %7793 = vmatmul.mubr.f32.gmra.mrb[0].mxu0 %v7654
          %v7794 = vpop.f32.mrb[0].mxu0
          %v7795 = vadd.f32 0.0, %v7794
          %v7796 = vpop.f32.mrb[0].mxu0
          %7797 = vmatprep.mubr.f32.mxu0 0.0
          %7798 = vmatmul.mubr.f32.gmra.mrb[0].mxu0 %v7657
          %v7799 = vpop.f32.mrb[0].mxu0
          %v7800 = vadd.f32 0.0, %v7799
          %v7801 = vpop.f32.mrb[0].mxu0
          %7802 = vmatprep.mubr.f32.mxu0 0.0
          %7803 = vmatmul.mubr.f32.gmra.mrb[0].mxu0 %v7660
          %v7804 = vpop.f32.mrb[0].mxu0
          %v7805 = vadd.f32 0.0, %v7804
          %v7806 = vpop.f32.mrb[0].mxu0
          %7807 = vmatprep.mubr.f32.mxu0 0.0
          %7808 = vmatmul.mubr.f32.gmra.mrb[0].mxu0 %v7663
          %v7809 = vpop.f32.mrb[0].mxu0
          %v7810 = vadd.f32 0.0, %v7809
          %v7811 = vpop.f32.mrb[0].mxu0
          %7812 = vmatprep.mubr.f32.mxu0 0.0
          %7813 = vmatmul.mubr.f32.gmra.mrb[0].mxu0 %v7666
          %v7814 = vpop.f32.mrb[0].mxu0
          %v7815 = vadd.f32 0.0, %v7814
          %v7816 = vpop.f32.mrb[0].mxu0
          %7817 = vmatprep.mubr.f32.mxu0 0.0
          %7818 = vmatmul.mubr.f32.gmra.mrb[0].mxu0 %v7669
          %v7819 = vpop.f32.mrb[0].mxu0
          %v7820 = vadd.f32 0.0, %v7819
          %v7821 = vpop.f32.mrb[0].mxu0
          %7822 = vmatprep.mubr.f32.mxu0 0.0
          %7823 = vmatmul.mubr.f32.gmra.mrb[0].mxu0 %v7672
          %v7824 = vpop.f32.mrb[0].mxu0
          %v7825 = vadd.f32 0.0, %v7824
          %v7826 = vpop.f32.mrb[0].mxu0
          %7827 = vmatprep.mubr.f32.mxu0 0.0
          %7828 = vmatmul.mubr.f32.gmra.mrb[0].mxu0 %v7675
          %v7829 = vpop.f32.mrb[0].mxu0
          %v7830 = vadd.f32 0.0, %v7829
          %v7831 = vpop.f32.mrb[0].mxu0
          %7832 = vmatprep.mubr.f32.mxu0 0.0
          %7833 = vmatmul.mubr.f32.gmra.mrb[0].mxu0 %v7678
          %v7834 = vpop.f32.mrb[0].mxu0
          %v7835 = vadd.f32 0.0, %v7834
          %v7836 = vpop.f32.mrb[0].mxu0
          %7837 = vmatprep.mubr.f32.mxu0 0.0
          %7838 = vmatmul.mubr.f32.gmra.mrb[0].mxu0 %v7681
          %v7839 = vpop.f32.mrb[0].mxu0
          %v7840 = vadd.f32 0.0, %v7839
          %v7841 = vpop.f32.mrb[0].mxu0
          %7842 = vmatprep.mubr.f32.mxu0 0.0
          %7843 = vmatmul.mubr.f32.gmra.mrb[0].mxu0 %v7684
          %v7844 = vpop.f32.mrb[0].mxu0
          %v7845 = vadd.f32 0.0, %v7844
          %v7846 = vpop.f32.mrb[0].mxu0
          %7847 = vmatprep.mubr.f32.mxu0 0.0
          %7848 = vmatmul.mubr.f32.gmra.mrb[0].mxu0 %v7687
          %v7849 = vpop.f32.mrb[0].mxu0
          %v7850 = vadd.f32 0.0, %v7849
          %v7851 = vpop.f32.mrb[0].mxu0
          %7852 = vmatprep.mubr.f32.mxu0 0.0
          %7853 = vmatmul.mubr.f32.gmra.mrb[0].mxu0 %v7690
          %v7854 = vpop.f32.mrb[0].mxu0
          %v7855 = vadd.f32 0.0, %v7854
          %v7856 = vpop.f32.mrb[0].mxu0
          %7857 = vmatprep.mubr.f32.mxu0 0.0
          %7858 = vmatmul.mubr.f32.gmra.mrb[0].mxu0 %v7693
          %v7859 = vpop.f32.mrb[0].mxu0
          %v7860 = vadd.f32 0.0, %v7859
          %v7861 = vpop.f32.mrb[0].mxu0
          %7862 = vmatprep.mubr.f32.mxu0 0.0
          %7863 = vmatmul.mubr.f32.gmra.mrb[0].mxu0 %v7696
          %v7864 = vpop.f32.mrb[0].mxu0
          %v7865 = vadd.f32 0.0, %v7864
          %v7866 = vpop.f32.mrb[0].mxu0
          %7867 = vmatprep.mubr.f32.mxu0 0.0
          %7868 = vmatmul.mubr.f32.gmra.mrb[0].mxu0 %v7699
          %v7869 = vpop.f32.mrb[0].mxu0
          %v7870 = vadd.f32 0.0, %v7869
          %v7871 = vpop.f32.mrb[0].mxu0
          %7872 = vmatprep.mubr.f32.mxu0 0.0
          %7873 = vmatmul.mubr.f32.gmra.mrb[0].mxu0 %v7702
          %v7874 = vpop.f32.mrb[0].mxu0
          %v7875 = vadd.f32 0.0, %v7874
          %v7876 = vpop.f32.mrb[0].mxu0
          %7877 = vmatprep.mubr.f32.mxu0 0.0
          %7878 = vmatmul.mubr.f32.gmra.mrb[0].mxu0 %v7705
          %v7879 = vpop.f32.mrb[0].mxu0
          %v7880 = vadd.f32 0.0, %v7879
          %v7881 = vpop.f32.mrb[0].mxu0
          %7882 = vmatprep.mubr.f32.mxu0 0.0
          %7883 = vmatmul.mubr.f32.gmra.mrb[0].mxu0 %v7708
          %v7884 = vpop.f32.mrb[0].mxu0
          %v7885 = vadd.f32 0.0, %v7884
          %v7886 = vpop.f32.mrb[0].mxu0
          %7887 = vmatprep.mubr.f32.mxu0 0.0
          %7888 = vmatmul.mubr.f32.gmra.mrb[0].mxu0 %v7711
          %v7889 = vpop.f32.mrb[0].mxu0
          %v7890 = vadd.f32 0.0, %v7889
          %v7891 = vpop.f32.mrb[0].mxu0
          %7892 = vmatprep.mubr.f32.mxu0 0.0
          %7893 = vmatmul.mubr.f32.gmra.mrb[0].mxu0 %v7714
          %v7894 = vpop.f32.mrb[0].mxu0
          %v7895 = vadd.f32 0.0, %v7894
          %v7896 = vpop.f32.mrb[0].mxu0
          %7897 = vmatprep.mubr.f32.mxu0 0.0
          %7898 = vmatmul.mubr.f32.gmra.mrb[0].mxu0 %v7717
          %v7899 = vpop.f32.mrb[0].mxu0
          %v7900 = vadd.f32 0.0, %v7899
          %v7901 = vpop.f32.mrb[0].mxu0
          %7902 = vmatprep.mubr.f32.mxu0 0.0
          %7903 = vmatmul.mubr.f32.gmra.mrb[0].mxu0 %v7720
          %v7904 = vpop.f32.mrb[0].mxu0
          %v7905 = vadd.f32 0.0, %v7904
          %v7906 = vpop.f32.mrb[0].mxu0
          %7907 = vmatprep.mubr.f32.mxu0 0.0
          %7908 = vmatmul.mubr.f32.gmra.mrb[0].mxu0 %v7723
          %v7909 = vpop.f32.mrb[0].mxu0
          %v7910 = vadd.f32 0.0, %v7909
          %v7911 = vpop.f32.mrb[0].mxu0
          %7912 = vmatprep.mubr.f32.mxu0 0.0
          %7913 = vmatmul.mubr.f32.gmra.mrb[0].mxu0 %v7726
          %v7914 = vpop.f32.mrb[0].mxu0
          %v7915 = vadd.f32 0.0, %v7914
          %v7916 = vpop.f32.mrb[0].mxu0
          %7917 = vdwg.mxu0
          %v7918 = vmul.f32 %v7795, %v7795
          %v7919 = vmul.f32 %v7800, %v7800
          %v7920 = vmul.f32 %v7805, %v7805
          %v7921 = vmul.f32 %v7810, %v7810
          %v7922 = vmul.f32 %v7815, %v7815
          %v7923 = vmul.f32 %v7820, %v7820
          %v7924 = vmul.f32 %v7825, %v7825
          %v7925 = vmul.f32 %v7830, %v7830
          %v7926 = vmul.f32 %v7835, %v7835
          %v7927 = vmul.f32 %v7840, %v7840
          %v7928 = vmul.f32 %v7795, %v7820
          %v7929 = vmul.f32 %v7800, %v7825
          %v7930 = vmul.f32 %v7805, %v7830
          %v7931 = vmul.f32 %v7810, %v7835
          %v7932 = vmul.f32 %v7815, %v7840
          %v7933 = vmul.f32 %v7928, 2.0
          %v7934 = vmul.f32 %v7929, 2.0
          %v7935 = vmul.f32 %v7930, 2.0
          %v7936 = vmul.f32 %v7931, 2.0
          %v7937 = vmul.f32 %v7932, 2.0
          %v7938 = vadd.f32 %v7933, 6.5025
          %v7939 = vadd.f32 %v7934, 6.5025
          %v7940 = vadd.f32 %v7935, 6.5025
          %v7941 = vadd.f32 %v7936, 6.5025
          %v7942 = vadd.f32 %v7937, 6.5025
          %v7943 = vadd.f32 %v7918, %v7923
          %v7944 = vadd.f32 %v7919, %v7924
          %v7945 = vadd.f32 %v7920, %v7925
          %v7946 = vadd.f32 %v7921, %v7926
          %v7947 = vadd.f32 %v7922, %v7927
          %v7948 = vadd.f32 %v7943, 6.5025
          %v7949 = vadd.f32 %v7944, 6.5025
          %v7950 = vadd.f32 %v7945, 6.5025
          %v7951 = vadd.f32 %v7946, 6.5025
          %v7952 = vadd.f32 %v7947, 6.5025
          %v7953 = vsub.f32 %v7895, %v7928
          %v7954 = vsub.f32 %v7900, %v7929
          %v7955 = vsub.f32 %v7905, %v7930
          %v7956 = vsub.f32 %v7910, %v7931
          %v7957 = vsub.f32 %v7915, %v7932
          %v7958 = vmul.f32 %v7953, 2.0
          %v7959 = vmul.f32 %v7954, 2.0
          %v7960 = vmul.f32 %v7955, 2.0
          %v7961 = vmul.f32 %v7956, 2.0
          %v7962 = vmul.f32 %v7957, 2.0
          %v7963 = vadd.f32 %v7958, 58.5225
          %v7964 = vadd.f32 %v7959, 58.5225
          %v7965 = vadd.f32 %v7960, 58.5225
          %v7966 = vadd.f32 %v7961, 58.5225
          %v7967 = vadd.f32 %v7962, 58.5225
          %v7968 = vsub.f32 %v7845, %v7918
          %v7969 = vsub.f32 %v7850, %v7919
          %v7970 = vsub.f32 %v7855, %v7920
          %v7971 = vsub.f32 %v7860, %v7921
          %v7972 = vsub.f32 %v7865, %v7922
          %v7973 = vsub.f32 %v7870, %v7923
          %v7974 = vsub.f32 %v7875, %v7924
          %v7975 = vsub.f32 %v7880, %v7925
          %v7976 = vsub.f32 %v7885, %v7926
          %v7977 = vsub.f32 %v7890, %v7927
          %v7978 = vadd.f32 %v7968, %v7973
          %v7979 = vadd.f32 %v7969, %v7974
          %v7980 = vadd.f32 %v7970, %v7975
          %v7981 = vadd.f32 %v7971, %v7976
          %v7982 = vadd.f32 %v7972, %v7977
          %v7983 = vadd.f32 %v7978, 58.5225
          %v7984 = vadd.f32 %v7979, 58.5225
          %v7985 = vadd.f32 %v7980, 58.5225
          %v7986 = vadd.f32 %v7981, 58.5225
          %v7987 = vadd.f32 %v7982, 58.5225
          %v7988 = vrcp.pop %v7983
          %v7989 = vmul.f32 %v7963, %v7988
          %v7990 = vrcp.pop %v7984
          %v7991 = vmul.f32 %v7964, %v7990
          %v7992 = vrcp.pop %v7985
          %v7993 = vmul.f32 %v7965, %v7992
          %v7994 = vrcp.pop %v7986
          %v7995 = vmul.f32 %v7966, %v7994
          %v7996 = vrcp.pop %v7987
          %v7997 = vmul.f32 %v7967, %v7996
          %v7998 = vrcp.pop %v7948
          %v7999 = vmul.f32 %v7938, %v7998
          %v8000 = vrcp.pop %v7949
          %v8001 = vmul.f32 %v7939, %v8000
          %v8002 = vrcp.pop %v7950
          %v8003 = vmul.f32 %v7940, %v8002
          %v8004 = vrcp.pop %v7951
          %v8005 = vmul.f32 %v7941, %v8004
          %v8006 = vrcp.pop %v7952
          %v8007 = vmul.f32 %v7942, %v8006
          %v8008 = vmul.f32 %v7999, %v7989
          %v8009 = vmul.f32 %v8001, %v7991
          %v8010 = vmul.f32 %v8003, %v7993
          %v8011 = vmul.f32 %v8005, %v7995
          %v8012 = vmul.f32 %v8007, %v7997
          %vm8013 = vcmask 310272
          %v8014 = vsel %vm8013, %v8008, 0.0
          %v8015 = vsel %vm8013, %v8009, 0.0
          %v8016 = vadd.f32 %v8014, %v8015
          %v8017 = vsel %vm8013, %v8010, 0.0
          %v8018 = vadd.f32 %v8016, %v8017
          %v8019 = vsel %vm8013, %v8011, 0.0
          %v8020 = vadd.f32 %v8018, %v8019
          %vm8021 = vcmask 308224
          %v8022 = vsel %vm8021, %v8012, 0.0
          %v8023 = vadd.f32 %v8020, %v8022
          %8024 = vadd.xlane.f32.xlu0 %v8023
          %v8025 = vpop.xlane.xlu0 %8024
          %v8026 = vrot.slane %v8025, 4
          %v8027 = vadd.f32 %v8025, %v8026
          %v8028 = vrot.slane %v8027, 2
          %v8029 = vadd.f32 %v8027, %v8028
          %v8030 = vrot.slane %v8029, 1
          %v8031 = vadd.f32 %v8029, %v8030
          %s8032 = vtos %v8031
          %s8033 = smul.f32 %s8032, 0.00069252076
          %v8034 = vsel %vm8013, %v7989, 0.0
          %v8035 = vsel %vm8013, %v7991, 0.0
          %v8036 = vadd.f32 %v8034, %v8035
          %v8037 = vsel %vm8013, %v7993, 0.0
          %v8038 = vadd.f32 %v8036, %v8037
          %v8039 = vsel %vm8013, %v7995, 0.0
          %v8040 = vadd.f32 %v8038, %v8039
          %v8041 = vsel %vm8021, %v7997, 0.0
          %v8042 = vadd.f32 %v8040, %v8041
          %8043 = vadd.xlane.f32.xlu0 %v8042
          %v8044 = vpop.xlane.xlu0 %8043
          %v8045 = vrot.slane %v8044, 4
          %v8046 = vadd.f32 %v8044, %v8045
          %v8047 = vrot.slane %v8046, 2
          %v8048 = vadd.f32 %v8046, %v8047
          %v8049 = vrot.slane %v8048, 1
          %v8050 = vadd.f32 %v8048, %v8049
          %s8051 = vtos %v8050
          %s8052 = smul.f32 %s8051, 0.00069252076
          %vm8053 = vcmp.eq.s32.totalorder %v954, 4
          %vm8054 = vcmp.eq.s32.totalorder %v955, 4
          %vm8055 = vmand %vm8053, %vm4526
          %vm8056 = vmand %vm8054, %vm4526
          %v8057 = vstv %s8033
          %v8058 = vsel %vm8055, %v8057, %v6704
          %v8059 = vsel %vm8056, %v8057, %v6705
          %vm8060 = vcmp.eq.s32.totalorder %v954, 5
          %vm8061 = vcmp.eq.s32.totalorder %v955, 5
          %vm8062 = vmand %vm8060, %vm4526
          %vm8063 = vmand %vm8061, %vm4526
          %v8064 = vstv %s8052
          %v8065 = vsel %vm8062, %v8064, %v8058
          %v8066 = vsel %vm8063, %v8064, %v8059
          %v8067 = vld [vmem:[#allocation24] sm:$0xff]
          %v8068 = vld [vmem:[#allocation24 + $0x8] sm:$0xff]
          %v8069 = vld [vmem:[#allocation24 + $0x10] sm:$0xff]
          %v8070 = vld [vmem:[#allocation30] sm:$0xff]
          %v8071 = vld [vmem:[#allocation30 + $0x8] sm:$0xff]
          %v8072 = vld [vmem:[#allocation30 + $0x10] sm:$0xff]
          %v8073 = vld [vmem:[#allocation30 + $0x18] sm:$0xff]
          %v8074 = vld [vmem:[#allocation30 + $0x20] sm:$0xff]
          %v8075 = vld [vmem:[#allocation30 + $0x28] sm:$0xff]
          %v8077 = vsel %vm7187, %v8067, 0
          %v8080 = vsel %vm7187, %v8068, 0
          %v8083 = vsel %vm7187, %v8069, 0
          %8085 = vmatprep.subr.mxu0 0.0
          %8086 = vmatpush1.msra.mxu0 %v6922
          %8087 = vmatprep.subr.mxu0 0.0
          %8088 = vmatpush1.msra.mxu0 %v6927
          %8089 = vmatprep.subr.mxu0 0.0
          %8090 = vmatpush1.msra.mxu0 %v6932
          %8091 = vmatprep.subr.mxu0 0.0
          %8092 = vmatpush1.msra.mxu0 %v6937
          %8093 = vmatprep.subr.mxu0 0.0
          %8094 = vmatpush1.msra.mxu0 %v6942
          %8095 = vmatprep.subr.mxu0 0.0
          %8096 = vmatpush1.msra.mxu0 %v6947
          %8097 = vmatprep.subr.mxu0 0.0
          %8098 = vmatpush1.msra.mxu0 0.0
          %8099 = vmatprep.subr.mxu0 0.0
          %8100 = vmatpush1.msra.mxu0 0.0
          %8101 = vmatprep.subr.mxu0 0.0
          %8102 = vmatpush1.msra.mxu0 0.0
          %8103 = vmatprep.subr.mxu0 0.0
          %8104 = vmatpush1.msra.mxu0 0.0
          %8105 = vmatprep.subr.mxu0 0.0
          %8106 = vmatpush1.msra.mxu0 0.0
          %8107 = vmatprep.subr.mxu0 0.0
          %8108 = vmatpush1.msra.mxu0 0.0
          %8109 = vmatprep.subr.mxu0 0.0
          %8110 = vmatpush1.msra.mxu0 0.0
          %8111 = vmatprep.subr.mxu0 0.0
          %8112 = vmatpush1.msra.mxu0 0.0
          %8113 = vmatprep.subr.mxu0 0.0
          %8114 = vmatpush1.msra.mxu0 0.0
          %8115 = vmatprep.subr.mxu0 0.0
          %8116 = vmatpush1.msra.mxu0 0.0
          %8117 = vmatprep.subr.mxu0 0.0
          %8118 = vmatpush1.msra.mxu0 0.0
          %8119 = vmatprep.subr.mxu0 0.0
          %8120 = vmatpush1.msra.mxu0 0.0
          %8121 = vmatprep.subr.mxu0 0.0
          %8122 = vmatpush1.msra.mxu0 0.0
          %8123 = vmatprep.subr.mxu0 0.0
          %8124 = vmatpush1.msra.mxu0 0.0
          %8125 = vmatprep.subr.mxu0 0.0
          %8126 = vmatpush1.msra.mxu0 0.0
          %8127 = vmatprep.subr.mxu0 0.0
          %8128 = vmatpush1.msra.mxu0 0.0
          %8129 = vmatprep.subr.mxu0 0.0
          %8130 = vmatpush1.msra.mxu0 0.0
          %8131 = vmatprep.subr.mxu0 0.0
          %8132 = vmatpush1.msra.mxu0 0.0
          %8133 = vmatprep.subr.mxu0 0.0
          %8134 = vmatpush1.msra.mxu0 0.0
          %8135 = vmatprep.subr.mxu0 0.0
          %8136 = vmatpush1.msra.mxu0 0.0
          %8137 = vmatprep.subr.mxu0 0.0
          %8138 = vmatpush1.msra.mxu0 0.0
          %8139 = vmatprep.subr.mxu0 0.0
          %8140 = vmatpush1.msra.mxu0 0.0
          %8141 = vmatprep.subr.mxu0 0.0
          %8142 = vmatpush1.msra.mxu0 0.0
          %8143 = vmatprep.subr.mxu0 0.0
          %8144 = vmatpush1.msra.mxu0 0.0
          %8145 = vmatprep.subr.mxu0 0.0
          %8146 = vmatpush1.msra.mxu0 0.0
          %8147 = vmatprep.subr.mxu0 0.0
          %8148 = vmatpush1.msra.mxu0 0.0
          %8149 = vmatprep.mubr.f32.mxu0 0.0
          %8150 = vmatmul.mubr.f32.gmra.mrb[0].mxu0 %v8077
          %v8151 = vpop.f32.mrb[0].mxu0
          %v8152 = vadd.f32 0.0, %v8151
          %v8153 = vpop.f32.mrb[0].mxu0
          %8154 = vmatprep.mubr.f32.mxu0 0.0
          %8155 = vmatmul.mubr.f32.gmra.mrb[0].mxu0 %v8080
          %v8156 = vpop.f32.mrb[0].mxu0
          %v8157 = vadd.f32 0.0, %v8156
          %v8158 = vpop.f32.mrb[0].mxu0
          %8159 = vmatprep.mubr.f32.mxu0 0.0
          %8160 = vmatmul.mubr.f32.gmra.mrb[0].mxu0 %v8083
          %v8161 = vpop.f32.mrb[0].mxu0
          %v8162 = vadd.f32 0.0, %v8161
          %v8163 = vpop.f32.mrb[0].mxu0
          %8164 = vdwg.mxu0
          %v8166 = vsel %vm7187, %v8152, 0
          %v8169 = vsel %vm7187, %v8157, 0
          %v8172 = vsel %vm7187, %v8162, 0
          %8174 = vmatprep.subr.mxu0 0.0
          %8175 = vmatpush1.msra.mxu0 %v8070
          %8176 = vmatprep.subr.mxu0 0.0
          %8177 = vmatpush1.msra.mxu0 %v8071
          %8178 = vmatprep.subr.mxu0 0.0
          %8179 = vmatpush1.msra.mxu0 %v8072
          %8180 = vmatprep.subr.mxu0 0.0
          %8181 = vmatpush1.msra.mxu0 %v8073
          %8182 = vmatprep.subr.mxu0 0.0
          %8183 = vmatpush1.msra.mxu0 %v8074
          %8184 = vmatprep.subr.mxu0 0.0
          %8185 = vmatpush1.msra.mxu0 %v8075
          %8186 = vmatprep.subr.mxu0 0.0
          %8187 = vmatpush1.msra.mxu0 0.0
          %8188 = vmatprep.subr.mxu0 0.0
          %8189 = vmatpush1.msra.mxu0 0.0
          %8190 = vmatprep.subr.mxu0 0.0
          %8191 = vmatpush1.msra.mxu0 0.0
          %8192 = vmatprep.subr.mxu0 0.0
          %8193 = vmatpush1.msra.mxu0 0.0
          %8194 = vmatprep.subr.mxu0 0.0
          %8195 = vmatpush1.msra.mxu0 0.0
          %8196 = vmatprep.subr.mxu0 0.0
          %8197 = vmatpush1.msra.mxu0 0.0
          %8198 = vmatprep.subr.mxu0 0.0
          %8199 = vmatpush1.msra.mxu0 0.0
          %8200 = vmatprep.subr.mxu0 0.0
          %8201 = vmatpush1.msra.mxu0 0.0
          %8202 = vmatprep.subr.mxu0 0.0
          %8203 = vmatpush1.msra.mxu0 0.0
          %8204 = vmatprep.subr.mxu0 0.0
          %8205 = vmatpush1.msra.mxu0 0.0
          %8206 = vmatprep.subr.mxu0 0.0
          %8207 = vmatpush1.msra.mxu0 0.0
          %8208 = vmatprep.subr.mxu0 0.0
          %8209 = vmatpush1.msra.mxu0 0.0
          %8210 = vmatprep.subr.mxu0 0.0
          %8211 = vmatpush1.msra.mxu0 0.0
          %8212 = vmatprep.subr.mxu0 0.0
          %8213 = vmatpush1.msra.mxu0 0.0
          %8214 = vmatprep.subr.mxu0 0.0
          %8215 = vmatpush1.msra.mxu0 0.0
          %8216 = vmatprep.subr.mxu0 0.0
          %8217 = vmatpush1.msra.mxu0 0.0
          %8218 = vmatprep.subr.mxu0 0.0
          %8219 = vmatpush1.msra.mxu0 0.0
          %8220 = vmatprep.subr.mxu0 0.0
          %8221 = vmatpush1.msra.mxu0 0.0
          %8222 = vmatprep.subr.mxu0 0.0
          %8223 = vmatpush1.msra.mxu0 0.0
          %8224 = vmatprep.subr.mxu0 0.0
          %8225 = vmatpush1.msra.mxu0 0.0
          %8226 = vmatprep.subr.mxu0 0.0
          %8227 = vmatpush1.msra.mxu0 0.0
          %8228 = vmatprep.subr.mxu0 0.0
          %8229 = vmatpush1.msra.mxu0 0.0
          %8230 = vmatprep.subr.mxu0 0.0
          %8231 = vmatpush1.msra.mxu0 0.0
          %8232 = vmatprep.subr.mxu0 0.0
          %8233 = vmatpush1.msra.mxu0 0.0
          %8234 = vmatprep.subr.mxu0 0.0
          %8235 = vmatpush1.msra.mxu0 0.0
          %8236 = vmatprep.subr.mxu0 0.0
          %8237 = vmatpush1.msra.mxu0 0.0
          %8238 = vmatprep.mubr.f32.mxu0 0.0
          %8239 = vmatmul.mubr.f32.gmra.mrb[0].mxu0 %v8166
          %v8240 = vpop.f32.mrb[0].mxu0
          %v8241 = vadd.f32 0.0, %v8240
          %v8242 = vpop.f32.mrb[0].mxu0
          %8243 = vmatprep.mubr.f32.mxu0 0.0
          %8244 = vmatmul.mubr.f32.gmra.mrb[0].mxu0 %v8169
          %v8245 = vpop.f32.mrb[0].mxu0
          %v8246 = vadd.f32 0.0, %v8245
          %v8247 = vpop.f32.mrb[0].mxu0
          %8248 = vmatprep.mubr.f32.mxu0 0.0
          %8249 = vmatmul.mubr.f32.gmra.mrb[0].mxu0 %v8172
          %v8250 = vpop.f32.mrb[0].mxu0
          %v8251 = vadd.f32 0.0, %v8250
          %v8252 = vpop.f32.mrb[0].mxu0
          %8253 = vdwg.mxu0
          %8254 = vmatprep.subr.mxu0 0.0
          %8255 = vmatpush1.msra.mxu0 %v7130
          %8256 = vmatprep.subr.mxu0 0.0
          %8257 = vmatpush1.msra.mxu0 %v7135
          %8258 = vmatprep.subr.mxu0 0.0
          %8259 = vmatpush1.msra.mxu0 %v7140
          %8260 = vmatprep.subr.mxu0 0.0
          %8261 = vmatpush1.msra.mxu0 %v7145
          %8262 = vmatprep.subr.mxu0 0.0
          %8263 = vmatpush1.msra.mxu0 %v7150
          %8264 = vmatprep.subr.mxu0 0.0
          %8265 = vmatpush1.msra.mxu0 %v7155
          %8266 = vmatprep.subr.mxu0 0.0
          %8267 = vmatpush1.msra.mxu0 0.0
          %8268 = vmatprep.subr.mxu0 0.0
          %8269 = vmatpush1.msra.mxu0 0.0
          %8270 = vmatprep.subr.mxu0 0.0
          %8271 = vmatpush1.msra.mxu0 0.0
          %8272 = vmatprep.subr.mxu0 0.0
          %8273 = vmatpush1.msra.mxu0 0.0
          %8274 = vmatprep.subr.mxu0 0.0
          %8275 = vmatpush1.msra.mxu0 0.0
          %8276 = vmatprep.subr.mxu0 0.0
          %8277 = vmatpush1.msra.mxu0 0.0
          %8278 = vmatprep.subr.mxu0 0.0
          %8279 = vmatpush1.msra.mxu0 0.0
          %8280 = vmatprep.subr.mxu0 0.0
          %8281 = vmatpush1.msra.mxu0 0.0
          %8282 = vmatprep.subr.mxu0 0.0
          %8283 = vmatpush1.msra.mxu0 0.0
          %8284 = vmatprep.subr.mxu0 0.0
          %8285 = vmatpush1.msra.mxu0 0.0
          %8286 = vmatprep.subr.mxu0 0.0
          %8287 = vmatpush1.msra.mxu0 0.0
          %8288 = vmatprep.subr.mxu0 0.0
          %8289 = vmatpush1.msra.mxu0 0.0
          %8290 = vmatprep.subr.mxu0 0.0
          %8291 = vmatpush1.msra.mxu0 0.0
          %8292 = vmatprep.subr.mxu0 0.0
          %8293 = vmatpush1.msra.mxu0 0.0
          %8294 = vmatprep.subr.mxu0 0.0
          %8295 = vmatpush1.msra.mxu0 0.0
          %8296 = vmatprep.subr.mxu0 0.0
          %8297 = vmatpush1.msra.mxu0 0.0
          %8298 = vmatprep.subr.mxu0 0.0
          %8299 = vmatpush1.msra.mxu0 0.0
          %8300 = vmatprep.subr.mxu0 0.0
          %8301 = vmatpush1.msra.mxu0 0.0
          %8302 = vmatprep.subr.mxu0 0.0
          %8303 = vmatpush1.msra.mxu0 0.0
          %8304 = vmatprep.subr.mxu0 0.0
          %8305 = vmatpush1.msra.mxu0 0.0
          %8306 = vmatprep.subr.mxu0 0.0
          %8307 = vmatpush1.msra.mxu0 0.0
          %8308 = vmatprep.subr.mxu0 0.0
          %8309 = vmatpush1.msra.mxu0 0.0
          %8310 = vmatprep.subr.mxu0 0.0
          %8311 = vmatpush1.msra.mxu0 0.0
          %8312 = vmatprep.subr.mxu0 0.0
          %8313 = vmatpush1.msra.mxu0 0.0
          %8314 = vmatprep.subr.mxu0 0.0
          %8315 = vmatpush1.msra.mxu0 0.0
          %8316 = vmatprep.subr.mxu0 0.0
          %8317 = vmatpush1.msra.mxu0 0.0
          %8318 = vmatprep.mubr.f32.mxu0 0.0
          %8319 = vmatmul.mubr.f32.gmra.mrb[0].mxu0 %v8077
          %v8320 = vpop.f32.mrb[0].mxu0
          %v8321 = vadd.f32 0.0, %v8320
          %v8322 = vpop.f32.mrb[0].mxu0
          %8323 = vmatprep.mubr.f32.mxu0 0.0
          %8324 = vmatmul.mubr.f32.gmra.mrb[0].mxu0 %v8080
          %v8325 = vpop.f32.mrb[0].mxu0
          %v8326 = vadd.f32 0.0, %v8325
          %v8327 = vpop.f32.mrb[0].mxu0
          %8328 = vmatprep.mubr.f32.mxu0 0.0
          %8329 = vmatmul.mubr.f32.gmra.mrb[0].mxu0 %v8083
          %v8330 = vpop.f32.mrb[0].mxu0
          %v8331 = vadd.f32 0.0, %v8330
          %v8332 = vpop.f32.mrb[0].mxu0
          %8333 = vdwg.mxu0
          %v8335 = vsel %vm7187, %v8321, 0
          %v8338 = vsel %vm7187, %v8326, 0
          %v8341 = vsel %vm7187, %v8331, 0
          %8343 = vmatprep.subr.mxu0 0.0
          %8344 = vmatpush1.msra.mxu0 %v8070
          %8345 = vmatprep.subr.mxu0 0.0
          %8346 = vmatpush1.msra.mxu0 %v8071
          %8347 = vmatprep.subr.mxu0 0.0
          %8348 = vmatpush1.msra.mxu0 %v8072
          %8349 = vmatprep.subr.mxu0 0.0
          %8350 = vmatpush1.msra.mxu0 %v8073
          %8351 = vmatprep.subr.mxu0 0.0
          %8352 = vmatpush1.msra.mxu0 %v8074
          %8353 = vmatprep.subr.mxu0 0.0
          %8354 = vmatpush1.msra.mxu0 %v8075
          %8355 = vmatprep.subr.mxu0 0.0
          %8356 = vmatpush1.msra.mxu0 0.0
          %8357 = vmatprep.subr.mxu0 0.0
          %8358 = vmatpush1.msra.mxu0 0.0
          %8359 = vmatprep.subr.mxu0 0.0
          %8360 = vmatpush1.msra.mxu0 0.0
          %8361 = vmatprep.subr.mxu0 0.0
          %8362 = vmatpush1.msra.mxu0 0.0
          %8363 = vmatprep.subr.mxu0 0.0
          %8364 = vmatpush1.msra.mxu0 0.0
          %8365 = vmatprep.subr.mxu0 0.0
          %8366 = vmatpush1.msra.mxu0 0.0
          %8367 = vmatprep.subr.mxu0 0.0
          %8368 = vmatpush1.msra.mxu0 0.0
          %8369 = vmatprep.subr.mxu0 0.0
          %8370 = vmatpush1.msra.mxu0 0.0
          %8371 = vmatprep.subr.mxu0 0.0
          %8372 = vmatpush1.msra.mxu0 0.0
          %8373 = vmatprep.subr.mxu0 0.0
          %8374 = vmatpush1.msra.mxu0 0.0
          %8375 = vmatprep.subr.mxu0 0.0
          %8376 = vmatpush1.msra.mxu0 0.0
          %8377 = vmatprep.subr.mxu0 0.0
          %8378 = vmatpush1.msra.mxu0 0.0
          %8379 = vmatprep.subr.mxu0 0.0
          %8380 = vmatpush1.msra.mxu0 0.0
          %8381 = vmatprep.subr.mxu0 0.0
          %8382 = vmatpush1.msra.mxu0 0.0
          %8383 = vmatprep.subr.mxu0 0.0
          %8384 = vmatpush1.msra.mxu0 0.0
          %8385 = vmatprep.subr.mxu0 0.0
          %8386 = vmatpush1.msra.mxu0 0.0
          %8387 = vmatprep.subr.mxu0 0.0
          %8388 = vmatpush1.msra.mxu0 0.0
          %8389 = vmatprep.subr.mxu0 0.0
          %8390 = vmatpush1.msra.mxu0 0.0
          %8391 = vmatprep.subr.mxu0 0.0
          %8392 = vmatpush1.msra.mxu0 0.0
          %8393 = vmatprep.subr.mxu0 0.0
          %8394 = vmatpush1.msra.mxu0 0.0
          %8395 = vmatprep.subr.mxu0 0.0
          %8396 = vmatpush1.msra.mxu0 0.0
          %8397 = vmatprep.subr.mxu0 0.0
          %8398 = vmatpush1.msra.mxu0 0.0
          %8399 = vmatprep.subr.mxu0 0.0
          %8400 = vmatpush1.msra.mxu0 0.0
          %8401 = vmatprep.subr.mxu0 0.0
          %8402 = vmatpush1.msra.mxu0 0.0
          %8403 = vmatprep.subr.mxu0 0.0
          %8404 = vmatpush1.msra.mxu0 0.0
          %8405 = vmatprep.subr.mxu0 0.0
          %8406 = vmatpush1.msra.mxu0 0.0
          %8407 = vmatprep.mubr.f32.mxu0 0.0
          %8408 = vmatmul.mubr.f32.gmra.mrb[0].mxu0 %v8335
          %v8409 = vpop.f32.mrb[0].mxu0
          %v8410 = vadd.f32 0.0, %v8409
          %v8411 = vpop.f32.mrb[0].mxu0
          %8412 = vmatprep.mubr.f32.mxu0 0.0
          %8413 = vmatmul.mubr.f32.gmra.mrb[0].mxu0 %v8338
          %v8414 = vpop.f32.mrb[0].mxu0
          %v8415 = vadd.f32 0.0, %v8414
          %v8416 = vpop.f32.mrb[0].mxu0
          %8417 = vmatprep.mubr.f32.mxu0 0.0
          %8418 = vmatmul.mubr.f32.gmra.mrb[0].mxu0 %v8341
          %v8419 = vpop.f32.mrb[0].mxu0
          %v8420 = vadd.f32 0.0, %v8419
          %v8421 = vpop.f32.mrb[0].mxu0
          %8422 = vdwg.mxu0
          %v8423 = vld [vmem:[#allocation10] sm:$0xff]
          %v8424 = vld [vmem:[#allocation10 + $0x8] sm:$0xff]
          %v8425 = vld [vmem:[#allocation18] sm:$0xff]
          %v8426 = vld [vmem:[#allocation18 + $0x8] sm:$0xff]
          %v8427 = vld [vmem:[#allocation18 + $0x10] sm:$0xff]
          %v8428 = vmul.f32 %v8241, %v8241
          %v8429 = vmul.f32 %v8246, %v8246
          %v8430 = vmul.f32 %v8251, %v8251
          %v8431 = vmul.f32 %v8410, %v8410
          %v8432 = vmul.f32 %v8415, %v8415
          %v8433 = vmul.f32 %v8420, %v8420
          %v8434 = vmul.f32 %v8241, %v8410
          %v8435 = vmul.f32 %v8246, %v8415
          %v8436 = vmul.f32 %v8251, %v8420
          %vm8437 = vcmask 195584
          %v8439 = vsel %vm8437, %v8423, 0
          %v8442 = vsel %vm8437, %v8424, 0
          %8444 = vmatprep.subr.mxu0 0.0
          %8445 = vmatpush1.msra.mxu0 %v8241
          %8446 = vmatprep.subr.mxu0 0.0
          %8447 = vmatpush1.msra.mxu0 %v8246
          %8448 = vmatprep.subr.mxu0 0.0
          %8449 = vmatpush1.msra.mxu0 %v8251
          %8450 = vmatprep.subr.mxu0 0.0
          %8451 = vmatpush1.msra.mxu0 0.0
          %8452 = vmatprep.subr.mxu0 0.0
          %8453 = vmatpush1.msra.mxu0 0.0
          %8454 = vmatprep.subr.mxu0 0.0
          %8455 = vmatpush1.msra.mxu0 0.0
          %8456 = vmatprep.subr.mxu0 0.0
          %8457 = vmatpush1.msra.mxu0 0.0
          %8458 = vmatprep.subr.mxu0 0.0
          %8459 = vmatpush1.msra.mxu0 0.0
          %8460 = vmatprep.subr.mxu0 0.0
          %8461 = vmatpush1.msra.mxu0 0.0
          %8462 = vmatprep.subr.mxu0 0.0
          %8463 = vmatpush1.msra.mxu0 0.0
          %8464 = vmatprep.subr.mxu0 0.0
          %8465 = vmatpush1.msra.mxu0 0.0
          %8466 = vmatprep.subr.mxu0 0.0
          %8467 = vmatpush1.msra.mxu0 0.0
          %8468 = vmatprep.subr.mxu0 0.0
          %8469 = vmatpush1.msra.mxu0 0.0
          %8470 = vmatprep.subr.mxu0 0.0
          %8471 = vmatpush1.msra.mxu0 0.0
          %8472 = vmatprep.subr.mxu0 0.0
          %8473 = vmatpush1.msra.mxu0 0.0
          %8474 = vmatprep.subr.mxu0 0.0
          %8475 = vmatpush1.msra.mxu0 0.0
          %8476 = vmatprep.subr.mxu0 0.0
          %8477 = vmatpush1.msra.mxu0 0.0
          %8478 = vmatprep.subr.mxu0 0.0
          %8479 = vmatpush1.msra.mxu0 0.0
          %8480 = vmatprep.subr.mxu0 0.0
          %8481 = vmatpush1.msra.mxu0 0.0
          %8482 = vmatprep.subr.mxu0 0.0
          %8483 = vmatpush1.msra.mxu0 0.0
          %8484 = vmatprep.subr.mxu0 0.0
          %8485 = vmatpush1.msra.mxu0 0.0
          %8486 = vmatprep.subr.mxu0 0.0
          %8487 = vmatpush1.msra.mxu0 0.0
          %8488 = vmatprep.subr.mxu0 0.0
          %8489 = vmatpush1.msra.mxu0 0.0
          %8490 = vmatprep.subr.mxu0 0.0
          %8491 = vmatpush1.msra.mxu0 0.0
          %8492 = vmatprep.subr.mxu0 0.0
          %8493 = vmatpush1.msra.mxu0 0.0
          %8494 = vmatprep.subr.mxu0 0.0
          %8495 = vmatpush1.msra.mxu0 0.0
          %8496 = vmatprep.subr.mxu0 0.0
          %8497 = vmatpush1.msra.mxu0 0.0
          %8498 = vmatprep.subr.mxu0 0.0
          %8499 = vmatpush1.msra.mxu0 0.0
          %8500 = vmatprep.subr.mxu0 0.0
          %8501 = vmatpush1.msra.mxu0 0.0
          %8502 = vmatprep.subr.mxu0 0.0
          %8503 = vmatpush1.msra.mxu0 0.0
          %8504 = vmatprep.subr.mxu0 0.0
          %8505 = vmatpush1.msra.mxu0 0.0
          %8506 = vmatprep.subr.mxu0 0.0
          %8507 = vmatpush1.msra.mxu0 0.0
          %8508 = vmatprep.mubr.f32.mxu0 0.0
          %8509 = vmatmul.mubr.f32.gmra.mrb[0].mxu0 %v8439
          %v8510 = vpop.f32.mrb[0].mxu0
          %v8511 = vadd.f32 0.0, %v8510
          %v8512 = vpop.f32.mrb[0].mxu0
          %8513 = vmatprep.mubr.f32.mxu0 0.0
          %8514 = vmatmul.mubr.f32.gmra.mrb[0].mxu0 %v8442
          %v8515 = vpop.f32.mrb[0].mxu0
          %v8516 = vadd.f32 0.0, %v8515
          %v8517 = vpop.f32.mrb[0].mxu0
          %8518 = vdwg.mxu0
          %8519 = vmatprep.subr.mxu0 0.0
          %8520 = vmatpush1.msra.mxu0 %v8410
          %8521 = vmatprep.subr.mxu0 0.0
          %8522 = vmatpush1.msra.mxu0 %v8415
          %8523 = vmatprep.subr.mxu0 0.0
          %8524 = vmatpush1.msra.mxu0 %v8420
          %8525 = vmatprep.subr.mxu0 0.0
          %8526 = vmatpush1.msra.mxu0 0.0
          %8527 = vmatprep.subr.mxu0 0.0
          %8528 = vmatpush1.msra.mxu0 0.0
          %8529 = vmatprep.subr.mxu0 0.0
          %8530 = vmatpush1.msra.mxu0 0.0
          %8531 = vmatprep.subr.mxu0 0.0
          %8532 = vmatpush1.msra.mxu0 0.0
          %8533 = vmatprep.subr.mxu0 0.0
          %8534 = vmatpush1.msra.mxu0 0.0
          %8535 = vmatprep.subr.mxu0 0.0
          %8536 = vmatpush1.msra.mxu0 0.0
          %8537 = vmatprep.subr.mxu0 0.0
          %8538 = vmatpush1.msra.mxu0 0.0
          %8539 = vmatprep.subr.mxu0 0.0
          %8540 = vmatpush1.msra.mxu0 0.0
          %8541 = vmatprep.subr.mxu0 0.0
          %8542 = vmatpush1.msra.mxu0 0.0
          %8543 = vmatprep.subr.mxu0 0.0
          %8544 = vmatpush1.msra.mxu0 0.0
          %8545 = vmatprep.subr.mxu0 0.0
          %8546 = vmatpush1.msra.mxu0 0.0
          %8547 = vmatprep.subr.mxu0 0.0
          %8548 = vmatpush1.msra.mxu0 0.0
          %8549 = vmatprep.subr.mxu0 0.0
          %8550 = vmatpush1.msra.mxu0 0.0
          %8551 = vmatprep.subr.mxu0 0.0
          %8552 = vmatpush1.msra.mxu0 0.0
          %8553 = vmatprep.subr.mxu0 0.0
          %8554 = vmatpush1.msra.mxu0 0.0
          %8555 = vmatprep.subr.mxu0 0.0
          %8556 = vmatpush1.msra.mxu0 0.0
          %8557 = vmatprep.subr.mxu0 0.0
          %8558 = vmatpush1.msra.mxu0 0.0
          %8559 = vmatprep.subr.mxu0 0.0
          %8560 = vmatpush1.msra.mxu0 0.0
          %8561 = vmatprep.subr.mxu0 0.0
          %8562 = vmatpush1.msra.mxu0 0.0
          %8563 = vmatprep.subr.mxu0 0.0
          %8564 = vmatpush1.msra.mxu0 0.0
          %8565 = vmatprep.subr.mxu0 0.0
          %8566 = vmatpush1.msra.mxu0 0.0
          %8567 = vmatprep.subr.mxu0 0.0
          %8568 = vmatpush1.msra.mxu0 0.0
          %8569 = vmatprep.subr.mxu0 0.0
          %8570 = vmatpush1.msra.mxu0 0.0
          %8571 = vmatprep.subr.mxu0 0.0
          %8572 = vmatpush1.msra.mxu0 0.0
          %8573 = vmatprep.subr.mxu0 0.0
          %8574 = vmatpush1.msra.mxu0 0.0
          %8575 = vmatprep.subr.mxu0 0.0
          %8576 = vmatpush1.msra.mxu0 0.0
          %8577 = vmatprep.subr.mxu0 0.0
          %8578 = vmatpush1.msra.mxu0 0.0
          %8579 = vmatprep.subr.mxu0 0.0
          %8580 = vmatpush1.msra.mxu0 0.0
          %8581 = vmatprep.subr.mxu0 0.0
          %8582 = vmatpush1.msra.mxu0 0.0
          %8583 = vmatprep.mubr.f32.mxu0 0.0
          %8584 = vmatmul.mubr.f32.gmra.mrb[0].mxu0 %v8439
          %v8585 = vpop.f32.mrb[0].mxu0
          %v8586 = vadd.f32 0.0, %v8585
          %v8587 = vpop.f32.mrb[0].mxu0
          %8588 = vmatprep.mubr.f32.mxu0 0.0
          %8589 = vmatmul.mubr.f32.gmra.mrb[0].mxu0 %v8442
          %v8590 = vpop.f32.mrb[0].mxu0
          %v8591 = vadd.f32 0.0, %v8590
          %v8592 = vpop.f32.mrb[0].mxu0
          %8593 = vdwg.mxu0
          %8594 = vmatprep.subr.mxu0 0.0
          %8595 = vmatpush1.msra.mxu0 %v8428
          %8596 = vmatprep.subr.mxu0 0.0
          %8597 = vmatpush1.msra.mxu0 %v8429
          %8598 = vmatprep.subr.mxu0 0.0
          %8599 = vmatpush1.msra.mxu0 %v8430
          %8600 = vmatprep.subr.mxu0 0.0
          %8601 = vmatpush1.msra.mxu0 0.0
          %8602 = vmatprep.subr.mxu0 0.0
          %8603 = vmatpush1.msra.mxu0 0.0
          %8604 = vmatprep.subr.mxu0 0.0
          %8605 = vmatpush1.msra.mxu0 0.0
          %8606 = vmatprep.subr.mxu0 0.0
          %8607 = vmatpush1.msra.mxu0 0.0
          %8608 = vmatprep.subr.mxu0 0.0
          %8609 = vmatpush1.msra.mxu0 0.0
          %8610 = vmatprep.subr.mxu0 0.0
          %8611 = vmatpush1.msra.mxu0 0.0
          %8612 = vmatprep.subr.mxu0 0.0
          %8613 = vmatpush1.msra.mxu0 0.0
          %8614 = vmatprep.subr.mxu0 0.0
          %8615 = vmatpush1.msra.mxu0 0.0
          %8616 = vmatprep.subr.mxu0 0.0
          %8617 = vmatpush1.msra.mxu0 0.0
          %8618 = vmatprep.subr.mxu0 0.0
          %8619 = vmatpush1.msra.mxu0 0.0
          %8620 = vmatprep.subr.mxu0 0.0
          %8621 = vmatpush1.msra.mxu0 0.0
          %8622 = vmatprep.subr.mxu0 0.0
          %8623 = vmatpush1.msra.mxu0 0.0
          %8624 = vmatprep.subr.mxu0 0.0
          %8625 = vmatpush1.msra.mxu0 0.0
          %8626 = vmatprep.subr.mxu0 0.0
          %8627 = vmatpush1.msra.mxu0 0.0
          %8628 = vmatprep.subr.mxu0 0.0
          %8629 = vmatpush1.msra.mxu0 0.0
          %8630 = vmatprep.subr.mxu0 0.0
          %8631 = vmatpush1.msra.mxu0 0.0
          %8632 = vmatprep.subr.mxu0 0.0
          %8633 = vmatpush1.msra.mxu0 0.0
          %8634 = vmatprep.subr.mxu0 0.0
          %8635 = vmatpush1.msra.mxu0 0.0
          %8636 = vmatprep.subr.mxu0 0.0
          %8637 = vmatpush1.msra.mxu0 0.0
          %8638 = vmatprep.subr.mxu0 0.0
          %8639 = vmatpush1.msra.mxu0 0.0
          %8640 = vmatprep.subr.mxu0 0.0
          %8641 = vmatpush1.msra.mxu0 0.0
          %8642 = vmatprep.subr.mxu0 0.0
          %8643 = vmatpush1.msra.mxu0 0.0
          %8644 = vmatprep.subr.mxu0 0.0
          %8645 = vmatpush1.msra.mxu0 0.0
          %8646 = vmatprep.subr.mxu0 0.0
          %8647 = vmatpush1.msra.mxu0 0.0
          %8648 = vmatprep.subr.mxu0 0.0
          %8649 = vmatpush1.msra.mxu0 0.0
          %8650 = vmatprep.subr.mxu0 0.0
          %8651 = vmatpush1.msra.mxu0 0.0
          %8652 = vmatprep.subr.mxu0 0.0
          %8653 = vmatpush1.msra.mxu0 0.0
          %8654 = vmatprep.subr.mxu0 0.0
          %8655 = vmatpush1.msra.mxu0 0.0
          %8656 = vmatprep.subr.mxu0 0.0
          %8657 = vmatpush1.msra.mxu0 0.0
          %8658 = vmatprep.mubr.f32.mxu0 0.0
          %8659 = vmatmul.mubr.f32.gmra.mrb[0].mxu0 %v8439
          %v8660 = vpop.f32.mrb[0].mxu0
          %v8661 = vadd.f32 0.0, %v8660
          %v8662 = vpop.f32.mrb[0].mxu0
          %8663 = vmatprep.mubr.f32.mxu0 0.0
          %8664 = vmatmul.mubr.f32.gmra.mrb[0].mxu0 %v8442
          %v8665 = vpop.f32.mrb[0].mxu0
          %v8666 = vadd.f32 0.0, %v8665
          %v8667 = vpop.f32.mrb[0].mxu0
          %8668 = vdwg.mxu0
          %8669 = vmatprep.subr.mxu0 0.0
          %8670 = vmatpush1.msra.mxu0 %v8431
          %8671 = vmatprep.subr.mxu0 0.0
          %8672 = vmatpush1.msra.mxu0 %v8432
          %8673 = vmatprep.subr.mxu0 0.0
          %8674 = vmatpush1.msra.mxu0 %v8433
          %8675 = vmatprep.subr.mxu0 0.0
          %8676 = vmatpush1.msra.mxu0 0.0
          %8677 = vmatprep.subr.mxu0 0.0
          %8678 = vmatpush1.msra.mxu0 0.0
          %8679 = vmatprep.subr.mxu0 0.0
          %8680 = vmatpush1.msra.mxu0 0.0
          %8681 = vmatprep.subr.mxu0 0.0
          %8682 = vmatpush1.msra.mxu0 0.0
          %8683 = vmatprep.subr.mxu0 0.0
          %8684 = vmatpush1.msra.mxu0 0.0
          %8685 = vmatprep.subr.mxu0 0.0
          %8686 = vmatpush1.msra.mxu0 0.0
          %8687 = vmatprep.subr.mxu0 0.0
          %8688 = vmatpush1.msra.mxu0 0.0
          %8689 = vmatprep.subr.mxu0 0.0
          %8690 = vmatpush1.msra.mxu0 0.0
          %8691 = vmatprep.subr.mxu0 0.0
          %8692 = vmatpush1.msra.mxu0 0.0
          %8693 = vmatprep.subr.mxu0 0.0
          %8694 = vmatpush1.msra.mxu0 0.0
          %8695 = vmatprep.subr.mxu0 0.0
          %8696 = vmatpush1.msra.mxu0 0.0
          %8697 = vmatprep.subr.mxu0 0.0
          %8698 = vmatpush1.msra.mxu0 0.0
          %8699 = vmatprep.subr.mxu0 0.0
          %8700 = vmatpush1.msra.mxu0 0.0
          %8701 = vmatprep.subr.mxu0 0.0
          %8702 = vmatpush1.msra.mxu0 0.0
          %8703 = vmatprep.subr.mxu0 0.0
          %8704 = vmatpush1.msra.mxu0 0.0
          %8705 = vmatprep.subr.mxu0 0.0
          %8706 = vmatpush1.msra.mxu0 0.0
          %8707 = vmatprep.subr.mxu0 0.0
          %8708 = vmatpush1.msra.mxu0 0.0
          %8709 = vmatprep.subr.mxu0 0.0
          %8710 = vmatpush1.msra.mxu0 0.0
          %8711 = vmatprep.subr.mxu0 0.0
          %8712 = vmatpush1.msra.mxu0 0.0
          %8713 = vmatprep.subr.mxu0 0.0
          %8714 = vmatpush1.msra.mxu0 0.0
          %8715 = vmatprep.subr.mxu0 0.0
          %8716 = vmatpush1.msra.mxu0 0.0
          %8717 = vmatprep.subr.mxu0 0.0
          %8718 = vmatpush1.msra.mxu0 0.0
          %8719 = vmatprep.subr.mxu0 0.0
          %8720 = vmatpush1.msra.mxu0 0.0
          %8721 = vmatprep.subr.mxu0 0.0
          %8722 = vmatpush1.msra.mxu0 0.0
          %8723 = vmatprep.subr.mxu0 0.0
          %8724 = vmatpush1.msra.mxu0 0.0
          %8725 = vmatprep.subr.mxu0 0.0
          %8726 = vmatpush1.msra.mxu0 0.0
          %8727 = vmatprep.subr.mxu0 0.0
          %8728 = vmatpush1.msra.mxu0 0.0
          %8729 = vmatprep.subr.mxu0 0.0
          %8730 = vmatpush1.msra.mxu0 0.0
          %8731 = vmatprep.subr.mxu0 0.0
          %8732 = vmatpush1.msra.mxu0 0.0
          %8733 = vmatprep.mubr.f32.mxu0 0.0
          %8734 = vmatmul.mubr.f32.gmra.mrb[0].mxu0 %v8439
          %v8735 = vpop.f32.mrb[0].mxu0
          %v8736 = vadd.f32 0.0, %v8735
          %v8737 = vpop.f32.mrb[0].mxu0
          %8738 = vmatprep.mubr.f32.mxu0 0.0
          %8739 = vmatmul.mubr.f32.gmra.mrb[0].mxu0 %v8442
          %v8740 = vpop.f32.mrb[0].mxu0
          %v8741 = vadd.f32 0.0, %v8740
          %v8742 = vpop.f32.mrb[0].mxu0
          %8743 = vdwg.mxu0
          %8744 = vmatprep.subr.mxu0 0.0
          %8745 = vmatpush1.msra.mxu0 %v8434
          %8746 = vmatprep.subr.mxu0 0.0
          %8747 = vmatpush1.msra.mxu0 %v8435
          %8748 = vmatprep.subr.mxu0 0.0
          %8749 = vmatpush1.msra.mxu0 %v8436
          %8750 = vmatprep.subr.mxu0 0.0
          %8751 = vmatpush1.msra.mxu0 0.0
          %8752 = vmatprep.subr.mxu0 0.0
          %8753 = vmatpush1.msra.mxu0 0.0
          %8754 = vmatprep.subr.mxu0 0.0
          %8755 = vmatpush1.msra.mxu0 0.0
          %8756 = vmatprep.subr.mxu0 0.0
          %8757 = vmatpush1.msra.mxu0 0.0
          %8758 = vmatprep.subr.mxu0 0.0
          %8759 = vmatpush1.msra.mxu0 0.0
          %8760 = vmatprep.subr.mxu0 0.0
          %8761 = vmatpush1.msra.mxu0 0.0
          %8762 = vmatprep.subr.mxu0 0.0
          %8763 = vmatpush1.msra.mxu0 0.0
          %8764 = vmatprep.subr.mxu0 0.0
          %8765 = vmatpush1.msra.mxu0 0.0
          %8766 = vmatprep.subr.mxu0 0.0
          %8767 = vmatpush1.msra.mxu0 0.0
          %8768 = vmatprep.subr.mxu0 0.0
          %8769 = vmatpush1.msra.mxu0 0.0
          %8770 = vmatprep.subr.mxu0 0.0
          %8771 = vmatpush1.msra.mxu0 0.0
          %8772 = vmatprep.subr.mxu0 0.0
          %8773 = vmatpush1.msra.mxu0 0.0
          %8774 = vmatprep.subr.mxu0 0.0
          %8775 = vmatpush1.msra.mxu0 0.0
          %8776 = vmatprep.subr.mxu0 0.0
          %8777 = vmatpush1.msra.mxu0 0.0
          %8778 = vmatprep.subr.mxu0 0.0
          %8779 = vmatpush1.msra.mxu0 0.0
          %8780 = vmatprep.subr.mxu0 0.0
          %8781 = vmatpush1.msra.mxu0 0.0
          %8782 = vmatprep.subr.mxu0 0.0
          %8783 = vmatpush1.msra.mxu0 0.0
          %8784 = vmatprep.subr.mxu0 0.0
          %8785 = vmatpush1.msra.mxu0 0.0
          %8786 = vmatprep.subr.mxu0 0.0
          %8787 = vmatpush1.msra.mxu0 0.0
          %8788 = vmatprep.subr.mxu0 0.0
          %8789 = vmatpush1.msra.mxu0 0.0
          %8790 = vmatprep.subr.mxu0 0.0
          %8791 = vmatpush1.msra.mxu0 0.0
          %8792 = vmatprep.subr.mxu0 0.0
          %8793 = vmatpush1.msra.mxu0 0.0
          %8794 = vmatprep.subr.mxu0 0.0
          %8795 = vmatpush1.msra.mxu0 0.0
          %8796 = vmatprep.subr.mxu0 0.0
          %8797 = vmatpush1.msra.mxu0 0.0
          %8798 = vmatprep.subr.mxu0 0.0
          %8799 = vmatpush1.msra.mxu0 0.0
          %8800 = vmatprep.subr.mxu0 0.0
          %8801 = vmatpush1.msra.mxu0 0.0
          %8802 = vmatprep.subr.mxu0 0.0
          %8803 = vmatpush1.msra.mxu0 0.0
          %8804 = vmatprep.subr.mxu0 0.0
          %8805 = vmatpush1.msra.mxu0 0.0
          %8806 = vmatprep.subr.mxu0 0.0
          %8807 = vmatpush1.msra.mxu0 0.0
          %8808 = vmatprep.mubr.f32.mxu0 0.0
          %8809 = vmatmul.mubr.f32.gmra.mrb[0].mxu0 %v8439
          %v8810 = vpop.f32.mrb[0].mxu0
          %v8811 = vadd.f32 0.0, %v8810
          %v8812 = vpop.f32.mrb[0].mxu0
          %8813 = vmatprep.mubr.f32.mxu0 0.0
          %8814 = vmatmul.mubr.f32.gmra.mrb[0].mxu0 %v8442
          %v8815 = vpop.f32.mrb[0].mxu0
          %v8816 = vadd.f32 0.0, %v8815
          %v8817 = vpop.f32.mrb[0].mxu0
          %8818 = vdwg.mxu0
          %v8820 = vsel %vm8437, %v8511, 0
          %v8823 = vsel %vm8437, %v8516, 0
          %v8826 = vsel %vm8437, %v8586, 0
          %v8829 = vsel %vm8437, %v8591, 0
          %v8832 = vsel %vm8437, %v8661, 0
          %v8835 = vsel %vm8437, %v8666, 0
          %v8838 = vsel %vm8437, %v8736, 0
          %v8841 = vsel %vm8437, %v8741, 0
          %v8844 = vsel %vm8437, %v8811, 0
          %v8847 = vsel %vm8437, %v8816, 0
          %8849 = vmatprep.subr.mxu0 0.0
          %8850 = vmatpush1.msra.mxu0 %v8425
          %8851 = vmatprep.subr.mxu0 0.0
          %8852 = vmatpush1.msra.mxu0 %v8426
          %8853 = vmatprep.subr.mxu0 0.0
          %8854 = vmatpush1.msra.mxu0 %v8427
          %8855 = vmatprep.subr.mxu0 0.0
          %8856 = vmatpush1.msra.mxu0 0.0
          %8857 = vmatprep.subr.mxu0 0.0
          %8858 = vmatpush1.msra.mxu0 0.0
          %8859 = vmatprep.subr.mxu0 0.0
          %8860 = vmatpush1.msra.mxu0 0.0
          %8861 = vmatprep.subr.mxu0 0.0
          %8862 = vmatpush1.msra.mxu0 0.0
          %8863 = vmatprep.subr.mxu0 0.0
          %8864 = vmatpush1.msra.mxu0 0.0
          %8865 = vmatprep.subr.mxu0 0.0
          %8866 = vmatpush1.msra.mxu0 0.0
          %8867 = vmatprep.subr.mxu0 0.0
          %8868 = vmatpush1.msra.mxu0 0.0
          %8869 = vmatprep.subr.mxu0 0.0
          %8870 = vmatpush1.msra.mxu0 0.0
          %8871 = vmatprep.subr.mxu0 0.0
          %8872 = vmatpush1.msra.mxu0 0.0
          %8873 = vmatprep.subr.mxu0 0.0
          %8874 = vmatpush1.msra.mxu0 0.0
          %8875 = vmatprep.subr.mxu0 0.0
          %8876 = vmatpush1.msra.mxu0 0.0
          %8877 = vmatprep.subr.mxu0 0.0
          %8878 = vmatpush1.msra.mxu0 0.0
          %8879 = vmatprep.subr.mxu0 0.0
          %8880 = vmatpush1.msra.mxu0 0.0
          %8881 = vmatprep.subr.mxu0 0.0
          %8882 = vmatpush1.msra.mxu0 0.0
          %8883 = vmatprep.subr.mxu0 0.0
          %8884 = vmatpush1.msra.mxu0 0.0
          %8885 = vmatprep.subr.mxu0 0.0
          %8886 = vmatpush1.msra.mxu0 0.0
          %8887 = vmatprep.subr.mxu0 0.0
          %8888 = vmatpush1.msra.mxu0 0.0
          %8889 = vmatprep.subr.mxu0 0.0
          %8890 = vmatpush1.msra.mxu0 0.0
          %8891 = vmatprep.subr.mxu0 0.0
          %8892 = vmatpush1.msra.mxu0 0.0
          %8893 = vmatprep.subr.mxu0 0.0
          %8894 = vmatpush1.msra.mxu0 0.0
          %8895 = vmatprep.subr.mxu0 0.0
          %8896 = vmatpush1.msra.mxu0 0.0
          %8897 = vmatprep.subr.mxu0 0.0
          %8898 = vmatpush1.msra.mxu0 0.0
          %8899 = vmatprep.subr.mxu0 0.0
          %8900 = vmatpush1.msra.mxu0 0.0
          %8901 = vmatprep.subr.mxu0 0.0
          %8902 = vmatpush1.msra.mxu0 0.0
          %8903 = vmatprep.subr.mxu0 0.0
          %8904 = vmatpush1.msra.mxu0 0.0
          %8905 = vmatprep.subr.mxu0 0.0
          %8906 = vmatpush1.msra.mxu0 0.0
          %8907 = vmatprep.subr.mxu0 0.0
          %8908 = vmatpush1.msra.mxu0 0.0
          %8909 = vmatprep.subr.mxu0 0.0
          %8910 = vmatpush1.msra.mxu0 0.0
          %8911 = vmatprep.subr.mxu0 0.0
          %8912 = vmatpush1.msra.mxu0 0.0
          %8913 = vmatprep.mubr.f32.mxu0 0.0
          %8914 = vmatmul.mubr.f32.gmra.mrb[0].mxu0 %v8820
          %v8915 = vpop.f32.mrb[0].mxu0
          %v8916 = vadd.f32 0.0, %v8915
          %v8917 = vpop.f32.mrb[0].mxu0
          %8918 = vmatprep.mubr.f32.mxu0 0.0
          %8919 = vmatmul.mubr.f32.gmra.mrb[0].mxu0 %v8823
          %v8920 = vpop.f32.mrb[0].mxu0
          %v8921 = vadd.f32 0.0, %v8920
          %v8922 = vpop.f32.mrb[0].mxu0
          %8923 = vmatprep.mubr.f32.mxu0 0.0
          %8924 = vmatmul.mubr.f32.gmra.mrb[0].mxu0 %v8826
          %v8925 = vpop.f32.mrb[0].mxu0
          %v8926 = vadd.f32 0.0, %v8925
          %v8927 = vpop.f32.mrb[0].mxu0
          %8928 = vmatprep.mubr.f32.mxu0 0.0
          %8929 = vmatmul.mubr.f32.gmra.mrb[0].mxu0 %v8829
          %v8930 = vpop.f32.mrb[0].mxu0
          %v8931 = vadd.f32 0.0, %v8930
          %v8932 = vpop.f32.mrb[0].mxu0
          %8933 = vmatprep.mubr.f32.mxu0 0.0
          %8934 = vmatmul.mubr.f32.gmra.mrb[0].mxu0 %v8832
          %v8935 = vpop.f32.mrb[0].mxu0
          %v8936 = vadd.f32 0.0, %v8935
          %v8937 = vpop.f32.mrb[0].mxu0
          %8938 = vmatprep.mubr.f32.mxu0 0.0
          %8939 = vmatmul.mubr.f32.gmra.mrb[0].mxu0 %v8835
          %v8940 = vpop.f32.mrb[0].mxu0
          %v8941 = vadd.f32 0.0, %v8940
          %v8942 = vpop.f32.mrb[0].mxu0
          %8943 = vmatprep.mubr.f32.mxu0 0.0
          %8944 = vmatmul.mubr.f32.gmra.mrb[0].mxu0 %v8838
          %v8945 = vpop.f32.mrb[0].mxu0
          %v8946 = vadd.f32 0.0, %v8945
          %v8947 = vpop.f32.mrb[0].mxu0
          %8948 = vmatprep.mubr.f32.mxu0 0.0
          %8949 = vmatmul.mubr.f32.gmra.mrb[0].mxu0 %v8841
          %v8950 = vpop.f32.mrb[0].mxu0
          %v8951 = vadd.f32 0.0, %v8950
          %v8952 = vpop.f32.mrb[0].mxu0
          %8953 = vmatprep.mubr.f32.mxu0 0.0
          %8954 = vmatmul.mubr.f32.gmra.mrb[0].mxu0 %v8844
          %v8955 = vpop.f32.mrb[0].mxu0
          %v8956 = vadd.f32 0.0, %v8955
          %v8957 = vpop.f32.mrb[0].mxu0
          %8958 = vmatprep.mubr.f32.mxu0 0.0
          %8959 = vmatmul.mubr.f32.gmra.mrb[0].mxu0 %v8847
          %v8960 = vpop.f32.mrb[0].mxu0
          %v8961 = vadd.f32 0.0, %v8960
          %v8962 = vpop.f32.mrb[0].mxu0
          %8963 = vdwg.mxu0
          %v8964 = vmul.f32 %v8916, %v8916
          %v8965 = vmul.f32 %v8921, %v8921
          %v8966 = vmul.f32 %v8926, %v8926
          %v8967 = vmul.f32 %v8931, %v8931
          %v8968 = vmul.f32 %v8916, %v8926
          %v8969 = vmul.f32 %v8921, %v8931
          %v8970 = vmul.f32 %v8968, 2.0
          %v8971 = vmul.f32 %v8969, 2.0
          %v8972 = vadd.f32 %v8970, 6.5025
          %v8973 = vadd.f32 %v8971, 6.5025
          %v8974 = vadd.f32 %v8964, %v8966
          %v8975 = vadd.f32 %v8965, %v8967
          %v8976 = vadd.f32 %v8974, 6.5025
          %v8977 = vadd.f32 %v8975, 6.5025
          %v8978 = vsub.f32 %v8956, %v8968
          %v8979 = vsub.f32 %v8961, %v8969
          %v8980 = vmul.f32 %v8978, 2.0
          %v8981 = vmul.f32 %v8979, 2.0
          %v8982 = vadd.f32 %v8980, 58.5225
          %v8983 = vadd.f32 %v8981, 58.5225
          %v8984 = vsub.f32 %v8936, %v8964
          %v8985 = vsub.f32 %v8941, %v8965
          %v8986 = vsub.f32 %v8946, %v8966
          %v8987 = vsub.f32 %v8951, %v8967
          %v8988 = vadd.f32 %v8984, %v8986
          %v8989 = vadd.f32 %v8985, %v8987
          %v8990 = vadd.f32 %v8988, 58.5225
          %v8991 = vadd.f32 %v8989, 58.5225
          %v8992 = vrcp.pop %v8990
          %v8993 = vmul.f32 %v8982, %v8992
          %v8994 = vrcp.pop %v8991
          %v8995 = vmul.f32 %v8983, %v8994
          %v8996 = vrcp.pop %v8976
          %v8997 = vmul.f32 %v8972, %v8996
          %v8998 = vrcp.pop %v8977
          %v8999 = vmul.f32 %v8973, %v8998
          %v9000 = vmul.f32 %v8997, %v8993
          %v9001 = vmul.f32 %v8999, %v8995
          %vm9002 = vcmask 113664
          %v9003 = vsel %vm9002, %v9000, 0.0
          %vm9004 = vcmask 111616
          %v9005 = vsel %vm9004, %v9001, 0.0
          %v9006 = vadd.f32 %v9003, %v9005
          %9007 = vadd.xlane.f32.xlu0 %v9006
          %v9008 = vpop.xlane.xlu0 %9007
          %v9009 = vrot.slane %v9008, 4
          %v9010 = vadd.f32 %v9008, %v9009
          %v9011 = vrot.slane %v9010, 2
          %v9012 = vadd.f32 %v9010, %v9011
          %v9013 = vrot.slane %v9012, 1
          %v9014 = vadd.f32 %v9012, %v9013
          %s9015 = vtos %v9014
          %s9016 = smul.f32 %s9015, 0.0051020407
          %v9017 = vsel %vm9002, %v8993, 0.0
          %v9018 = vsel %vm9004, %v8995, 0.0
          %v9019 = vadd.f32 %v9017, %v9018
          %9020 = vadd.xlane.f32.xlu0 %v9019
          %v9021 = vpop.xlane.xlu0 %9020
          %v9022 = vrot.slane %v9021, 4
          %v9023 = vadd.f32 %v9021, %v9022
          %v9024 = vrot.slane %v9023, 2
          %v9025 = vadd.f32 %v9023, %v9024
          %v9026 = vrot.slane %v9025, 1
          %v9027 = vadd.f32 %v9025, %v9026
          %s9028 = vtos %v9027
          %s9029 = smul.f32 %s9028, 0.0051020407
          %vm9030 = vcmp.eq.s32.totalorder %v954, 6
          %vm9031 = vcmp.eq.s32.totalorder %v955, 6
          %vm9032 = vmand %vm9030, %vm4526
          %vm9033 = vmand %vm9031, %vm4526
          %v9034 = vstv %s9016
          %v9035 = vsel %vm9032, %v9034, %v8065
          %v9036 = vsel %vm9033, %v9034, %v8066
          %vm9037 = vcmp.eq.s32.totalorder %v954, 7
          %vm9038 = vcmp.eq.s32.totalorder %v955, 7
          %vm9039 = vmand %vm9037, %vm4526
          %vm9040 = vmand %vm9038, %vm4526
          %v9041 = vstv %s9029
          %v9042 = vsel %vm9039, %v9041, %v9035
          %v9043 = vsel %vm9040, %v9041, %v9036
          %v9044 = vld [vmem:[#allocation25] sm:$0xff]
          %v9045 = vld [vmem:[#allocation25 + $0x8] sm:$0xf]
          %v9046 = vld [vmem:[#allocation31] sm:$0xff]
          %v9047 = vld [vmem:[#allocation31 + $0x8] sm:$0xff]
          %v9048 = vld [vmem:[#allocation31 + $0x10] sm:$0xff]
          %v9050 = vsel %vm8437, %v9044, 0
          %v9053 = vsel %vm8437, %v9045, 0
          %9055 = vmatprep.subr.mxu0 0.0
          %9056 = vmatpush1.msra.mxu0 %v8241
          %9057 = vmatprep.subr.mxu0 0.0
          %9058 = vmatpush1.msra.mxu0 %v8246
          %9059 = vmatprep.subr.mxu0 0.0
          %9060 = vmatpush1.msra.mxu0 %v8251
          %9061 = vmatprep.subr.mxu0 0.0
          %9062 = vmatpush1.msra.mxu0 0.0
          %9063 = vmatprep.subr.mxu0 0.0
          %9064 = vmatpush1.msra.mxu0 0.0
          %9065 = vmatprep.subr.mxu0 0.0
          %9066 = vmatpush1.msra.mxu0 0.0
          %9067 = vmatprep.subr.mxu0 0.0
          %9068 = vmatpush1.msra.mxu0 0.0
          %9069 = vmatprep.subr.mxu0 0.0
          %9070 = vmatpush1.msra.mxu0 0.0
          %9071 = vmatprep.subr.mxu0 0.0
          %9072 = vmatpush1.msra.mxu0 0.0
          %9073 = vmatprep.subr.mxu0 0.0
          %9074 = vmatpush1.msra.mxu0 0.0
          %9075 = vmatprep.subr.mxu0 0.0
          %9076 = vmatpush1.msra.mxu0 0.0
          %9077 = vmatprep.subr.mxu0 0.0
          %9078 = vmatpush1.msra.mxu0 0.0
          %9079 = vmatprep.subr.mxu0 0.0
          %9080 = vmatpush1.msra.mxu0 0.0
          %9081 = vmatprep.subr.mxu0 0.0
          %9082 = vmatpush1.msra.mxu0 0.0
          %9083 = vmatprep.subr.mxu0 0.0
          %9084 = vmatpush1.msra.mxu0 0.0
          %9085 = vmatprep.subr.mxu0 0.0
          %9086 = vmatpush1.msra.mxu0 0.0
          %9087 = vmatprep.subr.mxu0 0.0
          %9088 = vmatpush1.msra.mxu0 0.0
          %9089 = vmatprep.subr.mxu0 0.0
          %9090 = vmatpush1.msra.mxu0 0.0
          %9091 = vmatprep.subr.mxu0 0.0
          %9092 = vmatpush1.msra.mxu0 0.0
          %9093 = vmatprep.subr.mxu0 0.0
          %9094 = vmatpush1.msra.mxu0 0.0
          %9095 = vmatprep.subr.mxu0 0.0
          %9096 = vmatpush1.msra.mxu0 0.0
          %9097 = vmatprep.subr.mxu0 0.0
          %9098 = vmatpush1.msra.mxu0 0.0
          %9099 = vmatprep.subr.mxu0 0.0
          %9100 = vmatpush1.msra.mxu0 0.0
          %9101 = vmatprep.subr.mxu0 0.0
          %9102 = vmatpush1.msra.mxu0 0.0
          %9103 = vmatprep.subr.mxu0 0.0
          %9104 = vmatpush1.msra.mxu0 0.0
          %9105 = vmatprep.subr.mxu0 0.0
          %9106 = vmatpush1.msra.mxu0 0.0
          %9107 = vmatprep.subr.mxu0 0.0
          %9108 = vmatpush1.msra.mxu0 0.0
          %9109 = vmatprep.subr.mxu0 0.0
          %9110 = vmatpush1.msra.mxu0 0.0
          %9111 = vmatprep.subr.mxu0 0.0
          %9112 = vmatpush1.msra.mxu0 0.0
          %9113 = vmatprep.subr.mxu0 0.0
          %9114 = vmatpush1.msra.mxu0 0.0
          %9115 = vmatprep.subr.mxu0 0.0
          %9116 = vmatpush1.msra.mxu0 0.0
          %9117 = vmatprep.subr.mxu0 0.0
          %9118 = vmatpush1.msra.mxu0 0.0
          %9119 = vmatprep.mubr.f32.mxu0 0.0
          %9120 = vmatmul.mubr.f32.gmra.mrb[0].mxu0 %v9050
          %v9121 = vpop.f32.mrb[0].mxu0
          %v9122 = vadd.f32 0.0, %v9121
          %v9123 = vpop.f32.mrb[0].mxu0
          %9124 = vmatprep.mubr.f32.mxu0 0.0
          %9125 = vmatmul.mubr.f32.gmra.mrb[0].mxu0 %v9053
          %v9126 = vpop.f32.mrb[0].mxu0
          %v9127 = vadd.f32 0.0, %v9126
          %v9128 = vpop.f32.mrb[0].mxu0
          %9129 = vdwg.mxu0
          %v9131 = vsel %vm8437, %v9122, 0
          %v9134 = vsel %vm8437, %v9127, 0
          %9136 = vmatprep.subr.mxu0 0.0
          %9137 = vmatpush1.msra.mxu0 %v9046
          %9138 = vmatprep.subr.mxu0 0.0
          %9139 = vmatpush1.msra.mxu0 %v9047
          %9140 = vmatprep.subr.mxu0 0.0
          %9141 = vmatpush1.msra.mxu0 %v9048
          %9142 = vmatprep.subr.mxu0 0.0
          %9143 = vmatpush1.msra.mxu0 0.0
          %9144 = vmatprep.subr.mxu0 0.0
          %9145 = vmatpush1.msra.mxu0 0.0
          %9146 = vmatprep.subr.mxu0 0.0
          %9147 = vmatpush1.msra.mxu0 0.0
          %9148 = vmatprep.subr.mxu0 0.0
          %9149 = vmatpush1.msra.mxu0 0.0
          %9150 = vmatprep.subr.mxu0 0.0
          %9151 = vmatpush1.msra.mxu0 0.0
          %9152 = vmatprep.subr.mxu0 0.0
          %9153 = vmatpush1.msra.mxu0 0.0
          %9154 = vmatprep.subr.mxu0 0.0
          %9155 = vmatpush1.msra.mxu0 0.0
          %9156 = vmatprep.subr.mxu0 0.0
          %9157 = vmatpush1.msra.mxu0 0.0
          %9158 = vmatprep.subr.mxu0 0.0
          %9159 = vmatpush1.msra.mxu0 0.0
          %9160 = vmatprep.subr.mxu0 0.0
          %9161 = vmatpush1.msra.mxu0 0.0
          %9162 = vmatprep.subr.mxu0 0.0
          %9163 = vmatpush1.msra.mxu0 0.0
          %9164 = vmatprep.subr.mxu0 0.0
          %9165 = vmatpush1.msra.mxu0 0.0
          %9166 = vmatprep.subr.mxu0 0.0
          %9167 = vmatpush1.msra.mxu0 0.0
          %9168 = vmatprep.subr.mxu0 0.0
          %9169 = vmatpush1.msra.mxu0 0.0
          %9170 = vmatprep.subr.mxu0 0.0
          %9171 = vmatpush1.msra.mxu0 0.0
          %9172 = vmatprep.subr.mxu0 0.0
          %9173 = vmatpush1.msra.mxu0 0.0
          %9174 = vmatprep.subr.mxu0 0.0
          %9175 = vmatpush1.msra.mxu0 0.0
          %9176 = vmatprep.subr.mxu0 0.0
          %9177 = vmatpush1.msra.mxu0 0.0
          %9178 = vmatprep.subr.mxu0 0.0
          %9179 = vmatpush1.msra.mxu0 0.0
          %9180 = vmatprep.subr.mxu0 0.0
          %9181 = vmatpush1.msra.mxu0 0.0
          %9182 = vmatprep.subr.mxu0 0.0
          %9183 = vmatpush1.msra.mxu0 0.0
          %9184 = vmatprep.subr.mxu0 0.0
          %9185 = vmatpush1.msra.mxu0 0.0
          %9186 = vmatprep.subr.mxu0 0.0
          %9187 = vmatpush1.msra.mxu0 0.0
          %9188 = vmatprep.subr.mxu0 0.0
          %9189 = vmatpush1.msra.mxu0 0.0
          %9190 = vmatprep.subr.mxu0 0.0
          %9191 = vmatpush1.msra.mxu0 0.0
          %9192 = vmatprep.subr.mxu0 0.0
          %9193 = vmatpush1.msra.mxu0 0.0
          %9194 = vmatprep.subr.mxu0 0.0
          %9195 = vmatpush1.msra.mxu0 0.0
          %9196 = vmatprep.subr.mxu0 0.0
          %9197 = vmatpush1.msra.mxu0 0.0
          %9198 = vmatprep.subr.mxu0 0.0
          %9199 = vmatpush1.msra.mxu0 0.0
          %9200 = vmatprep.mubr.f32.mxu0 0.0
          %9201 = vmatmul.mubr.f32.gmra.mrb[0].mxu0 %v9131
          %v9202 = vpop.f32.mrb[0].mxu0
          %v9203 = vadd.f32 0.0, %v9202
          %v9204 = vpop.f32.mrb[0].mxu0
          %9205 = vmatprep.mubr.f32.mxu0 0.0
          %9206 = vmatmul.mubr.f32.gmra.mrb[0].mxu0 %v9134
          %v9207 = vpop.f32.mrb[0].mxu0
          %v9208 = vadd.f32 0.0, %v9207
          %v9209 = vpop.f32.mrb[0].mxu0
          %9210 = vdwg.mxu0
          %9211 = vmatprep.subr.mxu0 0.0
          %9212 = vmatpush1.msra.mxu0 %v8410
          %9213 = vmatprep.subr.mxu0 0.0
          %9214 = vmatpush1.msra.mxu0 %v8415
          %9215 = vmatprep.subr.mxu0 0.0
          %9216 = vmatpush1.msra.mxu0 %v8420
          %9217 = vmatprep.subr.mxu0 0.0
          %9218 = vmatpush1.msra.mxu0 0.0
          %9219 = vmatprep.subr.mxu0 0.0
          %9220 = vmatpush1.msra.mxu0 0.0
          %9221 = vmatprep.subr.mxu0 0.0
          %9222 = vmatpush1.msra.mxu0 0.0
          %9223 = vmatprep.subr.mxu0 0.0
          %9224 = vmatpush1.msra.mxu0 0.0
          %9225 = vmatprep.subr.mxu0 0.0
          %9226 = vmatpush1.msra.mxu0 0.0
          %9227 = vmatprep.subr.mxu0 0.0
          %9228 = vmatpush1.msra.mxu0 0.0
          %9229 = vmatprep.subr.mxu0 0.0
          %9230 = vmatpush1.msra.mxu0 0.0
          %9231 = vmatprep.subr.mxu0 0.0
          %9232 = vmatpush1.msra.mxu0 0.0
          %9233 = vmatprep.subr.mxu0 0.0
          %9234 = vmatpush1.msra.mxu0 0.0
          %9235 = vmatprep.subr.mxu0 0.0
          %9236 = vmatpush1.msra.mxu0 0.0
          %9237 = vmatprep.subr.mxu0 0.0
          %9238 = vmatpush1.msra.mxu0 0.0
          %9239 = vmatprep.subr.mxu0 0.0
          %9240 = vmatpush1.msra.mxu0 0.0
          %9241 = vmatprep.subr.mxu0 0.0
          %9242 = vmatpush1.msra.mxu0 0.0
          %9243 = vmatprep.subr.mxu0 0.0
          %9244 = vmatpush1.msra.mxu0 0.0
          %9245 = vmatprep.subr.mxu0 0.0
          %9246 = vmatpush1.msra.mxu0 0.0
          %9247 = vmatprep.subr.mxu0 0.0
          %9248 = vmatpush1.msra.mxu0 0.0
          %9249 = vmatprep.subr.mxu0 0.0
          %9250 = vmatpush1.msra.mxu0 0.0
          %9251 = vmatprep.subr.mxu0 0.0
          %9252 = vmatpush1.msra.mxu0 0.0
          %9253 = vmatprep.subr.mxu0 0.0
          %9254 = vmatpush1.msra.mxu0 0.0
          %9255 = vmatprep.subr.mxu0 0.0
          %9256 = vmatpush1.msra.mxu0 0.0
          %9257 = vmatprep.subr.mxu0 0.0
          %9258 = vmatpush1.msra.mxu0 0.0
          %9259 = vmatprep.subr.mxu0 0.0
          %9260 = vmatpush1.msra.mxu0 0.0
          %9261 = vmatprep.subr.mxu0 0.0
          %9262 = vmatpush1.msra.mxu0 0.0
          %9263 = vmatprep.subr.mxu0 0.0
          %9264 = vmatpush1.msra.mxu0 0.0
          %9265 = vmatprep.subr.mxu0 0.0
          %9266 = vmatpush1.msra.mxu0 0.0
          %9267 = vmatprep.subr.mxu0 0.0
          %9268 = vmatpush1.msra.mxu0 0.0
          %9269 = vmatprep.subr.mxu0 0.0
          %9270 = vmatpush1.msra.mxu0 0.0
          %9271 = vmatprep.subr.mxu0 0.0
          %9272 = vmatpush1.msra.mxu0 0.0
          %9273 = vmatprep.subr.mxu0 0.0
          %9274 = vmatpush1.msra.mxu0 0.0
          %9275 = vmatprep.mubr.f32.mxu0 0.0
          %9276 = vmatmul.mubr.f32.gmra.mrb[0].mxu0 %v9050
          %v9277 = vpop.f32.mrb[0].mxu0
          %v9278 = vadd.f32 0.0, %v9277
          %v9279 = vpop.f32.mrb[0].mxu0
          %9280 = vmatprep.mubr.f32.mxu0 0.0
          %9281 = vmatmul.mubr.f32.gmra.mrb[0].mxu0 %v9053
          %v9282 = vpop.f32.mrb[0].mxu0
          %v9283 = vadd.f32 0.0, %v9282
          %v9284 = vpop.f32.mrb[0].mxu0
          %9285 = vdwg.mxu0
          %v9287 = vsel %vm8437, %v9278, 0
          %v9290 = vsel %vm8437, %v9283, 0
          %9292 = vmatprep.subr.mxu0 0.0
          %9293 = vmatpush1.msra.mxu0 %v9046
          %9294 = vmatprep.subr.mxu0 0.0
          %9295 = vmatpush1.msra.mxu0 %v9047
          %9296 = vmatprep.subr.mxu0 0.0
          %9297 = vmatpush1.msra.mxu0 %v9048
          %9298 = vmatprep.subr.mxu0 0.0
          %9299 = vmatpush1.msra.mxu0 0.0
          %9300 = vmatprep.subr.mxu0 0.0
          %9301 = vmatpush1.msra.mxu0 0.0
          %9302 = vmatprep.subr.mxu0 0.0
          %9303 = vmatpush1.msra.mxu0 0.0
          %9304 = vmatprep.subr.mxu0 0.0
          %9305 = vmatpush1.msra.mxu0 0.0
          %9306 = vmatprep.subr.mxu0 0.0
          %9307 = vmatpush1.msra.mxu0 0.0
          %9308 = vmatprep.subr.mxu0 0.0
          %9309 = vmatpush1.msra.mxu0 0.0
          %9310 = vmatprep.subr.mxu0 0.0
          %9311 = vmatpush1.msra.mxu0 0.0
          %9312 = vmatprep.subr.mxu0 0.0
          %9313 = vmatpush1.msra.mxu0 0.0
          %9314 = vmatprep.subr.mxu0 0.0
          %9315 = vmatpush1.msra.mxu0 0.0
          %9316 = vmatprep.subr.mxu0 0.0
          %9317 = vmatpush1.msra.mxu0 0.0
          %9318 = vmatprep.subr.mxu0 0.0
          %9319 = vmatpush1.msra.mxu0 0.0
          %9320 = vmatprep.subr.mxu0 0.0
          %9321 = vmatpush1.msra.mxu0 0.0
          %9322 = vmatprep.subr.mxu0 0.0
          %9323 = vmatpush1.msra.mxu0 0.0
          %9324 = vmatprep.subr.mxu0 0.0
          %9325 = vmatpush1.msra.mxu0 0.0
          %9326 = vmatprep.subr.mxu0 0.0
          %9327 = vmatpush1.msra.mxu0 0.0
          %9328 = vmatprep.subr.mxu0 0.0
          %9329 = vmatpush1.msra.mxu0 0.0
          %9330 = vmatprep.subr.mxu0 0.0
          %9331 = vmatpush1.msra.mxu0 0.0
          %9332 = vmatprep.subr.mxu0 0.0
          %9333 = vmatpush1.msra.mxu0 0.0
          %9334 = vmatprep.subr.mxu0 0.0
          %9335 = vmatpush1.msra.mxu0 0.0
          %9336 = vmatprep.subr.mxu0 0.0
          %9337 = vmatpush1.msra.mxu0 0.0
          %9338 = vmatprep.subr.mxu0 0.0
          %9339 = vmatpush1.msra.mxu0 0.0
          %9340 = vmatprep.subr.mxu0 0.0
          %9341 = vmatpush1.msra.mxu0 0.0
          %9342 = vmatprep.subr.mxu0 0.0
          %9343 = vmatpush1.msra.mxu0 0.0
          %9344 = vmatprep.subr.mxu0 0.0
          %9345 = vmatpush1.msra.mxu0 0.0
          %9346 = vmatprep.subr.mxu0 0.0
          %9347 = vmatpush1.msra.mxu0 0.0
          %9348 = vmatprep.subr.mxu0 0.0
          %9349 = vmatpush1.msra.mxu0 0.0
          %9350 = vmatprep.subr.mxu0 0.0
          %9351 = vmatpush1.msra.mxu0 0.0
          %9352 = vmatprep.subr.mxu0 0.0
          %9353 = vmatpush1.msra.mxu0 0.0
          %9354 = vmatprep.subr.mxu0 0.0
          %9355 = vmatpush1.msra.mxu0 0.0
          %9356 = vmatprep.mubr.f32.mxu0 0.0
          %9357 = vmatmul.mubr.f32.gmra.mrb[0].mxu0 %v9287
          %v9358 = vpop.f32.mrb[0].mxu0
          %v9359 = vadd.f32 0.0, %v9358
          %v9360 = vpop.f32.mrb[0].mxu0
          %9361 = vmatprep.mubr.f32.mxu0 0.0
          %9362 = vmatmul.mubr.f32.gmra.mrb[0].mxu0 %v9290
          %v9363 = vpop.f32.mrb[0].mxu0
          %v9364 = vadd.f32 0.0, %v9363
          %v9365 = vpop.f32.mrb[0].mxu0
          %9366 = vdwg.mxu0
          %v9367 = vld [vmem:[#allocation12] sm:$0xff]
          %v9368 = vld [vmem:[#allocation19] sm:$0xff]
          %v9369 = vld [vmem:[#allocation19 + $0x8] sm:$0xf]
          %v9370 = vmul.f32 %v9203, %v9203
          %v9371 = vmul.f32 %v9208, %v9208
          %v9372 = vmul.f32 %v9359, %v9359
          %v9373 = vmul.f32 %v9364, %v9364
          %v9374 = vmul.f32 %v9203, %v9359
          %v9375 = vmul.f32 %v9208, %v9364
          %vm9376 = vcmask 97280
          %v9378 = vsel %vm9376, %v9367, 0
          %vm9380 = vcmask 1043456
          %v9382 = vsel %vm9380, %v9208, 0
          %9384 = vmatprep.subr.mxu0 0.0
          %9385 = vmatpush1.msra.mxu0 %v9203
          %9386 = vmatprep.subr.mxu0 0.0
          %9387 = vmatpush1.msra.mxu0 %v9382
          %9388 = vmatprep.subr.mxu0 0.0
          %9389 = vmatpush1.msra.mxu0 0.0
          %9390 = vmatprep.subr.mxu0 0.0
          %9391 = vmatpush1.msra.mxu0 0.0
          %9392 = vmatprep.subr.mxu0 0.0
          %9393 = vmatpush1.msra.mxu0 0.0
          %9394 = vmatprep.subr.mxu0 0.0
          %9395 = vmatpush1.msra.mxu0 0.0
          %9396 = vmatprep.subr.mxu0 0.0
          %9397 = vmatpush1.msra.mxu0 0.0
          %9398 = vmatprep.subr.mxu0 0.0
          %9399 = vmatpush1.msra.mxu0 0.0
          %9400 = vmatprep.subr.mxu0 0.0
          %9401 = vmatpush1.msra.mxu0 0.0
          %9402 = vmatprep.subr.mxu0 0.0
          %9403 = vmatpush1.msra.mxu0 0.0
          %9404 = vmatprep.subr.mxu0 0.0
          %9405 = vmatpush1.msra.mxu0 0.0
          %9406 = vmatprep.subr.mxu0 0.0
          %9407 = vmatpush1.msra.mxu0 0.0
          %9408 = vmatprep.subr.mxu0 0.0
          %9409 = vmatpush1.msra.mxu0 0.0
          %9410 = vmatprep.subr.mxu0 0.0
          %9411 = vmatpush1.msra.mxu0 0.0
          %9412 = vmatprep.subr.mxu0 0.0
          %9413 = vmatpush1.msra.mxu0 0.0
          %9414 = vmatprep.subr.mxu0 0.0
          %9415 = vmatpush1.msra.mxu0 0.0
          %9416 = vmatprep.subr.mxu0 0.0
          %9417 = vmatpush1.msra.mxu0 0.0
          %9418 = vmatprep.subr.mxu0 0.0
          %9419 = vmatpush1.msra.mxu0 0.0
          %9420 = vmatprep.subr.mxu0 0.0
          %9421 = vmatpush1.msra.mxu0 0.0
          %9422 = vmatprep.subr.mxu0 0.0
          %9423 = vmatpush1.msra.mxu0 0.0
          %9424 = vmatprep.subr.mxu0 0.0
          %9425 = vmatpush1.msra.mxu0 0.0
          %9426 = vmatprep.subr.mxu0 0.0
          %9427 = vmatpush1.msra.mxu0 0.0
          %9428 = vmatprep.subr.mxu0 0.0
          %9429 = vmatpush1.msra.mxu0 0.0
          %9430 = vmatprep.subr.mxu0 0.0
          %9431 = vmatpush1.msra.mxu0 0.0
          %9432 = vmatprep.subr.mxu0 0.0
          %9433 = vmatpush1.msra.mxu0 0.0
          %9434 = vmatprep.subr.mxu0 0.0
          %9435 = vmatpush1.msra.mxu0 0.0
          %9436 = vmatprep.subr.mxu0 0.0
          %9437 = vmatpush1.msra.mxu0 0.0
          %9438 = vmatprep.subr.mxu0 0.0
          %9439 = vmatpush1.msra.mxu0 0.0
          %9440 = vmatprep.subr.mxu0 0.0
          %9441 = vmatpush1.msra.mxu0 0.0
          %9442 = vmatprep.subr.mxu0 0.0
          %9443 = vmatpush1.msra.mxu0 0.0
          %9444 = vmatprep.subr.mxu0 0.0
          %9445 = vmatpush1.msra.mxu0 0.0
          %9446 = vmatprep.subr.mxu0 0.0
          %9447 = vmatpush1.msra.mxu0 0.0
          %9448 = vmatprep.mubr.f32.mxu0 0.0
          %9449 = vmatmul.mubr.f32.gmra.mrb[0].mxu0 %v9378
          %v9450 = vpop.f32.mrb[0].mxu0
          %v9451 = vadd.f32 0.0, %v9450
          %v9452 = vpop.f32.mrb[0].mxu0
          %9453 = vdwg.mxu0
          %v9455 = vsel %vm9380, %v9364, 0
          %9457 = vmatprep.subr.mxu0 0.0
          %9458 = vmatpush1.msra.mxu0 %v9359
          %9459 = vmatprep.subr.mxu0 0.0
          %9460 = vmatpush1.msra.mxu0 %v9455
          %9461 = vmatprep.subr.mxu0 0.0
          %9462 = vmatpush1.msra.mxu0 0.0
          %9463 = vmatprep.subr.mxu0 0.0
          %9464 = vmatpush1.msra.mxu0 0.0
          %9465 = vmatprep.subr.mxu0 0.0
          %9466 = vmatpush1.msra.mxu0 0.0
          %9467 = vmatprep.subr.mxu0 0.0
          %9468 = vmatpush1.msra.mxu0 0.0
          %9469 = vmatprep.subr.mxu0 0.0
          %9470 = vmatpush1.msra.mxu0 0.0
          %9471 = vmatprep.subr.mxu0 0.0
          %9472 = vmatpush1.msra.mxu0 0.0
          %9473 = vmatprep.subr.mxu0 0.0
          %9474 = vmatpush1.msra.mxu0 0.0
          %9475 = vmatprep.subr.mxu0 0.0
          %9476 = vmatpush1.msra.mxu0 0.0
          %9477 = vmatprep.subr.mxu0 0.0
          %9478 = vmatpush1.msra.mxu0 0.0
          %9479 = vmatprep.subr.mxu0 0.0
          %9480 = vmatpush1.msra.mxu0 0.0
          %9481 = vmatprep.subr.mxu0 0.0
          %9482 = vmatpush1.msra.mxu0 0.0
          %9483 = vmatprep.subr.mxu0 0.0
          %9484 = vmatpush1.msra.mxu0 0.0
          %9485 = vmatprep.subr.mxu0 0.0
          %9486 = vmatpush1.msra.mxu0 0.0
          %9487 = vmatprep.subr.mxu0 0.0
          %9488 = vmatpush1.msra.mxu0 0.0
          %9489 = vmatprep.subr.mxu0 0.0
          %9490 = vmatpush1.msra.mxu0 0.0
          %9491 = vmatprep.subr.mxu0 0.0
          %9492 = vmatpush1.msra.mxu0 0.0
          %9493 = vmatprep.subr.mxu0 0.0
          %9494 = vmatpush1.msra.mxu0 0.0
          %9495 = vmatprep.subr.mxu0 0.0
          %9496 = vmatpush1.msra.mxu0 0.0
          %9497 = vmatprep.subr.mxu0 0.0
          %9498 = vmatpush1.msra.mxu0 0.0
          %9499 = vmatprep.subr.mxu0 0.0
          %9500 = vmatpush1.msra.mxu0 0.0
          %9501 = vmatprep.subr.mxu0 0.0
          %9502 = vmatpush1.msra.mxu0 0.0
          %9503 = vmatprep.subr.mxu0 0.0
          %9504 = vmatpush1.msra.mxu0 0.0
          %9505 = vmatprep.subr.mxu0 0.0
          %9506 = vmatpush1.msra.mxu0 0.0
          %9507 = vmatprep.subr.mxu0 0.0
          %9508 = vmatpush1.msra.mxu0 0.0
          %9509 = vmatprep.subr.mxu0 0.0
          %9510 = vmatpush1.msra.mxu0 0.0
          %9511 = vmatprep.subr.mxu0 0.0
          %9512 = vmatpush1.msra.mxu0 0.0
          %9513 = vmatprep.subr.mxu0 0.0
          %9514 = vmatpush1.msra.mxu0 0.0
          %9515 = vmatprep.subr.mxu0 0.0
          %9516 = vmatpush1.msra.mxu0 0.0
          %9517 = vmatprep.subr.mxu0 0.0
          %9518 = vmatpush1.msra.mxu0 0.0
          %9519 = vmatprep.subr.mxu0 0.0
          %9520 = vmatpush1.msra.mxu0 0.0
          %9521 = vmatprep.mubr.f32.mxu0 0.0
          %9522 = vmatmul.mubr.f32.gmra.mrb[0].mxu0 %v9378
          %v9523 = vpop.f32.mrb[0].mxu0
          %v9524 = vadd.f32 0.0, %v9523
          %v9525 = vpop.f32.mrb[0].mxu0
          %9526 = vdwg.mxu0
          %v9528 = vsel %vm9380, %v9371, 0
          %9530 = vmatprep.subr.mxu0 0.0
          %9531 = vmatpush1.msra.mxu0 %v9370
          %9532 = vmatprep.subr.mxu0 0.0
          %9533 = vmatpush1.msra.mxu0 %v9528
          %9534 = vmatprep.subr.mxu0 0.0
          %9535 = vmatpush1.msra.mxu0 0.0
          %9536 = vmatprep.subr.mxu0 0.0
          %9537 = vmatpush1.msra.mxu0 0.0
          %9538 = vmatprep.subr.mxu0 0.0
          %9539 = vmatpush1.msra.mxu0 0.0
          %9540 = vmatprep.subr.mxu0 0.0
          %9541 = vmatpush1.msra.mxu0 0.0
          %9542 = vmatprep.subr.mxu0 0.0
          %9543 = vmatpush1.msra.mxu0 0.0
          %9544 = vmatprep.subr.mxu0 0.0
          %9545 = vmatpush1.msra.mxu0 0.0
          %9546 = vmatprep.subr.mxu0 0.0
          %9547 = vmatpush1.msra.mxu0 0.0
          %9548 = vmatprep.subr.mxu0 0.0
          %9549 = vmatpush1.msra.mxu0 0.0
          %9550 = vmatprep.subr.mxu0 0.0
          %9551 = vmatpush1.msra.mxu0 0.0
          %9552 = vmatprep.subr.mxu0 0.0
          %9553 = vmatpush1.msra.mxu0 0.0
          %9554 = vmatprep.subr.mxu0 0.0
          %9555 = vmatpush1.msra.mxu0 0.0
          %9556 = vmatprep.subr.mxu0 0.0
          %9557 = vmatpush1.msra.mxu0 0.0
          %9558 = vmatprep.subr.mxu0 0.0
          %9559 = vmatpush1.msra.mxu0 0.0
          %9560 = vmatprep.subr.mxu0 0.0
          %9561 = vmatpush1.msra.mxu0 0.0
          %9562 = vmatprep.subr.mxu0 0.0
          %9563 = vmatpush1.msra.mxu0 0.0
          %9564 = vmatprep.subr.mxu0 0.0
          %9565 = vmatpush1.msra.mxu0 0.0
          %9566 = vmatprep.subr.mxu0 0.0
          %9567 = vmatpush1.msra.mxu0 0.0
          %9568 = vmatprep.subr.mxu0 0.0
          %9569 = vmatpush1.msra.mxu0 0.0
          %9570 = vmatprep.subr.mxu0 0.0
          %9571 = vmatpush1.msra.mxu0 0.0
          %9572 = vmatprep.subr.mxu0 0.0
          %9573 = vmatpush1.msra.mxu0 0.0
          %9574 = vmatprep.subr.mxu0 0.0
          %9575 = vmatpush1.msra.mxu0 0.0
          %9576 = vmatprep.subr.mxu0 0.0
          %9577 = vmatpush1.msra.mxu0 0.0
          %9578 = vmatprep.subr.mxu0 0.0
          %9579 = vmatpush1.msra.mxu0 0.0
          %9580 = vmatprep.subr.mxu0 0.0
          %9581 = vmatpush1.msra.mxu0 0.0
          %9582 = vmatprep.subr.mxu0 0.0
          %9583 = vmatpush1.msra.mxu0 0.0
          %9584 = vmatprep.subr.mxu0 0.0
          %9585 = vmatpush1.msra.mxu0 0.0
          %9586 = vmatprep.subr.mxu0 0.0
          %9587 = vmatpush1.msra.mxu0 0.0
          %9588 = vmatprep.subr.mxu0 0.0
          %9589 = vmatpush1.msra.mxu0 0.0
          %9590 = vmatprep.subr.mxu0 0.0
          %9591 = vmatpush1.msra.mxu0 0.0
          %9592 = vmatprep.subr.mxu0 0.0
          %9593 = vmatpush1.msra.mxu0 0.0
          %9594 = vmatprep.mubr.f32.mxu0 0.0
          %9595 = vmatmul.mubr.f32.gmra.mrb[0].mxu0 %v9378
          %v9596 = vpop.f32.mrb[0].mxu0
          %v9597 = vadd.f32 0.0, %v9596
          %v9598 = vpop.f32.mrb[0].mxu0
          %9599 = vdwg.mxu0
          %v9601 = vsel %vm9380, %v9373, 0
          %9603 = vmatprep.subr.mxu0 0.0
          %9604 = vmatpush1.msra.mxu0 %v9372
          %9605 = vmatprep.subr.mxu0 0.0
          %9606 = vmatpush1.msra.mxu0 %v9601
          %9607 = vmatprep.subr.mxu0 0.0
          %9608 = vmatpush1.msra.mxu0 0.0
          %9609 = vmatprep.subr.mxu0 0.0
          %9610 = vmatpush1.msra.mxu0 0.0
          %9611 = vmatprep.subr.mxu0 0.0
          %9612 = vmatpush1.msra.mxu0 0.0
          %9613 = vmatprep.subr.mxu0 0.0
          %9614 = vmatpush1.msra.mxu0 0.0
          %9615 = vmatprep.subr.mxu0 0.0
          %9616 = vmatpush1.msra.mxu0 0.0
          %9617 = vmatprep.subr.mxu0 0.0
          %9618 = vmatpush1.msra.mxu0 0.0
          %9619 = vmatprep.subr.mxu0 0.0
          %9620 = vmatpush1.msra.mxu0 0.0
          %9621 = vmatprep.subr.mxu0 0.0
          %9622 = vmatpush1.msra.mxu0 0.0
          %9623 = vmatprep.subr.mxu0 0.0
          %9624 = vmatpush1.msra.mxu0 0.0
          %9625 = vmatprep.subr.mxu0 0.0
          %9626 = vmatpush1.msra.mxu0 0.0
          %9627 = vmatprep.subr.mxu0 0.0
          %9628 = vmatpush1.msra.mxu0 0.0
          %9629 = vmatprep.subr.mxu0 0.0
          %9630 = vmatpush1.msra.mxu0 0.0
          %9631 = vmatprep.subr.mxu0 0.0
          %9632 = vmatpush1.msra.mxu0 0.0
          %9633 = vmatprep.subr.mxu0 0.0
          %9634 = vmatpush1.msra.mxu0 0.0
          %9635 = vmatprep.subr.mxu0 0.0
          %9636 = vmatpush1.msra.mxu0 0.0
          %9637 = vmatprep.subr.mxu0 0.0
          %9638 = vmatpush1.msra.mxu0 0.0
          %9639 = vmatprep.subr.mxu0 0.0
          %9640 = vmatpush1.msra.mxu0 0.0
          %9641 = vmatprep.subr.mxu0 0.0
          %9642 = vmatpush1.msra.mxu0 0.0
          %9643 = vmatprep.subr.mxu0 0.0
          %9644 = vmatpush1.msra.mxu0 0.0
          %9645 = vmatprep.subr.mxu0 0.0
          %9646 = vmatpush1.msra.mxu0 0.0
          %9647 = vmatprep.subr.mxu0 0.0
          %9648 = vmatpush1.msra.mxu0 0.0
          %9649 = vmatprep.subr.mxu0 0.0
          %9650 = vmatpush1.msra.mxu0 0.0
          %9651 = vmatprep.subr.mxu0 0.0
          %9652 = vmatpush1.msra.mxu0 0.0
          %9653 = vmatprep.subr.mxu0 0.0
          %9654 = vmatpush1.msra.mxu0 0.0
          %9655 = vmatprep.subr.mxu0 0.0
          %9656 = vmatpush1.msra.mxu0 0.0
          %9657 = vmatprep.subr.mxu0 0.0
          %9658 = vmatpush1.msra.mxu0 0.0
          %9659 = vmatprep.subr.mxu0 0.0
          %9660 = vmatpush1.msra.mxu0 0.0
          %9661 = vmatprep.subr.mxu0 0.0
          %9662 = vmatpush1.msra.mxu0 0.0
          %9663 = vmatprep.subr.mxu0 0.0
          %9664 = vmatpush1.msra.mxu0 0.0
          %9665 = vmatprep.subr.mxu0 0.0
          %9666 = vmatpush1.msra.mxu0 0.0
          %9667 = vmatprep.mubr.f32.mxu0 0.0
          %9668 = vmatmul.mubr.f32.gmra.mrb[0].mxu0 %v9378
          %v9669 = vpop.f32.mrb[0].mxu0
          %v9670 = vadd.f32 0.0, %v9669
          %v9671 = vpop.f32.mrb[0].mxu0
          %9672 = vdwg.mxu0
          %v9674 = vsel %vm9380, %v9375, 0
          %9676 = vmatprep.subr.mxu0 0.0
          %9677 = vmatpush1.msra.mxu0 %v9374
          %9678 = vmatprep.subr.mxu0 0.0
          %9679 = vmatpush1.msra.mxu0 %v9674
          %9680 = vmatprep.subr.mxu0 0.0
          %9681 = vmatpush1.msra.mxu0 0.0
          %9682 = vmatprep.subr.mxu0 0.0
          %9683 = vmatpush1.msra.mxu0 0.0
          %9684 = vmatprep.subr.mxu0 0.0
          %9685 = vmatpush1.msra.mxu0 0.0
          %9686 = vmatprep.subr.mxu0 0.0
          %9687 = vmatpush1.msra.mxu0 0.0
          %9688 = vmatprep.subr.mxu0 0.0
          %9689 = vmatpush1.msra.mxu0 0.0
          %9690 = vmatprep.subr.mxu0 0.0
          %9691 = vmatpush1.msra.mxu0 0.0
          %9692 = vmatprep.subr.mxu0 0.0
          %9693 = vmatpush1.msra.mxu0 0.0
          %9694 = vmatprep.subr.mxu0 0.0
          %9695 = vmatpush1.msra.mxu0 0.0
          %9696 = vmatprep.subr.mxu0 0.0
          %9697 = vmatpush1.msra.mxu0 0.0
          %9698 = vmatprep.subr.mxu0 0.0
          %9699 = vmatpush1.msra.mxu0 0.0
          %9700 = vmatprep.subr.mxu0 0.0
          %9701 = vmatpush1.msra.mxu0 0.0
          %9702 = vmatprep.subr.mxu0 0.0
          %9703 = vmatpush1.msra.mxu0 0.0
          %9704 = vmatprep.subr.mxu0 0.0
          %9705 = vmatpush1.msra.mxu0 0.0
          %9706 = vmatprep.subr.mxu0 0.0
          %9707 = vmatpush1.msra.mxu0 0.0
          %9708 = vmatprep.subr.mxu0 0.0
          %9709 = vmatpush1.msra.mxu0 0.0
          %9710 = vmatprep.subr.mxu0 0.0
          %9711 = vmatpush1.msra.mxu0 0.0
          %9712 = vmatprep.subr.mxu0 0.0
          %9713 = vmatpush1.msra.mxu0 0.0
          %9714 = vmatprep.subr.mxu0 0.0
          %9715 = vmatpush1.msra.mxu0 0.0
          %9716 = vmatprep.subr.mxu0 0.0
          %9717 = vmatpush1.msra.mxu0 0.0
          %9718 = vmatprep.subr.mxu0 0.0
          %9719 = vmatpush1.msra.mxu0 0.0
          %9720 = vmatprep.subr.mxu0 0.0
          %9721 = vmatpush1.msra.mxu0 0.0
          %9722 = vmatprep.subr.mxu0 0.0
          %9723 = vmatpush1.msra.mxu0 0.0
          %9724 = vmatprep.subr.mxu0 0.0
          %9725 = vmatpush1.msra.mxu0 0.0
          %9726 = vmatprep.subr.mxu0 0.0
          %9727 = vmatpush1.msra.mxu0 0.0
          %9728 = vmatprep.subr.mxu0 0.0
          %9729 = vmatpush1.msra.mxu0 0.0
          %9730 = vmatprep.subr.mxu0 0.0
          %9731 = vmatpush1.msra.mxu0 0.0
          %9732 = vmatprep.subr.mxu0 0.0
          %9733 = vmatpush1.msra.mxu0 0.0
          %9734 = vmatprep.subr.mxu0 0.0
          %9735 = vmatpush1.msra.mxu0 0.0
          %9736 = vmatprep.subr.mxu0 0.0
          %9737 = vmatpush1.msra.mxu0 0.0
          %9738 = vmatprep.subr.mxu0 0.0
          %9739 = vmatpush1.msra.mxu0 0.0
          %9740 = vmatprep.mubr.f32.mxu0 0.0
          %9741 = vmatmul.mubr.f32.gmra.mrb[0].mxu0 %v9378
          %v9742 = vpop.f32.mrb[0].mxu0
          %v9743 = vadd.f32 0.0, %v9742
          %v9744 = vpop.f32.mrb[0].mxu0
          %9745 = vdwg.mxu0
          %v9747 = vsel %vm9376, %v9451, 0
          %v9750 = vsel %vm9376, %v9524, 0
          %v9753 = vsel %vm9376, %v9597, 0
          %v9756 = vsel %vm9376, %v9670, 0
          %v9759 = vsel %vm9376, %v9743, 0
          %v9762 = vsel %vm9380, %v9369, 0
          %9764 = vmatprep.subr.mxu0 0.0
          %9765 = vmatpush1.msra.mxu0 %v9368
          %9766 = vmatprep.subr.mxu0 0.0
          %9767 = vmatpush1.msra.mxu0 %v9762
          %9768 = vmatprep.subr.mxu0 0.0
          %9769 = vmatpush1.msra.mxu0 0.0
          %9770 = vmatprep.subr.mxu0 0.0
          %9771 = vmatpush1.msra.mxu0 0.0
          %9772 = vmatprep.subr.mxu0 0.0
          %9773 = vmatpush1.msra.mxu0 0.0
          %9774 = vmatprep.subr.mxu0 0.0
          %9775 = vmatpush1.msra.mxu0 0.0
          %9776 = vmatprep.subr.mxu0 0.0
          %9777 = vmatpush1.msra.mxu0 0.0
          %9778 = vmatprep.subr.mxu0 0.0
          %9779 = vmatpush1.msra.mxu0 0.0
          %9780 = vmatprep.subr.mxu0 0.0
          %9781 = vmatpush1.msra.mxu0 0.0
          %9782 = vmatprep.subr.mxu0 0.0
          %9783 = vmatpush1.msra.mxu0 0.0
          %9784 = vmatprep.subr.mxu0 0.0
          %9785 = vmatpush1.msra.mxu0 0.0
          %9786 = vmatprep.subr.mxu0 0.0
          %9787 = vmatpush1.msra.mxu0 0.0
          %9788 = vmatprep.subr.mxu0 0.0
          %9789 = vmatpush1.msra.mxu0 0.0
          %9790 = vmatprep.subr.mxu0 0.0
          %9791 = vmatpush1.msra.mxu0 0.0
          %9792 = vmatprep.subr.mxu0 0.0
          %9793 = vmatpush1.msra.mxu0 0.0
          %9794 = vmatprep.subr.mxu0 0.0
          %9795 = vmatpush1.msra.mxu0 0.0
          %9796 = vmatprep.subr.mxu0 0.0
          %9797 = vmatpush1.msra.mxu0 0.0
          %9798 = vmatprep.subr.mxu0 0.0
          %9799 = vmatpush1.msra.mxu0 0.0
          %9800 = vmatprep.subr.mxu0 0.0
          %9801 = vmatpush1.msra.mxu0 0.0
          %9802 = vmatprep.subr.mxu0 0.0
          %9803 = vmatpush1.msra.mxu0 0.0
          %9804 = vmatprep.subr.mxu0 0.0
          %9805 = vmatpush1.msra.mxu0 0.0
          %9806 = vmatprep.subr.mxu0 0.0
          %9807 = vmatpush1.msra.mxu0 0.0
          %9808 = vmatprep.subr.mxu0 0.0
          %9809 = vmatpush1.msra.mxu0 0.0
          %9810 = vmatprep.subr.mxu0 0.0
          %9811 = vmatpush1.msra.mxu0 0.0
          %9812 = vmatprep.subr.mxu0 0.0
          %9813 = vmatpush1.msra.mxu0 0.0
          %9814 = vmatprep.subr.mxu0 0.0
          %9815 = vmatpush1.msra.mxu0 0.0
          %9816 = vmatprep.subr.mxu0 0.0
          %9817 = vmatpush1.msra.mxu0 0.0
          %9818 = vmatprep.subr.mxu0 0.0
          %9819 = vmatpush1.msra.mxu0 0.0
          %9820 = vmatprep.subr.mxu0 0.0
          %9821 = vmatpush1.msra.mxu0 0.0
          %9822 = vmatprep.subr.mxu0 0.0
          %9823 = vmatpush1.msra.mxu0 0.0
          %9824 = vmatprep.subr.mxu0 0.0
          %9825 = vmatpush1.msra.mxu0 0.0
          %9826 = vmatprep.subr.mxu0 0.0
          %9827 = vmatpush1.msra.mxu0 0.0
          %9828 = vmatprep.mubr.f32.mxu0 0.0
          %9829 = vmatmul.mubr.f32.gmra.mrb[0].mxu0 %v9747
          %v9830 = vpop.f32.mrb[0].mxu0
          %v9831 = vadd.f32 0.0, %v9830
          %v9832 = vpop.f32.mrb[0].mxu0
          %9833 = vmatprep.mubr.f32.mxu0 0.0
          %9834 = vmatmul.mubr.f32.gmra.mrb[0].mxu0 %v9750
          %v9835 = vpop.f32.mrb[0].mxu0
          %v9836 = vadd.f32 0.0, %v9835
          %v9837 = vpop.f32.mrb[0].mxu0
          %9838 = vmatprep.mubr.f32.mxu0 0.0
          %9839 = vmatmul.mubr.f32.gmra.mrb[0].mxu0 %v9753
          %v9840 = vpop.f32.mrb[0].mxu0
          %v9841 = vadd.f32 0.0, %v9840
          %v9842 = vpop.f32.mrb[0].mxu0
          %9843 = vmatprep.mubr.f32.mxu0 0.0
          %9844 = vmatmul.mubr.f32.gmra.mrb[0].mxu0 %v9756
          %v9845 = vpop.f32.mrb[0].mxu0
          %v9846 = vadd.f32 0.0, %v9845
          %v9847 = vpop.f32.mrb[0].mxu0
          %9848 = vmatprep.mubr.f32.mxu0 0.0
          %9849 = vmatmul.mubr.f32.gmra.mrb[0].mxu0 %v9759
          %v9850 = vpop.f32.mrb[0].mxu0
          %v9851 = vadd.f32 0.0, %v9850
          %v9852 = vpop.f32.mrb[0].mxu0
          %9853 = vdwg.mxu0
          %v9854 = vmul.f32 %v9831, %v9831
          %v9855 = vmul.f32 %v9836, %v9836
          %v9856 = vmul.f32 %v9831, %v9836
          %v9857 = vmul.f32 %v9856, 2.0
          %v9858 = vadd.f32 %v9857, 6.5025
          %v9859 = vadd.f32 %v9854, %v9855
          %v9860 = vadd.f32 %v9859, 6.5025
          %v9861 = vsub.f32 %v9851, %v9856
          %v9862 = vmul.f32 %v9861, 2.0
          %v9863 = vadd.f32 %v9862, 58.5225
          %v9864 = vsub.f32 %v9841, %v9854
          %v9865 = vsub.f32 %v9846, %v9855
          %v9866 = vadd.f32 %v9864, %v9865
          %v9867 = vadd.f32 %v9866, 58.5225
          %v9868 = vrcp.pop %v9867
          %v9869 = vmul.f32 %v9863, %v9868
          %v9870 = vrcp.pop %v9860
          %v9871 = vmul.f32 %v9858, %v9870
          %v9872 = vmul.f32 %v9871, %v9869
          %vm9873 = vcmask 9216
          %v9874 = vsel %vm9873, %v9872, 0.0
          %9875 = vadd.xlane.f32.xlu0 %v9874
          %v9876 = vpop.xlane.xlu0 %9875
          %v9877 = vrot.slane %v9876, 4
          %v9878 = vadd.f32 %v9876, %v9877
          %v9879 = vrot.slane %v9878, 2
          %v9880 = vadd.f32 %v9878, %v9879
          %v9881 = vrot.slane %v9880, 1
          %v9882 = vadd.f32 %v9880, %v9881
          %s9883 = vtos %v9882
          %s9884 = smul.f32 %s9883, 0.25
          %v9885 = vsel %vm9873, %v9869, 0.0
          %9886 = vadd.xlane.f32.xlu0 %v9885
          %v9887 = vpop.xlane.xlu0 %9886
          %v9888 = vrot.slane %v9887, 4
          %v9889 = vadd.f32 %v9887, %v9888
          %v9890 = vrot.slane %v9889, 2
          %v9891 = vadd.f32 %v9889, %v9890
          %v9892 = vrot.slane %v9891, 1
          %v9893 = vadd.f32 %v9891, %v9892
          %s9894 = vtos %v9893
          %s9895 = smul.f32 %s9894, 0.25
          %vm9896 = vcmp.eq.s32.totalorder %v954, 8
          %vm9897 = vcmp.eq.s32.totalorder %v955, 8
          %vm9898 = vmand %vm9896, %vm4526
          %vm9899 = vmand %vm9897, %vm4526
          %v9900 = vstv %s9884
          %v9901 = vsel %vm9898, %v9900, %v9042
          %v9902 = vsel %vm9899, %v9900, %v9043
          %vm9903 = vcmp.eq.s32.totalorder %v954, 9
          %vm9904 = vcmp.eq.s32.totalorder %v955, 9
          %vm9905 = vmand %vm9903, %vm4526
          %vm9906 = vmand %vm9904, %vm4526
          %v9907 = vstv %s9895
          %v9908 = vsel %vm9905, %v9907, %v9901
          %v9909 = vsel %vm9906, %v9907, %v9902
        $region185: #{_forward_impl.1} parent=99 // loop_footer
          %s963 = sadd.s32 1, %s959
        $region186: #{_forward_impl.1} parent=99 // loop_footer_branch
          %958 = sbr.rel target = $region182
        $region187: #{_forward_impl.1} parent=99 // loop_exit
          _
        %9910 = vst [vmem:[%s952] sm:$0xff] %v964
        %9911 = vst [vmem:[%s952 + $0x8] sm:$0xff] %v965
        %p9912 = scmp.lt.s32.totalorder %s46, 1
        %s9913 = scalar_select %p9912, %s46, 1
        %s9914 = smul.addr %s9913, 2
        %s9915 = smul.addr %s9914, 8
        %s9916 = scalar_lea.vmem %s20, %s9915
        // Predicated region
        $region188: #{_forward_impl.1} parent=99 // pred_check
          %p9917 = pneg %p494
        $region189: #{_forward_impl.1} parent=99 // pred_check_branch
          %9919 = sbr.rel (%p9917) target = $region191
        $region190: #{_forward_impl.1} parent=99 // pred_region
          _
        $region191: #{_forward_impl.1} parent=99 // pred_fallthru
          _
      $region100: #{_forward_impl.1} parent=5 // pred_fallthru
        _
      %p9920 = scmp.le.s32.totalorder 2, %s41
      // Predicated region
      $region192: #{_forward_impl.1} parent=5 // pred_check
        %p9921 = pneg %p9920
      $region193: #{_forward_impl.1} parent=5 // pred_check_branch
        %9923 = sbr.rel (%p9921) target = $region195
      $region194: #{_forward_impl.1} parent=5 // pred_region
        %s9924 = ssub.s32 %s41, 2
        // Predicated region
        $region196: #{_forward_impl.1} parent=194 // pred_check
          %p9925 = pneg %p500
        $region197: #{_forward_impl.1} parent=194 // pred_check_branch
          %9927 = sbr.rel (%p9925) target = $region199
        $region198: #{_forward_impl.1} parent=194 // pred_region
          %p9928 = scmp.lt.s32.totalorder %s47, 1
          %s9929 = scalar_select %p9928, %s47, 1
          %s9930 = smul.addr %s9929, 2
          %s9931 = smul.addr %s9930, 8
          %s9932 = scalar_lea.vmem %s20, %s9931
        $region199: #{_forward_impl.1} parent=194 // pred_fallthru
          _
      $region195: #{_forward_impl.1} parent=5 // pred_fallthru
        _
    $region6: #{_forward_impl.1} parent=1 // loop_footer
      %s45 = sadd.s32 1, %s41
    $region7: #{_forward_impl.1} parent=1 // loop_footer_branch
      %40 = sbr.rel target = $region3
    $region8: #{_forward_impl.1} parent=1 // loop_exit
      _
    %9933 = vsyncpa [#allocation3], 1
    %s9934 = scalar_lea.sflag [#allocation3], 1
    %9935 = vsyncpa %s9934, 1
    %9936 = vsyncpa [#allocation5], 1
    %s9937 = scalar_lea.sflag [#allocation5], 1
    %9938 = vsyncpa %s9937, 1
    %9939 = vsyncpa [#allocation8], 1
    %9940 = vsyncpa [#allocation11], 1
    %9941 = vsyncpa [#allocation14], 1
    %9942 = vsyncpa [#allocation17], 1
    %9943 = vsyncpa [#allocation20], 1
    %9944 = vsyncpa [#allocation23], 1
    %9945 = vsyncpa [#allocation26], 1
    %9946 = vsyncpa [#allocation29], 1
    %9947 = vsyncpa [#allocation32], 1

</llo_original>
